<compile_context>
chip_gen: v5e
topology: v5e:2x2
jax: 0.10.0
libtpu: 0.0.40
codegen_flags: <defaults>
</compile_context>

<pallas_src>
import jax
import jax.numpy as jnp
from jax import lax
from jax.experimental import pallas as pl
from jax.experimental.pallas import tpu as pltpu

EPS = 1e-5  # torch BatchNorm default

_COMPILER_PARAMS = pltpu.CompilerParams(vmem_limit_bytes=32 * 1024 * 1024)


def _vmem_specs(n):
    return [pl.BlockSpec(memory_space=pltpu.MemorySpace.VMEM) for _ in range(n)]


def _batchnorm_apply(h, gamma, beta):
    """Training-mode batch-norm over axis 0 as a single scale/shift FMA."""
    mean = jnp.mean(h, axis=0, keepdims=True)
    var = jnp.mean(jnp.square(h - mean), axis=0, keepdims=True)
    scale = gamma * lax.rsqrt(var + EPS)
    shift = beta - mean * scale
    return h * scale + shift


# ---------------------------------------------------------------------------
# Fused conv stage kernel: GEMM + bias + ReLU + 2x2 max-pool + BatchNorm2d
# ---------------------------------------------------------------------------
def _conv_stage_kernel(p_ref, w_ref, b_ref, g_ref, be_ref, o_ref):
    # p_ref : (4*R, K) pool-position-major im2col patches (rows = (pp, n, ohp, owp))
    # w_ref : (K, OC)  conv weight, rows ordered (ki, kj, ic)
    # b/g/be: (1, OC)
    # o_ref : (R, OC)  pooled + batch-normalized activations, rows = (n, ohp, owp)
    R = o_ref.shape[0]
    y = jnp.dot(p_ref[...], w_ref[...], preferred_element_type=jnp.float32)
    y = jnp.maximum(y + b_ref[...], 0.0)                       # bias + ReLU
    # 2x2/2 max-pool == elementwise max over the 4 pool-position row blocks.
    pooled = jnp.maximum(jnp.maximum(y[0 * R:1 * R], y[1 * R:2 * R]),
                         jnp.maximum(y[2 * R:3 * R], y[3 * R:4 * R]))
    o_ref[...] = _batchnorm_apply(pooled, g_ref[...], be_ref[...])


# ---------------------------------------------------------------------------
# Fused FC head kernel: fc1..fc4 (+ReLU+BN) and fc5, all in one pallas_call
# ---------------------------------------------------------------------------
def _fc_stack_kernel(x_ref,
                     w1_ref, b1_ref, g1_ref, be1_ref,
                     w2_ref, b2_ref, g2_ref, be2_ref,
                     w3_ref, b3_ref, g3_ref, be3_ref,
                     w4_ref, b4_ref, g4_ref, be4_ref,
                     w5_ref, b5_ref, o_ref):
    h = x_ref[...]
    for w_r, b_r, g_r, be_r in ((w1_ref, b1_ref, g1_ref, be1_ref),
                                (w2_ref, b2_ref, g2_ref, be2_ref),
                                (w3_ref, b3_ref, g3_ref, be3_ref),
                                (w4_ref, b4_ref, g4_ref, be4_ref)):
        h = jnp.dot(h, w_r[...], preferred_element_type=jnp.float32)
        h = jnp.maximum(h + b_r[...], 0.0)
        h = _batchnorm_apply(h, g_r[...], be_r[...])
    o_ref[...] = jnp.dot(h, w5_ref[...],
                         preferred_element_type=jnp.float32) + b5_ref[...]


# ---------------------------------------------------------------------------
# Host-side patch construction (pure data-movement glue feeding the kernel)
# ---------------------------------------------------------------------------
def _pool_ordered_patches(x_nhwc, kh, kw):
    """im2col patches for a VALID stride-1 conv followed by 2x2/2 max-pool.

    Rows are ordered (pool_pos, n, ohp, owp) so the kernel pools with an
    elementwise max over four contiguous, 8-aligned row blocks.  Columns are
    ordered (ki, kj, ic), matching the torch (OC, IC, KH, KW) weight flatten.
    """
    n, h, w, c = x_nhwc.shape
    oh, ow = h - kh + 1, w - kw + 1
    ohp, owp = oh // 2, ow // 2
    groups = []
    for ph in range(2):
        for pw in range(2):
            taps = [x_nhwc[:, ph + ki: ph + ki + 2 * ohp: 2,
                           pw + kj: pw + kj + 2 * owp: 2, :]
                    for ki in range(kh) for kj in range(kw)]
            groups.append(jnp.concatenate(taps, axis=-1))      # (n, ohp, owp, K)
    pat = jnp.stack(groups, axis=0)                            # (4, n, ohp, owp, K)
    return pat.reshape(4 * n * ohp * owp, kh * kw * c), ohp, owp


def conv_pool_bn_stage(x_nhwc, w_oihw, bias, gamma, beta):
    """One fused pallas_call: conv(valid,s=1)+bias+ReLU+maxpool(2,2)+BatchNorm2d."""
    n = x_nhwc.shape[0]
    oc, ic, kh, kw = w_oihw.shape
    w2d = jnp.transpose(w_oihw, (2, 3, 1, 0)).reshape(kh * kw * ic, oc)
    patches, ohp, owp = _pool_ordered_patches(x_nhwc, kh, kw)
    r = n * ohp * owp
    out = pl.pallas_call(
        _conv_stage_kernel,
        out_shape=jax.ShapeDtypeStruct((r, oc), jnp.float32),
        in_specs=_vmem_specs(5),
        out_specs=pl.BlockSpec(memory_space=pltpu.MemorySpace.VMEM),
        compiler_params=_COMPILER_PARAMS,
    )(patches, w2d, bias.reshape(1, oc), gamma.reshape(1, oc),
      beta.reshape(1, oc))
    return out.reshape(n, ohp, owp, oc)


def fc_head(x2d, params, c_last, h_sp, w_sp):
    """One fused pallas_call for fc1..fc5 (+ ReLUs and BatchNorm1d layers)."""
    n = x2d.shape[0]
    # Fold the torch.flatten(NCHW) permutation into fc1's weight rows (-> h,w,c).
    w1 = jnp.transpose(params["fc1_w"])                        # (in_nchw, out)
    w1 = (w1.reshape(c_last, h_sp, w_sp, -1)
            .transpose(1, 2, 0, 3)
            .reshape(h_sp * w_sp * c_last, -1))

    def wt(name):
        return jnp.transpose(params[name + "_w"])

    def vec(name, suffix):
        v = params[name + suffix]
        return v.reshape(1, v.shape[0])

    args = [x2d,
            w1,        vec("fc1", "_b"), vec("fc1", "_bn_g"), vec("fc1", "_bn_b"),
            wt("fc2"), vec("fc2", "_b"), vec("fc2", "_bn_g"), vec("fc2", "_bn_b"),
            wt("fc3"), vec("fc3", "_b"), vec("fc3", "_bn_g"), vec("fc3", "_bn_b"),
            wt("fc4"), vec("fc4", "_b"), vec("fc4", "_bn_g"), vec("fc4", "_bn_b"),
            wt("fc5"), vec("fc5", "_b")]
    return pl.pallas_call(
        _fc_stack_kernel,
        out_shape=jax.ShapeDtypeStruct((n, params["fc5_w"].shape[0]), jnp.float32),
        in_specs=_vmem_specs(len(args)),
        out_specs=pl.BlockSpec(memory_space=pltpu.MemorySpace.VMEM),
        compiler_params=_COMPILER_PARAMS,
    )(*args)


# ---------------------------------------------------------------------------
# Parameters (deterministic synthetic init, torch-like uniform(+-1/sqrt(fan_in)))
# ---------------------------------------------------------------------------
def init_params(key):
    params = {}

    def uni(k, shape, fan_in):
        bound = 1.0 / jnp.sqrt(float(fan_in))
        return jax.random.uniform(k, shape, jnp.float32, -bound, bound)

    conv_cfg = [("conv1", 3, 6, 5), ("conv2", 6, 16, 5), ("conv3", 16, 32, 5)]
    fc_cfg = [("fc1", 512, 512), ("fc2", 512, 128), ("fc3", 128, 64),
              ("fc4", 64, 32), ("fc5", 32, 2)]

    keys = jax.random.split(key, 2 * (len(conv_cfg) + len(fc_cfg)))
    ki = 0
    for name, ic, oc, k in conv_cfg:
        fan_in = ic * k * k
        params[name + "_w"] = uni(keys[ki], (oc, ic, k, k), fan_in); ki += 1
        params[name + "_b"] = uni(keys[ki], (oc,), fan_in); ki += 1
        params[name + "_bn_g"] = jnp.ones((oc,), jnp.float32)
        params[name + "_bn_b"] = jnp.zeros((oc,), jnp.float32)
    for name, fin, fout in fc_cfg:
        params[name + "_w"] = uni(keys[ki], (fout, fin), fin); ki += 1
        params[name + "_b"] = uni(keys[ki], (fout,), fin); ki += 1
        if name != "fc5":
            params[name + "_bn_g"] = jnp.ones((fout,), jnp.float32)
            params[name + "_bn_b"] = jnp.zeros((fout,), jnp.float32)
    return params


# ---------------------------------------------------------------------------
# Forward pass (mirrors CNN_Network.forward)
# ---------------------------------------------------------------------------
@jax.jit
def forward(params, x_nchw):
    x = jnp.transpose(x_nchw.astype(jnp.float32), (0, 2, 3, 1))  # NCHW -> NHWC
    n = x.shape[0]

    # x = cv_bn_i(pool(relu(conv_i(x)))), one fused pallas_call per stage
    for name in ("conv1", "conv2", "conv3"):
        x = conv_pool_bn_stage(x, params[name + "_w"], params[name + "_b"],
                               params[name + "_bn_g"], params[name + "_bn_b"])

    # NHWC flatten; the NCHW flatten permutation is folded into fc1's weight.
    _, h_sp, w_sp, c_last = x.shape
    xf = x.reshape(n, -1)                                        # (n, 512)

    # Whole FC head (fc1..fc5 with ReLUs and BNs) in one fused pallas_call.
    return fc_head(xf, params, c_last, h_sp, w_sp)               # (n, 2)


if __name__ == "__main__":
    key = jax.random.PRNGKey(0)
    k_params, k_x = jax.random.split(key)
    params = init_params(k_params)

    # Input spatial size implied by the module: 60x60x3 -> 32*4*4 = 512 features.
    x = jax.random.normal(k_x, (2, 3, 60, 60), dtype=jnp.float32)

    out = forward(params, x)
    out = jax.block_until_ready(out)
    assert out.shape == (2, 2) and out.dtype == jnp.float32
    print("KERNEL_OK")
</pallas_src>

<mosaic_0001>
module attributes {stable_mosaic.version = 11 : i64} {
  func.func @_conv_stage_kernel(%arg0: memref<6272x75xf32, #tpu.memory_space<vmem>>, %arg1: memref<75x6xf32, #tpu.memory_space<vmem>>, %arg2: memref<1x6xf32, #tpu.memory_space<vmem>>, %arg3: memref<1x6xf32, #tpu.memory_space<vmem>>, %arg4: memref<1x6xf32, #tpu.memory_space<vmem>>, %arg5: memref<1568x6xf32, #tpu.memory_space<vmem>>) attributes {dimension_semantics = [], scalar_prefetch = 0 : i64, scratch_operands = 0 : i64, tpu.core_type = #tpu.core_type<tc>} {
    %c0 = arith.constant 0 : index
    %c0_0 = arith.constant 0 : index
    %0 = vector.load %arg0[%c0, %c0_0] : memref<6272x75xf32, #tpu.memory_space<vmem>>, vector<6272x75xf32>
    %c0_1 = arith.constant 0 : index
    %c0_2 = arith.constant 0 : index
    %1 = vector.load %arg1[%c0_1, %c0_2] : memref<75x6xf32, #tpu.memory_space<vmem>>, vector<75x6xf32>
    %cst = arith.constant dense<0.000000e+00> : vector<6272x6xf32>
    %2 = tpu.matmul %0, %1, %cst {dimension_numbers = #tpu.dot_dimension_numbers<[1], [0], [0], [1], [0, 0, 1, 1], [], []>} : vector<6272x75xf32>, vector<75x6xf32>, vector<6272x6xf32> -> vector<6272x6xf32>
    %c0_3 = arith.constant 0 : index
    %c0_4 = arith.constant 0 : index
    %3 = vector.load %arg2[%c0_3, %c0_4] : memref<1x6xf32, #tpu.memory_space<vmem>>, vector<1x6xf32>
    %4 = vector.broadcast %3 : vector<1x6xf32> to vector<6272x6xf32>
    %5 = arith.addf %2, %4 : vector<6272x6xf32>
    %cst_5 = arith.constant 0.000000e+00 : f32
    %6 = vector.broadcast %cst_5 : f32 to vector<6272x6xf32>
    %7 = arith.maximumf %5, %6 : vector<6272x6xf32>
    %8 = vector.extract_strided_slice %7 {offsets = [0, 0], sizes = [1568, 6], strides = [1, 1]} : vector<6272x6xf32> to vector<1568x6xf32>
    %9 = vector.extract_strided_slice %7 {offsets = [1568, 0], sizes = [1568, 6], strides = [1, 1]} : vector<6272x6xf32> to vector<1568x6xf32>
    %10 = arith.maximumf %8, %9 : vector<1568x6xf32>
    %11 = vector.extract_strided_slice %7 {offsets = [3136, 0], sizes = [1568, 6], strides = [1, 1]} : vector<6272x6xf32> to vector<1568x6xf32>
    %12 = vector.extract_strided_slice %7 {offsets = [4704, 0], sizes = [1568, 6], strides = [1, 1]} : vector<6272x6xf32> to vector<1568x6xf32>
    %13 = arith.maximumf %11, %12 : vector<1568x6xf32>
    %14 = arith.maximumf %10, %13 : vector<1568x6xf32>
    %c0_6 = arith.constant 0 : index
    %c0_7 = arith.constant 0 : index
    %15 = vector.load %arg3[%c0_6, %c0_7] : memref<1x6xf32, #tpu.memory_space<vmem>>, vector<1x6xf32>
    %c0_8 = arith.constant 0 : index
    %c0_9 = arith.constant 0 : index
    %16 = vector.load %arg4[%c0_8, %c0_9] : memref<1x6xf32, #tpu.memory_space<vmem>>, vector<1x6xf32>
    %cst_10 = arith.constant dense<0.000000e+00> : vector<6xf32>
    %17 = vector.multi_reduction <add>, %14, %cst_10 [0] : vector<1568x6xf32> to vector<6xf32>
    %18 = vector.shape_cast %17 : vector<6xf32> to vector<1x6xf32>
    %cst_11 = arith.constant 1.568000e+03 : f32
    %19 = vector.broadcast %cst_11 : f32 to vector<1x6xf32>
    %20 = arith.divf %18, %19 : vector<1x6xf32>
    %21 = vector.broadcast %20 : vector<1x6xf32> to vector<1568x6xf32>
    %22 = arith.subf %14, %21 : vector<1568x6xf32>
    %23 = arith.mulf %22, %22 : vector<1568x6xf32>
    %cst_12 = arith.constant dense<0.000000e+00> : vector<6xf32>
    %24 = vector.multi_reduction <add>, %23, %cst_12 [0] : vector<1568x6xf32> to vector<6xf32>
    %25 = vector.shape_cast %24 : vector<6xf32> to vector<1x6xf32>
    %cst_13 = arith.constant 1.568000e+03 : f32
    %26 = vector.broadcast %cst_13 : f32 to vector<1x6xf32>
    %27 = arith.divf %25, %26 : vector<1x6xf32>
    %cst_14 = arith.constant 9.99999974E-6 : f32
    %28 = vector.broadcast %cst_14 : f32 to vector<1x6xf32>
    %29 = arith.addf %27, %28 : vector<1x6xf32>
    %30 = math.rsqrt %29 : vector<1x6xf32>
    %31 = arith.mulf %15, %30 : vector<1x6xf32>
    %32 = arith.mulf %20, %31 : vector<1x6xf32>
    %33 = arith.subf %16, %32 : vector<1x6xf32>
    %34 = vector.broadcast %31 : vector<1x6xf32> to vector<1568x6xf32>
    %35 = arith.mulf %14, %34 : vector<1568x6xf32>
    %36 = vector.broadcast %33 : vector<1x6xf32> to vector<1568x6xf32>
    %37 = arith.addf %35, %36 : vector<1568x6xf32>
    %c0_15 = arith.constant 0 : index
    %c0_16 = arith.constant 0 : index
    %38 = vector.load %arg5[%c0_15, %c0_16] : memref<1568x6xf32, #tpu.memory_space<vmem>>, vector<1568x6xf32>
    tpu.vector_store %arg5[%c0_15, %c0_16], %37 {strides = array<i32>} : memref<1568x6xf32, #tpu.memory_space<vmem>>, vector<1568x6xf32>,
    return
  }
}

module attributes {stable_mosaic.version = 11 : i64} {
  func.func @_conv_stage_kernel(%arg0: memref<1152x150xf32, #tpu.memory_space<vmem>>, %arg1: memref<150x16xf32, #tpu.memory_space<vmem>>, %arg2: memref<1x16xf32, #tpu.memory_space<vmem>>, %arg3: memref<1x16xf32, #tpu.memory_space<vmem>>, %arg4: memref<1x16xf32, #tpu.memory_space<vmem>>, %arg5: memref<288x16xf32, #tpu.memory_space<vmem>>) attributes {dimension_semantics = [], scalar_prefetch = 0 : i64, scratch_operands = 0 : i64, tpu.core_type = #tpu.core_type<tc>} {
    %c0 = arith.constant 0 : index
    %c0_0 = arith.constant 0 : index
    %0 = vector.load %arg0[%c0, %c0_0] : memref<1152x150xf32, #tpu.memory_space<vmem>>, vector<1152x150xf32>
    %c0_1 = arith.constant 0 : index
    %c0_2 = arith.constant 0 : index
    %1 = vector.load %arg1[%c0_1, %c0_2] : memref<150x16xf32, #tpu.memory_space<vmem>>, vector<150x16xf32>
    %cst = arith.constant dense<0.000000e+00> : vector<1152x16xf32>
    %2 = tpu.matmul %0, %1, %cst {dimension_numbers = #tpu.dot_dimension_numbers<[1], [0], [0], [1], [0, 0, 1, 1], [], []>} : vector<1152x150xf32>, vector<150x16xf32>, vector<1152x16xf32> -> vector<1152x16xf32>
    %c0_3 = arith.constant 0 : index
    %c0_4 = arith.constant 0 : index
    %3 = vector.load %arg2[%c0_3, %c0_4] : memref<1x16xf32, #tpu.memory_space<vmem>>, vector<1x16xf32>
    %4 = vector.broadcast %3 : vector<1x16xf32> to vector<1152x16xf32>
    %5 = arith.addf %2, %4 : vector<1152x16xf32>
    %cst_5 = arith.constant 0.000000e+00 : f32
    %6 = vector.broadcast %cst_5 : f32 to vector<1152x16xf32>
    %7 = arith.maximumf %5, %6 : vector<1152x16xf32>
    %8 = vector.extract_strided_slice %7 {offsets = [0, 0], sizes = [288, 16], strides = [1, 1]} : vector<1152x16xf32> to vector<288x16xf32>
    %9 = vector.extract_strided_slice %7 {offsets = [288, 0], sizes = [288, 16], strides = [1, 1]} : vector<1152x16xf32> to vector<288x16xf32>
    %10 = arith.maximumf %8, %9 : vector<288x16xf32>
    %11 = vector.extract_strided_slice %7 {offsets = [576, 0], sizes = [288, 16], strides = [1, 1]} : vector<1152x16xf32> to vector<288x16xf32>
    %12 = vector.extract_strided_slice %7 {offsets = [864, 0], sizes = [288, 16], strides = [1, 1]} : vector<1152x16xf32> to vector<288x16xf32>
    %13 = arith.maximumf %11, %12 : vector<288x16xf32>
    %14 = arith.maximumf %10, %13 : vector<288x16xf32>
    %c0_6 = arith.constant 0 : index
    %c0_7 = arith.constant 0 : index
    %15 = vector.load %arg3[%c0_6, %c0_7] : memref<1x16xf32, #tpu.memory_space<vmem>>, vector<1x16xf32>
    %c0_8 = arith.constant 0 : index
    %c0_9 = arith.constant 0 : index
    %16 = vector.load %arg4[%c0_8, %c0_9] : memref<1x16xf32, #tpu.memory_space<vmem>>, vector<1x16xf32>
    %cst_10 = arith.constant dense<0.000000e+00> : vector<16xf32>
    %17 = vector.multi_reduction <add>, %14, %cst_10 [0] : vector<288x16xf32> to vector<16xf32>
    %18 = vector.shape_cast %17 : vector<16xf32> to vector<1x16xf32>
    %cst_11 = arith.constant 2.880000e+02 : f32
    %19 = vector.broadcast %cst_11 : f32 to vector<1x16xf32>
    %20 = arith.divf %18, %19 : vector<1x16xf32>
    %21 = vector.broadcast %20 : vector<1x16xf32> to vector<288x16xf32>
    %22 = arith.subf %14, %21 : vector<288x16xf32>
    %23 = arith.mulf %22, %22 : vector<288x16xf32>
    %cst_12 = arith.constant dense<0.000000e+00> : vector<16xf32>
    %24 = vector.multi_reduction <add>, %23, %cst_12 [0] : vector<288x16xf32> to vector<16xf32>
    %25 = vector.shape_cast %24 : vector<16xf32> to vector<1x16xf32>
    %cst_13 = arith.constant 2.880000e+02 : f32
    %26 = vector.broadcast %cst_13 : f32 to vector<1x16xf32>
    %27 = arith.divf %25, %26 : vector<1x16xf32>
    %cst_14 = arith.constant 9.99999974E-6 : f32
    %28 = vector.broadcast %cst_14 : f32 to vector<1x16xf32>
    %29 = arith.addf %27, %28 : vector<1x16xf32>
    %30 = math.rsqrt %29 : vector<1x16xf32>
    %31 = arith.mulf %15, %30 : vector<1x16xf32>
    %32 = arith.mulf %20, %31 : vector<1x16xf32>
    %33 = arith.subf %16, %32 : vector<1x16xf32>
    %34 = vector.broadcast %31 : vector<1x16xf32> to vector<288x16xf32>
    %35 = arith.mulf %14, %34 : vector<288x16xf32>
    %36 = vector.broadcast %33 : vector<1x16xf32> to vector<288x16xf32>
    %37 = arith.addf %35, %36 : vector<288x16xf32>
    %c0_15 = arith.constant 0 : index
    %c0_16 = arith.constant 0 : index
    %38 = vector.load %arg5[%c0_15, %c0_16] : memref<288x16xf32, #tpu.memory_space<vmem>>, vector<288x16xf32>
    tpu.vector_store %arg5[%c0_15, %c0_16], %37 {strides = array<i32>} : memref<288x16xf32, #tpu.memory_space<vmem>>, vector<288x16xf32>,
    return
  }
}

module attributes {stable_mosaic.version = 11 : i64} {
  func.func @_conv_stage_kernel(%arg0: memref<128x400xf32, #tpu.memory_space<vmem>>, %arg1: memref<400x32xf32, #tpu.memory_space<vmem>>, %arg2: memref<1x32xf32, #tpu.memory_space<vmem>>, %arg3: memref<1x32xf32, #tpu.memory_space<vmem>>, %arg4: memref<1x32xf32, #tpu.memory_space<vmem>>, %arg5: memref<32x32xf32, #tpu.memory_space<vmem>>) attributes {dimension_semantics = [], scalar_prefetch = 0 : i64, scratch_operands = 0 : i64, tpu.core_type = #tpu.core_type<tc>} {
    %c0 = arith.constant 0 : index
    %c0_0 = arith.constant 0 : index
    %0 = vector.load %arg0[%c0, %c0_0] : memref<128x400xf32, #tpu.memory_space<vmem>>, vector<128x400xf32>
    %c0_1 = arith.constant 0 : index
    %c0_2 = arith.constant 0 : index
    %1 = vector.load %arg1[%c0_1, %c0_2] : memref<400x32xf32, #tpu.memory_space<vmem>>, vector<400x32xf32>
    %cst = arith.constant dense<0.000000e+00> : vector<128x32xf32>
    %2 = tpu.matmul %0, %1, %cst {dimension_numbers = #tpu.dot_dimension_numbers<[1], [0], [0], [1], [0, 0, 1, 1], [], []>} : vector<128x400xf32>, vector<400x32xf32>, vector<128x32xf32> -> vector<128x32xf32>
    %c0_3 = arith.constant 0 : index
    %c0_4 = arith.constant 0 : index
    %3 = vector.load %arg2[%c0_3, %c0_4] : memref<1x32xf32, #tpu.memory_space<vmem>>, vector<1x32xf32>
    %4 = vector.broadcast %3 : vector<1x32xf32> to vector<128x32xf32>
    %5 = arith.addf %2, %4 : vector<128x32xf32>
    %cst_5 = arith.constant 0.000000e+00 : f32
    %6 = vector.broadcast %cst_5 : f32 to vector<128x32xf32>
    %7 = arith.maximumf %5, %6 : vector<128x32xf32>
    %8 = vector.extract_strided_slice %7 {offsets = [0, 0], sizes = [32, 32], strides = [1, 1]} : vector<128x32xf32> to vector<32x32xf32>
    %9 = vector.extract_strided_slice %7 {offsets = [32, 0], sizes = [32, 32], strides = [1, 1]} : vector<128x32xf32> to vector<32x32xf32>
    %10 = arith.maximumf %8, %9 : vector<32x32xf32>
    %11 = vector.extract_strided_slice %7 {offsets = [64, 0], sizes = [32, 32], strides = [1, 1]} : vector<128x32xf32> to vector<32x32xf32>
    %12 = vector.extract_strided_slice %7 {offsets = [96, 0], sizes = [32, 32], strides = [1, 1]} : vector<128x32xf32> to vector<32x32xf32>
    %13 = arith.maximumf %11, %12 : vector<32x32xf32>
    %14 = arith.maximumf %10, %13 : vector<32x32xf32>
    %c0_6 = arith.constant 0 : index
    %c0_7 = arith.constant 0 : index
    %15 = vector.load %arg3[%c0_6, %c0_7] : memref<1x32xf32, #tpu.memory_space<vmem>>, vector<1x32xf32>
    %c0_8 = arith.constant 0 : index
    %c0_9 = arith.constant 0 : index
    %16 = vector.load %arg4[%c0_8, %c0_9] : memref<1x32xf32, #tpu.memory_space<vmem>>, vector<1x32xf32>
    %cst_10 = arith.constant dense<0.000000e+00> : vector<32xf32>
    %17 = vector.multi_reduction <add>, %14, %cst_10 [0] : vector<32x32xf32> to vector<32xf32>
    %18 = vector.shape_cast %17 : vector<32xf32> to vector<1x32xf32>
    %cst_11 = arith.constant 3.200000e+01 : f32
    %19 = vector.broadcast %cst_11 : f32 to vector<1x32xf32>
    %20 = arith.divf %18, %19 : vector<1x32xf32>
    %21 = vector.broadcast %20 : vector<1x32xf32> to vector<32x32xf32>
    %22 = arith.subf %14, %21 : vector<32x32xf32>
    %23 = arith.mulf %22, %22 : vector<32x32xf32>
    %cst_12 = arith.constant dense<0.000000e+00> : vector<32xf32>
    %24 = vector.multi_reduction <add>, %23, %cst_12 [0] : vector<32x32xf32> to vector<32xf32>
    %25 = vector.shape_cast %24 : vector<32xf32> to vector<1x32xf32>
    %cst_13 = arith.constant 3.200000e+01 : f32
    %26 = vector.broadcast %cst_13 : f32 to vector<1x32xf32>
    %27 = arith.divf %25, %26 : vector<1x32xf32>
    %cst_14 = arith.constant 9.99999974E-6 : f32
    %28 = vector.broadcast %cst_14 : f32 to vector<1x32xf32>
    %29 = arith.addf %27, %28 : vector<1x32xf32>
    %30 = math.rsqrt %29 : vector<1x32xf32>
    %31 = arith.mulf %15, %30 : vector<1x32xf32>
    %32 = arith.mulf %20, %31 : vector<1x32xf32>
    %33 = arith.subf %16, %32 : vector<1x32xf32>
    %34 = vector.broadcast %31 : vector<1x32xf32> to vector<32x32xf32>
    %35 = arith.mulf %14, %34 : vector<32x32xf32>
    %36 = vector.broadcast %33 : vector<1x32xf32> to vector<32x32xf32>
    %37 = arith.addf %35, %36 : vector<32x32xf32>
    %c0_15 = arith.constant 0 : index
    %c0_16 = arith.constant 0 : index
    %38 = vector.load %arg5[%c0_15, %c0_16] : memref<32x32xf32, #tpu.memory_space<vmem>>, vector<32x32xf32>
    tpu.vector_store %arg5[%c0_15, %c0_16], %37 {strides = array<i32>} : memref<32x32xf32, #tpu.memory_space<vmem>>, vector<32x32xf32>,
    return
  }
}

module attributes {stable_mosaic.version = 11 : i64} {
  func.func @_fc_stack_kernel(%arg0: memref<2x512xf32, #tpu.memory_space<vmem>>, %arg1: memref<512x512xf32, #tpu.memory_space<vmem>>, %arg2: memref<1x512xf32, #tpu.memory_space<vmem>>, %arg3: memref<1x512xf32, #tpu.memory_space<vmem>>, %arg4: memref<1x512xf32, #tpu.memory_space<vmem>>, %arg5: memref<512x128xf32, #tpu.memory_space<vmem>>, %arg6: memref<1x128xf32, #tpu.memory_space<vmem>>, %arg7: memref<1x128xf32, #tpu.memory_space<vmem>>, %arg8: memref<1x128xf32, #tpu.memory_space<vmem>>, %arg9: memref<128x64xf32, #tpu.memory_space<vmem>>, %arg10: memref<1x64xf32, #tpu.memory_space<vmem>>, %arg11: memref<1x64xf32, #tpu.memory_space<vmem>>, %arg12: memref<1x64xf32, #tpu.memory_space<vmem>>, %arg13: memref<64x32xf32, #tpu.memory_space<vmem>>, %arg14: memref<1x32xf32, #tpu.memory_space<vmem>>, %arg15: memref<1x32xf32, #tpu.memory_space<vmem>>, %arg16: memref<1x32xf32, #tpu.memory_space<vmem>>, %arg17: memref<32x2xf32, #tpu.memory_space<vmem>>, %arg18: memref<1x2xf32, #tpu.memory_space<vmem>>, %arg19: memref<2x2xf32, #tpu.memory_space<vmem>>) attributes {dimension_semantics = [], scalar_prefetch = 0 : i64, scratch_operands = 0 : i64, tpu.core_type = #tpu.core_type<tc>} {
    %c0 = arith.constant 0 : index
    %c0_0 = arith.constant 0 : index
    %0 = vector.load %arg0[%c0, %c0_0] : memref<2x512xf32, #tpu.memory_space<vmem>>, vector<2x512xf32>
    %c0_1 = arith.constant 0 : index
    %c0_2 = arith.constant 0 : index
    %1 = vector.load %arg1[%c0_1, %c0_2] : memref<512x512xf32, #tpu.memory_space<vmem>>, vector<512x512xf32>
    %cst = arith.constant dense<0.000000e+00> : vector<2x512xf32>
    %2 = tpu.matmul %0, %1, %cst {dimension_numbers = #tpu.dot_dimension_numbers<[1], [0], [0], [1], [0, 0, 1, 1], [], []>} : vector<2x512xf32>, vector<512x512xf32>, vector<2x512xf32> -> vector<2x512xf32>
    %c0_3 = arith.constant 0 : index
    %c0_4 = arith.constant 0 : index
    %3 = vector.load %arg2[%c0_3, %c0_4] : memref<1x512xf32, #tpu.memory_space<vmem>>, vector<1x512xf32>
    %4 = vector.broadcast %3 : vector<1x512xf32> to vector<2x512xf32>
    %5 = arith.addf %2, %4 : vector<2x512xf32>
    %cst_5 = arith.constant 0.000000e+00 : f32
    %6 = vector.broadcast %cst_5 : f32 to vector<2x512xf32>
    %7 = arith.maximumf %5, %6 : vector<2x512xf32>
    %c0_6 = arith.constant 0 : index
    %c0_7 = arith.constant 0 : index
    %8 = vector.load %arg3[%c0_6, %c0_7] : memref<1x512xf32, #tpu.memory_space<vmem>>, vector<1x512xf32>
    %c0_8 = arith.constant 0 : index
    %c0_9 = arith.constant 0 : index
    %9 = vector.load %arg4[%c0_8, %c0_9] : memref<1x512xf32, #tpu.memory_space<vmem>>, vector<1x512xf32>
    %cst_10 = arith.constant dense<0.000000e+00> : vector<512xf32>
    %10 = vector.multi_reduction <add>, %7, %cst_10 [0] : vector<2x512xf32> to vector<512xf32>
    %11 = vector.shape_cast %10 : vector<512xf32> to vector<1x512xf32>
    %cst_11 = arith.constant 2.000000e+00 : f32
    %12 = vector.broadcast %cst_11 : f32 to vector<1x512xf32>
    %13 = arith.divf %11, %12 : vector<1x512xf32>
    %14 = vector.broadcast %13 : vector<1x512xf32> to vector<2x512xf32>
    %15 = arith.subf %7, %14 : vector<2x512xf32>
    %16 = arith.mulf %15, %15 : vector<2x512xf32>
    %cst_12 = arith.constant dense<0.000000e+00> : vector<512xf32>
    %17 = vector.multi_reduction <add>, %16, %cst_12 [0] : vector<2x512xf32> to vector<512xf32>
    %18 = vector.shape_cast %17 : vector<512xf32> to vector<1x512xf32>
    %cst_13 = arith.constant 2.000000e+00 : f32
    %19 = vector.broadcast %cst_13 : f32 to vector<1x512xf32>
    %20 = arith.divf %18, %19 : vector<1x512xf32>
    %cst_14 = arith.constant 9.99999974E-6 : f32
    %21 = vector.broadcast %cst_14 : f32 to vector<1x512xf32>
    %22 = arith.addf %20, %21 : vector<1x512xf32>
    %23 = math.rsqrt %22 : vector<1x512xf32>
    %24 = arith.mulf %8, %23 : vector<1x512xf32>
    %25 = arith.mulf %13, %24 : vector<1x512xf32>
    %26 = arith.subf %9, %25 : vector<1x512xf32>
    %27 = vector.broadcast %24 : vector<1x512xf32> to vector<2x512xf32>
    %28 = arith.mulf %7, %27 : vector<2x512xf32>
    %29 = vector.broadcast %26 : vector<1x512xf32> to vector<2x512xf32>
    %30 = arith.addf %28, %29 : vector<2x512xf32>
    %c0_15 = arith.constant 0 : index
    %c0_16 = arith.constant 0 : index
    %31 = vector.load %arg5[%c0_15, %c0_16] : memref<512x128xf32, #tpu.memory_space<vmem>>, vector<512x128xf32>
    %cst_17 = arith.constant dense<0.000000e+00> : vector<2x128xf32>
    %32 = tpu.matmul %30, %31, %cst_17 {dimension_numbers = #tpu.dot_dimension_numbers<[1], [0], [0], [1], [0, 0, 1, 1], [], []>} : vector<2x512xf32>, vector<512x128xf32>, vector<2x128xf32> -> vector<2x128xf32>
    %c0_18 = arith.constant 0 : index
    %c0_19 = arith.constant 0 : index
    %33 = vector.load %arg6[%c0_18, %c0_19] : memref<1x128xf32, #tpu.memory_space<vmem>>, vector<1x128xf32>
    %34 = vector.broadcast %33 : vector<1x128xf32> to vector<2x128xf32>
    %35 = arith.addf %32, %34 : vector<2x128xf32>
    %cst_20 = arith.constant 0.000000e+00 : f32
    %36 = vector.broadcast %cst_20 : f32 to vector<2x128xf32>
    %37 = arith.maximumf %35, %36 : vector<2x128xf32>
    %c0_21 = arith.constant 0 : index
    %c0_22 = arith.constant 0 : index
    %38 = vector.load %arg7[%c0_21, %c0_22] : memref<1x128xf32, #tpu.memory_space<vmem>>, vector<1x128xf32>
    %c0_23 = arith.constant 0 : index
    %c0_24 = arith.constant 0 : index
    %39 = vector.load %arg8[%c0_23, %c0_24] : memref<1x128xf32, #tpu.memory_space<vmem>>, vector<1x128xf32>
    %cst_25 = arith.constant dense<0.000000e+00> : vector<128xf32>
    %40 = vector.multi_reduction <add>, %37, %cst_25 [0] : vector<2x128xf32> to vector<128xf32>
    %41 = vector.shape_cast %40 : vector<128xf32> to vector<1x128xf32>
    %cst_26 = arith.constant 2.000000e+00 : f32
    %42 = vector.broadcast %cst_26 : f32 to vector<1x128xf32>
    %43 = arith.divf %41, %42 : vector<1x128xf32>
    %44 = vector.broadcast %43 : vector<1x128xf32> to vector<2x128xf32>
    %45 = arith.subf %37, %44 : vector<2x128xf32>
    %46 = arith.mulf %45, %45 : vector<2x128xf32>
    %cst_27 = arith.constant dense<0.000000e+00> : vector<128xf32>
    %47 = vector.multi_reduction <add>, %46, %cst_27 [0] : vector<2x128xf32> to vector<128xf32>
    %48 = vector.shape_cast %47 : vector<128xf32> to vector<1x128xf32>
    %cst_28 = arith.constant 2.000000e+00 : f32
    %49 = vector.broadcast %cst_28 : f32 to vector<1x128xf32>
    %50 = arith.divf %48, %49 : vector<1x128xf32>
    %cst_29 = arith.constant 9.99999974E-6 : f32
    %51 = vector.broadcast %cst_29 : f32 to vector<1x128xf32>
    %52 = arith.addf %50, %51 : vector<1x128xf32>
    %53 = math.rsqrt %52 : vector<1x128xf32>
    %54 = arith.mulf %38, %53 : vector<1x128xf32>
    %55 = arith.mulf %43, %54 : vector<1x128xf32>
    %56 = arith.subf %39, %55 : vector<1x128xf32>
    %57 = vector.broadcast %54 : vector<1x128xf32> to vector<2x128xf32>
    %58 = arith.mulf %37, %57 : vector<2x128xf32>
    %59 = vector.broadcast %56 : vector<1x128xf32> to vector<2x128xf32>
    %60 = arith.addf %58, %59 : vector<2x128xf32>
    %c0_30 = arith.constant 0 : index
    %c0_31 = arith.constant 0 : index
    %61 = vector.load %arg9[%c0_30, %c0_31] : memref<128x64xf32, #tpu.memory_space<vmem>>, vector<128x64xf32>
    %cst_32 = arith.constant dense<0.000000e+00> : vector<2x64xf32>
    %62 = tpu.matmul %60, %61, %cst_32 {dimension_numbers = #tpu.dot_dimension_numbers<[1], [0], [0], [1], [0, 0, 1, 1], [], []>} : vector<2x128xf32>, vector<128x64xf32>, vector<2x64xf32> -> vector<2x64xf32>
    %c0_33 = arith.constant 0 : index
    %c0_34 = arith.constant 0 : index
    %63 = vector.load %arg10[%c0_33, %c0_34] : memref<1x64xf32, #tpu.memory_space<vmem>>, vector<1x64xf32>
    %64 = vector.broadcast %63 : vector<1x64xf32> to vector<2x64xf32>
    %65 = arith.addf %62, %64 : vector<2x64xf32>
    %cst_35 = arith.constant 0.000000e+00 : f32
    %66 = vector.broadcast %cst_35 : f32 to vector<2x64xf32>
    %67 = arith.maximumf %65, %66 : vector<2x64xf32>
    %c0_36 = arith.constant 0 : index
    %c0_37 = arith.constant 0 : index
    %68 = vector.load %arg11[%c0_36, %c0_37] : memref<1x64xf32, #tpu.memory_space<vmem>>, vector<1x64xf32>
    %c0_38 = arith.constant 0 : index
    %c0_39 = arith.constant 0 : index
    %69 = vector.load %arg12[%c0_38, %c0_39] : memref<1x64xf32, #tpu.memory_space<vmem>>, vector<1x64xf32>
    %cst_40 = arith.constant dense<0.000000e+00> : vector<64xf32>
    %70 = vector.multi_reduction <add>, %67, %cst_40 [0] : vector<2x64xf32> to vector<64xf32>
    %71 = vector.shape_cast %70 : vector<64xf32> to vector<1x64xf32>
    %cst_41 = arith.constant 2.000000e+00 : f32
    %72 = vector.broadcast %cst_41 : f32 to vector<1x64xf32>
    %73 = arith.divf %71, %72 : vector<1x64xf32>
    %74 = vector.broadcast %73 : vector<1x64xf32> to vector<2x64xf32>
    %75 = arith.subf %67, %74 : vector<2x64xf32>
    %76 = arith.mulf %75, %75 : vector<2x64xf32>
    %cst_42 = arith.constant dense<0.000000e+00> : vector<64xf32>
    %77 = vector.multi_reduction <add>, %76, %cst_42 [0] : vector<2x64xf32> to vector<64xf32>
    %78 = vector.shape_cast %77 : vector<64xf32> to vector<1x64xf32>
    %cst_43 = arith.constant 2.000000e+00 : f32
    %79 = vector.broadcast %cst_43 : f32 to vector<1x64xf32>
    %80 = arith.divf %78, %79 : vector<1x64xf32>
    %cst_44 = arith.constant 9.99999974E-6 : f32
    %81 = vector.broadcast %cst_44 : f32 to vector<1x64xf32>
    %82 = arith.addf %80, %81 : vector<1x64xf32>
    %83 = math.rsqrt %82 : vector<1x64xf32>
    %84 = arith.mulf %68, %83 : vector<1x64xf32>
    %85 = arith.mulf %73, %84 : vector<1x64xf32>
    %86 = arith.subf %69, %85 : vector<1x64xf32>
    %87 = vector.broadcast %84 : vector<1x64xf32> to vector<2x64xf32>
    %88 = arith.mulf %67, %87 : vector<2x64xf32>
    %89 = vector.broadcast %86 : vector<1x64xf32> to vector<2x64xf32>
    %90 = arith.addf %88, %89 : vector<2x64xf32>
    %c0_45 = arith.constant 0 : index
    %c0_46 = arith.constant 0 : index
    %91 = vector.load %arg13[%c0_45, %c0_46] : memref<64x32xf32, #tpu.memory_space<vmem>>, vector<64x32xf32>
    %cst_47 = arith.constant dense<0.000000e+00> : vector<2x32xf32>
    %92 = tpu.matmul %90, %91, %cst_47 {dimension_numbers = #tpu.dot_dimension_numbers<[1], [0], [0], [1], [0, 0, 1, 1], [], []>} : vector<2x64xf32>, vector<64x32xf32>, vector<2x32xf32> -> vector<2x32xf32>
    %c0_48 = arith.constant 0 : index
    %c0_49 = arith.constant 0 : index
    %93 = vector.load %arg14[%c0_48, %c0_49] : memref<1x32xf32, #tpu.memory_space<vmem>>, vector<1x32xf32>
    %94 = vector.broadcast %93 : vector<1x32xf32> to vector<2x32xf32>
    %95 = arith.addf %92, %94 : vector<2x32xf32>
    %cst_50 = arith.constant 0.000000e+00 : f32
    %96 = vector.broadcast %cst_50 : f32 to vector<2x32xf32>
    %97 = arith.maximumf %95, %96 : vector<2x32xf32>
    %c0_51 = arith.constant 0 : index
    %c0_52 = arith.constant 0 : index
    %98 = vector.load %arg15[%c0_51, %c0_52] : memref<1x32xf32, #tpu.memory_space<vmem>>, vector<1x32xf32>
    %c0_53 = arith.constant 0 : index
    %c0_54 = arith.constant 0 : index
    %99 = vector.load %arg16[%c0_53, %c0_54] : memref<1x32xf32, #tpu.memory_space<vmem>>, vector<1x32xf32>
    %cst_55 = arith.constant dense<0.000000e+00> : vector<32xf32>
    %100 = vector.multi_reduction <add>, %97, %cst_55 [0] : vector<2x32xf32> to vector<32xf32>
    %101 = vector.shape_cast %100 : vector<32xf32> to vector<1x32xf32>
    %cst_56 = arith.constant 2.000000e+00 : f32
    %102 = vector.broadcast %cst_56 : f32 to vector<1x32xf32>
    %103 = arith.divf %101, %102 : vector<1x32xf32>
    %104 = vector.broadcast %103 : vector<1x32xf32> to vector<2x32xf32>
    %105 = arith.subf %97, %104 : vector<2x32xf32>
    %106 = arith.mulf %105, %105 : vector<2x32xf32>
    %cst_57 = arith.constant dense<0.000000e+00> : vector<32xf32>
    %107 = vector.multi_reduction <add>, %106, %cst_57 [0] : vector<2x32xf32> to vector<32xf32>
    %108 = vector.shape_cast %107 : vector<32xf32> to vector<1x32xf32>
    %cst_58 = arith.constant 2.000000e+00 : f32
    %109 = vector.broadcast %cst_58 : f32 to vector<1x32xf32>
    %110 = arith.divf %108, %109 : vector<1x32xf32>
    %cst_59 = arith.constant 9.99999974E-6 : f32
    %111 = vector.broadcast %cst_59 : f32 to vector<1x32xf32>
    %112 = arith.addf %110, %111 : vector<1x32xf32>
    %113 = math.rsqrt %112 : vector<1x32xf32>
    %114 = arith.mulf %98, %113 : vector<1x32xf32>
    %115 = arith.mulf %103, %114 : vector<1x32xf32>
    %116 = arith.subf %99, %115 : vector<1x32xf32>
    %117 = vector.broadcast %114 : vector<1x32xf32> to vector<2x32xf32>
    %118 = arith.mulf %97, %117 : vector<2x32xf32>
    %119 = vector.broadcast %116 : vector<1x32xf32> to vector<2x32xf32>
    %120 = arith.addf %118, %119 : vector<2x32xf32>
    %c0_60 = arith.constant 0 : index
    %c0_61 = arith.constant 0 : index
    %121 = vector.load %arg17[%c0_60, %c0_61] : memref<32x2xf32, #tpu.memory_space<vmem>>, vector<32x2xf32>
    %cst_62 = arith.constant dense<0.000000e+00> : vector<2x2xf32>
    %122 = tpu.matmul %120, %121, %cst_62 {dimension_numbers = #tpu.dot_dimension_numbers<[1], [0], [0], [1], [0, 0, 1, 1], [], []>} : vector<2x32xf32>, vector<32x2xf32>, vector<2x2xf32> -> vector<2x2xf32>
    %c0_63 = arith.constant 0 : index
    %c0_64 = arith.constant 0 : index
    %123 = vector.load %arg18[%c0_63, %c0_64] : memref<1x2xf32, #tpu.memory_space<vmem>>, vector<1x2xf32>
    %124 = vector.broadcast %123 : vector<1x2xf32> to vector<2x2xf32>
    %125 = arith.addf %122, %124 : vector<2x2xf32>
    %c0_65 = arith.constant 0 : index
    %c0_66 = arith.constant 0 : index
    %126 = vector.load %arg19[%c0_65, %c0_66] : memref<2x2xf32, #tpu.memory_space<vmem>>, vector<2x2xf32>
    tpu.vector_store %arg19[%c0_65, %c0_66], %125 {strides = array<i32>} : memref<2x2xf32, #tpu.memory_space<vmem>>, vector<2x2xf32>,
    return
  }
}

</mosaic_0001>

<llo_original>
// kernel: forward.4
$region0: #{forward.4}
  #allocation0 [shape = 'u32[]', space=smem, size = 0x4, offset = 0x4, fixed_abs, tag = 'smem constant byte address 0x4 - core index']
  #allocation1 [shape = 'u32[72,128]{1,0:T(1,128)}', space=vmem, size = 0x9000, scoped, tag = 'internal scratch']
  %s0 = inlined_call_operand.vmem [shape: f32[6272,75], index: 0, kind: input, shape index: {}]
  %s1 = inlined_call_operand.vmem [shape: f32[75,6], index: 1, kind: input, shape index: {}]
  %s2 = inlined_call_operand.vmem [shape: f32[1,6], index: 2, kind: input, shape index: {}]
  %s3 = inlined_call_operand.vmem [shape: f32[1,6], index: 3, kind: input, shape index: {}]
  %s4 = inlined_call_operand.vmem [shape: f32[1,6], index: 4, kind: input, shape index: {}]
  %s5 = inlined_call_operand.vmem [shape: f32[1568,6], index: 5, kind: output, shape index: {}]
  %s6 = sld [smem:[#allocation0]]
  $region30: #{forward.4} parent=0
    _
  %s8 = ssub.s32 1, %s6
  %s9 = scalar_select 0, %s8, %s6
  // Predicated region
  $region2: #{forward.4} parent=0 // pred_check
    _
  $region3: #{forward.4} parent=0 // pred_check_branch
    %11 = sbr.rel (0) target = $region5
  $region4: #{forward.4} parent=0 // pred_region
    _
  $region5: #{forward.4} parent=0 // pred_fallthru
    _
  // Predicated region
  $region6: #{forward.4} parent=0 // pred_check
    _
  $region7: #{forward.4} parent=0 // pred_check_branch
    %13 = sbr.rel (0) target = $region9
  $region8: #{forward.4} parent=0 // pred_region
    _
  $region9: #{forward.4} parent=0 // pred_fallthru
    _
  // Predicated region
  $region10: #{forward.4} parent=0 // pred_check
    _
  $region11: #{forward.4} parent=0 // pred_check_branch
    %15 = sbr.rel (0) target = $region13
  $region12: #{forward.4} parent=0 // pred_region
    _
  $region13: #{forward.4} parent=0 // pred_fallthru
    _
  // Predicated region
  $region14: #{forward.4} parent=0 // pred_check
    _
  $region15: #{forward.4} parent=0 // pred_check_branch
    %17 = sbr.rel (0) target = $region17
  $region16: #{forward.4} parent=0 // pred_region
    _
  $region17: #{forward.4} parent=0 // pred_fallthru
    _
  // Predicated region
  $region18: #{forward.4} parent=0 // pred_check
    _
  $region19: #{forward.4} parent=0 // pred_check_branch
    %19 = sbr.rel (0) target = $region21
  $region20: #{forward.4} parent=0 // pred_region
    _
  $region21: #{forward.4} parent=0 // pred_fallthru
    _
  %v20 = vld [vmem:[%s0] sm:$0xff]
  %v21 = vld [vmem:[%s0 + $0x8] sm:$0xff]
  %v22 = vld [vmem:[%s0 + $0x10] sm:$0xff]
  %v23 = vld [vmem:[%s0 + $0x18] sm:$0xff]
  %v24 = vld [vmem:[%s0 + $0x20] sm:$0xff]
  %v25 = vld [vmem:[%s0 + $0x28] sm:$0xff]
  %v26 = vld [vmem:[%s0 + $0x30] sm:$0xff]
  %v27 = vld [vmem:[%s0 + $0x38] sm:$0xff]
  %v28 = vld [vmem:[%s0 + $0x40] sm:$0xff]
  %v29 = vld [vmem:[%s0 + $0x48] sm:$0xff]
  %v30 = vld [vmem:[%s0 + $0x50] sm:$0xff]
  %v31 = vld [vmem:[%s0 + $0x58] sm:$0xff]
  %v32 = vld [vmem:[%s0 + $0x60] sm:$0xff]
  %v33 = vld [vmem:[%s0 + $0x68] sm:$0xff]
  %v34 = vld [vmem:[%s0 + $0x70] sm:$0xff]
  %v35 = vld [vmem:[%s0 + $0x78] sm:$0xff]
  %v36 = vld [vmem:[%s0 + $0x80] sm:$0xff]
  %v37 = vld [vmem:[%s0 + $0x88] sm:$0xff]
  %v38 = vld [vmem:[%s0 + $0x90] sm:$0xff]
  %v39 = vld [vmem:[%s0 + $0x98] sm:$0xff]
  %v40 = vld [vmem:[%s0 + $0xa0] sm:$0xff]
  %v41 = vld [vmem:[%s0 + $0xa8] sm:$0xff]
  %v42 = vld [vmem:[%s0 + $0xb0] sm:$0xff]
  %v43 = vld [vmem:[%s0 + $0xb8] sm:$0xff]
  %v44 = vld [vmem:[%s0 + $0xc0] sm:$0xff]
  %v45 = vld [vmem:[%s0 + $0xc8] sm:$0xff]
  %v46 = vld [vmem:[%s0 + $0xd0] sm:$0xff]
  %v47 = vld [vmem:[%s0 + $0xd8] sm:$0xff]
  %v48 = vld [vmem:[%s0 + $0xe0] sm:$0xff]
  %v49 = vld [vmem:[%s0 + $0xe8] sm:$0xff]
  %v50 = vld [vmem:[%s0 + $0xf0] sm:$0xff]
  %v51 = vld [vmem:[%s0 + $0xf8] sm:$0xff]
  %v52 = vld [vmem:[%s0 + $0x100] sm:$0xff]
  %v53 = vld [vmem:[%s0 + $0x108] sm:$0xff]
  %v54 = vld [vmem:[%s0 + $0x110] sm:$0xff]
  %v55 = vld [vmem:[%s0 + $0x118] sm:$0xff]
  %v56 = vld [vmem:[%s0 + $0x120] sm:$0xff]
  %v57 = vld [vmem:[%s0 + $0x128] sm:$0xff]
  %v58 = vld [vmem:[%s0 + $0x130] sm:$0xff]
  %v59 = vld [vmem:[%s0 + $0x138] sm:$0xff]
  %v60 = vld [vmem:[%s0 + $0x140] sm:$0xff]
  %v61 = vld [vmem:[%s0 + $0x148] sm:$0xff]
  %v62 = vld [vmem:[%s0 + $0x150] sm:$0xff]
  %v63 = vld [vmem:[%s0 + $0x158] sm:$0xff]
  %v64 = vld [vmem:[%s0 + $0x160] sm:$0xff]
  %v65 = vld [vmem:[%s0 + $0x168] sm:$0xff]
  %v66 = vld [vmem:[%s0 + $0x170] sm:$0xff]
  %v67 = vld [vmem:[%s0 + $0x178] sm:$0xff]
  %v68 = vld [vmem:[%s0 + $0x180] sm:$0xff]
  %v69 = vld [vmem:[%s0 + $0x188] sm:$0xff]
  %v70 = vld [vmem:[%s0 + $0x190] sm:$0xff]
  %v71 = vld [vmem:[%s0 + $0x198] sm:$0xff]
  %v72 = vld [vmem:[%s0 + $0x1a0] sm:$0xff]
  %v73 = vld [vmem:[%s0 + $0x1a8] sm:$0xff]
  %v74 = vld [vmem:[%s0 + $0x1b0] sm:$0xff]
  %v75 = vld [vmem:[%s0 + $0x1b8] sm:$0xff]
  %v76 = vld [vmem:[%s0 + $0x1c0] sm:$0xff]
  %v77 = vld [vmem:[%s0 + $0x1c8] sm:$0xff]
  %v78 = vld [vmem:[%s0 + $0x1d0] sm:$0xff]
  %v79 = vld [vmem:[%s0 + $0x1d8] sm:$0xff]
  %v80 = vld [vmem:[%s0 + $0x1e0] sm:$0xff]
  %v81 = vld [vmem:[%s0 + $0x1e8] sm:$0xff]
  %v82 = vld [vmem:[%s0 + $0x1f0] sm:$0xff]
  %v83 = vld [vmem:[%s0 + $0x1f8] sm:$0xff]
  %v84 = vld [vmem:[%s0 + $0x200] sm:$0xff]
  %v85 = vld [vmem:[%s0 + $0x208] sm:$0xff]
  %v86 = vld [vmem:[%s0 + $0x210] sm:$0xff]
  %v87 = vld [vmem:[%s0 + $0x218] sm:$0xff]
  %v88 = vld [vmem:[%s0 + $0x220] sm:$0xff]
  %v89 = vld [vmem:[%s0 + $0x228] sm:$0xff]
  %v90 = vld [vmem:[%s0 + $0x230] sm:$0xff]
  %v91 = vld [vmem:[%s0 + $0x238] sm:$0xff]
  %v92 = vld [vmem:[%s0 + $0x240] sm:$0xff]
  %v93 = vld [vmem:[%s0 + $0x248] sm:$0xff]
  %v94 = vld [vmem:[%s0 + $0x250] sm:$0xff]
  %v95 = vld [vmem:[%s0 + $0x258] sm:$0xff]
  %v96 = vld [vmem:[%s0 + $0x260] sm:$0xff]
  %v97 = vld [vmem:[%s0 + $0x268] sm:$0xff]
  %v98 = vld [vmem:[%s0 + $0x270] sm:$0xff]
  %v99 = vld [vmem:[%s0 + $0x278] sm:$0xff]
  %v100 = vld [vmem:[%s0 + $0x280] sm:$0xff]
  %v101 = vld [vmem:[%s0 + $0x288] sm:$0xff]
  %v102 = vld [vmem:[%s0 + $0x290] sm:$0xff]
  %v103 = vld [vmem:[%s0 + $0x298] sm:$0xff]
  %v104 = vld [vmem:[%s0 + $0x2a0] sm:$0xff]
  %v105 = vld [vmem:[%s0 + $0x2a8] sm:$0xff]
  %v106 = vld [vmem:[%s0 + $0x2b0] sm:$0xff]
  %v107 = vld [vmem:[%s0 + $0x2b8] sm:$0xff]
  %v108 = vld [vmem:[%s0 + $0x2c0] sm:$0xff]
  %v109 = vld [vmem:[%s0 + $0x2c8] sm:$0xff]
  %v110 = vld [vmem:[%s0 + $0x2d0] sm:$0xff]
  %v111 = vld [vmem:[%s0 + $0x2d8] sm:$0xff]
  %v112 = vld [vmem:[%s0 + $0x2e0] sm:$0xff]
  %v113 = vld [vmem:[%s0 + $0x2e8] sm:$0xff]
  %v114 = vld [vmem:[%s0 + $0x2f0] sm:$0xff]
  %v115 = vld [vmem:[%s0 + $0x2f8] sm:$0xff]
  %v116 = vld [vmem:[%s0 + $0x300] sm:$0xff]
  %v117 = vld [vmem:[%s0 + $0x308] sm:$0xff]
  %v118 = vld [vmem:[%s0 + $0x310] sm:$0xff]
  %v119 = vld [vmem:[%s0 + $0x318] sm:$0xff]
  %v120 = vld [vmem:[%s0 + $0x320] sm:$0xff]
  %v121 = vld [vmem:[%s0 + $0x328] sm:$0xff]
  %v122 = vld [vmem:[%s0 + $0x330] sm:$0xff]
  %v123 = vld [vmem:[%s0 + $0x338] sm:$0xff]
  %v124 = vld [vmem:[%s0 + $0x340] sm:$0xff]
  %v125 = vld [vmem:[%s0 + $0x348] sm:$0xff]
  %v126 = vld [vmem:[%s0 + $0x350] sm:$0xff]
  %v127 = vld [vmem:[%s0 + $0x358] sm:$0xff]
  %v128 = vld [vmem:[%s0 + $0x360] sm:$0xff]
  %v129 = vld [vmem:[%s0 + $0x368] sm:$0xff]
  %v130 = vld [vmem:[%s0 + $0x370] sm:$0xff]
  %v131 = vld [vmem:[%s0 + $0x378] sm:$0xff]
  %v132 = vld [vmem:[%s0 + $0x380] sm:$0xff]
  %v133 = vld [vmem:[%s0 + $0x388] sm:$0xff]
  %v134 = vld [vmem:[%s0 + $0x390] sm:$0xff]
  %v135 = vld [vmem:[%s0 + $0x398] sm:$0xff]
  %v136 = vld [vmem:[%s0 + $0x3a0] sm:$0xff]
  %v137 = vld [vmem:[%s0 + $0x3a8] sm:$0xff]
  %v138 = vld [vmem:[%s0 + $0x3b0] sm:$0xff]
  %v139 = vld [vmem:[%s0 + $0x3b8] sm:$0xff]
  %v140 = vld [vmem:[%s0 + $0x3c0] sm:$0xff]
  %v141 = vld [vmem:[%s0 + $0x3c8] sm:$0xff]
  %v142 = vld [vmem:[%s0 + $0x3d0] sm:$0xff]
  %v143 = vld [vmem:[%s0 + $0x3d8] sm:$0xff]
  %v144 = vld [vmem:[%s0 + $0x3e0] sm:$0xff]
  %v145 = vld [vmem:[%s0 + $0x3e8] sm:$0xff]
  %v146 = vld [vmem:[%s0 + $0x3f0] sm:$0xff]
  %v147 = vld [vmem:[%s0 + $0x3f8] sm:$0xff]
  %v148 = vld [vmem:[%s0 + $0x400] sm:$0xff]
  %v149 = vld [vmem:[%s0 + $0x408] sm:$0xff]
  %v150 = vld [vmem:[%s0 + $0x410] sm:$0xff]
  %v151 = vld [vmem:[%s0 + $0x418] sm:$0xff]
  %v152 = vld [vmem:[%s0 + $0x420] sm:$0xff]
  %v153 = vld [vmem:[%s0 + $0x428] sm:$0xff]
  %v154 = vld [vmem:[%s0 + $0x430] sm:$0xff]
  %v155 = vld [vmem:[%s0 + $0x438] sm:$0xff]
  %v156 = vld [vmem:[%s0 + $0x440] sm:$0xff]
  %v157 = vld [vmem:[%s0 + $0x448] sm:$0xff]
  %v158 = vld [vmem:[%s0 + $0x450] sm:$0xff]
  %v159 = vld [vmem:[%s0 + $0x458] sm:$0xff]
  %v160 = vld [vmem:[%s0 + $0x460] sm:$0xff]
  %v161 = vld [vmem:[%s0 + $0x468] sm:$0xff]
  %v162 = vld [vmem:[%s0 + $0x470] sm:$0xff]
  %v163 = vld [vmem:[%s0 + $0x478] sm:$0xff]
  %v164 = vld [vmem:[%s0 + $0x480] sm:$0xff]
  %v165 = vld [vmem:[%s0 + $0x488] sm:$0xff]
  %v166 = vld [vmem:[%s0 + $0x490] sm:$0xff]
  %v167 = vld [vmem:[%s0 + $0x498] sm:$0xff]
  %v168 = vld [vmem:[%s0 + $0x4a0] sm:$0xff]
  %v169 = vld [vmem:[%s0 + $0x4a8] sm:$0xff]
  %v170 = vld [vmem:[%s0 + $0x4b0] sm:$0xff]
  %v171 = vld [vmem:[%s0 + $0x4b8] sm:$0xff]
  %v172 = vld [vmem:[%s0 + $0x4c0] sm:$0xff]
  %v173 = vld [vmem:[%s0 + $0x4c8] sm:$0xff]
  %v174 = vld [vmem:[%s0 + $0x4d0] sm:$0xff]
  %v175 = vld [vmem:[%s0 + $0x4d8] sm:$0xff]
  %v176 = vld [vmem:[%s0 + $0x4e0] sm:$0xff]
  %v177 = vld [vmem:[%s0 + $0x4e8] sm:$0xff]
  %v178 = vld [vmem:[%s0 + $0x4f0] sm:$0xff]
  %v179 = vld [vmem:[%s0 + $0x4f8] sm:$0xff]
  %v180 = vld [vmem:[%s0 + $0x500] sm:$0xff]
  %v181 = vld [vmem:[%s0 + $0x508] sm:$0xff]
  %v182 = vld [vmem:[%s0 + $0x510] sm:$0xff]
  %v183 = vld [vmem:[%s0 + $0x518] sm:$0xff]
  %v184 = vld [vmem:[%s0 + $0x520] sm:$0xff]
  %v185 = vld [vmem:[%s0 + $0x528] sm:$0xff]
  %v186 = vld [vmem:[%s0 + $0x530] sm:$0xff]
  %v187 = vld [vmem:[%s0 + $0x538] sm:$0xff]
  %v188 = vld [vmem:[%s0 + $0x540] sm:$0xff]
  %v189 = vld [vmem:[%s0 + $0x548] sm:$0xff]
  %v190 = vld [vmem:[%s0 + $0x550] sm:$0xff]
  %v191 = vld [vmem:[%s0 + $0x558] sm:$0xff]
  %v192 = vld [vmem:[%s0 + $0x560] sm:$0xff]
  %v193 = vld [vmem:[%s0 + $0x568] sm:$0xff]
  %v194 = vld [vmem:[%s0 + $0x570] sm:$0xff]
  %v195 = vld [vmem:[%s0 + $0x578] sm:$0xff]
  %v196 = vld [vmem:[%s0 + $0x580] sm:$0xff]
  %v197 = vld [vmem:[%s0 + $0x588] sm:$0xff]
  %v198 = vld [vmem:[%s0 + $0x590] sm:$0xff]
  %v199 = vld [vmem:[%s0 + $0x598] sm:$0xff]
  %v200 = vld [vmem:[%s0 + $0x5a0] sm:$0xff]
  %v201 = vld [vmem:[%s0 + $0x5a8] sm:$0xff]
  %v202 = vld [vmem:[%s0 + $0x5b0] sm:$0xff]
  %v203 = vld [vmem:[%s0 + $0x5b8] sm:$0xff]
  %v204 = vld [vmem:[%s0 + $0x5c0] sm:$0xff]
  %v205 = vld [vmem:[%s0 + $0x5c8] sm:$0xff]
  %v206 = vld [vmem:[%s0 + $0x5d0] sm:$0xff]
  %v207 = vld [vmem:[%s0 + $0x5d8] sm:$0xff]
  %v208 = vld [vmem:[%s0 + $0x5e0] sm:$0xff]
  %v209 = vld [vmem:[%s0 + $0x5e8] sm:$0xff]
  %v210 = vld [vmem:[%s0 + $0x5f0] sm:$0xff]
  %v211 = vld [vmem:[%s0 + $0x5f8] sm:$0xff]
  %v212 = vld [vmem:[%s0 + $0x600] sm:$0xff]
  %v213 = vld [vmem:[%s0 + $0x608] sm:$0xff]
  %v214 = vld [vmem:[%s0 + $0x610] sm:$0xff]
  %v215 = vld [vmem:[%s0 + $0x618] sm:$0xff]
  %v216 = vld [vmem:[%s0 + $0x620] sm:$0xff]
  %v217 = vld [vmem:[%s0 + $0x628] sm:$0xff]
  %v218 = vld [vmem:[%s0 + $0x630] sm:$0xff]
  %v219 = vld [vmem:[%s0 + $0x638] sm:$0xff]
  %v220 = vld [vmem:[%s0 + $0x640] sm:$0xff]
  %v221 = vld [vmem:[%s0 + $0x648] sm:$0xff]
  %v222 = vld [vmem:[%s0 + $0x650] sm:$0xff]
  %v223 = vld [vmem:[%s0 + $0x658] sm:$0xff]
  %v224 = vld [vmem:[%s0 + $0x660] sm:$0xff]
  %v225 = vld [vmem:[%s0 + $0x668] sm:$0xff]
  %v226 = vld [vmem:[%s0 + $0x670] sm:$0xff]
  %v227 = vld [vmem:[%s0 + $0x678] sm:$0xff]
  %v228 = vld [vmem:[%s0 + $0x680] sm:$0xff]
  %v229 = vld [vmem:[%s0 + $0x688] sm:$0xff]
  %v230 = vld [vmem:[%s0 + $0x690] sm:$0xff]
  %v231 = vld [vmem:[%s0 + $0x698] sm:$0xff]
  %v232 = vld [vmem:[%s0 + $0x6a0] sm:$0xff]
  %v233 = vld [vmem:[%s0 + $0x6a8] sm:$0xff]
  %v234 = vld [vmem:[%s0 + $0x6b0] sm:$0xff]
  %v235 = vld [vmem:[%s0 + $0x6b8] sm:$0xff]
  %v236 = vld [vmem:[%s0 + $0x6c0] sm:$0xff]
  %v237 = vld [vmem:[%s0 + $0x6c8] sm:$0xff]
  %v238 = vld [vmem:[%s0 + $0x6d0] sm:$0xff]
  %v239 = vld [vmem:[%s0 + $0x6d8] sm:$0xff]
  %v240 = vld [vmem:[%s0 + $0x6e0] sm:$0xff]
  %v241 = vld [vmem:[%s0 + $0x6e8] sm:$0xff]
  %v242 = vld [vmem:[%s0 + $0x6f0] sm:$0xff]
  %v243 = vld [vmem:[%s0 + $0x6f8] sm:$0xff]
  %v244 = vld [vmem:[%s0 + $0x700] sm:$0xff]
  %v245 = vld [vmem:[%s0 + $0x708] sm:$0xff]
  %v246 = vld [vmem:[%s0 + $0x710] sm:$0xff]
  %v247 = vld [vmem:[%s0 + $0x718] sm:$0xff]
  %v248 = vld [vmem:[%s0 + $0x720] sm:$0xff]
  %v249 = vld [vmem:[%s0 + $0x728] sm:$0xff]
  %v250 = vld [vmem:[%s0 + $0x730] sm:$0xff]
  %v251 = vld [vmem:[%s0 + $0x738] sm:$0xff]
  %v252 = vld [vmem:[%s0 + $0x740] sm:$0xff]
  %v253 = vld [vmem:[%s0 + $0x748] sm:$0xff]
  %v254 = vld [vmem:[%s0 + $0x750] sm:$0xff]
  %v255 = vld [vmem:[%s0 + $0x758] sm:$0xff]
  %v256 = vld [vmem:[%s0 + $0x760] sm:$0xff]
  %v257 = vld [vmem:[%s0 + $0x768] sm:$0xff]
  %v258 = vld [vmem:[%s0 + $0x770] sm:$0xff]
  %v259 = vld [vmem:[%s0 + $0x778] sm:$0xff]
  %v260 = vld [vmem:[%s0 + $0x780] sm:$0xff]
  %v261 = vld [vmem:[%s0 + $0x788] sm:$0xff]
  %v262 = vld [vmem:[%s0 + $0x790] sm:$0xff]
  %v263 = vld [vmem:[%s0 + $0x798] sm:$0xff]
  %v264 = vld [vmem:[%s0 + $0x7a0] sm:$0xff]
  %v265 = vld [vmem:[%s0 + $0x7a8] sm:$0xff]
  %v266 = vld [vmem:[%s0 + $0x7b0] sm:$0xff]
  %v267 = vld [vmem:[%s0 + $0x7b8] sm:$0xff]
  %v268 = vld [vmem:[%s0 + $0x7c0] sm:$0xff]
  %v269 = vld [vmem:[%s0 + $0x7c8] sm:$0xff]
  %v270 = vld [vmem:[%s0 + $0x7d0] sm:$0xff]
  %v271 = vld [vmem:[%s0 + $0x7d8] sm:$0xff]
  %v272 = vld [vmem:[%s0 + $0x7e0] sm:$0xff]
  %v273 = vld [vmem:[%s0 + $0x7e8] sm:$0xff]
  %v274 = vld [vmem:[%s0 + $0x7f0] sm:$0xff]
  %v275 = vld [vmem:[%s0 + $0x7f8] sm:$0xff]
  %v276 = vld [vmem:[%s0 + $0x800] sm:$0xff]
  %v277 = vld [vmem:[%s0 + $0x808] sm:$0xff]
  %v278 = vld [vmem:[%s0 + $0x810] sm:$0xff]
  %v279 = vld [vmem:[%s0 + $0x818] sm:$0xff]
  %v280 = vld [vmem:[%s0 + $0x820] sm:$0xff]
  %v281 = vld [vmem:[%s0 + $0x828] sm:$0xff]
  %v282 = vld [vmem:[%s0 + $0x830] sm:$0xff]
  %v283 = vld [vmem:[%s0 + $0x838] sm:$0xff]
  %v284 = vld [vmem:[%s0 + $0x840] sm:$0xff]
  %v285 = vld [vmem:[%s0 + $0x848] sm:$0xff]
  %v286 = vld [vmem:[%s0 + $0x850] sm:$0xff]
  %v287 = vld [vmem:[%s0 + $0x858] sm:$0xff]
  %v288 = vld [vmem:[%s0 + $0x860] sm:$0xff]
  %v289 = vld [vmem:[%s0 + $0x868] sm:$0xff]
  %v290 = vld [vmem:[%s0 + $0x870] sm:$0xff]
  %v291 = vld [vmem:[%s0 + $0x878] sm:$0xff]
  %v292 = vld [vmem:[%s0 + $0x880] sm:$0xff]
  %v293 = vld [vmem:[%s0 + $0x888] sm:$0xff]
  %v294 = vld [vmem:[%s0 + $0x890] sm:$0xff]
  %v295 = vld [vmem:[%s0 + $0x898] sm:$0xff]
  %v296 = vld [vmem:[%s0 + $0x8a0] sm:$0xff]
  %v297 = vld [vmem:[%s0 + $0x8a8] sm:$0xff]
  %v298 = vld [vmem:[%s0 + $0x8b0] sm:$0xff]
  %v299 = vld [vmem:[%s0 + $0x8b8] sm:$0xff]
  %v300 = vld [vmem:[%s0 + $0x8c0] sm:$0xff]
  %v301 = vld [vmem:[%s0 + $0x8c8] sm:$0xff]
  %v302 = vld [vmem:[%s0 + $0x8d0] sm:$0xff]
  %v303 = vld [vmem:[%s0 + $0x8d8] sm:$0xff]
  %v304 = vld [vmem:[%s0 + $0x8e0] sm:$0xff]
  %v305 = vld [vmem:[%s0 + $0x8e8] sm:$0xff]
  %v306 = vld [vmem:[%s0 + $0x8f0] sm:$0xff]
  %v307 = vld [vmem:[%s0 + $0x8f8] sm:$0xff]
  %v308 = vld [vmem:[%s0 + $0x900] sm:$0xff]
  %v309 = vld [vmem:[%s0 + $0x908] sm:$0xff]
  %v310 = vld [vmem:[%s0 + $0x910] sm:$0xff]
  %v311 = vld [vmem:[%s0 + $0x918] sm:$0xff]
  %v312 = vld [vmem:[%s0 + $0x920] sm:$0xff]
  %v313 = vld [vmem:[%s0 + $0x928] sm:$0xff]
  %v314 = vld [vmem:[%s0 + $0x930] sm:$0xff]
  %v315 = vld [vmem:[%s0 + $0x938] sm:$0xff]
  %v316 = vld [vmem:[%s0 + $0x940] sm:$0xff]
  %v317 = vld [vmem:[%s0 + $0x948] sm:$0xff]
  %v318 = vld [vmem:[%s0 + $0x950] sm:$0xff]
  %v319 = vld [vmem:[%s0 + $0x958] sm:$0xff]
  %v320 = vld [vmem:[%s0 + $0x960] sm:$0xff]
  %v321 = vld [vmem:[%s0 + $0x968] sm:$0xff]
  %v322 = vld [vmem:[%s0 + $0x970] sm:$0xff]
  %v323 = vld [vmem:[%s0 + $0x978] sm:$0xff]
  %v324 = vld [vmem:[%s0 + $0x980] sm:$0xff]
  %v325 = vld [vmem:[%s0 + $0x988] sm:$0xff]
  %v326 = vld [vmem:[%s0 + $0x990] sm:$0xff]
  %v327 = vld [vmem:[%s0 + $0x998] sm:$0xff]
  %v328 = vld [vmem:[%s0 + $0x9a0] sm:$0xff]
  %v329 = vld [vmem:[%s0 + $0x9a8] sm:$0xff]
  %v330 = vld [vmem:[%s0 + $0x9b0] sm:$0xff]
  %v331 = vld [vmem:[%s0 + $0x9b8] sm:$0xff]
  %v332 = vld [vmem:[%s0 + $0x9c0] sm:$0xff]
  %v333 = vld [vmem:[%s0 + $0x9c8] sm:$0xff]
  %v334 = vld [vmem:[%s0 + $0x9d0] sm:$0xff]
  %v335 = vld [vmem:[%s0 + $0x9d8] sm:$0xff]
  %v336 = vld [vmem:[%s0 + $0x9e0] sm:$0xff]
  %v337 = vld [vmem:[%s0 + $0x9e8] sm:$0xff]
  %v338 = vld [vmem:[%s0 + $0x9f0] sm:$0xff]
  %v339 = vld [vmem:[%s0 + $0x9f8] sm:$0xff]
  %v340 = vld [vmem:[%s0 + $0xa00] sm:$0xff]
  %v341 = vld [vmem:[%s0 + $0xa08] sm:$0xff]
  %v342 = vld [vmem:[%s0 + $0xa10] sm:$0xff]
  %v343 = vld [vmem:[%s0 + $0xa18] sm:$0xff]
  %v344 = vld [vmem:[%s0 + $0xa20] sm:$0xff]
  %v345 = vld [vmem:[%s0 + $0xa28] sm:$0xff]
  %v346 = vld [vmem:[%s0 + $0xa30] sm:$0xff]
  %v347 = vld [vmem:[%s0 + $0xa38] sm:$0xff]
  %v348 = vld [vmem:[%s0 + $0xa40] sm:$0xff]
  %v349 = vld [vmem:[%s0 + $0xa48] sm:$0xff]
  %v350 = vld [vmem:[%s0 + $0xa50] sm:$0xff]
  %v351 = vld [vmem:[%s0 + $0xa58] sm:$0xff]
  %v352 = vld [vmem:[%s0 + $0xa60] sm:$0xff]
  %v353 = vld [vmem:[%s0 + $0xa68] sm:$0xff]
  %v354 = vld [vmem:[%s0 + $0xa70] sm:$0xff]
  %v355 = vld [vmem:[%s0 + $0xa78] sm:$0xff]
  %v356 = vld [vmem:[%s0 + $0xa80] sm:$0xff]
  %v357 = vld [vmem:[%s0 + $0xa88] sm:$0xff]
  %v358 = vld [vmem:[%s0 + $0xa90] sm:$0xff]
  %v359 = vld [vmem:[%s0 + $0xa98] sm:$0xff]
  %v360 = vld [vmem:[%s0 + $0xaa0] sm:$0xff]
  %v361 = vld [vmem:[%s0 + $0xaa8] sm:$0xff]
  %v362 = vld [vmem:[%s0 + $0xab0] sm:$0xff]
  %v363 = vld [vmem:[%s0 + $0xab8] sm:$0xff]
  %v364 = vld [vmem:[%s0 + $0xac0] sm:$0xff]
  %v365 = vld [vmem:[%s0 + $0xac8] sm:$0xff]
  %v366 = vld [vmem:[%s0 + $0xad0] sm:$0xff]
  %v367 = vld [vmem:[%s0 + $0xad8] sm:$0xff]
  %v368 = vld [vmem:[%s0 + $0xae0] sm:$0xff]
  %v369 = vld [vmem:[%s0 + $0xae8] sm:$0xff]
  %v370 = vld [vmem:[%s0 + $0xaf0] sm:$0xff]
  %v371 = vld [vmem:[%s0 + $0xaf8] sm:$0xff]
  %v372 = vld [vmem:[%s0 + $0xb00] sm:$0xff]
  %v373 = vld [vmem:[%s0 + $0xb08] sm:$0xff]
  %v374 = vld [vmem:[%s0 + $0xb10] sm:$0xff]
  %v375 = vld [vmem:[%s0 + $0xb18] sm:$0xff]
  %v376 = vld [vmem:[%s0 + $0xb20] sm:$0xff]
  %v377 = vld [vmem:[%s0 + $0xb28] sm:$0xff]
  %v378 = vld [vmem:[%s0 + $0xb30] sm:$0xff]
  %v379 = vld [vmem:[%s0 + $0xb38] sm:$0xff]
  %v380 = vld [vmem:[%s0 + $0xb40] sm:$0xff]
  %v381 = vld [vmem:[%s0 + $0xb48] sm:$0xff]
  %v382 = vld [vmem:[%s0 + $0xb50] sm:$0xff]
  %v383 = vld [vmem:[%s0 + $0xb58] sm:$0xff]
  %v384 = vld [vmem:[%s0 + $0xb60] sm:$0xff]
  %v385 = vld [vmem:[%s0 + $0xb68] sm:$0xff]
  %v386 = vld [vmem:[%s0 + $0xb70] sm:$0xff]
  %v387 = vld [vmem:[%s0 + $0xb78] sm:$0xff]
  %v388 = vld [vmem:[%s0 + $0xb80] sm:$0xff]
  %v389 = vld [vmem:[%s0 + $0xb88] sm:$0xff]
  %v390 = vld [vmem:[%s0 + $0xb90] sm:$0xff]
  %v391 = vld [vmem:[%s0 + $0xb98] sm:$0xff]
  %v392 = vld [vmem:[%s0 + $0xba0] sm:$0xff]
  %v393 = vld [vmem:[%s0 + $0xba8] sm:$0xff]
  %v394 = vld [vmem:[%s0 + $0xbb0] sm:$0xff]
  %v395 = vld [vmem:[%s0 + $0xbb8] sm:$0xff]
  %v396 = vld [vmem:[%s0 + $0xbc0] sm:$0xff]
  %v397 = vld [vmem:[%s0 + $0xbc8] sm:$0xff]
  %v398 = vld [vmem:[%s0 + $0xbd0] sm:$0xff]
  %v399 = vld [vmem:[%s0 + $0xbd8] sm:$0xff]
  %v400 = vld [vmem:[%s0 + $0xbe0] sm:$0xff]
  %v401 = vld [vmem:[%s0 + $0xbe8] sm:$0xff]
  %v402 = vld [vmem:[%s0 + $0xbf0] sm:$0xff]
  %v403 = vld [vmem:[%s0 + $0xbf8] sm:$0xff]
  %v404 = vld [vmem:[%s0 + $0xc00] sm:$0xff]
  %v405 = vld [vmem:[%s0 + $0xc08] sm:$0xff]
  %v406 = vld [vmem:[%s0 + $0xc10] sm:$0xff]
  %v407 = vld [vmem:[%s0 + $0xc18] sm:$0xff]
  %v408 = vld [vmem:[%s0 + $0xc20] sm:$0xff]
  %v409 = vld [vmem:[%s0 + $0xc28] sm:$0xff]
  %v410 = vld [vmem:[%s0 + $0xc30] sm:$0xff]
  %v411 = vld [vmem:[%s0 + $0xc38] sm:$0xff]
  %v412 = vld [vmem:[%s0 + $0xc40] sm:$0xff]
  %v413 = vld [vmem:[%s0 + $0xc48] sm:$0xff]
  %v414 = vld [vmem:[%s0 + $0xc50] sm:$0xff]
  %v415 = vld [vmem:[%s0 + $0xc58] sm:$0xff]
  %v416 = vld [vmem:[%s0 + $0xc60] sm:$0xff]
  %v417 = vld [vmem:[%s0 + $0xc68] sm:$0xff]
  %v418 = vld [vmem:[%s0 + $0xc70] sm:$0xff]
  %v419 = vld [vmem:[%s0 + $0xc78] sm:$0xff]
  %v420 = vld [vmem:[%s0 + $0xc80] sm:$0xff]
  %v421 = vld [vmem:[%s0 + $0xc88] sm:$0xff]
  %v422 = vld [vmem:[%s0 + $0xc90] sm:$0xff]
  %v423 = vld [vmem:[%s0 + $0xc98] sm:$0xff]
  %v424 = vld [vmem:[%s0 + $0xca0] sm:$0xff]
  %v425 = vld [vmem:[%s0 + $0xca8] sm:$0xff]
  %v426 = vld [vmem:[%s0 + $0xcb0] sm:$0xff]
  %v427 = vld [vmem:[%s0 + $0xcb8] sm:$0xff]
  %v428 = vld [vmem:[%s0 + $0xcc0] sm:$0xff]
  %v429 = vld [vmem:[%s0 + $0xcc8] sm:$0xff]
  %v430 = vld [vmem:[%s0 + $0xcd0] sm:$0xff]
  %v431 = vld [vmem:[%s0 + $0xcd8] sm:$0xff]
  %v432 = vld [vmem:[%s0 + $0xce0] sm:$0xff]
  %v433 = vld [vmem:[%s0 + $0xce8] sm:$0xff]
  %v434 = vld [vmem:[%s0 + $0xcf0] sm:$0xff]
  %v435 = vld [vmem:[%s0 + $0xcf8] sm:$0xff]
  %v436 = vld [vmem:[%s0 + $0xd00] sm:$0xff]
  %v437 = vld [vmem:[%s0 + $0xd08] sm:$0xff]
  %v438 = vld [vmem:[%s0 + $0xd10] sm:$0xff]
  %v439 = vld [vmem:[%s0 + $0xd18] sm:$0xff]
  %v440 = vld [vmem:[%s0 + $0xd20] sm:$0xff]
  %v441 = vld [vmem:[%s0 + $0xd28] sm:$0xff]
  %v442 = vld [vmem:[%s0 + $0xd30] sm:$0xff]
  %v443 = vld [vmem:[%s0 + $0xd38] sm:$0xff]
  %v444 = vld [vmem:[%s0 + $0xd40] sm:$0xff]
  %v445 = vld [vmem:[%s0 + $0xd48] sm:$0xff]
  %v446 = vld [vmem:[%s0 + $0xd50] sm:$0xff]
  %v447 = vld [vmem:[%s0 + $0xd58] sm:$0xff]
  %v448 = vld [vmem:[%s0 + $0xd60] sm:$0xff]
  %v449 = vld [vmem:[%s0 + $0xd68] sm:$0xff]
  %v450 = vld [vmem:[%s0 + $0xd70] sm:$0xff]
  %v451 = vld [vmem:[%s0 + $0xd78] sm:$0xff]
  %v452 = vld [vmem:[%s0 + $0xd80] sm:$0xff]
  %v453 = vld [vmem:[%s0 + $0xd88] sm:$0xff]
  %v454 = vld [vmem:[%s0 + $0xd90] sm:$0xff]
  %v455 = vld [vmem:[%s0 + $0xd98] sm:$0xff]
  %v456 = vld [vmem:[%s0 + $0xda0] sm:$0xff]
  %v457 = vld [vmem:[%s0 + $0xda8] sm:$0xff]
  %v458 = vld [vmem:[%s0 + $0xdb0] sm:$0xff]
  %v459 = vld [vmem:[%s0 + $0xdb8] sm:$0xff]
  %v460 = vld [vmem:[%s0 + $0xdc0] sm:$0xff]
  %v461 = vld [vmem:[%s0 + $0xdc8] sm:$0xff]
  %v462 = vld [vmem:[%s0 + $0xdd0] sm:$0xff]
  %v463 = vld [vmem:[%s0 + $0xdd8] sm:$0xff]
  %v464 = vld [vmem:[%s0 + $0xde0] sm:$0xff]
  %v465 = vld [vmem:[%s0 + $0xde8] sm:$0xff]
  %v466 = vld [vmem:[%s0 + $0xdf0] sm:$0xff]
  %v467 = vld [vmem:[%s0 + $0xdf8] sm:$0xff]
  %v468 = vld [vmem:[%s0 + $0xe00] sm:$0xff]
  %v469 = vld [vmem:[%s0 + $0xe08] sm:$0xff]
  %v470 = vld [vmem:[%s0 + $0xe10] sm:$0xff]
  %v471 = vld [vmem:[%s0 + $0xe18] sm:$0xff]
  %v472 = vld [vmem:[%s0 + $0xe20] sm:$0xff]
  %v473 = vld [vmem:[%s0 + $0xe28] sm:$0xff]
  %v474 = vld [vmem:[%s0 + $0xe30] sm:$0xff]
  %v475 = vld [vmem:[%s0 + $0xe38] sm:$0xff]
  %v476 = vld [vmem:[%s0 + $0xe40] sm:$0xff]
  %v477 = vld [vmem:[%s0 + $0xe48] sm:$0xff]
  %v478 = vld [vmem:[%s0 + $0xe50] sm:$0xff]
  %v479 = vld [vmem:[%s0 + $0xe58] sm:$0xff]
  %v480 = vld [vmem:[%s0 + $0xe60] sm:$0xff]
  %v481 = vld [vmem:[%s0 + $0xe68] sm:$0xff]
  %v482 = vld [vmem:[%s0 + $0xe70] sm:$0xff]
  %v483 = vld [vmem:[%s0 + $0xe78] sm:$0xff]
  %v484 = vld [vmem:[%s0 + $0xe80] sm:$0xff]
  %v485 = vld [vmem:[%s0 + $0xe88] sm:$0xff]
  %v486 = vld [vmem:[%s0 + $0xe90] sm:$0xff]
  %v487 = vld [vmem:[%s0 + $0xe98] sm:$0xff]
  %v488 = vld [vmem:[%s0 + $0xea0] sm:$0xff]
  %v489 = vld [vmem:[%s0 + $0xea8] sm:$0xff]
  %v490 = vld [vmem:[%s0 + $0xeb0] sm:$0xff]
  %v491 = vld [vmem:[%s0 + $0xeb8] sm:$0xff]
  %v492 = vld [vmem:[%s0 + $0xec0] sm:$0xff]
  %v493 = vld [vmem:[%s0 + $0xec8] sm:$0xff]
  %v494 = vld [vmem:[%s0 + $0xed0] sm:$0xff]
  %v495 = vld [vmem:[%s0 + $0xed8] sm:$0xff]
  %v496 = vld [vmem:[%s0 + $0xee0] sm:$0xff]
  %v497 = vld [vmem:[%s0 + $0xee8] sm:$0xff]
  %v498 = vld [vmem:[%s0 + $0xef0] sm:$0xff]
  %v499 = vld [vmem:[%s0 + $0xef8] sm:$0xff]
  %v500 = vld [vmem:[%s0 + $0xf00] sm:$0xff]
  %v501 = vld [vmem:[%s0 + $0xf08] sm:$0xff]
  %v502 = vld [vmem:[%s0 + $0xf10] sm:$0xff]
  %v503 = vld [vmem:[%s0 + $0xf18] sm:$0xff]
  %v504 = vld [vmem:[%s0 + $0xf20] sm:$0xff]
  %v505 = vld [vmem:[%s0 + $0xf28] sm:$0xff]
  %v506 = vld [vmem:[%s0 + $0xf30] sm:$0xff]
  %v507 = vld [vmem:[%s0 + $0xf38] sm:$0xff]
  %v508 = vld [vmem:[%s0 + $0xf40] sm:$0xff]
  %v509 = vld [vmem:[%s0 + $0xf48] sm:$0xff]
  %v510 = vld [vmem:[%s0 + $0xf50] sm:$0xff]
  %v511 = vld [vmem:[%s0 + $0xf58] sm:$0xff]
  %v512 = vld [vmem:[%s0 + $0xf60] sm:$0xff]
  %v513 = vld [vmem:[%s0 + $0xf68] sm:$0xff]
  %v514 = vld [vmem:[%s0 + $0xf70] sm:$0xff]
  %v515 = vld [vmem:[%s0 + $0xf78] sm:$0xff]
  %v516 = vld [vmem:[%s0 + $0xf80] sm:$0xff]
  %v517 = vld [vmem:[%s0 + $0xf88] sm:$0xff]
  %v518 = vld [vmem:[%s0 + $0xf90] sm:$0xff]
  %v519 = vld [vmem:[%s0 + $0xf98] sm:$0xff]
  %v520 = vld [vmem:[%s0 + $0xfa0] sm:$0xff]
  %v521 = vld [vmem:[%s0 + $0xfa8] sm:$0xff]
  %v522 = vld [vmem:[%s0 + $0xfb0] sm:$0xff]
  %v523 = vld [vmem:[%s0 + $0xfb8] sm:$0xff]
  %v524 = vld [vmem:[%s0 + $0xfc0] sm:$0xff]
  %v525 = vld [vmem:[%s0 + $0xfc8] sm:$0xff]
  %v526 = vld [vmem:[%s0 + $0xfd0] sm:$0xff]
  %v527 = vld [vmem:[%s0 + $0xfd8] sm:$0xff]
  %v528 = vld [vmem:[%s0 + $0xfe0] sm:$0xff]
  %v529 = vld [vmem:[%s0 + $0xfe8] sm:$0xff]
  %v530 = vld [vmem:[%s0 + $0xff0] sm:$0xff]
  %v531 = vld [vmem:[%s0 + $0xff8] sm:$0xff]
  %v532 = vld [vmem:[%s0 + $0x1000] sm:$0xff]
  %v533 = vld [vmem:[%s0 + $0x1008] sm:$0xff]
  %v534 = vld [vmem:[%s0 + $0x1010] sm:$0xff]
  %v535 = vld [vmem:[%s0 + $0x1018] sm:$0xff]
  %v536 = vld [vmem:[%s0 + $0x1020] sm:$0xff]
  %v537 = vld [vmem:[%s0 + $0x1028] sm:$0xff]
  %v538 = vld [vmem:[%s0 + $0x1030] sm:$0xff]
  %v539 = vld [vmem:[%s0 + $0x1038] sm:$0xff]
  %v540 = vld [vmem:[%s0 + $0x1040] sm:$0xff]
  %v541 = vld [vmem:[%s0 + $0x1048] sm:$0xff]
  %v542 = vld [vmem:[%s0 + $0x1050] sm:$0xff]
  %v543 = vld [vmem:[%s0 + $0x1058] sm:$0xff]
  %v544 = vld [vmem:[%s0 + $0x1060] sm:$0xff]
  %v545 = vld [vmem:[%s0 + $0x1068] sm:$0xff]
  %v546 = vld [vmem:[%s0 + $0x1070] sm:$0xff]
  %v547 = vld [vmem:[%s0 + $0x1078] sm:$0xff]
  %v548 = vld [vmem:[%s0 + $0x1080] sm:$0xff]
  %v549 = vld [vmem:[%s0 + $0x1088] sm:$0xff]
  %v550 = vld [vmem:[%s0 + $0x1090] sm:$0xff]
  %v551 = vld [vmem:[%s0 + $0x1098] sm:$0xff]
  %v552 = vld [vmem:[%s0 + $0x10a0] sm:$0xff]
  %v553 = vld [vmem:[%s0 + $0x10a8] sm:$0xff]
  %v554 = vld [vmem:[%s0 + $0x10b0] sm:$0xff]
  %v555 = vld [vmem:[%s0 + $0x10b8] sm:$0xff]
  %v556 = vld [vmem:[%s0 + $0x10c0] sm:$0xff]
  %v557 = vld [vmem:[%s0 + $0x10c8] sm:$0xff]
  %v558 = vld [vmem:[%s0 + $0x10d0] sm:$0xff]
  %v559 = vld [vmem:[%s0 + $0x10d8] sm:$0xff]
  %v560 = vld [vmem:[%s0 + $0x10e0] sm:$0xff]
  %v561 = vld [vmem:[%s0 + $0x10e8] sm:$0xff]
  %v562 = vld [vmem:[%s0 + $0x10f0] sm:$0xff]
  %v563 = vld [vmem:[%s0 + $0x10f8] sm:$0xff]
  %v564 = vld [vmem:[%s0 + $0x1100] sm:$0xff]
  %v565 = vld [vmem:[%s0 + $0x1108] sm:$0xff]
  %v566 = vld [vmem:[%s0 + $0x1110] sm:$0xff]
  %v567 = vld [vmem:[%s0 + $0x1118] sm:$0xff]
  %v568 = vld [vmem:[%s0 + $0x1120] sm:$0xff]
  %v569 = vld [vmem:[%s0 + $0x1128] sm:$0xff]
  %v570 = vld [vmem:[%s0 + $0x1130] sm:$0xff]
  %v571 = vld [vmem:[%s0 + $0x1138] sm:$0xff]
  %v572 = vld [vmem:[%s0 + $0x1140] sm:$0xff]
  %v573 = vld [vmem:[%s0 + $0x1148] sm:$0xff]
  %v574 = vld [vmem:[%s0 + $0x1150] sm:$0xff]
  %v575 = vld [vmem:[%s0 + $0x1158] sm:$0xff]
  %v576 = vld [vmem:[%s0 + $0x1160] sm:$0xff]
  %v577 = vld [vmem:[%s0 + $0x1168] sm:$0xff]
  %v578 = vld [vmem:[%s0 + $0x1170] sm:$0xff]
  %v579 = vld [vmem:[%s0 + $0x1178] sm:$0xff]
  %v580 = vld [vmem:[%s0 + $0x1180] sm:$0xff]
  %v581 = vld [vmem:[%s0 + $0x1188] sm:$0xff]
  %v582 = vld [vmem:[%s0 + $0x1190] sm:$0xff]
  %v583 = vld [vmem:[%s0 + $0x1198] sm:$0xff]
  %v584 = vld [vmem:[%s0 + $0x11a0] sm:$0xff]
  %v585 = vld [vmem:[%s0 + $0x11a8] sm:$0xff]
  %v586 = vld [vmem:[%s0 + $0x11b0] sm:$0xff]
  %v587 = vld [vmem:[%s0 + $0x11b8] sm:$0xff]
  %v588 = vld [vmem:[%s0 + $0x11c0] sm:$0xff]
  %v589 = vld [vmem:[%s0 + $0x11c8] sm:$0xff]
  %v590 = vld [vmem:[%s0 + $0x11d0] sm:$0xff]
  %v591 = vld [vmem:[%s0 + $0x11d8] sm:$0xff]
  %v592 = vld [vmem:[%s0 + $0x11e0] sm:$0xff]
  %v593 = vld [vmem:[%s0 + $0x11e8] sm:$0xff]
  %v594 = vld [vmem:[%s0 + $0x11f0] sm:$0xff]
  %v595 = vld [vmem:[%s0 + $0x11f8] sm:$0xff]
  %v596 = vld [vmem:[%s0 + $0x1200] sm:$0xff]
  %v597 = vld [vmem:[%s0 + $0x1208] sm:$0xff]
  %v598 = vld [vmem:[%s0 + $0x1210] sm:$0xff]
  %v599 = vld [vmem:[%s0 + $0x1218] sm:$0xff]
  %v600 = vld [vmem:[%s0 + $0x1220] sm:$0xff]
  %v601 = vld [vmem:[%s0 + $0x1228] sm:$0xff]
  %v602 = vld [vmem:[%s0 + $0x1230] sm:$0xff]
  %v603 = vld [vmem:[%s0 + $0x1238] sm:$0xff]
  %v604 = vld [vmem:[%s0 + $0x1240] sm:$0xff]
  %v605 = vld [vmem:[%s0 + $0x1248] sm:$0xff]
  %v606 = vld [vmem:[%s0 + $0x1250] sm:$0xff]
  %v607 = vld [vmem:[%s0 + $0x1258] sm:$0xff]
  %v608 = vld [vmem:[%s0 + $0x1260] sm:$0xff]
  %v609 = vld [vmem:[%s0 + $0x1268] sm:$0xff]
  %v610 = vld [vmem:[%s0 + $0x1270] sm:$0xff]
  %v611 = vld [vmem:[%s0 + $0x1278] sm:$0xff]
  %v612 = vld [vmem:[%s0 + $0x1280] sm:$0xff]
  %v613 = vld [vmem:[%s0 + $0x1288] sm:$0xff]
  %v614 = vld [vmem:[%s0 + $0x1290] sm:$0xff]
  %v615 = vld [vmem:[%s0 + $0x1298] sm:$0xff]
  %v616 = vld [vmem:[%s0 + $0x12a0] sm:$0xff]
  %v617 = vld [vmem:[%s0 + $0x12a8] sm:$0xff]
  %v618 = vld [vmem:[%s0 + $0x12b0] sm:$0xff]
  %v619 = vld [vmem:[%s0 + $0x12b8] sm:$0xff]
  %v620 = vld [vmem:[%s0 + $0x12c0] sm:$0xff]
  %v621 = vld [vmem:[%s0 + $0x12c8] sm:$0xff]
  %v622 = vld [vmem:[%s0 + $0x12d0] sm:$0xff]
  %v623 = vld [vmem:[%s0 + $0x12d8] sm:$0xff]
  %v624 = vld [vmem:[%s0 + $0x12e0] sm:$0xff]
  %v625 = vld [vmem:[%s0 + $0x12e8] sm:$0xff]
  %v626 = vld [vmem:[%s0 + $0x12f0] sm:$0xff]
  %v627 = vld [vmem:[%s0 + $0x12f8] sm:$0xff]
  %v628 = vld [vmem:[%s0 + $0x1300] sm:$0xff]
  %v629 = vld [vmem:[%s0 + $0x1308] sm:$0xff]
  %v630 = vld [vmem:[%s0 + $0x1310] sm:$0xff]
  %v631 = vld [vmem:[%s0 + $0x1318] sm:$0xff]
  %v632 = vld [vmem:[%s0 + $0x1320] sm:$0xff]
  %v633 = vld [vmem:[%s0 + $0x1328] sm:$0xff]
  %v634 = vld [vmem:[%s0 + $0x1330] sm:$0xff]
  %v635 = vld [vmem:[%s0 + $0x1338] sm:$0xff]
  %v636 = vld [vmem:[%s0 + $0x1340] sm:$0xff]
  %v637 = vld [vmem:[%s0 + $0x1348] sm:$0xff]
  %v638 = vld [vmem:[%s0 + $0x1350] sm:$0xff]
  %v639 = vld [vmem:[%s0 + $0x1358] sm:$0xff]
  %v640 = vld [vmem:[%s0 + $0x1360] sm:$0xff]
  %v641 = vld [vmem:[%s0 + $0x1368] sm:$0xff]
  %v642 = vld [vmem:[%s0 + $0x1370] sm:$0xff]
  %v643 = vld [vmem:[%s0 + $0x1378] sm:$0xff]
  %v644 = vld [vmem:[%s0 + $0x1380] sm:$0xff]
  %v645 = vld [vmem:[%s0 + $0x1388] sm:$0xff]
  %v646 = vld [vmem:[%s0 + $0x1390] sm:$0xff]
  %v647 = vld [vmem:[%s0 + $0x1398] sm:$0xff]
  %v648 = vld [vmem:[%s0 + $0x13a0] sm:$0xff]
  %v649 = vld [vmem:[%s0 + $0x13a8] sm:$0xff]
  %v650 = vld [vmem:[%s0 + $0x13b0] sm:$0xff]
  %v651 = vld [vmem:[%s0 + $0x13b8] sm:$0xff]
  %v652 = vld [vmem:[%s0 + $0x13c0] sm:$0xff]
  %v653 = vld [vmem:[%s0 + $0x13c8] sm:$0xff]
  %v654 = vld [vmem:[%s0 + $0x13d0] sm:$0xff]
  %v655 = vld [vmem:[%s0 + $0x13d8] sm:$0xff]
  %v656 = vld [vmem:[%s0 + $0x13e0] sm:$0xff]
  %v657 = vld [vmem:[%s0 + $0x13e8] sm:$0xff]
  %v658 = vld [vmem:[%s0 + $0x13f0] sm:$0xff]
  %v659 = vld [vmem:[%s0 + $0x13f8] sm:$0xff]
  %v660 = vld [vmem:[%s0 + $0x1400] sm:$0xff]
  %v661 = vld [vmem:[%s0 + $0x1408] sm:$0xff]
  %v662 = vld [vmem:[%s0 + $0x1410] sm:$0xff]
  %v663 = vld [vmem:[%s0 + $0x1418] sm:$0xff]
  %v664 = vld [vmem:[%s0 + $0x1420] sm:$0xff]
  %v665 = vld [vmem:[%s0 + $0x1428] sm:$0xff]
  %v666 = vld [vmem:[%s0 + $0x1430] sm:$0xff]
  %v667 = vld [vmem:[%s0 + $0x1438] sm:$0xff]
  %v668 = vld [vmem:[%s0 + $0x1440] sm:$0xff]
  %v669 = vld [vmem:[%s0 + $0x1448] sm:$0xff]
  %v670 = vld [vmem:[%s0 + $0x1450] sm:$0xff]
  %v671 = vld [vmem:[%s0 + $0x1458] sm:$0xff]
  %v672 = vld [vmem:[%s0 + $0x1460] sm:$0xff]
  %v673 = vld [vmem:[%s0 + $0x1468] sm:$0xff]
  %v674 = vld [vmem:[%s0 + $0x1470] sm:$0xff]
  %v675 = vld [vmem:[%s0 + $0x1478] sm:$0xff]
  %v676 = vld [vmem:[%s0 + $0x1480] sm:$0xff]
  %v677 = vld [vmem:[%s0 + $0x1488] sm:$0xff]
  %v678 = vld [vmem:[%s0 + $0x1490] sm:$0xff]
  %v679 = vld [vmem:[%s0 + $0x1498] sm:$0xff]
  %v680 = vld [vmem:[%s0 + $0x14a0] sm:$0xff]
  %v681 = vld [vmem:[%s0 + $0x14a8] sm:$0xff]
  %v682 = vld [vmem:[%s0 + $0x14b0] sm:$0xff]
  %v683 = vld [vmem:[%s0 + $0x14b8] sm:$0xff]
  %v684 = vld [vmem:[%s0 + $0x14c0] sm:$0xff]
  %v685 = vld [vmem:[%s0 + $0x14c8] sm:$0xff]
  %v686 = vld [vmem:[%s0 + $0x14d0] sm:$0xff]
  %v687 = vld [vmem:[%s0 + $0x14d8] sm:$0xff]
  %v688 = vld [vmem:[%s0 + $0x14e0] sm:$0xff]
  %v689 = vld [vmem:[%s0 + $0x14e8] sm:$0xff]
  %v690 = vld [vmem:[%s0 + $0x14f0] sm:$0xff]
  %v691 = vld [vmem:[%s0 + $0x14f8] sm:$0xff]
  %v692 = vld [vmem:[%s0 + $0x1500] sm:$0xff]
  %v693 = vld [vmem:[%s0 + $0x1508] sm:$0xff]
  %v694 = vld [vmem:[%s0 + $0x1510] sm:$0xff]
  %v695 = vld [vmem:[%s0 + $0x1518] sm:$0xff]
  %v696 = vld [vmem:[%s0 + $0x1520] sm:$0xff]
  %v697 = vld [vmem:[%s0 + $0x1528] sm:$0xff]
  %v698 = vld [vmem:[%s0 + $0x1530] sm:$0xff]
  %v699 = vld [vmem:[%s0 + $0x1538] sm:$0xff]
  %v700 = vld [vmem:[%s0 + $0x1540] sm:$0xff]
  %v701 = vld [vmem:[%s0 + $0x1548] sm:$0xff]
  %v702 = vld [vmem:[%s0 + $0x1550] sm:$0xff]
  %v703 = vld [vmem:[%s0 + $0x1558] sm:$0xff]
  %v704 = vld [vmem:[%s0 + $0x1560] sm:$0xff]
  %v705 = vld [vmem:[%s0 + $0x1568] sm:$0xff]
  %v706 = vld [vmem:[%s0 + $0x1570] sm:$0xff]
  %v707 = vld [vmem:[%s0 + $0x1578] sm:$0xff]
  %v708 = vld [vmem:[%s0 + $0x1580] sm:$0xff]
  %v709 = vld [vmem:[%s0 + $0x1588] sm:$0xff]
  %v710 = vld [vmem:[%s0 + $0x1590] sm:$0xff]
  %v711 = vld [vmem:[%s0 + $0x1598] sm:$0xff]
  %v712 = vld [vmem:[%s0 + $0x15a0] sm:$0xff]
  %v713 = vld [vmem:[%s0 + $0x15a8] sm:$0xff]
  %v714 = vld [vmem:[%s0 + $0x15b0] sm:$0xff]
  %v715 = vld [vmem:[%s0 + $0x15b8] sm:$0xff]
  %v716 = vld [vmem:[%s0 + $0x15c0] sm:$0xff]
  %v717 = vld [vmem:[%s0 + $0x15c8] sm:$0xff]
  %v718 = vld [vmem:[%s0 + $0x15d0] sm:$0xff]
  %v719 = vld [vmem:[%s0 + $0x15d8] sm:$0xff]
  %v720 = vld [vmem:[%s0 + $0x15e0] sm:$0xff]
  %v721 = vld [vmem:[%s0 + $0x15e8] sm:$0xff]
  %v722 = vld [vmem:[%s0 + $0x15f0] sm:$0xff]
  %v723 = vld [vmem:[%s0 + $0x15f8] sm:$0xff]
  %v724 = vld [vmem:[%s0 + $0x1600] sm:$0xff]
  %v725 = vld [vmem:[%s0 + $0x1608] sm:$0xff]
  %v726 = vld [vmem:[%s0 + $0x1610] sm:$0xff]
  %v727 = vld [vmem:[%s0 + $0x1618] sm:$0xff]
  %v728 = vld [vmem:[%s0 + $0x1620] sm:$0xff]
  %v729 = vld [vmem:[%s0 + $0x1628] sm:$0xff]
  %v730 = vld [vmem:[%s0 + $0x1630] sm:$0xff]
  %v731 = vld [vmem:[%s0 + $0x1638] sm:$0xff]
  %v732 = vld [vmem:[%s0 + $0x1640] sm:$0xff]
  %v733 = vld [vmem:[%s0 + $0x1648] sm:$0xff]
  %v734 = vld [vmem:[%s0 + $0x1650] sm:$0xff]
  %v735 = vld [vmem:[%s0 + $0x1658] sm:$0xff]
  %v736 = vld [vmem:[%s0 + $0x1660] sm:$0xff]
  %v737 = vld [vmem:[%s0 + $0x1668] sm:$0xff]
  %v738 = vld [vmem:[%s0 + $0x1670] sm:$0xff]
  %v739 = vld [vmem:[%s0 + $0x1678] sm:$0xff]
  %v740 = vld [vmem:[%s0 + $0x1680] sm:$0xff]
  %v741 = vld [vmem:[%s0 + $0x1688] sm:$0xff]
  %v742 = vld [vmem:[%s0 + $0x1690] sm:$0xff]
  %v743 = vld [vmem:[%s0 + $0x1698] sm:$0xff]
  %v744 = vld [vmem:[%s0 + $0x16a0] sm:$0xff]
  %v745 = vld [vmem:[%s0 + $0x16a8] sm:$0xff]
  %v746 = vld [vmem:[%s0 + $0x16b0] sm:$0xff]
  %v747 = vld [vmem:[%s0 + $0x16b8] sm:$0xff]
  %v748 = vld [vmem:[%s0 + $0x16c0] sm:$0xff]
  %v749 = vld [vmem:[%s0 + $0x16c8] sm:$0xff]
  %v750 = vld [vmem:[%s0 + $0x16d0] sm:$0xff]
  %v751 = vld [vmem:[%s0 + $0x16d8] sm:$0xff]
  %v752 = vld [vmem:[%s0 + $0x16e0] sm:$0xff]
  %v753 = vld [vmem:[%s0 + $0x16e8] sm:$0xff]
  %v754 = vld [vmem:[%s0 + $0x16f0] sm:$0xff]
  %v755 = vld [vmem:[%s0 + $0x16f8] sm:$0xff]
  %v756 = vld [vmem:[%s0 + $0x1700] sm:$0xff]
  %v757 = vld [vmem:[%s0 + $0x1708] sm:$0xff]
  %v758 = vld [vmem:[%s0 + $0x1710] sm:$0xff]
  %v759 = vld [vmem:[%s0 + $0x1718] sm:$0xff]
  %v760 = vld [vmem:[%s0 + $0x1720] sm:$0xff]
  %v761 = vld [vmem:[%s0 + $0x1728] sm:$0xff]
  %v762 = vld [vmem:[%s0 + $0x1730] sm:$0xff]
  %v763 = vld [vmem:[%s0 + $0x1738] sm:$0xff]
  %v764 = vld [vmem:[%s0 + $0x1740] sm:$0xff]
  %v765 = vld [vmem:[%s0 + $0x1748] sm:$0xff]
  %v766 = vld [vmem:[%s0 + $0x1750] sm:$0xff]
  %v767 = vld [vmem:[%s0 + $0x1758] sm:$0xff]
  %v768 = vld [vmem:[%s0 + $0x1760] sm:$0xff]
  %v769 = vld [vmem:[%s0 + $0x1768] sm:$0xff]
  %v770 = vld [vmem:[%s0 + $0x1770] sm:$0xff]
  %v771 = vld [vmem:[%s0 + $0x1778] sm:$0xff]
  %v772 = vld [vmem:[%s0 + $0x1780] sm:$0xff]
  %v773 = vld [vmem:[%s0 + $0x1788] sm:$0xff]
  %v774 = vld [vmem:[%s0 + $0x1790] sm:$0xff]
  %v775 = vld [vmem:[%s0 + $0x1798] sm:$0xff]
  %v776 = vld [vmem:[%s0 + $0x17a0] sm:$0xff]
  %v777 = vld [vmem:[%s0 + $0x17a8] sm:$0xff]
  %v778 = vld [vmem:[%s0 + $0x17b0] sm:$0xff]
  %v779 = vld [vmem:[%s0 + $0x17b8] sm:$0xff]
  %v780 = vld [vmem:[%s0 + $0x17c0] sm:$0xff]
  %v781 = vld [vmem:[%s0 + $0x17c8] sm:$0xff]
  %v782 = vld [vmem:[%s0 + $0x17d0] sm:$0xff]
  %v783 = vld [vmem:[%s0 + $0x17d8] sm:$0xff]
  %v784 = vld [vmem:[%s0 + $0x17e0] sm:$0xff]
  %v785 = vld [vmem:[%s0 + $0x17e8] sm:$0xff]
  %v786 = vld [vmem:[%s0 + $0x17f0] sm:$0xff]
  %v787 = vld [vmem:[%s0 + $0x17f8] sm:$0xff]
  %v788 = vld [vmem:[%s0 + $0x1800] sm:$0xff]
  %v789 = vld [vmem:[%s0 + $0x1808] sm:$0xff]
  %v790 = vld [vmem:[%s0 + $0x1810] sm:$0xff]
  %v791 = vld [vmem:[%s0 + $0x1818] sm:$0xff]
  %v792 = vld [vmem:[%s0 + $0x1820] sm:$0xff]
  %v793 = vld [vmem:[%s0 + $0x1828] sm:$0xff]
  %v794 = vld [vmem:[%s0 + $0x1830] sm:$0xff]
  %v795 = vld [vmem:[%s0 + $0x1838] sm:$0xff]
  %v796 = vld [vmem:[%s0 + $0x1840] sm:$0xff]
  %v797 = vld [vmem:[%s0 + $0x1848] sm:$0xff]
  %v798 = vld [vmem:[%s0 + $0x1850] sm:$0xff]
  %v799 = vld [vmem:[%s0 + $0x1858] sm:$0xff]
  %v800 = vld [vmem:[%s0 + $0x1860] sm:$0xff]
  %v801 = vld [vmem:[%s0 + $0x1868] sm:$0xff]
  %v802 = vld [vmem:[%s0 + $0x1870] sm:$0xff]
  %v803 = vld [vmem:[%s0 + $0x1878] sm:$0xff]
  %v804 = vld [vmem:[%s1] sm:$0xff]
  %v805 = vld [vmem:[%s1 + $0x8] sm:$0xff]
  %v806 = vld [vmem:[%s1 + $0x10] sm:$0xff]
  %v807 = vld [vmem:[%s1 + $0x18] sm:$0xff]
  %v808 = vld [vmem:[%s1 + $0x20] sm:$0xff]
  %v809 = vld [vmem:[%s1 + $0x28] sm:$0xff]
  %v810 = vld [vmem:[%s1 + $0x30] sm:$0xff]
  %v811 = vld [vmem:[%s1 + $0x38] sm:$0xff]
  %v812 = vld [vmem:[%s1 + $0x40] sm:$0xff]
  %v813 = vld [vmem:[%s1 + $0x48] sm:$0x7]
  %v814 = vld [vmem:[%s2] sm:$0x1]
  %v816 = vperm.slane %v814, 0
  %vm818 = vcmask 613376
  %v820 = vsel %vm818, %v20, 0
  %v823 = vsel %vm818, %v21, 0
  %v826 = vsel %vm818, %v22, 0
  %v829 = vsel %vm818, %v23, 0
  %v832 = vsel %vm818, %v24, 0
  %v835 = vsel %vm818, %v25, 0
  %v838 = vsel %vm818, %v26, 0
  %v841 = vsel %vm818, %v27, 0
  %v844 = vsel %vm818, %v28, 0
  %v847 = vsel %vm818, %v29, 0
  %v850 = vsel %vm818, %v30, 0
  %v853 = vsel %vm818, %v31, 0
  %v856 = vsel %vm818, %v32, 0
  %v859 = vsel %vm818, %v33, 0
  %v862 = vsel %vm818, %v34, 0
  %v865 = vsel %vm818, %v35, 0
  %v868 = vsel %vm818, %v36, 0
  %v871 = vsel %vm818, %v37, 0
  %v874 = vsel %vm818, %v38, 0
  %v877 = vsel %vm818, %v39, 0
  %v880 = vsel %vm818, %v40, 0
  %v883 = vsel %vm818, %v41, 0
  %v886 = vsel %vm818, %v42, 0
  %v889 = vsel %vm818, %v43, 0
  %v892 = vsel %vm818, %v44, 0
  %v895 = vsel %vm818, %v45, 0
  %v898 = vsel %vm818, %v46, 0
  %v901 = vsel %vm818, %v47, 0
  %v904 = vsel %vm818, %v48, 0
  %v907 = vsel %vm818, %v49, 0
  %v910 = vsel %vm818, %v50, 0
  %v913 = vsel %vm818, %v51, 0
  %v916 = vsel %vm818, %v52, 0
  %v919 = vsel %vm818, %v53, 0
  %v922 = vsel %vm818, %v54, 0
  %v925 = vsel %vm818, %v55, 0
  %v928 = vsel %vm818, %v56, 0
  %v931 = vsel %vm818, %v57, 0
  %v934 = vsel %vm818, %v58, 0
  %v937 = vsel %vm818, %v59, 0
  %v940 = vsel %vm818, %v60, 0
  %v943 = vsel %vm818, %v61, 0
  %v946 = vsel %vm818, %v62, 0
  %v949 = vsel %vm818, %v63, 0
  %v952 = vsel %vm818, %v64, 0
  %v955 = vsel %vm818, %v65, 0
  %v958 = vsel %vm818, %v66, 0
  %v961 = vsel %vm818, %v67, 0
  %v964 = vsel %vm818, %v68, 0
  %v967 = vsel %vm818, %v69, 0
  %v970 = vsel %vm818, %v70, 0
  %v973 = vsel %vm818, %v71, 0
  %v976 = vsel %vm818, %v72, 0
  %v979 = vsel %vm818, %v73, 0
  %v982 = vsel %vm818, %v74, 0
  %v985 = vsel %vm818, %v75, 0
  %v988 = vsel %vm818, %v76, 0
  %v991 = vsel %vm818, %v77, 0
  %v994 = vsel %vm818, %v78, 0
  %v997 = vsel %vm818, %v79, 0
  %v1000 = vsel %vm818, %v80, 0
  %v1003 = vsel %vm818, %v81, 0
  %v1006 = vsel %vm818, %v82, 0
  %v1009 = vsel %vm818, %v83, 0
  %v1012 = vsel %vm818, %v84, 0
  %v1015 = vsel %vm818, %v85, 0
  %v1018 = vsel %vm818, %v86, 0
  %v1021 = vsel %vm818, %v87, 0
  %v1024 = vsel %vm818, %v88, 0
  %v1027 = vsel %vm818, %v89, 0
  %v1030 = vsel %vm818, %v90, 0
  %v1033 = vsel %vm818, %v91, 0
  %v1036 = vsel %vm818, %v92, 0
  %v1039 = vsel %vm818, %v93, 0
  %v1042 = vsel %vm818, %v94, 0
  %v1045 = vsel %vm818, %v95, 0
  %v1048 = vsel %vm818, %v96, 0
  %v1051 = vsel %vm818, %v97, 0
  %v1054 = vsel %vm818, %v98, 0
  %v1057 = vsel %vm818, %v99, 0
  %v1060 = vsel %vm818, %v100, 0
  %v1063 = vsel %vm818, %v101, 0
  %v1066 = vsel %vm818, %v102, 0
  %v1069 = vsel %vm818, %v103, 0
  %v1072 = vsel %vm818, %v104, 0
  %v1075 = vsel %vm818, %v105, 0
  %v1078 = vsel %vm818, %v106, 0
  %v1081 = vsel %vm818, %v107, 0
  %v1084 = vsel %vm818, %v108, 0
  %v1087 = vsel %vm818, %v109, 0
  %v1090 = vsel %vm818, %v110, 0
  %v1093 = vsel %vm818, %v111, 0
  %v1096 = vsel %vm818, %v112, 0
  %v1099 = vsel %vm818, %v113, 0
  %v1102 = vsel %vm818, %v114, 0
  %v1105 = vsel %vm818, %v115, 0
  %v1108 = vsel %vm818, %v116, 0
  %v1111 = vsel %vm818, %v117, 0
  %v1114 = vsel %vm818, %v118, 0
  %v1117 = vsel %vm818, %v119, 0
  %v1120 = vsel %vm818, %v120, 0
  %v1123 = vsel %vm818, %v121, 0
  %v1126 = vsel %vm818, %v122, 0
  %v1129 = vsel %vm818, %v123, 0
  %v1132 = vsel %vm818, %v124, 0
  %v1135 = vsel %vm818, %v125, 0
  %v1138 = vsel %vm818, %v126, 0
  %v1141 = vsel %vm818, %v127, 0
  %v1144 = vsel %vm818, %v128, 0
  %v1147 = vsel %vm818, %v129, 0
  %v1150 = vsel %vm818, %v130, 0
  %v1153 = vsel %vm818, %v131, 0
  %v1156 = vsel %vm818, %v132, 0
  %v1159 = vsel %vm818, %v133, 0
  %v1162 = vsel %vm818, %v134, 0
  %v1165 = vsel %vm818, %v135, 0
  %v1168 = vsel %vm818, %v136, 0
  %v1171 = vsel %vm818, %v137, 0
  %v1174 = vsel %vm818, %v138, 0
  %v1177 = vsel %vm818, %v139, 0
  %v1180 = vsel %vm818, %v140, 0
  %v1183 = vsel %vm818, %v141, 0
  %v1186 = vsel %vm818, %v142, 0
  %v1189 = vsel %vm818, %v143, 0
  %v1192 = vsel %vm818, %v144, 0
  %v1195 = vsel %vm818, %v145, 0
  %v1198 = vsel %vm818, %v146, 0
  %v1201 = vsel %vm818, %v147, 0
  %v1204 = vsel %vm818, %v148, 0
  %v1207 = vsel %vm818, %v149, 0
  %v1210 = vsel %vm818, %v150, 0
  %v1213 = vsel %vm818, %v151, 0
  %v1216 = vsel %vm818, %v152, 0
  %v1219 = vsel %vm818, %v153, 0
  %v1222 = vsel %vm818, %v154, 0
  %v1225 = vsel %vm818, %v155, 0
  %v1228 = vsel %vm818, %v156, 0
  %v1231 = vsel %vm818, %v157, 0
  %v1234 = vsel %vm818, %v158, 0
  %v1237 = vsel %vm818, %v159, 0
  %v1240 = vsel %vm818, %v160, 0
  %v1243 = vsel %vm818, %v161, 0
  %v1246 = vsel %vm818, %v162, 0
  %v1249 = vsel %vm818, %v163, 0
  %v1252 = vsel %vm818, %v164, 0
  %v1255 = vsel %vm818, %v165, 0
  %v1258 = vsel %vm818, %v166, 0
  %v1261 = vsel %vm818, %v167, 0
  %v1264 = vsel %vm818, %v168, 0
  %v1267 = vsel %vm818, %v169, 0
  %v1270 = vsel %vm818, %v170, 0
  %v1273 = vsel %vm818, %v171, 0
  %v1276 = vsel %vm818, %v172, 0
  %v1279 = vsel %vm818, %v173, 0
  %v1282 = vsel %vm818, %v174, 0
  %v1285 = vsel %vm818, %v175, 0
  %v1288 = vsel %vm818, %v176, 0
  %v1291 = vsel %vm818, %v177, 0
  %v1294 = vsel %vm818, %v178, 0
  %v1297 = vsel %vm818, %v179, 0
  %v1300 = vsel %vm818, %v180, 0
  %v1303 = vsel %vm818, %v181, 0
  %v1306 = vsel %vm818, %v182, 0
  %v1309 = vsel %vm818, %v183, 0
  %v1312 = vsel %vm818, %v184, 0
  %v1315 = vsel %vm818, %v185, 0
  %v1318 = vsel %vm818, %v186, 0
  %v1321 = vsel %vm818, %v187, 0
  %v1324 = vsel %vm818, %v188, 0
  %v1327 = vsel %vm818, %v189, 0
  %v1330 = vsel %vm818, %v190, 0
  %v1333 = vsel %vm818, %v191, 0
  %v1336 = vsel %vm818, %v192, 0
  %v1339 = vsel %vm818, %v193, 0
  %v1342 = vsel %vm818, %v194, 0
  %v1345 = vsel %vm818, %v195, 0
  %v1348 = vsel %vm818, %v196, 0
  %v1351 = vsel %vm818, %v197, 0
  %v1354 = vsel %vm818, %v198, 0
  %v1357 = vsel %vm818, %v199, 0
  %v1360 = vsel %vm818, %v200, 0
  %v1363 = vsel %vm818, %v201, 0
  %v1366 = vsel %vm818, %v202, 0
  %v1369 = vsel %vm818, %v203, 0
  %v1372 = vsel %vm818, %v204, 0
  %v1375 = vsel %vm818, %v205, 0
  %v1378 = vsel %vm818, %v206, 0
  %v1381 = vsel %vm818, %v207, 0
  %v1384 = vsel %vm818, %v208, 0
  %v1387 = vsel %vm818, %v209, 0
  %v1390 = vsel %vm818, %v210, 0
  %v1393 = vsel %vm818, %v211, 0
  %v1396 = vsel %vm818, %v212, 0
  %v1399 = vsel %vm818, %v213, 0
  %v1402 = vsel %vm818, %v214, 0
  %v1405 = vsel %vm818, %v215, 0
  %v1408 = vsel %vm818, %v216, 0
  %v1411 = vsel %vm818, %v217, 0
  %v1414 = vsel %vm818, %v218, 0
  %v1417 = vsel %vm818, %v219, 0
  %v1420 = vsel %vm818, %v220, 0
  %v1423 = vsel %vm818, %v221, 0
  %v1426 = vsel %vm818, %v222, 0
  %v1429 = vsel %vm818, %v223, 0
  %v1432 = vsel %vm818, %v224, 0
  %v1435 = vsel %vm818, %v225, 0
  %v1438 = vsel %vm818, %v226, 0
  %v1441 = vsel %vm818, %v227, 0
  %v1444 = vsel %vm818, %v228, 0
  %v1447 = vsel %vm818, %v229, 0
  %v1450 = vsel %vm818, %v230, 0
  %v1453 = vsel %vm818, %v231, 0
  %v1456 = vsel %vm818, %v232, 0
  %v1459 = vsel %vm818, %v233, 0
  %v1462 = vsel %vm818, %v234, 0
  %v1465 = vsel %vm818, %v235, 0
  %v1468 = vsel %vm818, %v236, 0
  %v1471 = vsel %vm818, %v237, 0
  %v1474 = vsel %vm818, %v238, 0
  %v1477 = vsel %vm818, %v239, 0
  %v1480 = vsel %vm818, %v240, 0
  %v1483 = vsel %vm818, %v241, 0
  %v1486 = vsel %vm818, %v242, 0
  %v1489 = vsel %vm818, %v243, 0
  %v1492 = vsel %vm818, %v244, 0
  %v1495 = vsel %vm818, %v245, 0
  %v1498 = vsel %vm818, %v246, 0
  %v1501 = vsel %vm818, %v247, 0
  %v1504 = vsel %vm818, %v248, 0
  %v1507 = vsel %vm818, %v249, 0
  %v1510 = vsel %vm818, %v250, 0
  %v1513 = vsel %vm818, %v251, 0
  %v1516 = vsel %vm818, %v252, 0
  %v1519 = vsel %vm818, %v253, 0
  %v1522 = vsel %vm818, %v254, 0
  %v1525 = vsel %vm818, %v255, 0
  %v1528 = vsel %vm818, %v256, 0
  %v1531 = vsel %vm818, %v257, 0
  %v1534 = vsel %vm818, %v258, 0
  %v1537 = vsel %vm818, %v259, 0
  %v1540 = vsel %vm818, %v260, 0
  %v1543 = vsel %vm818, %v261, 0
  %v1546 = vsel %vm818, %v262, 0
  %v1549 = vsel %vm818, %v263, 0
  %v1552 = vsel %vm818, %v264, 0
  %v1555 = vsel %vm818, %v265, 0
  %v1558 = vsel %vm818, %v266, 0
  %v1561 = vsel %vm818, %v267, 0
  %v1564 = vsel %vm818, %v268, 0
  %v1567 = vsel %vm818, %v269, 0
  %v1570 = vsel %vm818, %v270, 0
  %v1573 = vsel %vm818, %v271, 0
  %v1576 = vsel %vm818, %v272, 0
  %v1579 = vsel %vm818, %v273, 0
  %v1582 = vsel %vm818, %v274, 0
  %v1585 = vsel %vm818, %v275, 0
  %v1588 = vsel %vm818, %v276, 0
  %v1591 = vsel %vm818, %v277, 0
  %v1594 = vsel %vm818, %v278, 0
  %v1597 = vsel %vm818, %v279, 0
  %v1600 = vsel %vm818, %v280, 0
  %v1603 = vsel %vm818, %v281, 0
  %v1606 = vsel %vm818, %v282, 0
  %v1609 = vsel %vm818, %v283, 0
  %v1612 = vsel %vm818, %v284, 0
  %v1615 = vsel %vm818, %v285, 0
  %v1618 = vsel %vm818, %v286, 0
  %v1621 = vsel %vm818, %v287, 0
  %v1624 = vsel %vm818, %v288, 0
  %v1627 = vsel %vm818, %v289, 0
  %v1630 = vsel %vm818, %v290, 0
  %v1633 = vsel %vm818, %v291, 0
  %v1636 = vsel %vm818, %v292, 0
  %v1639 = vsel %vm818, %v293, 0
  %v1642 = vsel %vm818, %v294, 0
  %v1645 = vsel %vm818, %v295, 0
  %v1648 = vsel %vm818, %v296, 0
  %v1651 = vsel %vm818, %v297, 0
  %v1654 = vsel %vm818, %v298, 0
  %v1657 = vsel %vm818, %v299, 0
  %v1660 = vsel %vm818, %v300, 0
  %v1663 = vsel %vm818, %v301, 0
  %v1666 = vsel %vm818, %v302, 0
  %v1669 = vsel %vm818, %v303, 0
  %v1672 = vsel %vm818, %v304, 0
  %v1675 = vsel %vm818, %v305, 0
  %v1678 = vsel %vm818, %v306, 0
  %v1681 = vsel %vm818, %v307, 0
  %v1684 = vsel %vm818, %v308, 0
  %v1687 = vsel %vm818, %v309, 0
  %v1690 = vsel %vm818, %v310, 0
  %v1693 = vsel %vm818, %v311, 0
  %v1696 = vsel %vm818, %v312, 0
  %v1699 = vsel %vm818, %v313, 0
  %v1702 = vsel %vm818, %v314, 0
  %v1705 = vsel %vm818, %v315, 0
  %v1708 = vsel %vm818, %v316, 0
  %v1711 = vsel %vm818, %v317, 0
  %v1714 = vsel %vm818, %v318, 0
  %v1717 = vsel %vm818, %v319, 0
  %v1720 = vsel %vm818, %v320, 0
  %v1723 = vsel %vm818, %v321, 0
  %v1726 = vsel %vm818, %v322, 0
  %v1729 = vsel %vm818, %v323, 0
  %v1732 = vsel %vm818, %v324, 0
  %v1735 = vsel %vm818, %v325, 0
  %v1738 = vsel %vm818, %v326, 0
  %v1741 = vsel %vm818, %v327, 0
  %v1744 = vsel %vm818, %v328, 0
  %v1747 = vsel %vm818, %v329, 0
  %v1750 = vsel %vm818, %v330, 0
  %v1753 = vsel %vm818, %v331, 0
  %v1756 = vsel %vm818, %v332, 0
  %v1759 = vsel %vm818, %v333, 0
  %v1762 = vsel %vm818, %v334, 0
  %v1765 = vsel %vm818, %v335, 0
  %v1768 = vsel %vm818, %v336, 0
  %v1771 = vsel %vm818, %v337, 0
  %v1774 = vsel %vm818, %v338, 0
  %v1777 = vsel %vm818, %v339, 0
  %v1780 = vsel %vm818, %v340, 0
  %v1783 = vsel %vm818, %v341, 0
  %v1786 = vsel %vm818, %v342, 0
  %v1789 = vsel %vm818, %v343, 0
  %v1792 = vsel %vm818, %v344, 0
  %v1795 = vsel %vm818, %v345, 0
  %v1798 = vsel %vm818, %v346, 0
  %v1801 = vsel %vm818, %v347, 0
  %v1804 = vsel %vm818, %v348, 0
  %v1807 = vsel %vm818, %v349, 0
  %v1810 = vsel %vm818, %v350, 0
  %v1813 = vsel %vm818, %v351, 0
  %v1816 = vsel %vm818, %v352, 0
  %v1819 = vsel %vm818, %v353, 0
  %v1822 = vsel %vm818, %v354, 0
  %v1825 = vsel %vm818, %v355, 0
  %v1828 = vsel %vm818, %v356, 0
  %v1831 = vsel %vm818, %v357, 0
  %v1834 = vsel %vm818, %v358, 0
  %v1837 = vsel %vm818, %v359, 0
  %v1840 = vsel %vm818, %v360, 0
  %v1843 = vsel %vm818, %v361, 0
  %v1846 = vsel %vm818, %v362, 0
  %v1849 = vsel %vm818, %v363, 0
  %v1852 = vsel %vm818, %v364, 0
  %v1855 = vsel %vm818, %v365, 0
  %v1858 = vsel %vm818, %v366, 0
  %v1861 = vsel %vm818, %v367, 0
  %v1864 = vsel %vm818, %v368, 0
  %v1867 = vsel %vm818, %v369, 0
  %v1870 = vsel %vm818, %v370, 0
  %v1873 = vsel %vm818, %v371, 0
  %v1876 = vsel %vm818, %v372, 0
  %v1879 = vsel %vm818, %v373, 0
  %v1882 = vsel %vm818, %v374, 0
  %v1885 = vsel %vm818, %v375, 0
  %v1888 = vsel %vm818, %v376, 0
  %v1891 = vsel %vm818, %v377, 0
  %v1894 = vsel %vm818, %v378, 0
  %v1897 = vsel %vm818, %v379, 0
  %v1900 = vsel %vm818, %v380, 0
  %v1903 = vsel %vm818, %v381, 0
  %v1906 = vsel %vm818, %v382, 0
  %v1909 = vsel %vm818, %v383, 0
  %v1912 = vsel %vm818, %v384, 0
  %v1915 = vsel %vm818, %v385, 0
  %v1918 = vsel %vm818, %v386, 0
  %v1921 = vsel %vm818, %v387, 0
  %v1924 = vsel %vm818, %v388, 0
  %v1927 = vsel %vm818, %v389, 0
  %v1930 = vsel %vm818, %v390, 0
  %v1933 = vsel %vm818, %v391, 0
  %v1936 = vsel %vm818, %v392, 0
  %v1939 = vsel %vm818, %v393, 0
  %v1942 = vsel %vm818, %v394, 0
  %v1945 = vsel %vm818, %v395, 0
  %v1948 = vsel %vm818, %v396, 0
  %v1951 = vsel %vm818, %v397, 0
  %v1954 = vsel %vm818, %v398, 0
  %v1957 = vsel %vm818, %v399, 0
  %v1960 = vsel %vm818, %v400, 0
  %v1963 = vsel %vm818, %v401, 0
  %v1966 = vsel %vm818, %v402, 0
  %v1969 = vsel %vm818, %v403, 0
  %v1972 = vsel %vm818, %v404, 0
  %v1975 = vsel %vm818, %v405, 0
  %v1978 = vsel %vm818, %v406, 0
  %v1981 = vsel %vm818, %v407, 0
  %v1984 = vsel %vm818, %v408, 0
  %v1987 = vsel %vm818, %v409, 0
  %v1990 = vsel %vm818, %v410, 0
  %v1993 = vsel %vm818, %v411, 0
  %v1996 = vsel %vm818, %v412, 0
  %v1999 = vsel %vm818, %v413, 0
  %v2002 = vsel %vm818, %v414, 0
  %v2005 = vsel %vm818, %v415, 0
  %v2008 = vsel %vm818, %v416, 0
  %v2011 = vsel %vm818, %v417, 0
  %v2014 = vsel %vm818, %v418, 0
  %v2017 = vsel %vm818, %v419, 0
  %v2020 = vsel %vm818, %v420, 0
  %v2023 = vsel %vm818, %v421, 0
  %v2026 = vsel %vm818, %v422, 0
  %v2029 = vsel %vm818, %v423, 0
  %v2032 = vsel %vm818, %v424, 0
  %v2035 = vsel %vm818, %v425, 0
  %v2038 = vsel %vm818, %v426, 0
  %v2041 = vsel %vm818, %v427, 0
  %v2044 = vsel %vm818, %v428, 0
  %v2047 = vsel %vm818, %v429, 0
  %v2050 = vsel %vm818, %v430, 0
  %v2053 = vsel %vm818, %v431, 0
  %v2056 = vsel %vm818, %v432, 0
  %v2059 = vsel %vm818, %v433, 0
  %v2062 = vsel %vm818, %v434, 0
  %v2065 = vsel %vm818, %v435, 0
  %v2068 = vsel %vm818, %v436, 0
  %v2071 = vsel %vm818, %v437, 0
  %v2074 = vsel %vm818, %v438, 0
  %v2077 = vsel %vm818, %v439, 0
  %v2080 = vsel %vm818, %v440, 0
  %v2083 = vsel %vm818, %v441, 0
  %v2086 = vsel %vm818, %v442, 0
  %v2089 = vsel %vm818, %v443, 0
  %v2092 = vsel %vm818, %v444, 0
  %v2095 = vsel %vm818, %v445, 0
  %v2098 = vsel %vm818, %v446, 0
  %v2101 = vsel %vm818, %v447, 0
  %v2104 = vsel %vm818, %v448, 0
  %v2107 = vsel %vm818, %v449, 0
  %v2110 = vsel %vm818, %v450, 0
  %v2113 = vsel %vm818, %v451, 0
  %v2116 = vsel %vm818, %v452, 0
  %v2119 = vsel %vm818, %v453, 0
  %v2122 = vsel %vm818, %v454, 0
  %v2125 = vsel %vm818, %v455, 0
  %v2128 = vsel %vm818, %v456, 0
  %v2131 = vsel %vm818, %v457, 0
  %v2134 = vsel %vm818, %v458, 0
  %v2137 = vsel %vm818, %v459, 0
  %v2140 = vsel %vm818, %v460, 0
  %v2143 = vsel %vm818, %v461, 0
  %v2146 = vsel %vm818, %v462, 0
  %v2149 = vsel %vm818, %v463, 0
  %v2152 = vsel %vm818, %v464, 0
  %v2155 = vsel %vm818, %v465, 0
  %v2158 = vsel %vm818, %v466, 0
  %v2161 = vsel %vm818, %v467, 0
  %v2164 = vsel %vm818, %v468, 0
  %v2167 = vsel %vm818, %v469, 0
  %v2170 = vsel %vm818, %v470, 0
  %v2173 = vsel %vm818, %v471, 0
  %v2176 = vsel %vm818, %v472, 0
  %v2179 = vsel %vm818, %v473, 0
  %v2182 = vsel %vm818, %v474, 0
  %v2185 = vsel %vm818, %v475, 0
  %v2188 = vsel %vm818, %v476, 0
  %v2191 = vsel %vm818, %v477, 0
  %v2194 = vsel %vm818, %v478, 0
  %v2197 = vsel %vm818, %v479, 0
  %v2200 = vsel %vm818, %v480, 0
  %v2203 = vsel %vm818, %v481, 0
  %v2206 = vsel %vm818, %v482, 0
  %v2209 = vsel %vm818, %v483, 0
  %v2212 = vsel %vm818, %v484, 0
  %v2215 = vsel %vm818, %v485, 0
  %v2218 = vsel %vm818, %v486, 0
  %v2221 = vsel %vm818, %v487, 0
  %v2224 = vsel %vm818, %v488, 0
  %v2227 = vsel %vm818, %v489, 0
  %v2230 = vsel %vm818, %v490, 0
  %v2233 = vsel %vm818, %v491, 0
  %v2236 = vsel %vm818, %v492, 0
  %v2239 = vsel %vm818, %v493, 0
  %v2242 = vsel %vm818, %v494, 0
  %v2245 = vsel %vm818, %v495, 0
  %v2248 = vsel %vm818, %v496, 0
  %v2251 = vsel %vm818, %v497, 0
  %v2254 = vsel %vm818, %v498, 0
  %v2257 = vsel %vm818, %v499, 0
  %v2260 = vsel %vm818, %v500, 0
  %v2263 = vsel %vm818, %v501, 0
  %v2266 = vsel %vm818, %v502, 0
  %v2269 = vsel %vm818, %v503, 0
  %v2272 = vsel %vm818, %v504, 0
  %v2275 = vsel %vm818, %v505, 0
  %v2278 = vsel %vm818, %v506, 0
  %v2281 = vsel %vm818, %v507, 0
  %v2284 = vsel %vm818, %v508, 0
  %v2287 = vsel %vm818, %v509, 0
  %v2290 = vsel %vm818, %v510, 0
  %v2293 = vsel %vm818, %v511, 0
  %v2296 = vsel %vm818, %v512, 0
  %v2299 = vsel %vm818, %v513, 0
  %v2302 = vsel %vm818, %v514, 0
  %v2305 = vsel %vm818, %v515, 0
  %v2308 = vsel %vm818, %v516, 0
  %v2311 = vsel %vm818, %v517, 0
  %v2314 = vsel %vm818, %v518, 0
  %v2317 = vsel %vm818, %v519, 0
  %v2320 = vsel %vm818, %v520, 0
  %v2323 = vsel %vm818, %v521, 0
  %v2326 = vsel %vm818, %v522, 0
  %v2329 = vsel %vm818, %v523, 0
  %v2332 = vsel %vm818, %v524, 0
  %v2335 = vsel %vm818, %v525, 0
  %v2338 = vsel %vm818, %v526, 0
  %v2341 = vsel %vm818, %v527, 0
  %v2344 = vsel %vm818, %v528, 0
  %v2347 = vsel %vm818, %v529, 0
  %v2350 = vsel %vm818, %v530, 0
  %v2353 = vsel %vm818, %v531, 0
  %v2356 = vsel %vm818, %v532, 0
  %v2359 = vsel %vm818, %v533, 0
  %v2362 = vsel %vm818, %v534, 0
  %v2365 = vsel %vm818, %v535, 0
  %v2368 = vsel %vm818, %v536, 0
  %v2371 = vsel %vm818, %v537, 0
  %v2374 = vsel %vm818, %v538, 0
  %v2377 = vsel %vm818, %v539, 0
  %v2380 = vsel %vm818, %v540, 0
  %v2383 = vsel %vm818, %v541, 0
  %v2386 = vsel %vm818, %v542, 0
  %v2389 = vsel %vm818, %v543, 0
  %v2392 = vsel %vm818, %v544, 0
  %v2395 = vsel %vm818, %v545, 0
  %v2398 = vsel %vm818, %v546, 0
  %v2401 = vsel %vm818, %v547, 0
  %v2404 = vsel %vm818, %v548, 0
  %v2407 = vsel %vm818, %v549, 0
  %v2410 = vsel %vm818, %v550, 0
  %v2413 = vsel %vm818, %v551, 0
  %v2416 = vsel %vm818, %v552, 0
  %v2419 = vsel %vm818, %v553, 0
  %v2422 = vsel %vm818, %v554, 0
  %v2425 = vsel %vm818, %v555, 0
  %v2428 = vsel %vm818, %v556, 0
  %v2431 = vsel %vm818, %v557, 0
  %v2434 = vsel %vm818, %v558, 0
  %v2437 = vsel %vm818, %v559, 0
  %v2440 = vsel %vm818, %v560, 0
  %v2443 = vsel %vm818, %v561, 0
  %v2446 = vsel %vm818, %v562, 0
  %v2449 = vsel %vm818, %v563, 0
  %v2452 = vsel %vm818, %v564, 0
  %v2455 = vsel %vm818, %v565, 0
  %v2458 = vsel %vm818, %v566, 0
  %v2461 = vsel %vm818, %v567, 0
  %v2464 = vsel %vm818, %v568, 0
  %v2467 = vsel %vm818, %v569, 0
  %v2470 = vsel %vm818, %v570, 0
  %v2473 = vsel %vm818, %v571, 0
  %v2476 = vsel %vm818, %v572, 0
  %v2479 = vsel %vm818, %v573, 0
  %v2482 = vsel %vm818, %v574, 0
  %v2485 = vsel %vm818, %v575, 0
  %v2488 = vsel %vm818, %v576, 0
  %v2491 = vsel %vm818, %v577, 0
  %v2494 = vsel %vm818, %v578, 0
  %v2497 = vsel %vm818, %v579, 0
  %v2500 = vsel %vm818, %v580, 0
  %v2503 = vsel %vm818, %v581, 0
  %v2506 = vsel %vm818, %v582, 0
  %v2509 = vsel %vm818, %v583, 0
  %v2512 = vsel %vm818, %v584, 0
  %v2515 = vsel %vm818, %v585, 0
  %v2518 = vsel %vm818, %v586, 0
  %v2521 = vsel %vm818, %v587, 0
  %v2524 = vsel %vm818, %v588, 0
  %v2527 = vsel %vm818, %v589, 0
  %v2530 = vsel %vm818, %v590, 0
  %v2533 = vsel %vm818, %v591, 0
  %v2536 = vsel %vm818, %v592, 0
  %v2539 = vsel %vm818, %v593, 0
  %v2542 = vsel %vm818, %v594, 0
  %v2545 = vsel %vm818, %v595, 0
  %v2548 = vsel %vm818, %v596, 0
  %v2551 = vsel %vm818, %v597, 0
  %v2554 = vsel %vm818, %v598, 0
  %v2557 = vsel %vm818, %v599, 0
  %v2560 = vsel %vm818, %v600, 0
  %v2563 = vsel %vm818, %v601, 0
  %v2566 = vsel %vm818, %v602, 0
  %v2569 = vsel %vm818, %v603, 0
  %v2572 = vsel %vm818, %v604, 0
  %v2575 = vsel %vm818, %v605, 0
  %v2578 = vsel %vm818, %v606, 0
  %v2581 = vsel %vm818, %v607, 0
  %v2584 = vsel %vm818, %v608, 0
  %v2587 = vsel %vm818, %v609, 0
  %v2590 = vsel %vm818, %v610, 0
  %v2593 = vsel %vm818, %v611, 0
  %v2596 = vsel %vm818, %v612, 0
  %v2599 = vsel %vm818, %v613, 0
  %v2602 = vsel %vm818, %v614, 0
  %v2605 = vsel %vm818, %v615, 0
  %v2608 = vsel %vm818, %v616, 0
  %v2611 = vsel %vm818, %v617, 0
  %v2614 = vsel %vm818, %v618, 0
  %v2617 = vsel %vm818, %v619, 0
  %v2620 = vsel %vm818, %v620, 0
  %v2623 = vsel %vm818, %v621, 0
  %v2626 = vsel %vm818, %v622, 0
  %v2629 = vsel %vm818, %v623, 0
  %v2632 = vsel %vm818, %v624, 0
  %v2635 = vsel %vm818, %v625, 0
  %v2638 = vsel %vm818, %v626, 0
  %v2641 = vsel %vm818, %v627, 0
  %v2644 = vsel %vm818, %v628, 0
  %v2647 = vsel %vm818, %v629, 0
  %v2650 = vsel %vm818, %v630, 0
  %v2653 = vsel %vm818, %v631, 0
  %v2656 = vsel %vm818, %v632, 0
  %v2659 = vsel %vm818, %v633, 0
  %v2662 = vsel %vm818, %v634, 0
  %v2665 = vsel %vm818, %v635, 0
  %v2668 = vsel %vm818, %v636, 0
  %v2671 = vsel %vm818, %v637, 0
  %v2674 = vsel %vm818, %v638, 0
  %v2677 = vsel %vm818, %v639, 0
  %v2680 = vsel %vm818, %v640, 0
  %v2683 = vsel %vm818, %v641, 0
  %v2686 = vsel %vm818, %v642, 0
  %v2689 = vsel %vm818, %v643, 0
  %v2692 = vsel %vm818, %v644, 0
  %v2695 = vsel %vm818, %v645, 0
  %v2698 = vsel %vm818, %v646, 0
  %v2701 = vsel %vm818, %v647, 0
  %v2704 = vsel %vm818, %v648, 0
  %v2707 = vsel %vm818, %v649, 0
  %v2710 = vsel %vm818, %v650, 0
  %v2713 = vsel %vm818, %v651, 0
  %v2716 = vsel %vm818, %v652, 0
  %v2719 = vsel %vm818, %v653, 0
  %v2722 = vsel %vm818, %v654, 0
  %v2725 = vsel %vm818, %v655, 0
  %v2728 = vsel %vm818, %v656, 0
  %v2731 = vsel %vm818, %v657, 0
  %v2734 = vsel %vm818, %v658, 0
  %v2737 = vsel %vm818, %v659, 0
  %v2740 = vsel %vm818, %v660, 0
  %v2743 = vsel %vm818, %v661, 0
  %v2746 = vsel %vm818, %v662, 0
  %v2749 = vsel %vm818, %v663, 0
  %v2752 = vsel %vm818, %v664, 0
  %v2755 = vsel %vm818, %v665, 0
  %v2758 = vsel %vm818, %v666, 0
  %v2761 = vsel %vm818, %v667, 0
  %v2764 = vsel %vm818, %v668, 0
  %v2767 = vsel %vm818, %v669, 0
  %v2770 = vsel %vm818, %v670, 0
  %v2773 = vsel %vm818, %v671, 0
  %v2776 = vsel %vm818, %v672, 0
  %v2779 = vsel %vm818, %v673, 0
  %v2782 = vsel %vm818, %v674, 0
  %v2785 = vsel %vm818, %v675, 0
  %v2788 = vsel %vm818, %v676, 0
  %v2791 = vsel %vm818, %v677, 0
  %v2794 = vsel %vm818, %v678, 0
  %v2797 = vsel %vm818, %v679, 0
  %v2800 = vsel %vm818, %v680, 0
  %v2803 = vsel %vm818, %v681, 0
  %v2806 = vsel %vm818, %v682, 0
  %v2809 = vsel %vm818, %v683, 0
  %v2812 = vsel %vm818, %v684, 0
  %v2815 = vsel %vm818, %v685, 0
  %v2818 = vsel %vm818, %v686, 0
  %v2821 = vsel %vm818, %v687, 0
  %v2824 = vsel %vm818, %v688, 0
  %v2827 = vsel %vm818, %v689, 0
  %v2830 = vsel %vm818, %v690, 0
  %v2833 = vsel %vm818, %v691, 0
  %v2836 = vsel %vm818, %v692, 0
  %v2839 = vsel %vm818, %v693, 0
  %v2842 = vsel %vm818, %v694, 0
  %v2845 = vsel %vm818, %v695, 0
  %v2848 = vsel %vm818, %v696, 0
  %v2851 = vsel %vm818, %v697, 0
  %v2854 = vsel %vm818, %v698, 0
  %v2857 = vsel %vm818, %v699, 0
  %v2860 = vsel %vm818, %v700, 0
  %v2863 = vsel %vm818, %v701, 0
  %v2866 = vsel %vm818, %v702, 0
  %v2869 = vsel %vm818, %v703, 0
  %v2872 = vsel %vm818, %v704, 0
  %v2875 = vsel %vm818, %v705, 0
  %v2878 = vsel %vm818, %v706, 0
  %v2881 = vsel %vm818, %v707, 0
  %v2884 = vsel %vm818, %v708, 0
  %v2887 = vsel %vm818, %v709, 0
  %v2890 = vsel %vm818, %v710, 0
  %v2893 = vsel %vm818, %v711, 0
  %v2896 = vsel %vm818, %v712, 0
  %v2899 = vsel %vm818, %v713, 0
  %v2902 = vsel %vm818, %v714, 0
  %v2905 = vsel %vm818, %v715, 0
  %v2908 = vsel %vm818, %v716, 0
  %v2911 = vsel %vm818, %v717, 0
  %v2914 = vsel %vm818, %v718, 0
  %v2917 = vsel %vm818, %v719, 0
  %v2920 = vsel %vm818, %v720, 0
  %v2923 = vsel %vm818, %v721, 0
  %v2926 = vsel %vm818, %v722, 0
  %v2929 = vsel %vm818, %v723, 0
  %v2932 = vsel %vm818, %v724, 0
  %v2935 = vsel %vm818, %v725, 0
  %v2938 = vsel %vm818, %v726, 0
  %v2941 = vsel %vm818, %v727, 0
  %v2944 = vsel %vm818, %v728, 0
  %v2947 = vsel %vm818, %v729, 0
  %v2950 = vsel %vm818, %v730, 0
  %v2953 = vsel %vm818, %v731, 0
  %v2956 = vsel %vm818, %v732, 0
  %v2959 = vsel %vm818, %v733, 0
  %v2962 = vsel %vm818, %v734, 0
  %v2965 = vsel %vm818, %v735, 0
  %v2968 = vsel %vm818, %v736, 0
  %v2971 = vsel %vm818, %v737, 0
  %v2974 = vsel %vm818, %v738, 0
  %v2977 = vsel %vm818, %v739, 0
  %v2980 = vsel %vm818, %v740, 0
  %v2983 = vsel %vm818, %v741, 0
  %v2986 = vsel %vm818, %v742, 0
  %v2989 = vsel %vm818, %v743, 0
  %v2992 = vsel %vm818, %v744, 0
  %v2995 = vsel %vm818, %v745, 0
  %v2998 = vsel %vm818, %v746, 0
  %v3001 = vsel %vm818, %v747, 0
  %v3004 = vsel %vm818, %v748, 0
  %v3007 = vsel %vm818, %v749, 0
  %v3010 = vsel %vm818, %v750, 0
  %v3013 = vsel %vm818, %v751, 0
  %v3016 = vsel %vm818, %v752, 0
  %v3019 = vsel %vm818, %v753, 0
  %v3022 = vsel %vm818, %v754, 0
  %v3025 = vsel %vm818, %v755, 0
  %v3028 = vsel %vm818, %v756, 0
  %v3031 = vsel %vm818, %v757, 0
  %v3034 = vsel %vm818, %v758, 0
  %v3037 = vsel %vm818, %v759, 0
  %v3040 = vsel %vm818, %v760, 0
  %v3043 = vsel %vm818, %v761, 0
  %v3046 = vsel %vm818, %v762, 0
  %v3049 = vsel %vm818, %v763, 0
  %v3052 = vsel %vm818, %v764, 0
  %v3055 = vsel %vm818, %v765, 0
  %v3058 = vsel %vm818, %v766, 0
  %v3061 = vsel %vm818, %v767, 0
  %v3064 = vsel %vm818, %v768, 0
  %v3067 = vsel %vm818, %v769, 0
  %v3070 = vsel %vm818, %v770, 0
  %v3073 = vsel %vm818, %v771, 0
  %v3076 = vsel %vm818, %v772, 0
  %v3079 = vsel %vm818, %v773, 0
  %v3082 = vsel %vm818, %v774, 0
  %v3085 = vsel %vm818, %v775, 0
  %v3088 = vsel %vm818, %v776, 0
  %v3091 = vsel %vm818, %v777, 0
  %v3094 = vsel %vm818, %v778, 0
  %v3097 = vsel %vm818, %v779, 0
  %v3100 = vsel %vm818, %v780, 0
  %v3103 = vsel %vm818, %v781, 0
  %v3106 = vsel %vm818, %v782, 0
  %v3109 = vsel %vm818, %v783, 0
  %v3112 = vsel %vm818, %v784, 0
  %v3115 = vsel %vm818, %v785, 0
  %v3118 = vsel %vm818, %v786, 0
  %v3121 = vsel %vm818, %v787, 0
  %v3124 = vsel %vm818, %v788, 0
  %v3127 = vsel %vm818, %v789, 0
  %v3130 = vsel %vm818, %v790, 0
  %v3133 = vsel %vm818, %v791, 0
  %v3136 = vsel %vm818, %v792, 0
  %v3139 = vsel %vm818, %v793, 0
  %v3142 = vsel %vm818, %v794, 0
  %v3145 = vsel %vm818, %v795, 0
  %v3148 = vsel %vm818, %v796, 0
  %v3151 = vsel %vm818, %v797, 0
  %v3154 = vsel %vm818, %v798, 0
  %v3157 = vsel %vm818, %v799, 0
  %v3160 = vsel %vm818, %v800, 0
  %v3163 = vsel %vm818, %v801, 0
  %v3166 = vsel %vm818, %v802, 0
  %v3169 = vsel %vm818, %v803, 0
  %vm3171 = vcmask 1042432
  %v3173 = vsel %vm3171, %v813, 0
  %3175 = vmatpush.msra.mxu0 0.0
  %3176 = vmatpush.msra.mxu0 0.0
  %3177 = vmatpush.msra.mxu0 0.0
  %3178 = vmatpush.msra.mxu0 0.0
  %3179 = vmatpush.msra.mxu0 0.0
  %3180 = vmatpush.msra.mxu0 0.0
  %3181 = vmatpush.msra.mxu0 %v3173
  %3182 = vmatpush.msra.mxu0 %v812
  %3183 = vmatpush.msra.mxu0 %v811
  %3184 = vmatpush.msra.mxu0 %v810
  %3185 = vmatpush.msra.mxu0 %v809
  %3186 = vmatpush.msra.mxu0 %v808
  %3187 = vmatpush.msra.mxu0 %v807
  %3188 = vmatpush.msra.mxu0 %v806
  %3189 = vmatpush.msra.mxu0 %v805
  %3190 = vmatpush.msra.mxu0 %v804
  %3191 = vmatmul.f32.gmra.mxu0 %v820
  %v3192 = vpop.f32.mrf.mxu0
  %v3193 = vadd.f32 %v816, %v3192
  %3194 = vmatmul.f32.gmra.mxu0 %v823
  %v3195 = vpop.f32.mrf.mxu0
  %v3196 = vadd.f32 %v816, %v3195
  %3197 = vmatmul.f32.gmra.mxu0 %v826
  %v3198 = vpop.f32.mrf.mxu0
  %v3199 = vadd.f32 %v816, %v3198
  %3200 = vmatmul.f32.gmra.mxu0 %v829
  %v3201 = vpop.f32.mrf.mxu0
  %v3202 = vadd.f32 %v816, %v3201
  %3203 = vmatmul.f32.gmra.mxu0 %v832
  %v3204 = vpop.f32.mrf.mxu0
  %v3205 = vadd.f32 %v816, %v3204
  %3206 = vmatmul.f32.gmra.mxu0 %v835
  %v3207 = vpop.f32.mrf.mxu0
  %v3208 = vadd.f32 %v816, %v3207
  %3209 = vmatmul.f32.gmra.mxu0 %v838
  %v3210 = vpop.f32.mrf.mxu0
  %v3211 = vadd.f32 %v816, %v3210
  %3212 = vmatmul.f32.gmra.mxu0 %v841
  %v3213 = vpop.f32.mrf.mxu0
  %v3214 = vadd.f32 %v816, %v3213
  %3215 = vmatmul.f32.gmra.mxu0 %v844
  %v3216 = vpop.f32.mrf.mxu0
  %v3217 = vadd.f32 %v816, %v3216
  %3218 = vmatmul.f32.gmra.mxu0 %v847
  %v3219 = vpop.f32.mrf.mxu0
  %v3220 = vadd.f32 %v816, %v3219
  %3221 = vmatmul.f32.gmra.mxu0 %v850
  %v3222 = vpop.f32.mrf.mxu0
  %v3223 = vadd.f32 %v816, %v3222
  %3224 = vmatmul.f32.gmra.mxu0 %v853
  %v3225 = vpop.f32.mrf.mxu0
  %v3226 = vadd.f32 %v816, %v3225
  %3227 = vmatmul.f32.gmra.mxu0 %v856
  %v3228 = vpop.f32.mrf.mxu0
  %v3229 = vadd.f32 %v816, %v3228
  %3230 = vmatmul.f32.gmra.mxu0 %v859
  %v3231 = vpop.f32.mrf.mxu0
  %v3232 = vadd.f32 %v816, %v3231
  %3233 = vmatmul.f32.gmra.mxu0 %v862
  %v3234 = vpop.f32.mrf.mxu0
  %v3235 = vadd.f32 %v816, %v3234
  %3236 = vmatmul.f32.gmra.mxu0 %v865
  %v3237 = vpop.f32.mrf.mxu0
  %v3238 = vadd.f32 %v816, %v3237
  %3239 = vmatmul.f32.gmra.mxu0 %v868
  %v3240 = vpop.f32.mrf.mxu0
  %v3241 = vadd.f32 %v816, %v3240
  %3242 = vmatmul.f32.gmra.mxu0 %v871
  %v3243 = vpop.f32.mrf.mxu0
  %v3244 = vadd.f32 %v816, %v3243
  %3245 = vmatmul.f32.gmra.mxu0 %v874
  %v3246 = vpop.f32.mrf.mxu0
  %v3247 = vadd.f32 %v816, %v3246
  %3248 = vmatmul.f32.gmra.mxu0 %v877
  %v3249 = vpop.f32.mrf.mxu0
  %v3250 = vadd.f32 %v816, %v3249
  %3251 = vmatmul.f32.gmra.mxu0 %v880
  %v3252 = vpop.f32.mrf.mxu0
  %v3253 = vadd.f32 %v816, %v3252
  %3254 = vmatmul.f32.gmra.mxu0 %v883
  %v3255 = vpop.f32.mrf.mxu0
  %v3256 = vadd.f32 %v816, %v3255
  %3257 = vmatmul.f32.gmra.mxu0 %v886
  %v3258 = vpop.f32.mrf.mxu0
  %v3259 = vadd.f32 %v816, %v3258
  %3260 = vmatmul.f32.gmra.mxu0 %v889
  %v3261 = vpop.f32.mrf.mxu0
  %v3262 = vadd.f32 %v816, %v3261
  %3263 = vmatmul.f32.gmra.mxu0 %v892
  %v3264 = vpop.f32.mrf.mxu0
  %v3265 = vadd.f32 %v816, %v3264
  %3266 = vmatmul.f32.gmra.mxu0 %v895
  %v3267 = vpop.f32.mrf.mxu0
  %v3268 = vadd.f32 %v816, %v3267
  %3269 = vmatmul.f32.gmra.mxu0 %v898
  %v3270 = vpop.f32.mrf.mxu0
  %v3271 = vadd.f32 %v816, %v3270
  %3272 = vmatmul.f32.gmra.mxu0 %v901
  %v3273 = vpop.f32.mrf.mxu0
  %v3274 = vadd.f32 %v816, %v3273
  %3275 = vmatmul.f32.gmra.mxu0 %v904
  %v3276 = vpop.f32.mrf.mxu0
  %v3277 = vadd.f32 %v816, %v3276
  %3278 = vmatmul.f32.gmra.mxu0 %v907
  %v3279 = vpop.f32.mrf.mxu0
  %v3280 = vadd.f32 %v816, %v3279
  %3281 = vmatmul.f32.gmra.mxu0 %v910
  %v3282 = vpop.f32.mrf.mxu0
  %v3283 = vadd.f32 %v816, %v3282
  %3284 = vmatmul.f32.gmra.mxu0 %v913
  %v3285 = vpop.f32.mrf.mxu0
  %v3286 = vadd.f32 %v816, %v3285
  %3287 = vmatmul.f32.gmra.mxu0 %v916
  %v3288 = vpop.f32.mrf.mxu0
  %v3289 = vadd.f32 %v816, %v3288
  %3290 = vmatmul.f32.gmra.mxu0 %v919
  %v3291 = vpop.f32.mrf.mxu0
  %v3292 = vadd.f32 %v816, %v3291
  %3293 = vmatmul.f32.gmra.mxu0 %v922
  %v3294 = vpop.f32.mrf.mxu0
  %v3295 = vadd.f32 %v816, %v3294
  %3296 = vmatmul.f32.gmra.mxu0 %v925
  %v3297 = vpop.f32.mrf.mxu0
  %v3298 = vadd.f32 %v816, %v3297
  %3299 = vmatmul.f32.gmra.mxu0 %v928
  %v3300 = vpop.f32.mrf.mxu0
  %v3301 = vadd.f32 %v816, %v3300
  %3302 = vmatmul.f32.gmra.mxu0 %v931
  %v3303 = vpop.f32.mrf.mxu0
  %v3304 = vadd.f32 %v816, %v3303
  %3305 = vmatmul.f32.gmra.mxu0 %v934
  %v3306 = vpop.f32.mrf.mxu0
  %v3307 = vadd.f32 %v816, %v3306
  %3308 = vmatmul.f32.gmra.mxu0 %v937
  %v3309 = vpop.f32.mrf.mxu0
  %v3310 = vadd.f32 %v816, %v3309
  %3311 = vmatmul.f32.gmra.mxu0 %v940
  %v3312 = vpop.f32.mrf.mxu0
  %v3313 = vadd.f32 %v816, %v3312
  %3314 = vmatmul.f32.gmra.mxu0 %v943
  %v3315 = vpop.f32.mrf.mxu0
  %v3316 = vadd.f32 %v816, %v3315
  %3317 = vmatmul.f32.gmra.mxu0 %v946
  %v3318 = vpop.f32.mrf.mxu0
  %v3319 = vadd.f32 %v816, %v3318
  %3320 = vmatmul.f32.gmra.mxu0 %v949
  %v3321 = vpop.f32.mrf.mxu0
  %v3322 = vadd.f32 %v816, %v3321
  %3323 = vmatmul.f32.gmra.mxu0 %v952
  %v3324 = vpop.f32.mrf.mxu0
  %v3325 = vadd.f32 %v816, %v3324
  %3326 = vmatmul.f32.gmra.mxu0 %v955
  %v3327 = vpop.f32.mrf.mxu0
  %v3328 = vadd.f32 %v816, %v3327
  %3329 = vmatmul.f32.gmra.mxu0 %v958
  %v3330 = vpop.f32.mrf.mxu0
  %v3331 = vadd.f32 %v816, %v3330
  %3332 = vmatmul.f32.gmra.mxu0 %v961
  %v3333 = vpop.f32.mrf.mxu0
  %v3334 = vadd.f32 %v816, %v3333
  %3335 = vmatmul.f32.gmra.mxu0 %v964
  %v3336 = vpop.f32.mrf.mxu0
  %v3337 = vadd.f32 %v816, %v3336
  %3338 = vmatmul.f32.gmra.mxu0 %v967
  %v3339 = vpop.f32.mrf.mxu0
  %v3340 = vadd.f32 %v816, %v3339
  %3341 = vmatmul.f32.gmra.mxu0 %v970
  %v3342 = vpop.f32.mrf.mxu0
  %v3343 = vadd.f32 %v816, %v3342
  %3344 = vmatmul.f32.gmra.mxu0 %v973
  %v3345 = vpop.f32.mrf.mxu0
  %v3346 = vadd.f32 %v816, %v3345
  %3347 = vmatmul.f32.gmra.mxu0 %v976
  %v3348 = vpop.f32.mrf.mxu0
  %v3349 = vadd.f32 %v816, %v3348
  %3350 = vmatmul.f32.gmra.mxu0 %v979
  %v3351 = vpop.f32.mrf.mxu0
  %v3352 = vadd.f32 %v816, %v3351
  %3353 = vmatmul.f32.gmra.mxu0 %v982
  %v3354 = vpop.f32.mrf.mxu0
  %v3355 = vadd.f32 %v816, %v3354
  %3356 = vmatmul.f32.gmra.mxu0 %v985
  %v3357 = vpop.f32.mrf.mxu0
  %v3358 = vadd.f32 %v816, %v3357
  %3359 = vmatmul.f32.gmra.mxu0 %v988
  %v3360 = vpop.f32.mrf.mxu0
  %v3361 = vadd.f32 %v816, %v3360
  %3362 = vmatmul.f32.gmra.mxu0 %v991
  %v3363 = vpop.f32.mrf.mxu0
  %v3364 = vadd.f32 %v816, %v3363
  %3365 = vmatmul.f32.gmra.mxu0 %v994
  %v3366 = vpop.f32.mrf.mxu0
  %v3367 = vadd.f32 %v816, %v3366
  %3368 = vmatmul.f32.gmra.mxu0 %v997
  %v3369 = vpop.f32.mrf.mxu0
  %v3370 = vadd.f32 %v816, %v3369
  %3371 = vmatmul.f32.gmra.mxu0 %v1000
  %v3372 = vpop.f32.mrf.mxu0
  %v3373 = vadd.f32 %v816, %v3372
  %3374 = vmatmul.f32.gmra.mxu0 %v1003
  %v3375 = vpop.f32.mrf.mxu0
  %v3376 = vadd.f32 %v816, %v3375
  %3377 = vmatmul.f32.gmra.mxu0 %v1006
  %v3378 = vpop.f32.mrf.mxu0
  %v3379 = vadd.f32 %v816, %v3378
  %3380 = vmatmul.f32.gmra.mxu0 %v1009
  %v3381 = vpop.f32.mrf.mxu0
  %v3382 = vadd.f32 %v816, %v3381
  %3383 = vmatmul.f32.gmra.mxu0 %v1012
  %v3384 = vpop.f32.mrf.mxu0
  %v3385 = vadd.f32 %v816, %v3384
  %3386 = vmatmul.f32.gmra.mxu0 %v1015
  %v3387 = vpop.f32.mrf.mxu0
  %v3388 = vadd.f32 %v816, %v3387
  %3389 = vmatmul.f32.gmra.mxu0 %v1018
  %v3390 = vpop.f32.mrf.mxu0
  %v3391 = vadd.f32 %v816, %v3390
  %3392 = vmatmul.f32.gmra.mxu0 %v1021
  %v3393 = vpop.f32.mrf.mxu0
  %v3394 = vadd.f32 %v816, %v3393
  %3395 = vmatmul.f32.gmra.mxu0 %v1024
  %v3396 = vpop.f32.mrf.mxu0
  %v3397 = vadd.f32 %v816, %v3396
  %3398 = vmatmul.f32.gmra.mxu0 %v1027
  %v3399 = vpop.f32.mrf.mxu0
  %v3400 = vadd.f32 %v816, %v3399
  %3401 = vmatmul.f32.gmra.mxu0 %v1030
  %v3402 = vpop.f32.mrf.mxu0
  %v3403 = vadd.f32 %v816, %v3402
  %3404 = vmatmul.f32.gmra.mxu0 %v1033
  %v3405 = vpop.f32.mrf.mxu0
  %v3406 = vadd.f32 %v816, %v3405
  %3407 = vmatmul.f32.gmra.mxu0 %v1036
  %v3408 = vpop.f32.mrf.mxu0
  %v3409 = vadd.f32 %v816, %v3408
  %3410 = vmatmul.f32.gmra.mxu0 %v1039
  %v3411 = vpop.f32.mrf.mxu0
  %v3412 = vadd.f32 %v816, %v3411
  %3413 = vmatmul.f32.gmra.mxu0 %v1042
  %v3414 = vpop.f32.mrf.mxu0
  %v3415 = vadd.f32 %v816, %v3414
  %3416 = vmatmul.f32.gmra.mxu0 %v1045
  %v3417 = vpop.f32.mrf.mxu0
  %v3418 = vadd.f32 %v816, %v3417
  %3419 = vmatmul.f32.gmra.mxu0 %v1048
  %v3420 = vpop.f32.mrf.mxu0
  %v3421 = vadd.f32 %v816, %v3420
  %3422 = vmatmul.f32.gmra.mxu0 %v1051
  %v3423 = vpop.f32.mrf.mxu0
  %v3424 = vadd.f32 %v816, %v3423
  %3425 = vmatmul.f32.gmra.mxu0 %v1054
  %v3426 = vpop.f32.mrf.mxu0
  %v3427 = vadd.f32 %v816, %v3426
  %3428 = vmatmul.f32.gmra.mxu0 %v1057
  %v3429 = vpop.f32.mrf.mxu0
  %v3430 = vadd.f32 %v816, %v3429
  %3431 = vmatmul.f32.gmra.mxu0 %v1060
  %v3432 = vpop.f32.mrf.mxu0
  %v3433 = vadd.f32 %v816, %v3432
  %3434 = vmatmul.f32.gmra.mxu0 %v1063
  %v3435 = vpop.f32.mrf.mxu0
  %v3436 = vadd.f32 %v816, %v3435
  %3437 = vmatmul.f32.gmra.mxu0 %v1066
  %v3438 = vpop.f32.mrf.mxu0
  %v3439 = vadd.f32 %v816, %v3438
  %3440 = vmatmul.f32.gmra.mxu0 %v1069
  %v3441 = vpop.f32.mrf.mxu0
  %v3442 = vadd.f32 %v816, %v3441
  %3443 = vmatmul.f32.gmra.mxu0 %v1072
  %v3444 = vpop.f32.mrf.mxu0
  %v3445 = vadd.f32 %v816, %v3444
  %3446 = vmatmul.f32.gmra.mxu0 %v1075
  %v3447 = vpop.f32.mrf.mxu0
  %v3448 = vadd.f32 %v816, %v3447
  %3449 = vmatmul.f32.gmra.mxu0 %v1078
  %v3450 = vpop.f32.mrf.mxu0
  %v3451 = vadd.f32 %v816, %v3450
  %3452 = vmatmul.f32.gmra.mxu0 %v1081
  %v3453 = vpop.f32.mrf.mxu0
  %v3454 = vadd.f32 %v816, %v3453
  %3455 = vmatmul.f32.gmra.mxu0 %v1084
  %v3456 = vpop.f32.mrf.mxu0
  %v3457 = vadd.f32 %v816, %v3456
  %3458 = vmatmul.f32.gmra.mxu0 %v1087
  %v3459 = vpop.f32.mrf.mxu0
  %v3460 = vadd.f32 %v816, %v3459
  %3461 = vmatmul.f32.gmra.mxu0 %v1090
  %v3462 = vpop.f32.mrf.mxu0
  %v3463 = vadd.f32 %v816, %v3462
  %3464 = vmatmul.f32.gmra.mxu0 %v1093
  %v3465 = vpop.f32.mrf.mxu0
  %v3466 = vadd.f32 %v816, %v3465
  %3467 = vmatmul.f32.gmra.mxu0 %v1096
  %v3468 = vpop.f32.mrf.mxu0
  %v3469 = vadd.f32 %v816, %v3468
  %3470 = vmatmul.f32.gmra.mxu0 %v1099
  %v3471 = vpop.f32.mrf.mxu0
  %v3472 = vadd.f32 %v816, %v3471
  %3473 = vmatmul.f32.gmra.mxu0 %v1102
  %v3474 = vpop.f32.mrf.mxu0
  %v3475 = vadd.f32 %v816, %v3474
  %3476 = vmatmul.f32.gmra.mxu0 %v1105
  %v3477 = vpop.f32.mrf.mxu0
  %v3478 = vadd.f32 %v816, %v3477
  %3479 = vmatmul.f32.gmra.mxu0 %v1108
  %v3480 = vpop.f32.mrf.mxu0
  %v3481 = vadd.f32 %v816, %v3480
  %3482 = vmatmul.f32.gmra.mxu0 %v1111
  %v3483 = vpop.f32.mrf.mxu0
  %v3484 = vadd.f32 %v816, %v3483
  %3485 = vmatmul.f32.gmra.mxu0 %v1114
  %v3486 = vpop.f32.mrf.mxu0
  %v3487 = vadd.f32 %v816, %v3486
  %3488 = vmatmul.f32.gmra.mxu0 %v1117
  %v3489 = vpop.f32.mrf.mxu0
  %v3490 = vadd.f32 %v816, %v3489
  %3491 = vmatmul.f32.gmra.mxu0 %v1120
  %v3492 = vpop.f32.mrf.mxu0
  %v3493 = vadd.f32 %v816, %v3492
  %3494 = vmatmul.f32.gmra.mxu0 %v1123
  %v3495 = vpop.f32.mrf.mxu0
  %v3496 = vadd.f32 %v816, %v3495
  %3497 = vmatmul.f32.gmra.mxu0 %v1126
  %v3498 = vpop.f32.mrf.mxu0
  %v3499 = vadd.f32 %v816, %v3498
  %3500 = vmatmul.f32.gmra.mxu0 %v1129
  %v3501 = vpop.f32.mrf.mxu0
  %v3502 = vadd.f32 %v816, %v3501
  %3503 = vmatmul.f32.gmra.mxu0 %v1132
  %v3504 = vpop.f32.mrf.mxu0
  %v3505 = vadd.f32 %v816, %v3504
  %3506 = vmatmul.f32.gmra.mxu0 %v1135
  %v3507 = vpop.f32.mrf.mxu0
  %v3508 = vadd.f32 %v816, %v3507
  %3509 = vmatmul.f32.gmra.mxu0 %v1138
  %v3510 = vpop.f32.mrf.mxu0
  %v3511 = vadd.f32 %v816, %v3510
  %3512 = vmatmul.f32.gmra.mxu0 %v1141
  %v3513 = vpop.f32.mrf.mxu0
  %v3514 = vadd.f32 %v816, %v3513
  %3515 = vmatmul.f32.gmra.mxu0 %v1144
  %v3516 = vpop.f32.mrf.mxu0
  %v3517 = vadd.f32 %v816, %v3516
  %3518 = vmatmul.f32.gmra.mxu0 %v1147
  %v3519 = vpop.f32.mrf.mxu0
  %v3520 = vadd.f32 %v816, %v3519
  %3521 = vmatmul.f32.gmra.mxu0 %v1150
  %v3522 = vpop.f32.mrf.mxu0
  %v3523 = vadd.f32 %v816, %v3522
  %3524 = vmatmul.f32.gmra.mxu0 %v1153
  %v3525 = vpop.f32.mrf.mxu0
  %v3526 = vadd.f32 %v816, %v3525
  %3527 = vmatmul.f32.gmra.mxu0 %v1156
  %v3528 = vpop.f32.mrf.mxu0
  %v3529 = vadd.f32 %v816, %v3528
  %3530 = vmatmul.f32.gmra.mxu0 %v1159
  %v3531 = vpop.f32.mrf.mxu0
  %v3532 = vadd.f32 %v816, %v3531
  %3533 = vmatmul.f32.gmra.mxu0 %v1162
  %v3534 = vpop.f32.mrf.mxu0
  %v3535 = vadd.f32 %v816, %v3534
  %3536 = vmatmul.f32.gmra.mxu0 %v1165
  %v3537 = vpop.f32.mrf.mxu0
  %v3538 = vadd.f32 %v816, %v3537
  %3539 = vmatmul.f32.gmra.mxu0 %v1168
  %v3540 = vpop.f32.mrf.mxu0
  %v3541 = vadd.f32 %v816, %v3540
  %3542 = vmatmul.f32.gmra.mxu0 %v1171
  %v3543 = vpop.f32.mrf.mxu0
  %v3544 = vadd.f32 %v816, %v3543
  %3545 = vmatmul.f32.gmra.mxu0 %v1174
  %v3546 = vpop.f32.mrf.mxu0
  %v3547 = vadd.f32 %v816, %v3546
  %3548 = vmatmul.f32.gmra.mxu0 %v1177
  %v3549 = vpop.f32.mrf.mxu0
  %v3550 = vadd.f32 %v816, %v3549
  %3551 = vmatmul.f32.gmra.mxu0 %v1180
  %v3552 = vpop.f32.mrf.mxu0
  %v3553 = vadd.f32 %v816, %v3552
  %3554 = vmatmul.f32.gmra.mxu0 %v1183
  %v3555 = vpop.f32.mrf.mxu0
  %v3556 = vadd.f32 %v816, %v3555
  %3557 = vmatmul.f32.gmra.mxu0 %v1186
  %v3558 = vpop.f32.mrf.mxu0
  %v3559 = vadd.f32 %v816, %v3558
  %3560 = vmatmul.f32.gmra.mxu0 %v1189
  %v3561 = vpop.f32.mrf.mxu0
  %v3562 = vadd.f32 %v816, %v3561
  %3563 = vmatmul.f32.gmra.mxu0 %v1192
  %v3564 = vpop.f32.mrf.mxu0
  %v3565 = vadd.f32 %v816, %v3564
  %3566 = vmatmul.f32.gmra.mxu0 %v1195
  %v3567 = vpop.f32.mrf.mxu0
  %v3568 = vadd.f32 %v816, %v3567
  %3569 = vmatmul.f32.gmra.mxu0 %v1198
  %v3570 = vpop.f32.mrf.mxu0
  %v3571 = vadd.f32 %v816, %v3570
  %3572 = vmatmul.f32.gmra.mxu0 %v1201
  %v3573 = vpop.f32.mrf.mxu0
  %v3574 = vadd.f32 %v816, %v3573
  %3575 = vmatmul.f32.gmra.mxu0 %v1204
  %v3576 = vpop.f32.mrf.mxu0
  %v3577 = vadd.f32 %v816, %v3576
  %3578 = vmatmul.f32.gmra.mxu0 %v1207
  %v3579 = vpop.f32.mrf.mxu0
  %v3580 = vadd.f32 %v816, %v3579
  %3581 = vmatmul.f32.gmra.mxu0 %v1210
  %v3582 = vpop.f32.mrf.mxu0
  %v3583 = vadd.f32 %v816, %v3582
  %3584 = vmatmul.f32.gmra.mxu0 %v1213
  %v3585 = vpop.f32.mrf.mxu0
  %v3586 = vadd.f32 %v816, %v3585
  %3587 = vmatmul.f32.gmra.mxu0 %v1216
  %v3588 = vpop.f32.mrf.mxu0
  %v3589 = vadd.f32 %v816, %v3588
  %3590 = vmatmul.f32.gmra.mxu0 %v1219
  %v3591 = vpop.f32.mrf.mxu0
  %v3592 = vadd.f32 %v816, %v3591
  %3593 = vmatmul.f32.gmra.mxu0 %v1222
  %v3594 = vpop.f32.mrf.mxu0
  %v3595 = vadd.f32 %v816, %v3594
  %3596 = vmatmul.f32.gmra.mxu0 %v1225
  %v3597 = vpop.f32.mrf.mxu0
  %v3598 = vadd.f32 %v816, %v3597
  %3599 = vmatmul.f32.gmra.mxu0 %v1228
  %v3600 = vpop.f32.mrf.mxu0
  %v3601 = vadd.f32 %v816, %v3600
  %3602 = vmatmul.f32.gmra.mxu0 %v1231
  %v3603 = vpop.f32.mrf.mxu0
  %v3604 = vadd.f32 %v816, %v3603
  %3605 = vmatmul.f32.gmra.mxu0 %v1234
  %v3606 = vpop.f32.mrf.mxu0
  %v3607 = vadd.f32 %v816, %v3606
  %3608 = vmatmul.f32.gmra.mxu0 %v1237
  %v3609 = vpop.f32.mrf.mxu0
  %v3610 = vadd.f32 %v816, %v3609
  %3611 = vmatmul.f32.gmra.mxu0 %v1240
  %v3612 = vpop.f32.mrf.mxu0
  %v3613 = vadd.f32 %v816, %v3612
  %3614 = vmatmul.f32.gmra.mxu0 %v1243
  %v3615 = vpop.f32.mrf.mxu0
  %v3616 = vadd.f32 %v816, %v3615
  %3617 = vmatmul.f32.gmra.mxu0 %v1246
  %v3618 = vpop.f32.mrf.mxu0
  %v3619 = vadd.f32 %v816, %v3618
  %3620 = vmatmul.f32.gmra.mxu0 %v1249
  %v3621 = vpop.f32.mrf.mxu0
  %v3622 = vadd.f32 %v816, %v3621
  %3623 = vmatmul.f32.gmra.mxu0 %v1252
  %v3624 = vpop.f32.mrf.mxu0
  %v3625 = vadd.f32 %v816, %v3624
  %3626 = vmatmul.f32.gmra.mxu0 %v1255
  %v3627 = vpop.f32.mrf.mxu0
  %v3628 = vadd.f32 %v816, %v3627
  %3629 = vmatmul.f32.gmra.mxu0 %v1258
  %v3630 = vpop.f32.mrf.mxu0
  %v3631 = vadd.f32 %v816, %v3630
  %3632 = vmatmul.f32.gmra.mxu0 %v1261
  %v3633 = vpop.f32.mrf.mxu0
  %v3634 = vadd.f32 %v816, %v3633
  %3635 = vmatmul.f32.gmra.mxu0 %v1264
  %v3636 = vpop.f32.mrf.mxu0
  %v3637 = vadd.f32 %v816, %v3636
  %3638 = vmatmul.f32.gmra.mxu0 %v1267
  %v3639 = vpop.f32.mrf.mxu0
  %v3640 = vadd.f32 %v816, %v3639
  %3641 = vmatmul.f32.gmra.mxu0 %v1270
  %v3642 = vpop.f32.mrf.mxu0
  %v3643 = vadd.f32 %v816, %v3642
  %3644 = vmatmul.f32.gmra.mxu0 %v1273
  %v3645 = vpop.f32.mrf.mxu0
  %v3646 = vadd.f32 %v816, %v3645
  %3647 = vmatmul.f32.gmra.mxu0 %v1276
  %v3648 = vpop.f32.mrf.mxu0
  %v3649 = vadd.f32 %v816, %v3648
  %3650 = vmatmul.f32.gmra.mxu0 %v1279
  %v3651 = vpop.f32.mrf.mxu0
  %v3652 = vadd.f32 %v816, %v3651
  %3653 = vmatmul.f32.gmra.mxu0 %v1282
  %v3654 = vpop.f32.mrf.mxu0
  %v3655 = vadd.f32 %v816, %v3654
  %3656 = vmatmul.f32.gmra.mxu0 %v1285
  %v3657 = vpop.f32.mrf.mxu0
  %v3658 = vadd.f32 %v816, %v3657
  %3659 = vmatmul.f32.gmra.mxu0 %v1288
  %v3660 = vpop.f32.mrf.mxu0
  %v3661 = vadd.f32 %v816, %v3660
  %3662 = vmatmul.f32.gmra.mxu0 %v1291
  %v3663 = vpop.f32.mrf.mxu0
  %v3664 = vadd.f32 %v816, %v3663
  %3665 = vmatmul.f32.gmra.mxu0 %v1294
  %v3666 = vpop.f32.mrf.mxu0
  %v3667 = vadd.f32 %v816, %v3666
  %3668 = vmatmul.f32.gmra.mxu0 %v1297
  %v3669 = vpop.f32.mrf.mxu0
  %v3670 = vadd.f32 %v816, %v3669
  %3671 = vmatmul.f32.gmra.mxu0 %v1300
  %v3672 = vpop.f32.mrf.mxu0
  %v3673 = vadd.f32 %v816, %v3672
  %3674 = vmatmul.f32.gmra.mxu0 %v1303
  %v3675 = vpop.f32.mrf.mxu0
  %v3676 = vadd.f32 %v816, %v3675
  %3677 = vmatmul.f32.gmra.mxu0 %v1306
  %v3678 = vpop.f32.mrf.mxu0
  %v3679 = vadd.f32 %v816, %v3678
  %3680 = vmatmul.f32.gmra.mxu0 %v1309
  %v3681 = vpop.f32.mrf.mxu0
  %v3682 = vadd.f32 %v816, %v3681
  %3683 = vmatmul.f32.gmra.mxu0 %v1312
  %v3684 = vpop.f32.mrf.mxu0
  %v3685 = vadd.f32 %v816, %v3684
  %3686 = vmatmul.f32.gmra.mxu0 %v1315
  %v3687 = vpop.f32.mrf.mxu0
  %v3688 = vadd.f32 %v816, %v3687
  %3689 = vmatmul.f32.gmra.mxu0 %v1318
  %v3690 = vpop.f32.mrf.mxu0
  %v3691 = vadd.f32 %v816, %v3690
  %3692 = vmatmul.f32.gmra.mxu0 %v1321
  %v3693 = vpop.f32.mrf.mxu0
  %v3694 = vadd.f32 %v816, %v3693
  %3695 = vmatmul.f32.gmra.mxu0 %v1324
  %v3696 = vpop.f32.mrf.mxu0
  %v3697 = vadd.f32 %v816, %v3696
  %3698 = vmatmul.f32.gmra.mxu0 %v1327
  %v3699 = vpop.f32.mrf.mxu0
  %v3700 = vadd.f32 %v816, %v3699
  %3701 = vmatmul.f32.gmra.mxu0 %v1330
  %v3702 = vpop.f32.mrf.mxu0
  %v3703 = vadd.f32 %v816, %v3702
  %3704 = vmatmul.f32.gmra.mxu0 %v1333
  %v3705 = vpop.f32.mrf.mxu0
  %v3706 = vadd.f32 %v816, %v3705
  %3707 = vmatmul.f32.gmra.mxu0 %v1336
  %v3708 = vpop.f32.mrf.mxu0
  %v3709 = vadd.f32 %v816, %v3708
  %3710 = vmatmul.f32.gmra.mxu0 %v1339
  %v3711 = vpop.f32.mrf.mxu0
  %v3712 = vadd.f32 %v816, %v3711
  %3713 = vmatmul.f32.gmra.mxu0 %v1342
  %v3714 = vpop.f32.mrf.mxu0
  %v3715 = vadd.f32 %v816, %v3714
  %3716 = vmatmul.f32.gmra.mxu0 %v1345
  %v3717 = vpop.f32.mrf.mxu0
  %v3718 = vadd.f32 %v816, %v3717
  %3719 = vmatmul.f32.gmra.mxu0 %v1348
  %v3720 = vpop.f32.mrf.mxu0
  %v3721 = vadd.f32 %v816, %v3720
  %3722 = vmatmul.f32.gmra.mxu0 %v1351
  %v3723 = vpop.f32.mrf.mxu0
  %v3724 = vadd.f32 %v816, %v3723
  %3725 = vmatmul.f32.gmra.mxu0 %v1354
  %v3726 = vpop.f32.mrf.mxu0
  %v3727 = vadd.f32 %v816, %v3726
  %3728 = vmatmul.f32.gmra.mxu0 %v1357
  %v3729 = vpop.f32.mrf.mxu0
  %v3730 = vadd.f32 %v816, %v3729
  %3731 = vmatmul.f32.gmra.mxu0 %v1360
  %v3732 = vpop.f32.mrf.mxu0
  %v3733 = vadd.f32 %v816, %v3732
  %3734 = vmatmul.f32.gmra.mxu0 %v1363
  %v3735 = vpop.f32.mrf.mxu0
  %v3736 = vadd.f32 %v816, %v3735
  %3737 = vmatmul.f32.gmra.mxu0 %v1366
  %v3738 = vpop.f32.mrf.mxu0
  %v3739 = vadd.f32 %v816, %v3738
  %3740 = vmatmul.f32.gmra.mxu0 %v1369
  %v3741 = vpop.f32.mrf.mxu0
  %v3742 = vadd.f32 %v816, %v3741
  %3743 = vmatmul.f32.gmra.mxu0 %v1372
  %v3744 = vpop.f32.mrf.mxu0
  %v3745 = vadd.f32 %v816, %v3744
  %3746 = vmatmul.f32.gmra.mxu0 %v1375
  %v3747 = vpop.f32.mrf.mxu0
  %v3748 = vadd.f32 %v816, %v3747
  %3749 = vmatmul.f32.gmra.mxu0 %v1378
  %v3750 = vpop.f32.mrf.mxu0
  %v3751 = vadd.f32 %v816, %v3750
  %3752 = vmatmul.f32.gmra.mxu0 %v1381
  %v3753 = vpop.f32.mrf.mxu0
  %v3754 = vadd.f32 %v816, %v3753
  %3755 = vmatmul.f32.gmra.mxu0 %v1384
  %v3756 = vpop.f32.mrf.mxu0
  %v3757 = vadd.f32 %v816, %v3756
  %3758 = vmatmul.f32.gmra.mxu0 %v1387
  %v3759 = vpop.f32.mrf.mxu0
  %v3760 = vadd.f32 %v816, %v3759
  %3761 = vmatmul.f32.gmra.mxu0 %v1390
  %v3762 = vpop.f32.mrf.mxu0
  %v3763 = vadd.f32 %v816, %v3762
  %3764 = vmatmul.f32.gmra.mxu0 %v1393
  %v3765 = vpop.f32.mrf.mxu0
  %v3766 = vadd.f32 %v816, %v3765
  %3767 = vmatmul.f32.gmra.mxu0 %v1396
  %v3768 = vpop.f32.mrf.mxu0
  %v3769 = vadd.f32 %v816, %v3768
  %3770 = vmatmul.f32.gmra.mxu0 %v1399
  %v3771 = vpop.f32.mrf.mxu0
  %v3772 = vadd.f32 %v816, %v3771
  %3773 = vmatmul.f32.gmra.mxu0 %v1402
  %v3774 = vpop.f32.mrf.mxu0
  %v3775 = vadd.f32 %v816, %v3774
  %3776 = vmatmul.f32.gmra.mxu0 %v1405
  %v3777 = vpop.f32.mrf.mxu0
  %v3778 = vadd.f32 %v816, %v3777
  %3779 = vmatmul.f32.gmra.mxu0 %v1408
  %v3780 = vpop.f32.mrf.mxu0
  %v3781 = vadd.f32 %v816, %v3780
  %3782 = vmatmul.f32.gmra.mxu0 %v1411
  %v3783 = vpop.f32.mrf.mxu0
  %v3784 = vadd.f32 %v816, %v3783
  %3785 = vmatmul.f32.gmra.mxu0 %v1414
  %v3786 = vpop.f32.mrf.mxu0
  %v3787 = vadd.f32 %v816, %v3786
  %3788 = vmatmul.f32.gmra.mxu0 %v1417
  %v3789 = vpop.f32.mrf.mxu0
  %v3790 = vadd.f32 %v816, %v3789
  %3791 = vmatmul.f32.gmra.mxu0 %v1420
  %v3792 = vpop.f32.mrf.mxu0
  %v3793 = vadd.f32 %v816, %v3792
  %3794 = vmatmul.f32.gmra.mxu0 %v1423
  %v3795 = vpop.f32.mrf.mxu0
  %v3796 = vadd.f32 %v816, %v3795
  %3797 = vmatmul.f32.gmra.mxu0 %v1426
  %v3798 = vpop.f32.mrf.mxu0
  %v3799 = vadd.f32 %v816, %v3798
  %3800 = vmatmul.f32.gmra.mxu0 %v1429
  %v3801 = vpop.f32.mrf.mxu0
  %v3802 = vadd.f32 %v816, %v3801
  %3803 = vmatmul.f32.gmra.mxu0 %v1432
  %v3804 = vpop.f32.mrf.mxu0
  %v3805 = vadd.f32 %v816, %v3804
  %3806 = vmatmul.f32.gmra.mxu0 %v1435
  %v3807 = vpop.f32.mrf.mxu0
  %v3808 = vadd.f32 %v816, %v3807
  %3809 = vmatmul.f32.gmra.mxu0 %v1438
  %v3810 = vpop.f32.mrf.mxu0
  %v3811 = vadd.f32 %v816, %v3810
  %3812 = vmatmul.f32.gmra.mxu0 %v1441
  %v3813 = vpop.f32.mrf.mxu0
  %v3814 = vadd.f32 %v816, %v3813
  %3815 = vmatmul.f32.gmra.mxu0 %v1444
  %v3816 = vpop.f32.mrf.mxu0
  %v3817 = vadd.f32 %v816, %v3816
  %3818 = vmatmul.f32.gmra.mxu0 %v1447
  %v3819 = vpop.f32.mrf.mxu0
  %v3820 = vadd.f32 %v816, %v3819
  %3821 = vmatmul.f32.gmra.mxu0 %v1450
  %v3822 = vpop.f32.mrf.mxu0
  %v3823 = vadd.f32 %v816, %v3822
  %3824 = vmatmul.f32.gmra.mxu0 %v1453
  %v3825 = vpop.f32.mrf.mxu0
  %v3826 = vadd.f32 %v816, %v3825
  %3827 = vmatmul.f32.gmra.mxu0 %v1456
  %v3828 = vpop.f32.mrf.mxu0
  %v3829 = vadd.f32 %v816, %v3828
  %3830 = vmatmul.f32.gmra.mxu0 %v1459
  %v3831 = vpop.f32.mrf.mxu0
  %v3832 = vadd.f32 %v816, %v3831
  %3833 = vmatmul.f32.gmra.mxu0 %v1462
  %v3834 = vpop.f32.mrf.mxu0
  %v3835 = vadd.f32 %v816, %v3834
  %3836 = vmatmul.f32.gmra.mxu0 %v1465
  %v3837 = vpop.f32.mrf.mxu0
  %v3838 = vadd.f32 %v816, %v3837
  %3839 = vmatmul.f32.gmra.mxu0 %v1468
  %v3840 = vpop.f32.mrf.mxu0
  %v3841 = vadd.f32 %v816, %v3840
  %3842 = vmatmul.f32.gmra.mxu0 %v1471
  %v3843 = vpop.f32.mrf.mxu0
  %v3844 = vadd.f32 %v816, %v3843
  %3845 = vmatmul.f32.gmra.mxu0 %v1474
  %v3846 = vpop.f32.mrf.mxu0
  %v3847 = vadd.f32 %v816, %v3846
  %3848 = vmatmul.f32.gmra.mxu0 %v1477
  %v3849 = vpop.f32.mrf.mxu0
  %v3850 = vadd.f32 %v816, %v3849
  %3851 = vmatmul.f32.gmra.mxu0 %v1480
  %v3852 = vpop.f32.mrf.mxu0
  %v3853 = vadd.f32 %v816, %v3852
  %3854 = vmatmul.f32.gmra.mxu0 %v1483
  %v3855 = vpop.f32.mrf.mxu0
  %v3856 = vadd.f32 %v816, %v3855
  %3857 = vmatmul.f32.gmra.mxu0 %v1486
  %v3858 = vpop.f32.mrf.mxu0
  %v3859 = vadd.f32 %v816, %v3858
  %3860 = vmatmul.f32.gmra.mxu0 %v1489
  %v3861 = vpop.f32.mrf.mxu0
  %v3862 = vadd.f32 %v816, %v3861
  %3863 = vmatmul.f32.gmra.mxu0 %v1492
  %v3864 = vpop.f32.mrf.mxu0
  %v3865 = vadd.f32 %v816, %v3864
  %3866 = vmatmul.f32.gmra.mxu0 %v1495
  %v3867 = vpop.f32.mrf.mxu0
  %v3868 = vadd.f32 %v816, %v3867
  %3869 = vmatmul.f32.gmra.mxu0 %v1498
  %v3870 = vpop.f32.mrf.mxu0
  %v3871 = vadd.f32 %v816, %v3870
  %3872 = vmatmul.f32.gmra.mxu0 %v1501
  %v3873 = vpop.f32.mrf.mxu0
  %v3874 = vadd.f32 %v816, %v3873
  %3875 = vmatmul.f32.gmra.mxu0 %v1504
  %v3876 = vpop.f32.mrf.mxu0
  %v3877 = vadd.f32 %v816, %v3876
  %3878 = vmatmul.f32.gmra.mxu0 %v1507
  %v3879 = vpop.f32.mrf.mxu0
  %v3880 = vadd.f32 %v816, %v3879
  %3881 = vmatmul.f32.gmra.mxu0 %v1510
  %v3882 = vpop.f32.mrf.mxu0
  %v3883 = vadd.f32 %v816, %v3882
  %3884 = vmatmul.f32.gmra.mxu0 %v1513
  %v3885 = vpop.f32.mrf.mxu0
  %v3886 = vadd.f32 %v816, %v3885
  %3887 = vmatmul.f32.gmra.mxu0 %v1516
  %v3888 = vpop.f32.mrf.mxu0
  %v3889 = vadd.f32 %v816, %v3888
  %3890 = vmatmul.f32.gmra.mxu0 %v1519
  %v3891 = vpop.f32.mrf.mxu0
  %v3892 = vadd.f32 %v816, %v3891
  %3893 = vmatmul.f32.gmra.mxu0 %v1522
  %v3894 = vpop.f32.mrf.mxu0
  %v3895 = vadd.f32 %v816, %v3894
  %3896 = vmatmul.f32.gmra.mxu0 %v1525
  %v3897 = vpop.f32.mrf.mxu0
  %v3898 = vadd.f32 %v816, %v3897
  %3899 = vmatmul.f32.gmra.mxu0 %v1528
  %v3900 = vpop.f32.mrf.mxu0
  %v3901 = vadd.f32 %v816, %v3900
  %3902 = vmatmul.f32.gmra.mxu0 %v1531
  %v3903 = vpop.f32.mrf.mxu0
  %v3904 = vadd.f32 %v816, %v3903
  %3905 = vmatmul.f32.gmra.mxu0 %v1534
  %v3906 = vpop.f32.mrf.mxu0
  %v3907 = vadd.f32 %v816, %v3906
  %3908 = vmatmul.f32.gmra.mxu0 %v1537
  %v3909 = vpop.f32.mrf.mxu0
  %v3910 = vadd.f32 %v816, %v3909
  %3911 = vmatmul.f32.gmra.mxu0 %v1540
  %v3912 = vpop.f32.mrf.mxu0
  %v3913 = vadd.f32 %v816, %v3912
  %3914 = vmatmul.f32.gmra.mxu0 %v1543
  %v3915 = vpop.f32.mrf.mxu0
  %v3916 = vadd.f32 %v816, %v3915
  %3917 = vmatmul.f32.gmra.mxu0 %v1546
  %v3918 = vpop.f32.mrf.mxu0
  %v3919 = vadd.f32 %v816, %v3918
  %3920 = vmatmul.f32.gmra.mxu0 %v1549
  %v3921 = vpop.f32.mrf.mxu0
  %v3922 = vadd.f32 %v816, %v3921
  %3923 = vmatmul.f32.gmra.mxu0 %v1552
  %v3924 = vpop.f32.mrf.mxu0
  %v3925 = vadd.f32 %v816, %v3924
  %3926 = vmatmul.f32.gmra.mxu0 %v1555
  %v3927 = vpop.f32.mrf.mxu0
  %v3928 = vadd.f32 %v816, %v3927
  %3929 = vmatmul.f32.gmra.mxu0 %v1558
  %v3930 = vpop.f32.mrf.mxu0
  %v3931 = vadd.f32 %v816, %v3930
  %3932 = vmatmul.f32.gmra.mxu0 %v1561
  %v3933 = vpop.f32.mrf.mxu0
  %v3934 = vadd.f32 %v816, %v3933
  %3935 = vmatmul.f32.gmra.mxu0 %v1564
  %v3936 = vpop.f32.mrf.mxu0
  %v3937 = vadd.f32 %v816, %v3936
  %3938 = vmatmul.f32.gmra.mxu0 %v1567
  %v3939 = vpop.f32.mrf.mxu0
  %v3940 = vadd.f32 %v816, %v3939
  %3941 = vmatmul.f32.gmra.mxu0 %v1570
  %v3942 = vpop.f32.mrf.mxu0
  %v3943 = vadd.f32 %v816, %v3942
  %3944 = vmatmul.f32.gmra.mxu0 %v1573
  %v3945 = vpop.f32.mrf.mxu0
  %v3946 = vadd.f32 %v816, %v3945
  %3947 = vmatmul.f32.gmra.mxu0 %v1576
  %v3948 = vpop.f32.mrf.mxu0
  %v3949 = vadd.f32 %v816, %v3948
  %3950 = vmatmul.f32.gmra.mxu0 %v1579
  %v3951 = vpop.f32.mrf.mxu0
  %v3952 = vadd.f32 %v816, %v3951
  %3953 = vmatmul.f32.gmra.mxu0 %v1582
  %v3954 = vpop.f32.mrf.mxu0
  %v3955 = vadd.f32 %v816, %v3954
  %3956 = vmatmul.f32.gmra.mxu0 %v1585
  %v3957 = vpop.f32.mrf.mxu0
  %v3958 = vadd.f32 %v816, %v3957
  %3959 = vmatmul.f32.gmra.mxu0 %v1588
  %v3960 = vpop.f32.mrf.mxu0
  %v3961 = vadd.f32 %v816, %v3960
  %3962 = vmatmul.f32.gmra.mxu0 %v1591
  %v3963 = vpop.f32.mrf.mxu0
  %v3964 = vadd.f32 %v816, %v3963
  %3965 = vmatmul.f32.gmra.mxu0 %v1594
  %v3966 = vpop.f32.mrf.mxu0
  %v3967 = vadd.f32 %v816, %v3966
  %3968 = vmatmul.f32.gmra.mxu0 %v1597
  %v3969 = vpop.f32.mrf.mxu0
  %v3970 = vadd.f32 %v816, %v3969
  %3971 = vmatmul.f32.gmra.mxu0 %v1600
  %v3972 = vpop.f32.mrf.mxu0
  %v3973 = vadd.f32 %v816, %v3972
  %3974 = vmatmul.f32.gmra.mxu0 %v1603
  %v3975 = vpop.f32.mrf.mxu0
  %v3976 = vadd.f32 %v816, %v3975
  %3977 = vmatmul.f32.gmra.mxu0 %v1606
  %v3978 = vpop.f32.mrf.mxu0
  %v3979 = vadd.f32 %v816, %v3978
  %3980 = vmatmul.f32.gmra.mxu0 %v1609
  %v3981 = vpop.f32.mrf.mxu0
  %v3982 = vadd.f32 %v816, %v3981
  %3983 = vmatmul.f32.gmra.mxu0 %v1612
  %v3984 = vpop.f32.mrf.mxu0
  %v3985 = vadd.f32 %v816, %v3984
  %3986 = vmatmul.f32.gmra.mxu0 %v1615
  %v3987 = vpop.f32.mrf.mxu0
  %v3988 = vadd.f32 %v816, %v3987
  %3989 = vmatmul.f32.gmra.mxu0 %v1618
  %v3990 = vpop.f32.mrf.mxu0
  %v3991 = vadd.f32 %v816, %v3990
  %3992 = vmatmul.f32.gmra.mxu0 %v1621
  %v3993 = vpop.f32.mrf.mxu0
  %v3994 = vadd.f32 %v816, %v3993
  %3995 = vmatmul.f32.gmra.mxu0 %v1624
  %v3996 = vpop.f32.mrf.mxu0
  %v3997 = vadd.f32 %v816, %v3996
  %3998 = vmatmul.f32.gmra.mxu0 %v1627
  %v3999 = vpop.f32.mrf.mxu0
  %v4000 = vadd.f32 %v816, %v3999
  %4001 = vmatmul.f32.gmra.mxu0 %v1630
  %v4002 = vpop.f32.mrf.mxu0
  %v4003 = vadd.f32 %v816, %v4002
  %4004 = vmatmul.f32.gmra.mxu0 %v1633
  %v4005 = vpop.f32.mrf.mxu0
  %v4006 = vadd.f32 %v816, %v4005
  %4007 = vmatmul.f32.gmra.mxu0 %v1636
  %v4008 = vpop.f32.mrf.mxu0
  %v4009 = vadd.f32 %v816, %v4008
  %4010 = vmatmul.f32.gmra.mxu0 %v1639
  %v4011 = vpop.f32.mrf.mxu0
  %v4012 = vadd.f32 %v816, %v4011
  %4013 = vmatmul.f32.gmra.mxu0 %v1642
  %v4014 = vpop.f32.mrf.mxu0
  %v4015 = vadd.f32 %v816, %v4014
  %4016 = vmatmul.f32.gmra.mxu0 %v1645
  %v4017 = vpop.f32.mrf.mxu0
  %v4018 = vadd.f32 %v816, %v4017
  %4019 = vmatmul.f32.gmra.mxu0 %v1648
  %v4020 = vpop.f32.mrf.mxu0
  %v4021 = vadd.f32 %v816, %v4020
  %4022 = vmatmul.f32.gmra.mxu0 %v1651
  %v4023 = vpop.f32.mrf.mxu0
  %v4024 = vadd.f32 %v816, %v4023
  %4025 = vmatmul.f32.gmra.mxu0 %v1654
  %v4026 = vpop.f32.mrf.mxu0
  %v4027 = vadd.f32 %v816, %v4026
  %4028 = vmatmul.f32.gmra.mxu0 %v1657
  %v4029 = vpop.f32.mrf.mxu0
  %v4030 = vadd.f32 %v816, %v4029
  %4031 = vmatmul.f32.gmra.mxu0 %v1660
  %v4032 = vpop.f32.mrf.mxu0
  %v4033 = vadd.f32 %v816, %v4032
  %4034 = vmatmul.f32.gmra.mxu0 %v1663
  %v4035 = vpop.f32.mrf.mxu0
  %v4036 = vadd.f32 %v816, %v4035
  %4037 = vmatmul.f32.gmra.mxu0 %v1666
  %v4038 = vpop.f32.mrf.mxu0
  %v4039 = vadd.f32 %v816, %v4038
  %4040 = vmatmul.f32.gmra.mxu0 %v1669
  %v4041 = vpop.f32.mrf.mxu0
  %v4042 = vadd.f32 %v816, %v4041
  %4043 = vmatmul.f32.gmra.mxu0 %v1672
  %v4044 = vpop.f32.mrf.mxu0
  %v4045 = vadd.f32 %v816, %v4044
  %4046 = vmatmul.f32.gmra.mxu0 %v1675
  %v4047 = vpop.f32.mrf.mxu0
  %v4048 = vadd.f32 %v816, %v4047
  %4049 = vmatmul.f32.gmra.mxu0 %v1678
  %v4050 = vpop.f32.mrf.mxu0
  %v4051 = vadd.f32 %v816, %v4050
  %4052 = vmatmul.f32.gmra.mxu0 %v1681
  %v4053 = vpop.f32.mrf.mxu0
  %v4054 = vadd.f32 %v816, %v4053
  %4055 = vmatmul.f32.gmra.mxu0 %v1684
  %v4056 = vpop.f32.mrf.mxu0
  %v4057 = vadd.f32 %v816, %v4056
  %4058 = vmatmul.f32.gmra.mxu0 %v1687
  %v4059 = vpop.f32.mrf.mxu0
  %v4060 = vadd.f32 %v816, %v4059
  %4061 = vmatmul.f32.gmra.mxu0 %v1690
  %v4062 = vpop.f32.mrf.mxu0
  %v4063 = vadd.f32 %v816, %v4062
  %4064 = vmatmul.f32.gmra.mxu0 %v1693
  %v4065 = vpop.f32.mrf.mxu0
  %v4066 = vadd.f32 %v816, %v4065
  %4067 = vmatmul.f32.gmra.mxu0 %v1696
  %v4068 = vpop.f32.mrf.mxu0
  %v4069 = vadd.f32 %v816, %v4068
  %4070 = vmatmul.f32.gmra.mxu0 %v1699
  %v4071 = vpop.f32.mrf.mxu0
  %v4072 = vadd.f32 %v816, %v4071
  %4073 = vmatmul.f32.gmra.mxu0 %v1702
  %v4074 = vpop.f32.mrf.mxu0
  %v4075 = vadd.f32 %v816, %v4074
  %4076 = vmatmul.f32.gmra.mxu0 %v1705
  %v4077 = vpop.f32.mrf.mxu0
  %v4078 = vadd.f32 %v816, %v4077
  %4079 = vmatmul.f32.gmra.mxu0 %v1708
  %v4080 = vpop.f32.mrf.mxu0
  %v4081 = vadd.f32 %v816, %v4080
  %4082 = vmatmul.f32.gmra.mxu0 %v1711
  %v4083 = vpop.f32.mrf.mxu0
  %v4084 = vadd.f32 %v816, %v4083
  %4085 = vmatmul.f32.gmra.mxu0 %v1714
  %v4086 = vpop.f32.mrf.mxu0
  %v4087 = vadd.f32 %v816, %v4086
  %4088 = vmatmul.f32.gmra.mxu0 %v1717
  %v4089 = vpop.f32.mrf.mxu0
  %v4090 = vadd.f32 %v816, %v4089
  %4091 = vmatmul.f32.gmra.mxu0 %v1720
  %v4092 = vpop.f32.mrf.mxu0
  %v4093 = vadd.f32 %v816, %v4092
  %4094 = vmatmul.f32.gmra.mxu0 %v1723
  %v4095 = vpop.f32.mrf.mxu0
  %v4096 = vadd.f32 %v816, %v4095
  %4097 = vmatmul.f32.gmra.mxu0 %v1726
  %v4098 = vpop.f32.mrf.mxu0
  %v4099 = vadd.f32 %v816, %v4098
  %4100 = vmatmul.f32.gmra.mxu0 %v1729
  %v4101 = vpop.f32.mrf.mxu0
  %v4102 = vadd.f32 %v816, %v4101
  %4103 = vmatmul.f32.gmra.mxu0 %v1732
  %v4104 = vpop.f32.mrf.mxu0
  %v4105 = vadd.f32 %v816, %v4104
  %4106 = vmatmul.f32.gmra.mxu0 %v1735
  %v4107 = vpop.f32.mrf.mxu0
  %v4108 = vadd.f32 %v816, %v4107
  %4109 = vmatmul.f32.gmra.mxu0 %v1738
  %v4110 = vpop.f32.mrf.mxu0
  %v4111 = vadd.f32 %v816, %v4110
  %4112 = vmatmul.f32.gmra.mxu0 %v1741
  %v4113 = vpop.f32.mrf.mxu0
  %v4114 = vadd.f32 %v816, %v4113
  %4115 = vmatmul.f32.gmra.mxu0 %v1744
  %v4116 = vpop.f32.mrf.mxu0
  %v4117 = vadd.f32 %v816, %v4116
  %4118 = vmatmul.f32.gmra.mxu0 %v1747
  %v4119 = vpop.f32.mrf.mxu0
  %v4120 = vadd.f32 %v816, %v4119
  %4121 = vmatmul.f32.gmra.mxu0 %v1750
  %v4122 = vpop.f32.mrf.mxu0
  %v4123 = vadd.f32 %v816, %v4122
  %4124 = vmatmul.f32.gmra.mxu0 %v1753
  %v4125 = vpop.f32.mrf.mxu0
  %v4126 = vadd.f32 %v816, %v4125
  %4127 = vmatmul.f32.gmra.mxu0 %v1756
  %v4128 = vpop.f32.mrf.mxu0
  %v4129 = vadd.f32 %v816, %v4128
  %4130 = vmatmul.f32.gmra.mxu0 %v1759
  %v4131 = vpop.f32.mrf.mxu0
  %v4132 = vadd.f32 %v816, %v4131
  %4133 = vmatmul.f32.gmra.mxu0 %v1762
  %v4134 = vpop.f32.mrf.mxu0
  %v4135 = vadd.f32 %v816, %v4134
  %4136 = vmatmul.f32.gmra.mxu0 %v1765
  %v4137 = vpop.f32.mrf.mxu0
  %v4138 = vadd.f32 %v816, %v4137
  %4139 = vmatmul.f32.gmra.mxu0 %v1768
  %v4140 = vpop.f32.mrf.mxu0
  %v4141 = vadd.f32 %v816, %v4140
  %4142 = vmatmul.f32.gmra.mxu0 %v1771
  %v4143 = vpop.f32.mrf.mxu0
  %v4144 = vadd.f32 %v816, %v4143
  %4145 = vmatmul.f32.gmra.mxu0 %v1774
  %v4146 = vpop.f32.mrf.mxu0
  %v4147 = vadd.f32 %v816, %v4146
  %4148 = vmatmul.f32.gmra.mxu0 %v1777
  %v4149 = vpop.f32.mrf.mxu0
  %v4150 = vadd.f32 %v816, %v4149
  %4151 = vmatmul.f32.gmra.mxu0 %v1780
  %v4152 = vpop.f32.mrf.mxu0
  %v4153 = vadd.f32 %v816, %v4152
  %4154 = vmatmul.f32.gmra.mxu0 %v1783
  %v4155 = vpop.f32.mrf.mxu0
  %v4156 = vadd.f32 %v816, %v4155
  %4157 = vmatmul.f32.gmra.mxu0 %v1786
  %v4158 = vpop.f32.mrf.mxu0
  %v4159 = vadd.f32 %v816, %v4158
  %4160 = vmatmul.f32.gmra.mxu0 %v1789
  %v4161 = vpop.f32.mrf.mxu0
  %v4162 = vadd.f32 %v816, %v4161
  %4163 = vmatmul.f32.gmra.mxu0 %v1792
  %v4164 = vpop.f32.mrf.mxu0
  %v4165 = vadd.f32 %v816, %v4164
  %4166 = vmatmul.f32.gmra.mxu0 %v1795
  %v4167 = vpop.f32.mrf.mxu0
  %v4168 = vadd.f32 %v816, %v4167
  %4169 = vmatmul.f32.gmra.mxu0 %v1798
  %v4170 = vpop.f32.mrf.mxu0
  %v4171 = vadd.f32 %v816, %v4170
  %4172 = vmatmul.f32.gmra.mxu0 %v1801
  %v4173 = vpop.f32.mrf.mxu0
  %v4174 = vadd.f32 %v816, %v4173
  %4175 = vmatmul.f32.gmra.mxu0 %v1804
  %v4176 = vpop.f32.mrf.mxu0
  %v4177 = vadd.f32 %v816, %v4176
  %4178 = vmatmul.f32.gmra.mxu0 %v1807
  %v4179 = vpop.f32.mrf.mxu0
  %v4180 = vadd.f32 %v816, %v4179
  %4181 = vmatmul.f32.gmra.mxu0 %v1810
  %v4182 = vpop.f32.mrf.mxu0
  %v4183 = vadd.f32 %v816, %v4182
  %4184 = vmatmul.f32.gmra.mxu0 %v1813
  %v4185 = vpop.f32.mrf.mxu0
  %v4186 = vadd.f32 %v816, %v4185
  %4187 = vmatmul.f32.gmra.mxu0 %v1816
  %v4188 = vpop.f32.mrf.mxu0
  %v4189 = vadd.f32 %v816, %v4188
  %4190 = vmatmul.f32.gmra.mxu0 %v1819
  %v4191 = vpop.f32.mrf.mxu0
  %v4192 = vadd.f32 %v816, %v4191
  %4193 = vmatmul.f32.gmra.mxu0 %v1822
  %v4194 = vpop.f32.mrf.mxu0
  %v4195 = vadd.f32 %v816, %v4194
  %4196 = vmatmul.f32.gmra.mxu0 %v1825
  %v4197 = vpop.f32.mrf.mxu0
  %v4198 = vadd.f32 %v816, %v4197
  %4199 = vmatmul.f32.gmra.mxu0 %v1828
  %v4200 = vpop.f32.mrf.mxu0
  %v4201 = vadd.f32 %v816, %v4200
  %4202 = vmatmul.f32.gmra.mxu0 %v1831
  %v4203 = vpop.f32.mrf.mxu0
  %v4204 = vadd.f32 %v816, %v4203
  %4205 = vmatmul.f32.gmra.mxu0 %v1834
  %v4206 = vpop.f32.mrf.mxu0
  %v4207 = vadd.f32 %v816, %v4206
  %4208 = vmatmul.f32.gmra.mxu0 %v1837
  %v4209 = vpop.f32.mrf.mxu0
  %v4210 = vadd.f32 %v816, %v4209
  %4211 = vmatmul.f32.gmra.mxu0 %v1840
  %v4212 = vpop.f32.mrf.mxu0
  %v4213 = vadd.f32 %v816, %v4212
  %4214 = vmatmul.f32.gmra.mxu0 %v1843
  %v4215 = vpop.f32.mrf.mxu0
  %v4216 = vadd.f32 %v816, %v4215
  %4217 = vmatmul.f32.gmra.mxu0 %v1846
  %v4218 = vpop.f32.mrf.mxu0
  %v4219 = vadd.f32 %v816, %v4218
  %4220 = vmatmul.f32.gmra.mxu0 %v1849
  %v4221 = vpop.f32.mrf.mxu0
  %v4222 = vadd.f32 %v816, %v4221
  %4223 = vmatmul.f32.gmra.mxu0 %v1852
  %v4224 = vpop.f32.mrf.mxu0
  %v4225 = vadd.f32 %v816, %v4224
  %4226 = vmatmul.f32.gmra.mxu0 %v1855
  %v4227 = vpop.f32.mrf.mxu0
  %v4228 = vadd.f32 %v816, %v4227
  %4229 = vmatmul.f32.gmra.mxu0 %v1858
  %v4230 = vpop.f32.mrf.mxu0
  %v4231 = vadd.f32 %v816, %v4230
  %4232 = vmatmul.f32.gmra.mxu0 %v1861
  %v4233 = vpop.f32.mrf.mxu0
  %v4234 = vadd.f32 %v816, %v4233
  %4235 = vmatmul.f32.gmra.mxu0 %v1864
  %v4236 = vpop.f32.mrf.mxu0
  %v4237 = vadd.f32 %v816, %v4236
  %4238 = vmatmul.f32.gmra.mxu0 %v1867
  %v4239 = vpop.f32.mrf.mxu0
  %v4240 = vadd.f32 %v816, %v4239
  %4241 = vmatmul.f32.gmra.mxu0 %v1870
  %v4242 = vpop.f32.mrf.mxu0
  %v4243 = vadd.f32 %v816, %v4242
  %4244 = vmatmul.f32.gmra.mxu0 %v1873
  %v4245 = vpop.f32.mrf.mxu0
  %v4246 = vadd.f32 %v816, %v4245
  %4247 = vmatmul.f32.gmra.mxu0 %v1876
  %v4248 = vpop.f32.mrf.mxu0
  %v4249 = vadd.f32 %v816, %v4248
  %4250 = vmatmul.f32.gmra.mxu0 %v1879
  %v4251 = vpop.f32.mrf.mxu0
  %v4252 = vadd.f32 %v816, %v4251
  %4253 = vmatmul.f32.gmra.mxu0 %v1882
  %v4254 = vpop.f32.mrf.mxu0
  %v4255 = vadd.f32 %v816, %v4254
  %4256 = vmatmul.f32.gmra.mxu0 %v1885
  %v4257 = vpop.f32.mrf.mxu0
  %v4258 = vadd.f32 %v816, %v4257
  %4259 = vmatmul.f32.gmra.mxu0 %v1888
  %v4260 = vpop.f32.mrf.mxu0
  %v4261 = vadd.f32 %v816, %v4260
  %4262 = vmatmul.f32.gmra.mxu0 %v1891
  %v4263 = vpop.f32.mrf.mxu0
  %v4264 = vadd.f32 %v816, %v4263
  %4265 = vmatmul.f32.gmra.mxu0 %v1894
  %v4266 = vpop.f32.mrf.mxu0
  %v4267 = vadd.f32 %v816, %v4266
  %4268 = vmatmul.f32.gmra.mxu0 %v1897
  %v4269 = vpop.f32.mrf.mxu0
  %v4270 = vadd.f32 %v816, %v4269
  %4271 = vmatmul.f32.gmra.mxu0 %v1900
  %v4272 = vpop.f32.mrf.mxu0
  %v4273 = vadd.f32 %v816, %v4272
  %4274 = vmatmul.f32.gmra.mxu0 %v1903
  %v4275 = vpop.f32.mrf.mxu0
  %v4276 = vadd.f32 %v816, %v4275
  %4277 = vmatmul.f32.gmra.mxu0 %v1906
  %v4278 = vpop.f32.mrf.mxu0
  %v4279 = vadd.f32 %v816, %v4278
  %4280 = vmatmul.f32.gmra.mxu0 %v1909
  %v4281 = vpop.f32.mrf.mxu0
  %v4282 = vadd.f32 %v816, %v4281
  %4283 = vmatmul.f32.gmra.mxu0 %v1912
  %v4284 = vpop.f32.mrf.mxu0
  %v4285 = vadd.f32 %v816, %v4284
  %4286 = vmatmul.f32.gmra.mxu0 %v1915
  %v4287 = vpop.f32.mrf.mxu0
  %v4288 = vadd.f32 %v816, %v4287
  %4289 = vmatmul.f32.gmra.mxu0 %v1918
  %v4290 = vpop.f32.mrf.mxu0
  %v4291 = vadd.f32 %v816, %v4290
  %4292 = vmatmul.f32.gmra.mxu0 %v1921
  %v4293 = vpop.f32.mrf.mxu0
  %v4294 = vadd.f32 %v816, %v4293
  %4295 = vmatmul.f32.gmra.mxu0 %v1924
  %v4296 = vpop.f32.mrf.mxu0
  %v4297 = vadd.f32 %v816, %v4296
  %4298 = vmatmul.f32.gmra.mxu0 %v1927
  %v4299 = vpop.f32.mrf.mxu0
  %v4300 = vadd.f32 %v816, %v4299
  %4301 = vmatmul.f32.gmra.mxu0 %v1930
  %v4302 = vpop.f32.mrf.mxu0
  %v4303 = vadd.f32 %v816, %v4302
  %4304 = vmatmul.f32.gmra.mxu0 %v1933
  %v4305 = vpop.f32.mrf.mxu0
  %v4306 = vadd.f32 %v816, %v4305
  %4307 = vmatmul.f32.gmra.mxu0 %v1936
  %v4308 = vpop.f32.mrf.mxu0
  %v4309 = vadd.f32 %v816, %v4308
  %4310 = vmatmul.f32.gmra.mxu0 %v1939
  %v4311 = vpop.f32.mrf.mxu0
  %v4312 = vadd.f32 %v816, %v4311
  %4313 = vmatmul.f32.gmra.mxu0 %v1942
  %v4314 = vpop.f32.mrf.mxu0
  %v4315 = vadd.f32 %v816, %v4314
  %4316 = vmatmul.f32.gmra.mxu0 %v1945
  %v4317 = vpop.f32.mrf.mxu0
  %v4318 = vadd.f32 %v816, %v4317
  %4319 = vmatmul.f32.gmra.mxu0 %v1948
  %v4320 = vpop.f32.mrf.mxu0
  %v4321 = vadd.f32 %v816, %v4320
  %4322 = vmatmul.f32.gmra.mxu0 %v1951
  %v4323 = vpop.f32.mrf.mxu0
  %v4324 = vadd.f32 %v816, %v4323
  %4325 = vmatmul.f32.gmra.mxu0 %v1954
  %v4326 = vpop.f32.mrf.mxu0
  %v4327 = vadd.f32 %v816, %v4326
  %4328 = vmatmul.f32.gmra.mxu0 %v1957
  %v4329 = vpop.f32.mrf.mxu0
  %v4330 = vadd.f32 %v816, %v4329
  %4331 = vmatmul.f32.gmra.mxu0 %v1960
  %v4332 = vpop.f32.mrf.mxu0
  %v4333 = vadd.f32 %v816, %v4332
  %4334 = vmatmul.f32.gmra.mxu0 %v1963
  %v4335 = vpop.f32.mrf.mxu0
  %v4336 = vadd.f32 %v816, %v4335
  %4337 = vmatmul.f32.gmra.mxu0 %v1966
  %v4338 = vpop.f32.mrf.mxu0
  %v4339 = vadd.f32 %v816, %v4338
  %4340 = vmatmul.f32.gmra.mxu0 %v1969
  %v4341 = vpop.f32.mrf.mxu0
  %v4342 = vadd.f32 %v816, %v4341
  %4343 = vmatmul.f32.gmra.mxu0 %v1972
  %v4344 = vpop.f32.mrf.mxu0
  %v4345 = vadd.f32 %v816, %v4344
  %4346 = vmatmul.f32.gmra.mxu0 %v1975
  %v4347 = vpop.f32.mrf.mxu0
  %v4348 = vadd.f32 %v816, %v4347
  %4349 = vmatmul.f32.gmra.mxu0 %v1978
  %v4350 = vpop.f32.mrf.mxu0
  %v4351 = vadd.f32 %v816, %v4350
  %4352 = vmatmul.f32.gmra.mxu0 %v1981
  %v4353 = vpop.f32.mrf.mxu0
  %v4354 = vadd.f32 %v816, %v4353
  %4355 = vmatmul.f32.gmra.mxu0 %v1984
  %v4356 = vpop.f32.mrf.mxu0
  %v4357 = vadd.f32 %v816, %v4356
  %4358 = vmatmul.f32.gmra.mxu0 %v1987
  %v4359 = vpop.f32.mrf.mxu0
  %v4360 = vadd.f32 %v816, %v4359
  %4361 = vmatmul.f32.gmra.mxu0 %v1990
  %v4362 = vpop.f32.mrf.mxu0
  %v4363 = vadd.f32 %v816, %v4362
  %4364 = vmatmul.f32.gmra.mxu0 %v1993
  %v4365 = vpop.f32.mrf.mxu0
  %v4366 = vadd.f32 %v816, %v4365
  %4367 = vmatmul.f32.gmra.mxu0 %v1996
  %v4368 = vpop.f32.mrf.mxu0
  %v4369 = vadd.f32 %v816, %v4368
  %4370 = vmatmul.f32.gmra.mxu0 %v1999
  %v4371 = vpop.f32.mrf.mxu0
  %v4372 = vadd.f32 %v816, %v4371
  %4373 = vmatmul.f32.gmra.mxu0 %v2002
  %v4374 = vpop.f32.mrf.mxu0
  %v4375 = vadd.f32 %v816, %v4374
  %4376 = vmatmul.f32.gmra.mxu0 %v2005
  %v4377 = vpop.f32.mrf.mxu0
  %v4378 = vadd.f32 %v816, %v4377
  %4379 = vmatmul.f32.gmra.mxu0 %v2008
  %v4380 = vpop.f32.mrf.mxu0
  %v4381 = vadd.f32 %v816, %v4380
  %4382 = vmatmul.f32.gmra.mxu0 %v2011
  %v4383 = vpop.f32.mrf.mxu0
  %v4384 = vadd.f32 %v816, %v4383
  %4385 = vmatmul.f32.gmra.mxu0 %v2014
  %v4386 = vpop.f32.mrf.mxu0
  %v4387 = vadd.f32 %v816, %v4386
  %4388 = vmatmul.f32.gmra.mxu0 %v2017
  %v4389 = vpop.f32.mrf.mxu0
  %v4390 = vadd.f32 %v816, %v4389
  %4391 = vmatmul.f32.gmra.mxu0 %v2020
  %v4392 = vpop.f32.mrf.mxu0
  %v4393 = vadd.f32 %v816, %v4392
  %4394 = vmatmul.f32.gmra.mxu0 %v2023
  %v4395 = vpop.f32.mrf.mxu0
  %v4396 = vadd.f32 %v816, %v4395
  %4397 = vmatmul.f32.gmra.mxu0 %v2026
  %v4398 = vpop.f32.mrf.mxu0
  %v4399 = vadd.f32 %v816, %v4398
  %4400 = vmatmul.f32.gmra.mxu0 %v2029
  %v4401 = vpop.f32.mrf.mxu0
  %v4402 = vadd.f32 %v816, %v4401
  %4403 = vmatmul.f32.gmra.mxu0 %v2032
  %v4404 = vpop.f32.mrf.mxu0
  %v4405 = vadd.f32 %v816, %v4404
  %4406 = vmatmul.f32.gmra.mxu0 %v2035
  %v4407 = vpop.f32.mrf.mxu0
  %v4408 = vadd.f32 %v816, %v4407
  %4409 = vmatmul.f32.gmra.mxu0 %v2038
  %v4410 = vpop.f32.mrf.mxu0
  %v4411 = vadd.f32 %v816, %v4410
  %4412 = vmatmul.f32.gmra.mxu0 %v2041
  %v4413 = vpop.f32.mrf.mxu0
  %v4414 = vadd.f32 %v816, %v4413
  %4415 = vmatmul.f32.gmra.mxu0 %v2044
  %v4416 = vpop.f32.mrf.mxu0
  %v4417 = vadd.f32 %v816, %v4416
  %4418 = vmatmul.f32.gmra.mxu0 %v2047
  %v4419 = vpop.f32.mrf.mxu0
  %v4420 = vadd.f32 %v816, %v4419
  %4421 = vmatmul.f32.gmra.mxu0 %v2050
  %v4422 = vpop.f32.mrf.mxu0
  %v4423 = vadd.f32 %v816, %v4422
  %4424 = vmatmul.f32.gmra.mxu0 %v2053
  %v4425 = vpop.f32.mrf.mxu0
  %v4426 = vadd.f32 %v816, %v4425
  %4427 = vmatmul.f32.gmra.mxu0 %v2056
  %v4428 = vpop.f32.mrf.mxu0
  %v4429 = vadd.f32 %v816, %v4428
  %4430 = vmatmul.f32.gmra.mxu0 %v2059
  %v4431 = vpop.f32.mrf.mxu0
  %v4432 = vadd.f32 %v816, %v4431
  %4433 = vmatmul.f32.gmra.mxu0 %v2062
  %v4434 = vpop.f32.mrf.mxu0
  %v4435 = vadd.f32 %v816, %v4434
  %4436 = vmatmul.f32.gmra.mxu0 %v2065
  %v4437 = vpop.f32.mrf.mxu0
  %v4438 = vadd.f32 %v816, %v4437
  %4439 = vmatmul.f32.gmra.mxu0 %v2068
  %v4440 = vpop.f32.mrf.mxu0
  %v4441 = vadd.f32 %v816, %v4440
  %4442 = vmatmul.f32.gmra.mxu0 %v2071
  %v4443 = vpop.f32.mrf.mxu0
  %v4444 = vadd.f32 %v816, %v4443
  %4445 = vmatmul.f32.gmra.mxu0 %v2074
  %v4446 = vpop.f32.mrf.mxu0
  %v4447 = vadd.f32 %v816, %v4446
  %4448 = vmatmul.f32.gmra.mxu0 %v2077
  %v4449 = vpop.f32.mrf.mxu0
  %v4450 = vadd.f32 %v816, %v4449
  %4451 = vmatmul.f32.gmra.mxu0 %v2080
  %v4452 = vpop.f32.mrf.mxu0
  %v4453 = vadd.f32 %v816, %v4452
  %4454 = vmatmul.f32.gmra.mxu0 %v2083
  %v4455 = vpop.f32.mrf.mxu0
  %v4456 = vadd.f32 %v816, %v4455
  %4457 = vmatmul.f32.gmra.mxu0 %v2086
  %v4458 = vpop.f32.mrf.mxu0
  %v4459 = vadd.f32 %v816, %v4458
  %4460 = vmatmul.f32.gmra.mxu0 %v2089
  %v4461 = vpop.f32.mrf.mxu0
  %v4462 = vadd.f32 %v816, %v4461
  %4463 = vmatmul.f32.gmra.mxu0 %v2092
  %v4464 = vpop.f32.mrf.mxu0
  %v4465 = vadd.f32 %v816, %v4464
  %4466 = vmatmul.f32.gmra.mxu0 %v2095
  %v4467 = vpop.f32.mrf.mxu0
  %v4468 = vadd.f32 %v816, %v4467
  %4469 = vmatmul.f32.gmra.mxu0 %v2098
  %v4470 = vpop.f32.mrf.mxu0
  %v4471 = vadd.f32 %v816, %v4470
  %4472 = vmatmul.f32.gmra.mxu0 %v2101
  %v4473 = vpop.f32.mrf.mxu0
  %v4474 = vadd.f32 %v816, %v4473
  %4475 = vmatmul.f32.gmra.mxu0 %v2104
  %v4476 = vpop.f32.mrf.mxu0
  %v4477 = vadd.f32 %v816, %v4476
  %4478 = vmatmul.f32.gmra.mxu0 %v2107
  %v4479 = vpop.f32.mrf.mxu0
  %v4480 = vadd.f32 %v816, %v4479
  %4481 = vmatmul.f32.gmra.mxu0 %v2110
  %v4482 = vpop.f32.mrf.mxu0
  %v4483 = vadd.f32 %v816, %v4482
  %4484 = vmatmul.f32.gmra.mxu0 %v2113
  %v4485 = vpop.f32.mrf.mxu0
  %v4486 = vadd.f32 %v816, %v4485
  %4487 = vmatmul.f32.gmra.mxu0 %v2116
  %v4488 = vpop.f32.mrf.mxu0
  %v4489 = vadd.f32 %v816, %v4488
  %4490 = vmatmul.f32.gmra.mxu0 %v2119
  %v4491 = vpop.f32.mrf.mxu0
  %v4492 = vadd.f32 %v816, %v4491
  %4493 = vmatmul.f32.gmra.mxu0 %v2122
  %v4494 = vpop.f32.mrf.mxu0
  %v4495 = vadd.f32 %v816, %v4494
  %4496 = vmatmul.f32.gmra.mxu0 %v2125
  %v4497 = vpop.f32.mrf.mxu0
  %v4498 = vadd.f32 %v816, %v4497
  %4499 = vmatmul.f32.gmra.mxu0 %v2128
  %v4500 = vpop.f32.mrf.mxu0
  %v4501 = vadd.f32 %v816, %v4500
  %4502 = vmatmul.f32.gmra.mxu0 %v2131
  %v4503 = vpop.f32.mrf.mxu0
  %v4504 = vadd.f32 %v816, %v4503
  %4505 = vmatmul.f32.gmra.mxu0 %v2134
  %v4506 = vpop.f32.mrf.mxu0
  %v4507 = vadd.f32 %v816, %v4506
  %4508 = vmatmul.f32.gmra.mxu0 %v2137
  %v4509 = vpop.f32.mrf.mxu0
  %v4510 = vadd.f32 %v816, %v4509
  %4511 = vmatmul.f32.gmra.mxu0 %v2140
  %v4512 = vpop.f32.mrf.mxu0
  %v4513 = vadd.f32 %v816, %v4512
  %4514 = vmatmul.f32.gmra.mxu0 %v2143
  %v4515 = vpop.f32.mrf.mxu0
  %v4516 = vadd.f32 %v816, %v4515
  %4517 = vmatmul.f32.gmra.mxu0 %v2146
  %v4518 = vpop.f32.mrf.mxu0
  %v4519 = vadd.f32 %v816, %v4518
  %4520 = vmatmul.f32.gmra.mxu0 %v2149
  %v4521 = vpop.f32.mrf.mxu0
  %v4522 = vadd.f32 %v816, %v4521
  %4523 = vmatmul.f32.gmra.mxu0 %v2152
  %v4524 = vpop.f32.mrf.mxu0
  %v4525 = vadd.f32 %v816, %v4524
  %4526 = vmatmul.f32.gmra.mxu0 %v2155
  %v4527 = vpop.f32.mrf.mxu0
  %v4528 = vadd.f32 %v816, %v4527
  %4529 = vmatmul.f32.gmra.mxu0 %v2158
  %v4530 = vpop.f32.mrf.mxu0
  %v4531 = vadd.f32 %v816, %v4530
  %4532 = vmatmul.f32.gmra.mxu0 %v2161
  %v4533 = vpop.f32.mrf.mxu0
  %v4534 = vadd.f32 %v816, %v4533
  %4535 = vmatmul.f32.gmra.mxu0 %v2164
  %v4536 = vpop.f32.mrf.mxu0
  %v4537 = vadd.f32 %v816, %v4536
  %4538 = vmatmul.f32.gmra.mxu0 %v2167
  %v4539 = vpop.f32.mrf.mxu0
  %v4540 = vadd.f32 %v816, %v4539
  %4541 = vmatmul.f32.gmra.mxu0 %v2170
  %v4542 = vpop.f32.mrf.mxu0
  %v4543 = vadd.f32 %v816, %v4542
  %4544 = vmatmul.f32.gmra.mxu0 %v2173
  %v4545 = vpop.f32.mrf.mxu0
  %v4546 = vadd.f32 %v816, %v4545
  %4547 = vmatmul.f32.gmra.mxu0 %v2176
  %v4548 = vpop.f32.mrf.mxu0
  %v4549 = vadd.f32 %v816, %v4548
  %4550 = vmatmul.f32.gmra.mxu0 %v2179
  %v4551 = vpop.f32.mrf.mxu0
  %v4552 = vadd.f32 %v816, %v4551
  %4553 = vmatmul.f32.gmra.mxu0 %v2182
  %v4554 = vpop.f32.mrf.mxu0
  %v4555 = vadd.f32 %v816, %v4554
  %4556 = vmatmul.f32.gmra.mxu0 %v2185
  %v4557 = vpop.f32.mrf.mxu0
  %v4558 = vadd.f32 %v816, %v4557
  %4559 = vmatmul.f32.gmra.mxu0 %v2188
  %v4560 = vpop.f32.mrf.mxu0
  %v4561 = vadd.f32 %v816, %v4560
  %4562 = vmatmul.f32.gmra.mxu0 %v2191
  %v4563 = vpop.f32.mrf.mxu0
  %v4564 = vadd.f32 %v816, %v4563
  %4565 = vmatmul.f32.gmra.mxu0 %v2194
  %v4566 = vpop.f32.mrf.mxu0
  %v4567 = vadd.f32 %v816, %v4566
  %4568 = vmatmul.f32.gmra.mxu0 %v2197
  %v4569 = vpop.f32.mrf.mxu0
  %v4570 = vadd.f32 %v816, %v4569
  %4571 = vmatmul.f32.gmra.mxu0 %v2200
  %v4572 = vpop.f32.mrf.mxu0
  %v4573 = vadd.f32 %v816, %v4572
  %4574 = vmatmul.f32.gmra.mxu0 %v2203
  %v4575 = vpop.f32.mrf.mxu0
  %v4576 = vadd.f32 %v816, %v4575
  %4577 = vmatmul.f32.gmra.mxu0 %v2206
  %v4578 = vpop.f32.mrf.mxu0
  %v4579 = vadd.f32 %v816, %v4578
  %4580 = vmatmul.f32.gmra.mxu0 %v2209
  %v4581 = vpop.f32.mrf.mxu0
  %v4582 = vadd.f32 %v816, %v4581
  %4583 = vmatmul.f32.gmra.mxu0 %v2212
  %v4584 = vpop.f32.mrf.mxu0
  %v4585 = vadd.f32 %v816, %v4584
  %4586 = vmatmul.f32.gmra.mxu0 %v2215
  %v4587 = vpop.f32.mrf.mxu0
  %v4588 = vadd.f32 %v816, %v4587
  %4589 = vmatmul.f32.gmra.mxu0 %v2218
  %v4590 = vpop.f32.mrf.mxu0
  %v4591 = vadd.f32 %v816, %v4590
  %4592 = vmatmul.f32.gmra.mxu0 %v2221
  %v4593 = vpop.f32.mrf.mxu0
  %v4594 = vadd.f32 %v816, %v4593
  %4595 = vmatmul.f32.gmra.mxu0 %v2224
  %v4596 = vpop.f32.mrf.mxu0
  %v4597 = vadd.f32 %v816, %v4596
  %4598 = vmatmul.f32.gmra.mxu0 %v2227
  %v4599 = vpop.f32.mrf.mxu0
  %v4600 = vadd.f32 %v816, %v4599
  %4601 = vmatmul.f32.gmra.mxu0 %v2230
  %v4602 = vpop.f32.mrf.mxu0
  %v4603 = vadd.f32 %v816, %v4602
  %4604 = vmatmul.f32.gmra.mxu0 %v2233
  %v4605 = vpop.f32.mrf.mxu0
  %v4606 = vadd.f32 %v816, %v4605
  %4607 = vmatmul.f32.gmra.mxu0 %v2236
  %v4608 = vpop.f32.mrf.mxu0
  %v4609 = vadd.f32 %v816, %v4608
  %4610 = vmatmul.f32.gmra.mxu0 %v2239
  %v4611 = vpop.f32.mrf.mxu0
  %v4612 = vadd.f32 %v816, %v4611
  %4613 = vmatmul.f32.gmra.mxu0 %v2242
  %v4614 = vpop.f32.mrf.mxu0
  %v4615 = vadd.f32 %v816, %v4614
  %4616 = vmatmul.f32.gmra.mxu0 %v2245
  %v4617 = vpop.f32.mrf.mxu0
  %v4618 = vadd.f32 %v816, %v4617
  %4619 = vmatmul.f32.gmra.mxu0 %v2248
  %v4620 = vpop.f32.mrf.mxu0
  %v4621 = vadd.f32 %v816, %v4620
  %4622 = vmatmul.f32.gmra.mxu0 %v2251
  %v4623 = vpop.f32.mrf.mxu0
  %v4624 = vadd.f32 %v816, %v4623
  %4625 = vmatmul.f32.gmra.mxu0 %v2254
  %v4626 = vpop.f32.mrf.mxu0
  %v4627 = vadd.f32 %v816, %v4626
  %4628 = vmatmul.f32.gmra.mxu0 %v2257
  %v4629 = vpop.f32.mrf.mxu0
  %v4630 = vadd.f32 %v816, %v4629
  %4631 = vmatmul.f32.gmra.mxu0 %v2260
  %v4632 = vpop.f32.mrf.mxu0
  %v4633 = vadd.f32 %v816, %v4632
  %4634 = vmatmul.f32.gmra.mxu0 %v2263
  %v4635 = vpop.f32.mrf.mxu0
  %v4636 = vadd.f32 %v816, %v4635
  %4637 = vmatmul.f32.gmra.mxu0 %v2266
  %v4638 = vpop.f32.mrf.mxu0
  %v4639 = vadd.f32 %v816, %v4638
  %4640 = vmatmul.f32.gmra.mxu0 %v2269
  %v4641 = vpop.f32.mrf.mxu0
  %v4642 = vadd.f32 %v816, %v4641
  %4643 = vmatmul.f32.gmra.mxu0 %v2272
  %v4644 = vpop.f32.mrf.mxu0
  %v4645 = vadd.f32 %v816, %v4644
  %4646 = vmatmul.f32.gmra.mxu0 %v2275
  %v4647 = vpop.f32.mrf.mxu0
  %v4648 = vadd.f32 %v816, %v4647
  %4649 = vmatmul.f32.gmra.mxu0 %v2278
  %v4650 = vpop.f32.mrf.mxu0
  %v4651 = vadd.f32 %v816, %v4650
  %4652 = vmatmul.f32.gmra.mxu0 %v2281
  %v4653 = vpop.f32.mrf.mxu0
  %v4654 = vadd.f32 %v816, %v4653
  %4655 = vmatmul.f32.gmra.mxu0 %v2284
  %v4656 = vpop.f32.mrf.mxu0
  %v4657 = vadd.f32 %v816, %v4656
  %4658 = vmatmul.f32.gmra.mxu0 %v2287
  %v4659 = vpop.f32.mrf.mxu0
  %v4660 = vadd.f32 %v816, %v4659
  %4661 = vmatmul.f32.gmra.mxu0 %v2290
  %v4662 = vpop.f32.mrf.mxu0
  %v4663 = vadd.f32 %v816, %v4662
  %4664 = vmatmul.f32.gmra.mxu0 %v2293
  %v4665 = vpop.f32.mrf.mxu0
  %v4666 = vadd.f32 %v816, %v4665
  %4667 = vmatmul.f32.gmra.mxu0 %v2296
  %v4668 = vpop.f32.mrf.mxu0
  %v4669 = vadd.f32 %v816, %v4668
  %4670 = vmatmul.f32.gmra.mxu0 %v2299
  %v4671 = vpop.f32.mrf.mxu0
  %v4672 = vadd.f32 %v816, %v4671
  %4673 = vmatmul.f32.gmra.mxu0 %v2302
  %v4674 = vpop.f32.mrf.mxu0
  %v4675 = vadd.f32 %v816, %v4674
  %4676 = vmatmul.f32.gmra.mxu0 %v2305
  %v4677 = vpop.f32.mrf.mxu0
  %v4678 = vadd.f32 %v816, %v4677
  %4679 = vmatmul.f32.gmra.mxu0 %v2308
  %v4680 = vpop.f32.mrf.mxu0
  %v4681 = vadd.f32 %v816, %v4680
  %4682 = vmatmul.f32.gmra.mxu0 %v2311
  %v4683 = vpop.f32.mrf.mxu0
  %v4684 = vadd.f32 %v816, %v4683
  %4685 = vmatmul.f32.gmra.mxu0 %v2314
  %v4686 = vpop.f32.mrf.mxu0
  %v4687 = vadd.f32 %v816, %v4686
  %4688 = vmatmul.f32.gmra.mxu0 %v2317
  %v4689 = vpop.f32.mrf.mxu0
  %v4690 = vadd.f32 %v816, %v4689
  %4691 = vmatmul.f32.gmra.mxu0 %v2320
  %v4692 = vpop.f32.mrf.mxu0
  %v4693 = vadd.f32 %v816, %v4692
  %4694 = vmatmul.f32.gmra.mxu0 %v2323
  %v4695 = vpop.f32.mrf.mxu0
  %v4696 = vadd.f32 %v816, %v4695
  %4697 = vmatmul.f32.gmra.mxu0 %v2326
  %v4698 = vpop.f32.mrf.mxu0
  %v4699 = vadd.f32 %v816, %v4698
  %4700 = vmatmul.f32.gmra.mxu0 %v2329
  %v4701 = vpop.f32.mrf.mxu0
  %v4702 = vadd.f32 %v816, %v4701
  %4703 = vmatmul.f32.gmra.mxu0 %v2332
  %v4704 = vpop.f32.mrf.mxu0
  %v4705 = vadd.f32 %v816, %v4704
  %4706 = vmatmul.f32.gmra.mxu0 %v2335
  %v4707 = vpop.f32.mrf.mxu0
  %v4708 = vadd.f32 %v816, %v4707
  %4709 = vmatmul.f32.gmra.mxu0 %v2338
  %v4710 = vpop.f32.mrf.mxu0
  %v4711 = vadd.f32 %v816, %v4710
  %4712 = vmatmul.f32.gmra.mxu0 %v2341
  %v4713 = vpop.f32.mrf.mxu0
  %v4714 = vadd.f32 %v816, %v4713
  %4715 = vmatmul.f32.gmra.mxu0 %v2344
  %v4716 = vpop.f32.mrf.mxu0
  %v4717 = vadd.f32 %v816, %v4716
  %4718 = vmatmul.f32.gmra.mxu0 %v2347
  %v4719 = vpop.f32.mrf.mxu0
  %v4720 = vadd.f32 %v816, %v4719
  %4721 = vmatmul.f32.gmra.mxu0 %v2350
  %v4722 = vpop.f32.mrf.mxu0
  %v4723 = vadd.f32 %v816, %v4722
  %4724 = vmatmul.f32.gmra.mxu0 %v2353
  %v4725 = vpop.f32.mrf.mxu0
  %v4726 = vadd.f32 %v816, %v4725
  %4727 = vmatmul.f32.gmra.mxu0 %v2356
  %v4728 = vpop.f32.mrf.mxu0
  %v4729 = vadd.f32 %v816, %v4728
  %4730 = vmatmul.f32.gmra.mxu0 %v2359
  %v4731 = vpop.f32.mrf.mxu0
  %v4732 = vadd.f32 %v816, %v4731
  %4733 = vmatmul.f32.gmra.mxu0 %v2362
  %v4734 = vpop.f32.mrf.mxu0
  %v4735 = vadd.f32 %v816, %v4734
  %4736 = vmatmul.f32.gmra.mxu0 %v2365
  %v4737 = vpop.f32.mrf.mxu0
  %v4738 = vadd.f32 %v816, %v4737
  %4739 = vmatmul.f32.gmra.mxu0 %v2368
  %v4740 = vpop.f32.mrf.mxu0
  %v4741 = vadd.f32 %v816, %v4740
  %4742 = vmatmul.f32.gmra.mxu0 %v2371
  %v4743 = vpop.f32.mrf.mxu0
  %v4744 = vadd.f32 %v816, %v4743
  %4745 = vmatmul.f32.gmra.mxu0 %v2374
  %v4746 = vpop.f32.mrf.mxu0
  %v4747 = vadd.f32 %v816, %v4746
  %4748 = vmatmul.f32.gmra.mxu0 %v2377
  %v4749 = vpop.f32.mrf.mxu0
  %v4750 = vadd.f32 %v816, %v4749
  %4751 = vmatmul.f32.gmra.mxu0 %v2380
  %v4752 = vpop.f32.mrf.mxu0
  %v4753 = vadd.f32 %v816, %v4752
  %4754 = vmatmul.f32.gmra.mxu0 %v2383
  %v4755 = vpop.f32.mrf.mxu0
  %v4756 = vadd.f32 %v816, %v4755
  %4757 = vmatmul.f32.gmra.mxu0 %v2386
  %v4758 = vpop.f32.mrf.mxu0
  %v4759 = vadd.f32 %v816, %v4758
  %4760 = vmatmul.f32.gmra.mxu0 %v2389
  %v4761 = vpop.f32.mrf.mxu0
  %v4762 = vadd.f32 %v816, %v4761
  %4763 = vmatmul.f32.gmra.mxu0 %v2392
  %v4764 = vpop.f32.mrf.mxu0
  %v4765 = vadd.f32 %v816, %v4764
  %4766 = vmatmul.f32.gmra.mxu0 %v2395
  %v4767 = vpop.f32.mrf.mxu0
  %v4768 = vadd.f32 %v816, %v4767
  %4769 = vmatmul.f32.gmra.mxu0 %v2398
  %v4770 = vpop.f32.mrf.mxu0
  %v4771 = vadd.f32 %v816, %v4770
  %4772 = vmatmul.f32.gmra.mxu0 %v2401
  %v4773 = vpop.f32.mrf.mxu0
  %v4774 = vadd.f32 %v816, %v4773
  %4775 = vmatmul.f32.gmra.mxu0 %v2404
  %v4776 = vpop.f32.mrf.mxu0
  %v4777 = vadd.f32 %v816, %v4776
  %4778 = vmatmul.f32.gmra.mxu0 %v2407
  %v4779 = vpop.f32.mrf.mxu0
  %v4780 = vadd.f32 %v816, %v4779
  %4781 = vmatmul.f32.gmra.mxu0 %v2410
  %v4782 = vpop.f32.mrf.mxu0
  %v4783 = vadd.f32 %v816, %v4782
  %4784 = vmatmul.f32.gmra.mxu0 %v2413
  %v4785 = vpop.f32.mrf.mxu0
  %v4786 = vadd.f32 %v816, %v4785
  %4787 = vmatmul.f32.gmra.mxu0 %v2416
  %v4788 = vpop.f32.mrf.mxu0
  %v4789 = vadd.f32 %v816, %v4788
  %4790 = vmatmul.f32.gmra.mxu0 %v2419
  %v4791 = vpop.f32.mrf.mxu0
  %v4792 = vadd.f32 %v816, %v4791
  %4793 = vmatmul.f32.gmra.mxu0 %v2422
  %v4794 = vpop.f32.mrf.mxu0
  %v4795 = vadd.f32 %v816, %v4794
  %4796 = vmatmul.f32.gmra.mxu0 %v2425
  %v4797 = vpop.f32.mrf.mxu0
  %v4798 = vadd.f32 %v816, %v4797
  %4799 = vmatmul.f32.gmra.mxu0 %v2428
  %v4800 = vpop.f32.mrf.mxu0
  %v4801 = vadd.f32 %v816, %v4800
  %4802 = vmatmul.f32.gmra.mxu0 %v2431
  %v4803 = vpop.f32.mrf.mxu0
  %v4804 = vadd.f32 %v816, %v4803
  %4805 = vmatmul.f32.gmra.mxu0 %v2434
  %v4806 = vpop.f32.mrf.mxu0
  %v4807 = vadd.f32 %v816, %v4806
  %4808 = vmatmul.f32.gmra.mxu0 %v2437
  %v4809 = vpop.f32.mrf.mxu0
  %v4810 = vadd.f32 %v816, %v4809
  %4811 = vmatmul.f32.gmra.mxu0 %v2440
  %v4812 = vpop.f32.mrf.mxu0
  %v4813 = vadd.f32 %v816, %v4812
  %4814 = vmatmul.f32.gmra.mxu0 %v2443
  %v4815 = vpop.f32.mrf.mxu0
  %v4816 = vadd.f32 %v816, %v4815
  %4817 = vmatmul.f32.gmra.mxu0 %v2446
  %v4818 = vpop.f32.mrf.mxu0
  %v4819 = vadd.f32 %v816, %v4818
  %4820 = vmatmul.f32.gmra.mxu0 %v2449
  %v4821 = vpop.f32.mrf.mxu0
  %v4822 = vadd.f32 %v816, %v4821
  %4823 = vmatmul.f32.gmra.mxu0 %v2452
  %v4824 = vpop.f32.mrf.mxu0
  %v4825 = vadd.f32 %v816, %v4824
  %4826 = vmatmul.f32.gmra.mxu0 %v2455
  %v4827 = vpop.f32.mrf.mxu0
  %v4828 = vadd.f32 %v816, %v4827
  %4829 = vmatmul.f32.gmra.mxu0 %v2458
  %v4830 = vpop.f32.mrf.mxu0
  %v4831 = vadd.f32 %v816, %v4830
  %4832 = vmatmul.f32.gmra.mxu0 %v2461
  %v4833 = vpop.f32.mrf.mxu0
  %v4834 = vadd.f32 %v816, %v4833
  %4835 = vmatmul.f32.gmra.mxu0 %v2464
  %v4836 = vpop.f32.mrf.mxu0
  %v4837 = vadd.f32 %v816, %v4836
  %4838 = vmatmul.f32.gmra.mxu0 %v2467
  %v4839 = vpop.f32.mrf.mxu0
  %v4840 = vadd.f32 %v816, %v4839
  %4841 = vmatmul.f32.gmra.mxu0 %v2470
  %v4842 = vpop.f32.mrf.mxu0
  %v4843 = vadd.f32 %v816, %v4842
  %4844 = vmatmul.f32.gmra.mxu0 %v2473
  %v4845 = vpop.f32.mrf.mxu0
  %v4846 = vadd.f32 %v816, %v4845
  %4847 = vmatmul.f32.gmra.mxu0 %v2476
  %v4848 = vpop.f32.mrf.mxu0
  %v4849 = vadd.f32 %v816, %v4848
  %4850 = vmatmul.f32.gmra.mxu0 %v2479
  %v4851 = vpop.f32.mrf.mxu0
  %v4852 = vadd.f32 %v816, %v4851
  %4853 = vmatmul.f32.gmra.mxu0 %v2482
  %v4854 = vpop.f32.mrf.mxu0
  %v4855 = vadd.f32 %v816, %v4854
  %4856 = vmatmul.f32.gmra.mxu0 %v2485
  %v4857 = vpop.f32.mrf.mxu0
  %v4858 = vadd.f32 %v816, %v4857
  %4859 = vmatmul.f32.gmra.mxu0 %v2488
  %v4860 = vpop.f32.mrf.mxu0
  %v4861 = vadd.f32 %v816, %v4860
  %4862 = vmatmul.f32.gmra.mxu0 %v2491
  %v4863 = vpop.f32.mrf.mxu0
  %v4864 = vadd.f32 %v816, %v4863
  %4865 = vmatmul.f32.gmra.mxu0 %v2494
  %v4866 = vpop.f32.mrf.mxu0
  %v4867 = vadd.f32 %v816, %v4866
  %4868 = vmatmul.f32.gmra.mxu0 %v2497
  %v4869 = vpop.f32.mrf.mxu0
  %v4870 = vadd.f32 %v816, %v4869
  %4871 = vmatmul.f32.gmra.mxu0 %v2500
  %v4872 = vpop.f32.mrf.mxu0
  %v4873 = vadd.f32 %v816, %v4872
  %4874 = vmatmul.f32.gmra.mxu0 %v2503
  %v4875 = vpop.f32.mrf.mxu0
  %v4876 = vadd.f32 %v816, %v4875
  %4877 = vmatmul.f32.gmra.mxu0 %v2506
  %v4878 = vpop.f32.mrf.mxu0
  %v4879 = vadd.f32 %v816, %v4878
  %4880 = vmatmul.f32.gmra.mxu0 %v2509
  %v4881 = vpop.f32.mrf.mxu0
  %v4882 = vadd.f32 %v816, %v4881
  %4883 = vmatmul.f32.gmra.mxu0 %v2512
  %v4884 = vpop.f32.mrf.mxu0
  %v4885 = vadd.f32 %v816, %v4884
  %4886 = vmatmul.f32.gmra.mxu0 %v2515
  %v4887 = vpop.f32.mrf.mxu0
  %v4888 = vadd.f32 %v816, %v4887
  %4889 = vmatmul.f32.gmra.mxu0 %v2518
  %v4890 = vpop.f32.mrf.mxu0
  %v4891 = vadd.f32 %v816, %v4890
  %4892 = vmatmul.f32.gmra.mxu0 %v2521
  %v4893 = vpop.f32.mrf.mxu0
  %v4894 = vadd.f32 %v816, %v4893
  %4895 = vmatmul.f32.gmra.mxu0 %v2524
  %v4896 = vpop.f32.mrf.mxu0
  %v4897 = vadd.f32 %v816, %v4896
  %4898 = vmatmul.f32.gmra.mxu0 %v2527
  %v4899 = vpop.f32.mrf.mxu0
  %v4900 = vadd.f32 %v816, %v4899
  %4901 = vmatmul.f32.gmra.mxu0 %v2530
  %v4902 = vpop.f32.mrf.mxu0
  %v4903 = vadd.f32 %v816, %v4902
  %4904 = vmatmul.f32.gmra.mxu0 %v2533
  %v4905 = vpop.f32.mrf.mxu0
  %v4906 = vadd.f32 %v816, %v4905
  %4907 = vmatmul.f32.gmra.mxu0 %v2536
  %v4908 = vpop.f32.mrf.mxu0
  %v4909 = vadd.f32 %v816, %v4908
  %4910 = vmatmul.f32.gmra.mxu0 %v2539
  %v4911 = vpop.f32.mrf.mxu0
  %v4912 = vadd.f32 %v816, %v4911
  %4913 = vmatmul.f32.gmra.mxu0 %v2542
  %v4914 = vpop.f32.mrf.mxu0
  %v4915 = vadd.f32 %v816, %v4914
  %4916 = vmatmul.f32.gmra.mxu0 %v2545
  %v4917 = vpop.f32.mrf.mxu0
  %v4918 = vadd.f32 %v816, %v4917
  %4919 = vmatmul.f32.gmra.mxu0 %v2548
  %v4920 = vpop.f32.mrf.mxu0
  %v4921 = vadd.f32 %v816, %v4920
  %4922 = vmatmul.f32.gmra.mxu0 %v2551
  %v4923 = vpop.f32.mrf.mxu0
  %v4924 = vadd.f32 %v816, %v4923
  %4925 = vmatmul.f32.gmra.mxu0 %v2554
  %v4926 = vpop.f32.mrf.mxu0
  %v4927 = vadd.f32 %v816, %v4926
  %4928 = vmatmul.f32.gmra.mxu0 %v2557
  %v4929 = vpop.f32.mrf.mxu0
  %v4930 = vadd.f32 %v816, %v4929
  %4931 = vmatmul.f32.gmra.mxu0 %v2560
  %v4932 = vpop.f32.mrf.mxu0
  %v4933 = vadd.f32 %v816, %v4932
  %4934 = vmatmul.f32.gmra.mxu0 %v2563
  %v4935 = vpop.f32.mrf.mxu0
  %v4936 = vadd.f32 %v816, %v4935
  %4937 = vmatmul.f32.gmra.mxu0 %v2566
  %v4938 = vpop.f32.mrf.mxu0
  %v4939 = vadd.f32 %v816, %v4938
  %4940 = vmatmul.f32.gmra.mxu0 %v2569
  %v4941 = vpop.f32.mrf.mxu0
  %v4942 = vadd.f32 %v816, %v4941
  %4943 = vmatmul.f32.gmra.mxu0 %v2572
  %v4944 = vpop.f32.mrf.mxu0
  %v4945 = vadd.f32 %v816, %v4944
  %4946 = vmatmul.f32.gmra.mxu0 %v2575
  %v4947 = vpop.f32.mrf.mxu0
  %v4948 = vadd.f32 %v816, %v4947
  %4949 = vmatmul.f32.gmra.mxu0 %v2578
  %v4950 = vpop.f32.mrf.mxu0
  %v4951 = vadd.f32 %v816, %v4950
  %4952 = vmatmul.f32.gmra.mxu0 %v2581
  %v4953 = vpop.f32.mrf.mxu0
  %v4954 = vadd.f32 %v816, %v4953
  %4955 = vmatmul.f32.gmra.mxu0 %v2584
  %v4956 = vpop.f32.mrf.mxu0
  %v4957 = vadd.f32 %v816, %v4956
  %4958 = vmatmul.f32.gmra.mxu0 %v2587
  %v4959 = vpop.f32.mrf.mxu0
  %v4960 = vadd.f32 %v816, %v4959
  %4961 = vmatmul.f32.gmra.mxu0 %v2590
  %v4962 = vpop.f32.mrf.mxu0
  %v4963 = vadd.f32 %v816, %v4962
  %4964 = vmatmul.f32.gmra.mxu0 %v2593
  %v4965 = vpop.f32.mrf.mxu0
  %v4966 = vadd.f32 %v816, %v4965
  %4967 = vmatmul.f32.gmra.mxu0 %v2596
  %v4968 = vpop.f32.mrf.mxu0
  %v4969 = vadd.f32 %v816, %v4968
  %4970 = vmatmul.f32.gmra.mxu0 %v2599
  %v4971 = vpop.f32.mrf.mxu0
  %v4972 = vadd.f32 %v816, %v4971
  %4973 = vmatmul.f32.gmra.mxu0 %v2602
  %v4974 = vpop.f32.mrf.mxu0
  %v4975 = vadd.f32 %v816, %v4974
  %4976 = vmatmul.f32.gmra.mxu0 %v2605
  %v4977 = vpop.f32.mrf.mxu0
  %v4978 = vadd.f32 %v816, %v4977
  %4979 = vmatmul.f32.gmra.mxu0 %v2608
  %v4980 = vpop.f32.mrf.mxu0
  %v4981 = vadd.f32 %v816, %v4980
  %4982 = vmatmul.f32.gmra.mxu0 %v2611
  %v4983 = vpop.f32.mrf.mxu0
  %v4984 = vadd.f32 %v816, %v4983
  %4985 = vmatmul.f32.gmra.mxu0 %v2614
  %v4986 = vpop.f32.mrf.mxu0
  %v4987 = vadd.f32 %v816, %v4986
  %4988 = vmatmul.f32.gmra.mxu0 %v2617
  %v4989 = vpop.f32.mrf.mxu0
  %v4990 = vadd.f32 %v816, %v4989
  %4991 = vmatmul.f32.gmra.mxu0 %v2620
  %v4992 = vpop.f32.mrf.mxu0
  %v4993 = vadd.f32 %v816, %v4992
  %4994 = vmatmul.f32.gmra.mxu0 %v2623
  %v4995 = vpop.f32.mrf.mxu0
  %v4996 = vadd.f32 %v816, %v4995
  %4997 = vmatmul.f32.gmra.mxu0 %v2626
  %v4998 = vpop.f32.mrf.mxu0
  %v4999 = vadd.f32 %v816, %v4998
  %5000 = vmatmul.f32.gmra.mxu0 %v2629
  %v5001 = vpop.f32.mrf.mxu0
  %v5002 = vadd.f32 %v816, %v5001
  %5003 = vmatmul.f32.gmra.mxu0 %v2632
  %v5004 = vpop.f32.mrf.mxu0
  %v5005 = vadd.f32 %v816, %v5004
  %5006 = vmatmul.f32.gmra.mxu0 %v2635
  %v5007 = vpop.f32.mrf.mxu0
  %v5008 = vadd.f32 %v816, %v5007
  %5009 = vmatmul.f32.gmra.mxu0 %v2638
  %v5010 = vpop.f32.mrf.mxu0
  %v5011 = vadd.f32 %v816, %v5010
  %5012 = vmatmul.f32.gmra.mxu0 %v2641
  %v5013 = vpop.f32.mrf.mxu0
  %v5014 = vadd.f32 %v816, %v5013
  %5015 = vmatmul.f32.gmra.mxu0 %v2644
  %v5016 = vpop.f32.mrf.mxu0
  %v5017 = vadd.f32 %v816, %v5016
  %5018 = vmatmul.f32.gmra.mxu0 %v2647
  %v5019 = vpop.f32.mrf.mxu0
  %v5020 = vadd.f32 %v816, %v5019
  %5021 = vmatmul.f32.gmra.mxu0 %v2650
  %v5022 = vpop.f32.mrf.mxu0
  %v5023 = vadd.f32 %v816, %v5022
  %5024 = vmatmul.f32.gmra.mxu0 %v2653
  %v5025 = vpop.f32.mrf.mxu0
  %v5026 = vadd.f32 %v816, %v5025
  %5027 = vmatmul.f32.gmra.mxu0 %v2656
  %v5028 = vpop.f32.mrf.mxu0
  %v5029 = vadd.f32 %v816, %v5028
  %5030 = vmatmul.f32.gmra.mxu0 %v2659
  %v5031 = vpop.f32.mrf.mxu0
  %v5032 = vadd.f32 %v816, %v5031
  %5033 = vmatmul.f32.gmra.mxu0 %v2662
  %v5034 = vpop.f32.mrf.mxu0
  %v5035 = vadd.f32 %v816, %v5034
  %5036 = vmatmul.f32.gmra.mxu0 %v2665
  %v5037 = vpop.f32.mrf.mxu0
  %v5038 = vadd.f32 %v816, %v5037
  %5039 = vmatmul.f32.gmra.mxu0 %v2668
  %v5040 = vpop.f32.mrf.mxu0
  %v5041 = vadd.f32 %v816, %v5040
  %5042 = vmatmul.f32.gmra.mxu0 %v2671
  %v5043 = vpop.f32.mrf.mxu0
  %v5044 = vadd.f32 %v816, %v5043
  %5045 = vmatmul.f32.gmra.mxu0 %v2674
  %v5046 = vpop.f32.mrf.mxu0
  %v5047 = vadd.f32 %v816, %v5046
  %5048 = vmatmul.f32.gmra.mxu0 %v2677
  %v5049 = vpop.f32.mrf.mxu0
  %v5050 = vadd.f32 %v816, %v5049
  %5051 = vmatmul.f32.gmra.mxu0 %v2680
  %v5052 = vpop.f32.mrf.mxu0
  %v5053 = vadd.f32 %v816, %v5052
  %5054 = vmatmul.f32.gmra.mxu0 %v2683
  %v5055 = vpop.f32.mrf.mxu0
  %v5056 = vadd.f32 %v816, %v5055
  %5057 = vmatmul.f32.gmra.mxu0 %v2686
  %v5058 = vpop.f32.mrf.mxu0
  %v5059 = vadd.f32 %v816, %v5058
  %5060 = vmatmul.f32.gmra.mxu0 %v2689
  %v5061 = vpop.f32.mrf.mxu0
  %v5062 = vadd.f32 %v816, %v5061
  %5063 = vmatmul.f32.gmra.mxu0 %v2692
  %v5064 = vpop.f32.mrf.mxu0
  %v5065 = vadd.f32 %v816, %v5064
  %5066 = vmatmul.f32.gmra.mxu0 %v2695
  %v5067 = vpop.f32.mrf.mxu0
  %v5068 = vadd.f32 %v816, %v5067
  %5069 = vmatmul.f32.gmra.mxu0 %v2698
  %v5070 = vpop.f32.mrf.mxu0
  %v5071 = vadd.f32 %v816, %v5070
  %5072 = vmatmul.f32.gmra.mxu0 %v2701
  %v5073 = vpop.f32.mrf.mxu0
  %v5074 = vadd.f32 %v816, %v5073
  %5075 = vmatmul.f32.gmra.mxu0 %v2704
  %v5076 = vpop.f32.mrf.mxu0
  %v5077 = vadd.f32 %v816, %v5076
  %5078 = vmatmul.f32.gmra.mxu0 %v2707
  %v5079 = vpop.f32.mrf.mxu0
  %v5080 = vadd.f32 %v816, %v5079
  %5081 = vmatmul.f32.gmra.mxu0 %v2710
  %v5082 = vpop.f32.mrf.mxu0
  %v5083 = vadd.f32 %v816, %v5082
  %5084 = vmatmul.f32.gmra.mxu0 %v2713
  %v5085 = vpop.f32.mrf.mxu0
  %v5086 = vadd.f32 %v816, %v5085
  %5087 = vmatmul.f32.gmra.mxu0 %v2716
  %v5088 = vpop.f32.mrf.mxu0
  %v5089 = vadd.f32 %v816, %v5088
  %5090 = vmatmul.f32.gmra.mxu0 %v2719
  %v5091 = vpop.f32.mrf.mxu0
  %v5092 = vadd.f32 %v816, %v5091
  %5093 = vmatmul.f32.gmra.mxu0 %v2722
  %v5094 = vpop.f32.mrf.mxu0
  %v5095 = vadd.f32 %v816, %v5094
  %5096 = vmatmul.f32.gmra.mxu0 %v2725
  %v5097 = vpop.f32.mrf.mxu0
  %v5098 = vadd.f32 %v816, %v5097
  %5099 = vmatmul.f32.gmra.mxu0 %v2728
  %v5100 = vpop.f32.mrf.mxu0
  %v5101 = vadd.f32 %v816, %v5100
  %5102 = vmatmul.f32.gmra.mxu0 %v2731
  %v5103 = vpop.f32.mrf.mxu0
  %v5104 = vadd.f32 %v816, %v5103
  %5105 = vmatmul.f32.gmra.mxu0 %v2734
  %v5106 = vpop.f32.mrf.mxu0
  %v5107 = vadd.f32 %v816, %v5106
  %5108 = vmatmul.f32.gmra.mxu0 %v2737
  %v5109 = vpop.f32.mrf.mxu0
  %v5110 = vadd.f32 %v816, %v5109
  %5111 = vmatmul.f32.gmra.mxu0 %v2740
  %v5112 = vpop.f32.mrf.mxu0
  %v5113 = vadd.f32 %v816, %v5112
  %5114 = vmatmul.f32.gmra.mxu0 %v2743
  %v5115 = vpop.f32.mrf.mxu0
  %v5116 = vadd.f32 %v816, %v5115
  %5117 = vmatmul.f32.gmra.mxu0 %v2746
  %v5118 = vpop.f32.mrf.mxu0
  %v5119 = vadd.f32 %v816, %v5118
  %5120 = vmatmul.f32.gmra.mxu0 %v2749
  %v5121 = vpop.f32.mrf.mxu0
  %v5122 = vadd.f32 %v816, %v5121
  %5123 = vmatmul.f32.gmra.mxu0 %v2752
  %v5124 = vpop.f32.mrf.mxu0
  %v5125 = vadd.f32 %v816, %v5124
  %5126 = vmatmul.f32.gmra.mxu0 %v2755
  %v5127 = vpop.f32.mrf.mxu0
  %v5128 = vadd.f32 %v816, %v5127
  %5129 = vmatmul.f32.gmra.mxu0 %v2758
  %v5130 = vpop.f32.mrf.mxu0
  %v5131 = vadd.f32 %v816, %v5130
  %5132 = vmatmul.f32.gmra.mxu0 %v2761
  %v5133 = vpop.f32.mrf.mxu0
  %v5134 = vadd.f32 %v816, %v5133
  %5135 = vmatmul.f32.gmra.mxu0 %v2764
  %v5136 = vpop.f32.mrf.mxu0
  %v5137 = vadd.f32 %v816, %v5136
  %5138 = vmatmul.f32.gmra.mxu0 %v2767
  %v5139 = vpop.f32.mrf.mxu0
  %v5140 = vadd.f32 %v816, %v5139
  %5141 = vmatmul.f32.gmra.mxu0 %v2770
  %v5142 = vpop.f32.mrf.mxu0
  %v5143 = vadd.f32 %v816, %v5142
  %5144 = vmatmul.f32.gmra.mxu0 %v2773
  %v5145 = vpop.f32.mrf.mxu0
  %v5146 = vadd.f32 %v816, %v5145
  %5147 = vmatmul.f32.gmra.mxu0 %v2776
  %v5148 = vpop.f32.mrf.mxu0
  %v5149 = vadd.f32 %v816, %v5148
  %5150 = vmatmul.f32.gmra.mxu0 %v2779
  %v5151 = vpop.f32.mrf.mxu0
  %v5152 = vadd.f32 %v816, %v5151
  %5153 = vmatmul.f32.gmra.mxu0 %v2782
  %v5154 = vpop.f32.mrf.mxu0
  %v5155 = vadd.f32 %v816, %v5154
  %5156 = vmatmul.f32.gmra.mxu0 %v2785
  %v5157 = vpop.f32.mrf.mxu0
  %v5158 = vadd.f32 %v816, %v5157
  %5159 = vmatmul.f32.gmra.mxu0 %v2788
  %v5160 = vpop.f32.mrf.mxu0
  %v5161 = vadd.f32 %v816, %v5160
  %5162 = vmatmul.f32.gmra.mxu0 %v2791
  %v5163 = vpop.f32.mrf.mxu0
  %v5164 = vadd.f32 %v816, %v5163
  %5165 = vmatmul.f32.gmra.mxu0 %v2794
  %v5166 = vpop.f32.mrf.mxu0
  %v5167 = vadd.f32 %v816, %v5166
  %5168 = vmatmul.f32.gmra.mxu0 %v2797
  %v5169 = vpop.f32.mrf.mxu0
  %v5170 = vadd.f32 %v816, %v5169
  %5171 = vmatmul.f32.gmra.mxu0 %v2800
  %v5172 = vpop.f32.mrf.mxu0
  %v5173 = vadd.f32 %v816, %v5172
  %5174 = vmatmul.f32.gmra.mxu0 %v2803
  %v5175 = vpop.f32.mrf.mxu0
  %v5176 = vadd.f32 %v816, %v5175
  %5177 = vmatmul.f32.gmra.mxu0 %v2806
  %v5178 = vpop.f32.mrf.mxu0
  %v5179 = vadd.f32 %v816, %v5178
  %5180 = vmatmul.f32.gmra.mxu0 %v2809
  %v5181 = vpop.f32.mrf.mxu0
  %v5182 = vadd.f32 %v816, %v5181
  %5183 = vmatmul.f32.gmra.mxu0 %v2812
  %v5184 = vpop.f32.mrf.mxu0
  %v5185 = vadd.f32 %v816, %v5184
  %5186 = vmatmul.f32.gmra.mxu0 %v2815
  %v5187 = vpop.f32.mrf.mxu0
  %v5188 = vadd.f32 %v816, %v5187
  %5189 = vmatmul.f32.gmra.mxu0 %v2818
  %v5190 = vpop.f32.mrf.mxu0
  %v5191 = vadd.f32 %v816, %v5190
  %5192 = vmatmul.f32.gmra.mxu0 %v2821
  %v5193 = vpop.f32.mrf.mxu0
  %v5194 = vadd.f32 %v816, %v5193
  %5195 = vmatmul.f32.gmra.mxu0 %v2824
  %v5196 = vpop.f32.mrf.mxu0
  %v5197 = vadd.f32 %v816, %v5196
  %5198 = vmatmul.f32.gmra.mxu0 %v2827
  %v5199 = vpop.f32.mrf.mxu0
  %v5200 = vadd.f32 %v816, %v5199
  %5201 = vmatmul.f32.gmra.mxu0 %v2830
  %v5202 = vpop.f32.mrf.mxu0
  %v5203 = vadd.f32 %v816, %v5202
  %5204 = vmatmul.f32.gmra.mxu0 %v2833
  %v5205 = vpop.f32.mrf.mxu0
  %v5206 = vadd.f32 %v816, %v5205
  %5207 = vmatmul.f32.gmra.mxu0 %v2836
  %v5208 = vpop.f32.mrf.mxu0
  %v5209 = vadd.f32 %v816, %v5208
  %5210 = vmatmul.f32.gmra.mxu0 %v2839
  %v5211 = vpop.f32.mrf.mxu0
  %v5212 = vadd.f32 %v816, %v5211
  %5213 = vmatmul.f32.gmra.mxu0 %v2842
  %v5214 = vpop.f32.mrf.mxu0
  %v5215 = vadd.f32 %v816, %v5214
  %5216 = vmatmul.f32.gmra.mxu0 %v2845
  %v5217 = vpop.f32.mrf.mxu0
  %v5218 = vadd.f32 %v816, %v5217
  %5219 = vmatmul.f32.gmra.mxu0 %v2848
  %v5220 = vpop.f32.mrf.mxu0
  %v5221 = vadd.f32 %v816, %v5220
  %5222 = vmatmul.f32.gmra.mxu0 %v2851
  %v5223 = vpop.f32.mrf.mxu0
  %v5224 = vadd.f32 %v816, %v5223
  %5225 = vmatmul.f32.gmra.mxu0 %v2854
  %v5226 = vpop.f32.mrf.mxu0
  %v5227 = vadd.f32 %v816, %v5226
  %5228 = vmatmul.f32.gmra.mxu0 %v2857
  %v5229 = vpop.f32.mrf.mxu0
  %v5230 = vadd.f32 %v816, %v5229
  %5231 = vmatmul.f32.gmra.mxu0 %v2860
  %v5232 = vpop.f32.mrf.mxu0
  %v5233 = vadd.f32 %v816, %v5232
  %5234 = vmatmul.f32.gmra.mxu0 %v2863
  %v5235 = vpop.f32.mrf.mxu0
  %v5236 = vadd.f32 %v816, %v5235
  %5237 = vmatmul.f32.gmra.mxu0 %v2866
  %v5238 = vpop.f32.mrf.mxu0
  %v5239 = vadd.f32 %v816, %v5238
  %5240 = vmatmul.f32.gmra.mxu0 %v2869
  %v5241 = vpop.f32.mrf.mxu0
  %v5242 = vadd.f32 %v816, %v5241
  %5243 = vmatmul.f32.gmra.mxu0 %v2872
  %v5244 = vpop.f32.mrf.mxu0
  %v5245 = vadd.f32 %v816, %v5244
  %5246 = vmatmul.f32.gmra.mxu0 %v2875
  %v5247 = vpop.f32.mrf.mxu0
  %v5248 = vadd.f32 %v816, %v5247
  %5249 = vmatmul.f32.gmra.mxu0 %v2878
  %v5250 = vpop.f32.mrf.mxu0
  %v5251 = vadd.f32 %v816, %v5250
  %5252 = vmatmul.f32.gmra.mxu0 %v2881
  %v5253 = vpop.f32.mrf.mxu0
  %v5254 = vadd.f32 %v816, %v5253
  %5255 = vmatmul.f32.gmra.mxu0 %v2884
  %v5256 = vpop.f32.mrf.mxu0
  %v5257 = vadd.f32 %v816, %v5256
  %5258 = vmatmul.f32.gmra.mxu0 %v2887
  %v5259 = vpop.f32.mrf.mxu0
  %v5260 = vadd.f32 %v816, %v5259
  %5261 = vmatmul.f32.gmra.mxu0 %v2890
  %v5262 = vpop.f32.mrf.mxu0
  %v5263 = vadd.f32 %v816, %v5262
  %5264 = vmatmul.f32.gmra.mxu0 %v2893
  %v5265 = vpop.f32.mrf.mxu0
  %v5266 = vadd.f32 %v816, %v5265
  %5267 = vmatmul.f32.gmra.mxu0 %v2896
  %v5268 = vpop.f32.mrf.mxu0
  %v5269 = vadd.f32 %v816, %v5268
  %5270 = vmatmul.f32.gmra.mxu0 %v2899
  %v5271 = vpop.f32.mrf.mxu0
  %v5272 = vadd.f32 %v816, %v5271
  %5273 = vmatmul.f32.gmra.mxu0 %v2902
  %v5274 = vpop.f32.mrf.mxu0
  %v5275 = vadd.f32 %v816, %v5274
  %5276 = vmatmul.f32.gmra.mxu0 %v2905
  %v5277 = vpop.f32.mrf.mxu0
  %v5278 = vadd.f32 %v816, %v5277
  %5279 = vmatmul.f32.gmra.mxu0 %v2908
  %v5280 = vpop.f32.mrf.mxu0
  %v5281 = vadd.f32 %v816, %v5280
  %5282 = vmatmul.f32.gmra.mxu0 %v2911
  %v5283 = vpop.f32.mrf.mxu0
  %v5284 = vadd.f32 %v816, %v5283
  %5285 = vmatmul.f32.gmra.mxu0 %v2914
  %v5286 = vpop.f32.mrf.mxu0
  %v5287 = vadd.f32 %v816, %v5286
  %5288 = vmatmul.f32.gmra.mxu0 %v2917
  %v5289 = vpop.f32.mrf.mxu0
  %v5290 = vadd.f32 %v816, %v5289
  %5291 = vmatmul.f32.gmra.mxu0 %v2920
  %v5292 = vpop.f32.mrf.mxu0
  %v5293 = vadd.f32 %v816, %v5292
  %5294 = vmatmul.f32.gmra.mxu0 %v2923
  %v5295 = vpop.f32.mrf.mxu0
  %v5296 = vadd.f32 %v816, %v5295
  %5297 = vmatmul.f32.gmra.mxu0 %v2926
  %v5298 = vpop.f32.mrf.mxu0
  %v5299 = vadd.f32 %v816, %v5298
  %5300 = vmatmul.f32.gmra.mxu0 %v2929
  %v5301 = vpop.f32.mrf.mxu0
  %v5302 = vadd.f32 %v816, %v5301
  %5303 = vmatmul.f32.gmra.mxu0 %v2932
  %v5304 = vpop.f32.mrf.mxu0
  %v5305 = vadd.f32 %v816, %v5304
  %5306 = vmatmul.f32.gmra.mxu0 %v2935
  %v5307 = vpop.f32.mrf.mxu0
  %v5308 = vadd.f32 %v816, %v5307
  %5309 = vmatmul.f32.gmra.mxu0 %v2938
  %v5310 = vpop.f32.mrf.mxu0
  %v5311 = vadd.f32 %v816, %v5310
  %5312 = vmatmul.f32.gmra.mxu0 %v2941
  %v5313 = vpop.f32.mrf.mxu0
  %v5314 = vadd.f32 %v816, %v5313
  %5315 = vmatmul.f32.gmra.mxu0 %v2944
  %v5316 = vpop.f32.mrf.mxu0
  %v5317 = vadd.f32 %v816, %v5316
  %5318 = vmatmul.f32.gmra.mxu0 %v2947
  %v5319 = vpop.f32.mrf.mxu0
  %v5320 = vadd.f32 %v816, %v5319
  %5321 = vmatmul.f32.gmra.mxu0 %v2950
  %v5322 = vpop.f32.mrf.mxu0
  %v5323 = vadd.f32 %v816, %v5322
  %5324 = vmatmul.f32.gmra.mxu0 %v2953
  %v5325 = vpop.f32.mrf.mxu0
  %v5326 = vadd.f32 %v816, %v5325
  %5327 = vmatmul.f32.gmra.mxu0 %v2956
  %v5328 = vpop.f32.mrf.mxu0
  %v5329 = vadd.f32 %v816, %v5328
  %5330 = vmatmul.f32.gmra.mxu0 %v2959
  %v5331 = vpop.f32.mrf.mxu0
  %v5332 = vadd.f32 %v816, %v5331
  %5333 = vmatmul.f32.gmra.mxu0 %v2962
  %v5334 = vpop.f32.mrf.mxu0
  %v5335 = vadd.f32 %v816, %v5334
  %5336 = vmatmul.f32.gmra.mxu0 %v2965
  %v5337 = vpop.f32.mrf.mxu0
  %v5338 = vadd.f32 %v816, %v5337
  %5339 = vmatmul.f32.gmra.mxu0 %v2968
  %v5340 = vpop.f32.mrf.mxu0
  %v5341 = vadd.f32 %v816, %v5340
  %5342 = vmatmul.f32.gmra.mxu0 %v2971
  %v5343 = vpop.f32.mrf.mxu0
  %v5344 = vadd.f32 %v816, %v5343
  %5345 = vmatmul.f32.gmra.mxu0 %v2974
  %v5346 = vpop.f32.mrf.mxu0
  %v5347 = vadd.f32 %v816, %v5346
  %5348 = vmatmul.f32.gmra.mxu0 %v2977
  %v5349 = vpop.f32.mrf.mxu0
  %v5350 = vadd.f32 %v816, %v5349
  %5351 = vmatmul.f32.gmra.mxu0 %v2980
  %v5352 = vpop.f32.mrf.mxu0
  %v5353 = vadd.f32 %v816, %v5352
  %5354 = vmatmul.f32.gmra.mxu0 %v2983
  %v5355 = vpop.f32.mrf.mxu0
  %v5356 = vadd.f32 %v816, %v5355
  %5357 = vmatmul.f32.gmra.mxu0 %v2986
  %v5358 = vpop.f32.mrf.mxu0
  %v5359 = vadd.f32 %v816, %v5358
  %5360 = vmatmul.f32.gmra.mxu0 %v2989
  %v5361 = vpop.f32.mrf.mxu0
  %v5362 = vadd.f32 %v816, %v5361
  %5363 = vmatmul.f32.gmra.mxu0 %v2992
  %v5364 = vpop.f32.mrf.mxu0
  %v5365 = vadd.f32 %v816, %v5364
  %5366 = vmatmul.f32.gmra.mxu0 %v2995
  %v5367 = vpop.f32.mrf.mxu0
  %v5368 = vadd.f32 %v816, %v5367
  %5369 = vmatmul.f32.gmra.mxu0 %v2998
  %v5370 = vpop.f32.mrf.mxu0
  %v5371 = vadd.f32 %v816, %v5370
  %5372 = vmatmul.f32.gmra.mxu0 %v3001
  %v5373 = vpop.f32.mrf.mxu0
  %v5374 = vadd.f32 %v816, %v5373
  %5375 = vmatmul.f32.gmra.mxu0 %v3004
  %v5376 = vpop.f32.mrf.mxu0
  %v5377 = vadd.f32 %v816, %v5376
  %5378 = vmatmul.f32.gmra.mxu0 %v3007
  %v5379 = vpop.f32.mrf.mxu0
  %v5380 = vadd.f32 %v816, %v5379
  %5381 = vmatmul.f32.gmra.mxu0 %v3010
  %v5382 = vpop.f32.mrf.mxu0
  %v5383 = vadd.f32 %v816, %v5382
  %5384 = vmatmul.f32.gmra.mxu0 %v3013
  %v5385 = vpop.f32.mrf.mxu0
  %v5386 = vadd.f32 %v816, %v5385
  %5387 = vmatmul.f32.gmra.mxu0 %v3016
  %v5388 = vpop.f32.mrf.mxu0
  %v5389 = vadd.f32 %v816, %v5388
  %5390 = vmatmul.f32.gmra.mxu0 %v3019
  %v5391 = vpop.f32.mrf.mxu0
  %v5392 = vadd.f32 %v816, %v5391
  %5393 = vmatmul.f32.gmra.mxu0 %v3022
  %v5394 = vpop.f32.mrf.mxu0
  %v5395 = vadd.f32 %v816, %v5394
  %5396 = vmatmul.f32.gmra.mxu0 %v3025
  %v5397 = vpop.f32.mrf.mxu0
  %v5398 = vadd.f32 %v816, %v5397
  %5399 = vmatmul.f32.gmra.mxu0 %v3028
  %v5400 = vpop.f32.mrf.mxu0
  %v5401 = vadd.f32 %v816, %v5400
  %5402 = vmatmul.f32.gmra.mxu0 %v3031
  %v5403 = vpop.f32.mrf.mxu0
  %v5404 = vadd.f32 %v816, %v5403
  %5405 = vmatmul.f32.gmra.mxu0 %v3034
  %v5406 = vpop.f32.mrf.mxu0
  %v5407 = vadd.f32 %v816, %v5406
  %5408 = vmatmul.f32.gmra.mxu0 %v3037
  %v5409 = vpop.f32.mrf.mxu0
  %v5410 = vadd.f32 %v816, %v5409
  %5411 = vmatmul.f32.gmra.mxu0 %v3040
  %v5412 = vpop.f32.mrf.mxu0
  %v5413 = vadd.f32 %v816, %v5412
  %5414 = vmatmul.f32.gmra.mxu0 %v3043
  %v5415 = vpop.f32.mrf.mxu0
  %v5416 = vadd.f32 %v816, %v5415
  %5417 = vmatmul.f32.gmra.mxu0 %v3046
  %v5418 = vpop.f32.mrf.mxu0
  %v5419 = vadd.f32 %v816, %v5418
  %5420 = vmatmul.f32.gmra.mxu0 %v3049
  %v5421 = vpop.f32.mrf.mxu0
  %v5422 = vadd.f32 %v816, %v5421
  %5423 = vmatmul.f32.gmra.mxu0 %v3052
  %v5424 = vpop.f32.mrf.mxu0
  %v5425 = vadd.f32 %v816, %v5424
  %5426 = vmatmul.f32.gmra.mxu0 %v3055
  %v5427 = vpop.f32.mrf.mxu0
  %v5428 = vadd.f32 %v816, %v5427
  %5429 = vmatmul.f32.gmra.mxu0 %v3058
  %v5430 = vpop.f32.mrf.mxu0
  %v5431 = vadd.f32 %v816, %v5430
  %5432 = vmatmul.f32.gmra.mxu0 %v3061
  %v5433 = vpop.f32.mrf.mxu0
  %v5434 = vadd.f32 %v816, %v5433
  %5435 = vmatmul.f32.gmra.mxu0 %v3064
  %v5436 = vpop.f32.mrf.mxu0
  %v5437 = vadd.f32 %v816, %v5436
  %5438 = vmatmul.f32.gmra.mxu0 %v3067
  %v5439 = vpop.f32.mrf.mxu0
  %v5440 = vadd.f32 %v816, %v5439
  %5441 = vmatmul.f32.gmra.mxu0 %v3070
  %v5442 = vpop.f32.mrf.mxu0
  %v5443 = vadd.f32 %v816, %v5442
  %5444 = vmatmul.f32.gmra.mxu0 %v3073
  %v5445 = vpop.f32.mrf.mxu0
  %v5446 = vadd.f32 %v816, %v5445
  %5447 = vmatmul.f32.gmra.mxu0 %v3076
  %v5448 = vpop.f32.mrf.mxu0
  %v5449 = vadd.f32 %v816, %v5448
  %5450 = vmatmul.f32.gmra.mxu0 %v3079
  %v5451 = vpop.f32.mrf.mxu0
  %v5452 = vadd.f32 %v816, %v5451
  %5453 = vmatmul.f32.gmra.mxu0 %v3082
  %v5454 = vpop.f32.mrf.mxu0
  %v5455 = vadd.f32 %v816, %v5454
  %5456 = vmatmul.f32.gmra.mxu0 %v3085
  %v5457 = vpop.f32.mrf.mxu0
  %v5458 = vadd.f32 %v816, %v5457
  %5459 = vmatmul.f32.gmra.mxu0 %v3088
  %v5460 = vpop.f32.mrf.mxu0
  %v5461 = vadd.f32 %v816, %v5460
  %5462 = vmatmul.f32.gmra.mxu0 %v3091
  %v5463 = vpop.f32.mrf.mxu0
  %v5464 = vadd.f32 %v816, %v5463
  %5465 = vmatmul.f32.gmra.mxu0 %v3094
  %v5466 = vpop.f32.mrf.mxu0
  %v5467 = vadd.f32 %v816, %v5466
  %5468 = vmatmul.f32.gmra.mxu0 %v3097
  %v5469 = vpop.f32.mrf.mxu0
  %v5470 = vadd.f32 %v816, %v5469
  %5471 = vmatmul.f32.gmra.mxu0 %v3100
  %v5472 = vpop.f32.mrf.mxu0
  %v5473 = vadd.f32 %v816, %v5472
  %5474 = vmatmul.f32.gmra.mxu0 %v3103
  %v5475 = vpop.f32.mrf.mxu0
  %v5476 = vadd.f32 %v816, %v5475
  %5477 = vmatmul.f32.gmra.mxu0 %v3106
  %v5478 = vpop.f32.mrf.mxu0
  %v5479 = vadd.f32 %v816, %v5478
  %5480 = vmatmul.f32.gmra.mxu0 %v3109
  %v5481 = vpop.f32.mrf.mxu0
  %v5482 = vadd.f32 %v816, %v5481
  %5483 = vmatmul.f32.gmra.mxu0 %v3112
  %v5484 = vpop.f32.mrf.mxu0
  %v5485 = vadd.f32 %v816, %v5484
  %5486 = vmatmul.f32.gmra.mxu0 %v3115
  %v5487 = vpop.f32.mrf.mxu0
  %v5488 = vadd.f32 %v816, %v5487
  %5489 = vmatmul.f32.gmra.mxu0 %v3118
  %v5490 = vpop.f32.mrf.mxu0
  %v5491 = vadd.f32 %v816, %v5490
  %5492 = vmatmul.f32.gmra.mxu0 %v3121
  %v5493 = vpop.f32.mrf.mxu0
  %v5494 = vadd.f32 %v816, %v5493
  %5495 = vmatmul.f32.gmra.mxu0 %v3124
  %v5496 = vpop.f32.mrf.mxu0
  %v5497 = vadd.f32 %v816, %v5496
  %5498 = vmatmul.f32.gmra.mxu0 %v3127
  %v5499 = vpop.f32.mrf.mxu0
  %v5500 = vadd.f32 %v816, %v5499
  %5501 = vmatmul.f32.gmra.mxu0 %v3130
  %v5502 = vpop.f32.mrf.mxu0
  %v5503 = vadd.f32 %v816, %v5502
  %5504 = vmatmul.f32.gmra.mxu0 %v3133
  %v5505 = vpop.f32.mrf.mxu0
  %v5506 = vadd.f32 %v816, %v5505
  %5507 = vmatmul.f32.gmra.mxu0 %v3136
  %v5508 = vpop.f32.mrf.mxu0
  %v5509 = vadd.f32 %v816, %v5508
  %5510 = vmatmul.f32.gmra.mxu0 %v3139
  %v5511 = vpop.f32.mrf.mxu0
  %v5512 = vadd.f32 %v816, %v5511
  %5513 = vmatmul.f32.gmra.mxu0 %v3142
  %v5514 = vpop.f32.mrf.mxu0
  %v5515 = vadd.f32 %v816, %v5514
  %5516 = vmatmul.f32.gmra.mxu0 %v3145
  %v5517 = vpop.f32.mrf.mxu0
  %v5518 = vadd.f32 %v816, %v5517
  %5519 = vmatmul.f32.gmra.mxu0 %v3148
  %v5520 = vpop.f32.mrf.mxu0
  %v5521 = vadd.f32 %v816, %v5520
  %5522 = vmatmul.f32.gmra.mxu0 %v3151
  %v5523 = vpop.f32.mrf.mxu0
  %v5524 = vadd.f32 %v816, %v5523
  %5525 = vmatmul.f32.gmra.mxu0 %v3154
  %v5526 = vpop.f32.mrf.mxu0
  %v5527 = vadd.f32 %v816, %v5526
  %5528 = vmatmul.f32.gmra.mxu0 %v3157
  %v5529 = vpop.f32.mrf.mxu0
  %v5530 = vadd.f32 %v816, %v5529
  %5531 = vmatmul.f32.gmra.mxu0 %v3160
  %v5532 = vpop.f32.mrf.mxu0
  %v5533 = vadd.f32 %v816, %v5532
  %5534 = vmatmul.f32.gmra.mxu0 %v3163
  %v5535 = vpop.f32.mrf.mxu0
  %v5536 = vadd.f32 %v816, %v5535
  %5537 = vmatmul.f32.gmra.mxu0 %v3166
  %v5538 = vpop.f32.mrf.mxu0
  %v5539 = vadd.f32 %v816, %v5538
  %5540 = vmatmul.f32.gmra.mxu0 %v3169
  %v5541 = vpop.f32.mrf.mxu0
  %v5542 = vadd.f32 %v816, %v5541
  %5543 = vdwg.mxu0
  %v5544 = vmax.f32 %v3193, 0.0
  %v5545 = vmax.f32 %v3196, 0.0
  %v5546 = vmax.f32 %v3199, 0.0
  %v5547 = vmax.f32 %v3202, 0.0
  %v5548 = vmax.f32 %v3205, 0.0
  %v5549 = vmax.f32 %v3208, 0.0
  %v5550 = vmax.f32 %v3211, 0.0
  %v5551 = vmax.f32 %v3214, 0.0
  %v5552 = vmax.f32 %v3217, 0.0
  %v5553 = vmax.f32 %v3220, 0.0
  %v5554 = vmax.f32 %v3223, 0.0
  %v5555 = vmax.f32 %v3226, 0.0
  %v5556 = vmax.f32 %v3229, 0.0
  %v5557 = vmax.f32 %v3232, 0.0
  %v5558 = vmax.f32 %v3235, 0.0
  %v5559 = vmax.f32 %v3238, 0.0
  %v5560 = vmax.f32 %v3241, 0.0
  %v5561 = vmax.f32 %v3244, 0.0
  %v5562 = vmax.f32 %v3247, 0.0
  %v5563 = vmax.f32 %v3250, 0.0
  %v5564 = vmax.f32 %v3253, 0.0
  %v5565 = vmax.f32 %v3256, 0.0
  %v5566 = vmax.f32 %v3259, 0.0
  %v5567 = vmax.f32 %v3262, 0.0
  %v5568 = vmax.f32 %v3265, 0.0
  %v5569 = vmax.f32 %v3268, 0.0
  %v5570 = vmax.f32 %v3271, 0.0
  %v5571 = vmax.f32 %v3274, 0.0
  %v5572 = vmax.f32 %v3277, 0.0
  %v5573 = vmax.f32 %v3280, 0.0
  %v5574 = vmax.f32 %v3283, 0.0
  %v5575 = vmax.f32 %v3286, 0.0
  %v5576 = vmax.f32 %v3289, 0.0
  %v5577 = vmax.f32 %v3292, 0.0
  %v5578 = vmax.f32 %v3295, 0.0
  %v5579 = vmax.f32 %v3298, 0.0
  %v5580 = vmax.f32 %v3301, 0.0
  %v5581 = vmax.f32 %v3304, 0.0
  %v5582 = vmax.f32 %v3307, 0.0
  %v5583 = vmax.f32 %v3310, 0.0
  %v5584 = vmax.f32 %v3313, 0.0
  %v5585 = vmax.f32 %v3316, 0.0
  %v5586 = vmax.f32 %v3319, 0.0
  %v5587 = vmax.f32 %v3322, 0.0
  %v5588 = vmax.f32 %v3325, 0.0
  %v5589 = vmax.f32 %v3328, 0.0
  %v5590 = vmax.f32 %v3331, 0.0
  %v5591 = vmax.f32 %v3334, 0.0
  %v5592 = vmax.f32 %v3337, 0.0
  %v5593 = vmax.f32 %v3340, 0.0
  %v5594 = vmax.f32 %v3343, 0.0
  %v5595 = vmax.f32 %v3346, 0.0
  %v5596 = vmax.f32 %v3349, 0.0
  %v5597 = vmax.f32 %v3352, 0.0
  %v5598 = vmax.f32 %v3355, 0.0
  %v5599 = vmax.f32 %v3358, 0.0
  %v5600 = vmax.f32 %v3361, 0.0
  %v5601 = vmax.f32 %v3364, 0.0
  %v5602 = vmax.f32 %v3367, 0.0
  %v5603 = vmax.f32 %v3370, 0.0
  %v5604 = vmax.f32 %v3373, 0.0
  %v5605 = vmax.f32 %v3376, 0.0
  %v5606 = vmax.f32 %v3379, 0.0
  %v5607 = vmax.f32 %v3382, 0.0
  %v5608 = vmax.f32 %v3385, 0.0
  %v5609 = vmax.f32 %v3388, 0.0
  %v5610 = vmax.f32 %v3391, 0.0
  %v5611 = vmax.f32 %v3394, 0.0
  %v5612 = vmax.f32 %v3397, 0.0
  %v5613 = vmax.f32 %v3400, 0.0
  %v5614 = vmax.f32 %v3403, 0.0
  %v5615 = vmax.f32 %v3406, 0.0
  %v5616 = vmax.f32 %v3409, 0.0
  %v5617 = vmax.f32 %v3412, 0.0
  %v5618 = vmax.f32 %v3415, 0.0
  %v5619 = vmax.f32 %v3418, 0.0
  %v5620 = vmax.f32 %v3421, 0.0
  %v5621 = vmax.f32 %v3424, 0.0
  %v5622 = vmax.f32 %v3427, 0.0
  %v5623 = vmax.f32 %v3430, 0.0
  %v5624 = vmax.f32 %v3433, 0.0
  %v5625 = vmax.f32 %v3436, 0.0
  %v5626 = vmax.f32 %v3439, 0.0
  %v5627 = vmax.f32 %v3442, 0.0
  %v5628 = vmax.f32 %v3445, 0.0
  %v5629 = vmax.f32 %v3448, 0.0
  %v5630 = vmax.f32 %v3451, 0.0
  %v5631 = vmax.f32 %v3454, 0.0
  %v5632 = vmax.f32 %v3457, 0.0
  %v5633 = vmax.f32 %v3460, 0.0
  %v5634 = vmax.f32 %v3463, 0.0
  %v5635 = vmax.f32 %v3466, 0.0
  %v5636 = vmax.f32 %v3469, 0.0
  %v5637 = vmax.f32 %v3472, 0.0
  %v5638 = vmax.f32 %v3475, 0.0
  %v5639 = vmax.f32 %v3478, 0.0
  %v5640 = vmax.f32 %v3481, 0.0
  %v5641 = vmax.f32 %v3484, 0.0
  %v5642 = vmax.f32 %v3487, 0.0
  %v5643 = vmax.f32 %v3490, 0.0
  %v5644 = vmax.f32 %v3493, 0.0
  %v5645 = vmax.f32 %v3496, 0.0
  %v5646 = vmax.f32 %v3499, 0.0
  %v5647 = vmax.f32 %v3502, 0.0
  %v5648 = vmax.f32 %v3505, 0.0
  %v5649 = vmax.f32 %v3508, 0.0
  %v5650 = vmax.f32 %v3511, 0.0
  %v5651 = vmax.f32 %v3514, 0.0
  %v5652 = vmax.f32 %v3517, 0.0
  %v5653 = vmax.f32 %v3520, 0.0
  %v5654 = vmax.f32 %v3523, 0.0
  %v5655 = vmax.f32 %v3526, 0.0
  %v5656 = vmax.f32 %v3529, 0.0
  %v5657 = vmax.f32 %v3532, 0.0
  %v5658 = vmax.f32 %v3535, 0.0
  %v5659 = vmax.f32 %v3538, 0.0
  %v5660 = vmax.f32 %v3541, 0.0
  %v5661 = vmax.f32 %v3544, 0.0
  %v5662 = vmax.f32 %v3547, 0.0
  %v5663 = vmax.f32 %v3550, 0.0
  %v5664 = vmax.f32 %v3553, 0.0
  %v5665 = vmax.f32 %v3556, 0.0
  %v5666 = vmax.f32 %v3559, 0.0
  %v5667 = vmax.f32 %v3562, 0.0
  %v5668 = vmax.f32 %v3565, 0.0
  %v5669 = vmax.f32 %v3568, 0.0
  %v5670 = vmax.f32 %v3571, 0.0
  %v5671 = vmax.f32 %v3574, 0.0
  %v5672 = vmax.f32 %v3577, 0.0
  %v5673 = vmax.f32 %v3580, 0.0
  %v5674 = vmax.f32 %v3583, 0.0
  %v5675 = vmax.f32 %v3586, 0.0
  %v5676 = vmax.f32 %v3589, 0.0
  %v5677 = vmax.f32 %v3592, 0.0
  %v5678 = vmax.f32 %v3595, 0.0
  %v5679 = vmax.f32 %v3598, 0.0
  %v5680 = vmax.f32 %v3601, 0.0
  %v5681 = vmax.f32 %v3604, 0.0
  %v5682 = vmax.f32 %v3607, 0.0
  %v5683 = vmax.f32 %v3610, 0.0
  %v5684 = vmax.f32 %v3613, 0.0
  %v5685 = vmax.f32 %v3616, 0.0
  %v5686 = vmax.f32 %v3619, 0.0
  %v5687 = vmax.f32 %v3622, 0.0
  %v5688 = vmax.f32 %v3625, 0.0
  %v5689 = vmax.f32 %v3628, 0.0
  %v5690 = vmax.f32 %v3631, 0.0
  %v5691 = vmax.f32 %v3634, 0.0
  %v5692 = vmax.f32 %v3637, 0.0
  %v5693 = vmax.f32 %v3640, 0.0
  %v5694 = vmax.f32 %v3643, 0.0
  %v5695 = vmax.f32 %v3646, 0.0
  %v5696 = vmax.f32 %v3649, 0.0
  %v5697 = vmax.f32 %v3652, 0.0
  %v5698 = vmax.f32 %v3655, 0.0
  %v5699 = vmax.f32 %v3658, 0.0
  %v5700 = vmax.f32 %v3661, 0.0
  %v5701 = vmax.f32 %v3664, 0.0
  %v5702 = vmax.f32 %v3667, 0.0
  %v5703 = vmax.f32 %v3670, 0.0
  %v5704 = vmax.f32 %v3673, 0.0
  %v5705 = vmax.f32 %v3676, 0.0
  %v5706 = vmax.f32 %v3679, 0.0
  %v5707 = vmax.f32 %v3682, 0.0
  %v5708 = vmax.f32 %v3685, 0.0
  %v5709 = vmax.f32 %v3688, 0.0
  %v5710 = vmax.f32 %v3691, 0.0
  %v5711 = vmax.f32 %v3694, 0.0
  %v5712 = vmax.f32 %v3697, 0.0
  %v5713 = vmax.f32 %v3700, 0.0
  %v5714 = vmax.f32 %v3703, 0.0
  %v5715 = vmax.f32 %v3706, 0.0
  %v5716 = vmax.f32 %v3709, 0.0
  %v5717 = vmax.f32 %v3712, 0.0
  %v5718 = vmax.f32 %v3715, 0.0
  %v5719 = vmax.f32 %v3718, 0.0
  %v5720 = vmax.f32 %v3721, 0.0
  %v5721 = vmax.f32 %v3724, 0.0
  %v5722 = vmax.f32 %v3727, 0.0
  %v5723 = vmax.f32 %v3730, 0.0
  %v5724 = vmax.f32 %v3733, 0.0
  %v5725 = vmax.f32 %v3736, 0.0
  %v5726 = vmax.f32 %v3739, 0.0
  %v5727 = vmax.f32 %v3742, 0.0
  %v5728 = vmax.f32 %v3745, 0.0
  %v5729 = vmax.f32 %v3748, 0.0
  %v5730 = vmax.f32 %v3751, 0.0
  %v5731 = vmax.f32 %v3754, 0.0
  %v5732 = vmax.f32 %v3757, 0.0
  %v5733 = vmax.f32 %v3760, 0.0
  %v5734 = vmax.f32 %v3763, 0.0
  %v5735 = vmax.f32 %v3766, 0.0
  %v5736 = vmax.f32 %v3769, 0.0
  %v5737 = vmax.f32 %v3772, 0.0
  %v5738 = vmax.f32 %v3775, 0.0
  %v5739 = vmax.f32 %v3778, 0.0
  %v5740 = vmax.f32 %v3781, 0.0
  %v5741 = vmax.f32 %v3784, 0.0
  %v5742 = vmax.f32 %v3787, 0.0
  %v5743 = vmax.f32 %v3790, 0.0
  %v5744 = vmax.f32 %v3793, 0.0
  %v5745 = vmax.f32 %v3796, 0.0
  %v5746 = vmax.f32 %v3799, 0.0
  %v5747 = vmax.f32 %v3802, 0.0
  %v5748 = vmax.f32 %v3805, 0.0
  %v5749 = vmax.f32 %v3808, 0.0
  %v5750 = vmax.f32 %v3811, 0.0
  %v5751 = vmax.f32 %v3814, 0.0
  %v5752 = vmax.f32 %v3817, 0.0
  %v5753 = vmax.f32 %v3820, 0.0
  %v5754 = vmax.f32 %v3823, 0.0
  %v5755 = vmax.f32 %v3826, 0.0
  %v5756 = vmax.f32 %v3829, 0.0
  %v5757 = vmax.f32 %v3832, 0.0
  %v5758 = vmax.f32 %v3835, 0.0
  %v5759 = vmax.f32 %v3838, 0.0
  %v5760 = vmax.f32 %v3841, 0.0
  %v5761 = vmax.f32 %v3844, 0.0
  %v5762 = vmax.f32 %v3847, 0.0
  %v5763 = vmax.f32 %v3850, 0.0
  %v5764 = vmax.f32 %v3853, 0.0
  %v5765 = vmax.f32 %v3856, 0.0
  %v5766 = vmax.f32 %v3859, 0.0
  %v5767 = vmax.f32 %v3862, 0.0
  %v5768 = vmax.f32 %v3865, 0.0
  %v5769 = vmax.f32 %v3868, 0.0
  %v5770 = vmax.f32 %v3871, 0.0
  %v5771 = vmax.f32 %v3874, 0.0
  %v5772 = vmax.f32 %v3877, 0.0
  %v5773 = vmax.f32 %v3880, 0.0
  %v5774 = vmax.f32 %v3883, 0.0
  %v5775 = vmax.f32 %v3886, 0.0
  %v5776 = vmax.f32 %v3889, 0.0
  %v5777 = vmax.f32 %v3892, 0.0
  %v5778 = vmax.f32 %v3895, 0.0
  %v5779 = vmax.f32 %v3898, 0.0
  %v5780 = vmax.f32 %v3901, 0.0
  %v5781 = vmax.f32 %v3904, 0.0
  %v5782 = vmax.f32 %v3907, 0.0
  %v5783 = vmax.f32 %v3910, 0.0
  %v5784 = vmax.f32 %v3913, 0.0
  %v5785 = vmax.f32 %v3916, 0.0
  %v5786 = vmax.f32 %v3919, 0.0
  %v5787 = vmax.f32 %v3922, 0.0
  %v5788 = vmax.f32 %v3925, 0.0
  %v5789 = vmax.f32 %v3928, 0.0
  %v5790 = vmax.f32 %v3931, 0.0
  %v5791 = vmax.f32 %v3934, 0.0
  %v5792 = vmax.f32 %v3937, 0.0
  %v5793 = vmax.f32 %v3940, 0.0
  %v5794 = vmax.f32 %v3943, 0.0
  %v5795 = vmax.f32 %v3946, 0.0
  %v5796 = vmax.f32 %v3949, 0.0
  %v5797 = vmax.f32 %v3952, 0.0
  %v5798 = vmax.f32 %v3955, 0.0
  %v5799 = vmax.f32 %v3958, 0.0
  %v5800 = vmax.f32 %v3961, 0.0
  %v5801 = vmax.f32 %v3964, 0.0
  %v5802 = vmax.f32 %v3967, 0.0
  %v5803 = vmax.f32 %v3970, 0.0
  %v5804 = vmax.f32 %v3973, 0.0
  %v5805 = vmax.f32 %v3976, 0.0
  %v5806 = vmax.f32 %v3979, 0.0
  %v5807 = vmax.f32 %v3982, 0.0
  %v5808 = vmax.f32 %v3985, 0.0
  %v5809 = vmax.f32 %v3988, 0.0
  %v5810 = vmax.f32 %v3991, 0.0
  %v5811 = vmax.f32 %v3994, 0.0
  %v5812 = vmax.f32 %v3997, 0.0
  %v5813 = vmax.f32 %v4000, 0.0
  %v5814 = vmax.f32 %v4003, 0.0
  %v5815 = vmax.f32 %v4006, 0.0
  %v5816 = vmax.f32 %v4009, 0.0
  %v5817 = vmax.f32 %v4012, 0.0
  %v5818 = vmax.f32 %v4015, 0.0
  %v5819 = vmax.f32 %v4018, 0.0
  %v5820 = vmax.f32 %v4021, 0.0
  %v5821 = vmax.f32 %v4024, 0.0
  %v5822 = vmax.f32 %v4027, 0.0
  %v5823 = vmax.f32 %v4030, 0.0
  %v5824 = vmax.f32 %v4033, 0.0
  %v5825 = vmax.f32 %v4036, 0.0
  %v5826 = vmax.f32 %v4039, 0.0
  %v5827 = vmax.f32 %v4042, 0.0
  %v5828 = vmax.f32 %v4045, 0.0
  %v5829 = vmax.f32 %v4048, 0.0
  %v5830 = vmax.f32 %v4051, 0.0
  %v5831 = vmax.f32 %v4054, 0.0
  %v5832 = vmax.f32 %v4057, 0.0
  %v5833 = vmax.f32 %v4060, 0.0
  %v5834 = vmax.f32 %v4063, 0.0
  %v5835 = vmax.f32 %v4066, 0.0
  %v5836 = vmax.f32 %v4069, 0.0
  %v5837 = vmax.f32 %v4072, 0.0
  %v5838 = vmax.f32 %v4075, 0.0
  %v5839 = vmax.f32 %v4078, 0.0
  %v5840 = vmax.f32 %v4081, 0.0
  %v5841 = vmax.f32 %v4084, 0.0
  %v5842 = vmax.f32 %v4087, 0.0
  %v5843 = vmax.f32 %v4090, 0.0
  %v5844 = vmax.f32 %v4093, 0.0
  %v5845 = vmax.f32 %v4096, 0.0
  %v5846 = vmax.f32 %v4099, 0.0
  %v5847 = vmax.f32 %v4102, 0.0
  %v5848 = vmax.f32 %v4105, 0.0
  %v5849 = vmax.f32 %v4108, 0.0
  %v5850 = vmax.f32 %v4111, 0.0
  %v5851 = vmax.f32 %v4114, 0.0
  %v5852 = vmax.f32 %v4117, 0.0
  %v5853 = vmax.f32 %v4120, 0.0
  %v5854 = vmax.f32 %v4123, 0.0
  %v5855 = vmax.f32 %v4126, 0.0
  %v5856 = vmax.f32 %v4129, 0.0
  %v5857 = vmax.f32 %v4132, 0.0
  %v5858 = vmax.f32 %v4135, 0.0
  %v5859 = vmax.f32 %v4138, 0.0
  %v5860 = vmax.f32 %v4141, 0.0
  %v5861 = vmax.f32 %v4144, 0.0
  %v5862 = vmax.f32 %v4147, 0.0
  %v5863 = vmax.f32 %v4150, 0.0
  %v5864 = vmax.f32 %v4153, 0.0
  %v5865 = vmax.f32 %v4156, 0.0
  %v5866 = vmax.f32 %v4159, 0.0
  %v5867 = vmax.f32 %v4162, 0.0
  %v5868 = vmax.f32 %v4165, 0.0
  %v5869 = vmax.f32 %v4168, 0.0
  %v5870 = vmax.f32 %v4171, 0.0
  %v5871 = vmax.f32 %v4174, 0.0
  %v5872 = vmax.f32 %v4177, 0.0
  %v5873 = vmax.f32 %v4180, 0.0
  %v5874 = vmax.f32 %v4183, 0.0
  %v5875 = vmax.f32 %v4186, 0.0
  %v5876 = vmax.f32 %v4189, 0.0
  %v5877 = vmax.f32 %v4192, 0.0
  %v5878 = vmax.f32 %v4195, 0.0
  %v5879 = vmax.f32 %v4198, 0.0
  %v5880 = vmax.f32 %v4201, 0.0
  %v5881 = vmax.f32 %v4204, 0.0
  %v5882 = vmax.f32 %v4207, 0.0
  %v5883 = vmax.f32 %v4210, 0.0
  %v5884 = vmax.f32 %v4213, 0.0
  %v5885 = vmax.f32 %v4216, 0.0
  %v5886 = vmax.f32 %v4219, 0.0
  %v5887 = vmax.f32 %v4222, 0.0
  %v5888 = vmax.f32 %v4225, 0.0
  %v5889 = vmax.f32 %v4228, 0.0
  %v5890 = vmax.f32 %v4231, 0.0
  %v5891 = vmax.f32 %v4234, 0.0
  %v5892 = vmax.f32 %v4237, 0.0
  %v5893 = vmax.f32 %v4240, 0.0
  %v5894 = vmax.f32 %v4243, 0.0
  %v5895 = vmax.f32 %v4246, 0.0
  %v5896 = vmax.f32 %v4249, 0.0
  %v5897 = vmax.f32 %v4252, 0.0
  %v5898 = vmax.f32 %v4255, 0.0
  %v5899 = vmax.f32 %v4258, 0.0
  %v5900 = vmax.f32 %v4261, 0.0
  %v5901 = vmax.f32 %v4264, 0.0
  %v5902 = vmax.f32 %v4267, 0.0
  %v5903 = vmax.f32 %v4270, 0.0
  %v5904 = vmax.f32 %v4273, 0.0
  %v5905 = vmax.f32 %v4276, 0.0
  %v5906 = vmax.f32 %v4279, 0.0
  %v5907 = vmax.f32 %v4282, 0.0
  %v5908 = vmax.f32 %v4285, 0.0
  %v5909 = vmax.f32 %v4288, 0.0
  %v5910 = vmax.f32 %v4291, 0.0
  %v5911 = vmax.f32 %v4294, 0.0
  %v5912 = vmax.f32 %v4297, 0.0
  %v5913 = vmax.f32 %v4300, 0.0
  %v5914 = vmax.f32 %v4303, 0.0
  %v5915 = vmax.f32 %v4306, 0.0
  %v5916 = vmax.f32 %v4309, 0.0
  %v5917 = vmax.f32 %v4312, 0.0
  %v5918 = vmax.f32 %v4315, 0.0
  %v5919 = vmax.f32 %v4318, 0.0
  %v5920 = vmax.f32 %v4321, 0.0
  %v5921 = vmax.f32 %v4324, 0.0
  %v5922 = vmax.f32 %v4327, 0.0
  %v5923 = vmax.f32 %v4330, 0.0
  %v5924 = vmax.f32 %v4333, 0.0
  %v5925 = vmax.f32 %v4336, 0.0
  %v5926 = vmax.f32 %v4339, 0.0
  %v5927 = vmax.f32 %v4342, 0.0
  %v5928 = vmax.f32 %v4345, 0.0
  %v5929 = vmax.f32 %v4348, 0.0
  %v5930 = vmax.f32 %v4351, 0.0
  %v5931 = vmax.f32 %v4354, 0.0
  %v5932 = vmax.f32 %v4357, 0.0
  %v5933 = vmax.f32 %v4360, 0.0
  %v5934 = vmax.f32 %v4363, 0.0
  %v5935 = vmax.f32 %v4366, 0.0
  %v5936 = vmax.f32 %v4369, 0.0
  %v5937 = vmax.f32 %v4372, 0.0
  %v5938 = vmax.f32 %v4375, 0.0
  %v5939 = vmax.f32 %v4378, 0.0
  %v5940 = vmax.f32 %v4381, 0.0
  %v5941 = vmax.f32 %v4384, 0.0
  %v5942 = vmax.f32 %v4387, 0.0
  %v5943 = vmax.f32 %v4390, 0.0
  %v5944 = vmax.f32 %v4393, 0.0
  %v5945 = vmax.f32 %v4396, 0.0
  %v5946 = vmax.f32 %v4399, 0.0
  %v5947 = vmax.f32 %v4402, 0.0
  %v5948 = vmax.f32 %v4405, 0.0
  %v5949 = vmax.f32 %v4408, 0.0
  %v5950 = vmax.f32 %v4411, 0.0
  %v5951 = vmax.f32 %v4414, 0.0
  %v5952 = vmax.f32 %v4417, 0.0
  %v5953 = vmax.f32 %v4420, 0.0
  %v5954 = vmax.f32 %v4423, 0.0
  %v5955 = vmax.f32 %v4426, 0.0
  %v5956 = vmax.f32 %v4429, 0.0
  %v5957 = vmax.f32 %v4432, 0.0
  %v5958 = vmax.f32 %v4435, 0.0
  %v5959 = vmax.f32 %v4438, 0.0
  %v5960 = vmax.f32 %v4441, 0.0
  %v5961 = vmax.f32 %v4444, 0.0
  %v5962 = vmax.f32 %v4447, 0.0
  %v5963 = vmax.f32 %v4450, 0.0
  %v5964 = vmax.f32 %v4453, 0.0
  %v5965 = vmax.f32 %v4456, 0.0
  %v5966 = vmax.f32 %v4459, 0.0
  %v5967 = vmax.f32 %v4462, 0.0
  %v5968 = vmax.f32 %v4465, 0.0
  %v5969 = vmax.f32 %v4468, 0.0
  %v5970 = vmax.f32 %v4471, 0.0
  %v5971 = vmax.f32 %v4474, 0.0
  %v5972 = vmax.f32 %v4477, 0.0
  %v5973 = vmax.f32 %v4480, 0.0
  %v5974 = vmax.f32 %v4483, 0.0
  %v5975 = vmax.f32 %v4486, 0.0
  %v5976 = vmax.f32 %v4489, 0.0
  %v5977 = vmax.f32 %v4492, 0.0
  %v5978 = vmax.f32 %v4495, 0.0
  %v5979 = vmax.f32 %v4498, 0.0
  %v5980 = vmax.f32 %v4501, 0.0
  %v5981 = vmax.f32 %v4504, 0.0
  %v5982 = vmax.f32 %v4507, 0.0
  %v5983 = vmax.f32 %v4510, 0.0
  %v5984 = vmax.f32 %v4513, 0.0
  %v5985 = vmax.f32 %v4516, 0.0
  %v5986 = vmax.f32 %v4519, 0.0
  %v5987 = vmax.f32 %v4522, 0.0
  %v5988 = vmax.f32 %v4525, 0.0
  %v5989 = vmax.f32 %v4528, 0.0
  %v5990 = vmax.f32 %v4531, 0.0
  %v5991 = vmax.f32 %v4534, 0.0
  %v5992 = vmax.f32 %v4537, 0.0
  %v5993 = vmax.f32 %v4540, 0.0
  %v5994 = vmax.f32 %v4543, 0.0
  %v5995 = vmax.f32 %v4546, 0.0
  %v5996 = vmax.f32 %v4549, 0.0
  %v5997 = vmax.f32 %v4552, 0.0
  %v5998 = vmax.f32 %v4555, 0.0
  %v5999 = vmax.f32 %v4558, 0.0
  %v6000 = vmax.f32 %v4561, 0.0
  %v6001 = vmax.f32 %v4564, 0.0
  %v6002 = vmax.f32 %v4567, 0.0
  %v6003 = vmax.f32 %v4570, 0.0
  %v6004 = vmax.f32 %v4573, 0.0
  %v6005 = vmax.f32 %v4576, 0.0
  %v6006 = vmax.f32 %v4579, 0.0
  %v6007 = vmax.f32 %v4582, 0.0
  %v6008 = vmax.f32 %v4585, 0.0
  %v6009 = vmax.f32 %v4588, 0.0
  %v6010 = vmax.f32 %v4591, 0.0
  %v6011 = vmax.f32 %v4594, 0.0
  %v6012 = vmax.f32 %v4597, 0.0
  %v6013 = vmax.f32 %v4600, 0.0
  %v6014 = vmax.f32 %v4603, 0.0
  %v6015 = vmax.f32 %v4606, 0.0
  %v6016 = vmax.f32 %v4609, 0.0
  %v6017 = vmax.f32 %v4612, 0.0
  %v6018 = vmax.f32 %v4615, 0.0
  %v6019 = vmax.f32 %v4618, 0.0
  %v6020 = vmax.f32 %v4621, 0.0
  %v6021 = vmax.f32 %v4624, 0.0
  %v6022 = vmax.f32 %v4627, 0.0
  %v6023 = vmax.f32 %v4630, 0.0
  %v6024 = vmax.f32 %v4633, 0.0
  %v6025 = vmax.f32 %v4636, 0.0
  %v6026 = vmax.f32 %v4639, 0.0
  %v6027 = vmax.f32 %v4642, 0.0
  %v6028 = vmax.f32 %v4645, 0.0
  %v6029 = vmax.f32 %v4648, 0.0
  %v6030 = vmax.f32 %v4651, 0.0
  %v6031 = vmax.f32 %v4654, 0.0
  %v6032 = vmax.f32 %v4657, 0.0
  %v6033 = vmax.f32 %v4660, 0.0
  %v6034 = vmax.f32 %v4663, 0.0
  %v6035 = vmax.f32 %v4666, 0.0
  %v6036 = vmax.f32 %v4669, 0.0
  %v6037 = vmax.f32 %v4672, 0.0
  %v6038 = vmax.f32 %v4675, 0.0
  %v6039 = vmax.f32 %v4678, 0.0
  %v6040 = vmax.f32 %v4681, 0.0
  %v6041 = vmax.f32 %v4684, 0.0
  %v6042 = vmax.f32 %v4687, 0.0
  %v6043 = vmax.f32 %v4690, 0.0
  %v6044 = vmax.f32 %v4693, 0.0
  %v6045 = vmax.f32 %v4696, 0.0
  %v6046 = vmax.f32 %v4699, 0.0
  %v6047 = vmax.f32 %v4702, 0.0
  %v6048 = vmax.f32 %v4705, 0.0
  %v6049 = vmax.f32 %v4708, 0.0
  %v6050 = vmax.f32 %v4711, 0.0
  %v6051 = vmax.f32 %v4714, 0.0
  %v6052 = vmax.f32 %v4717, 0.0
  %v6053 = vmax.f32 %v4720, 0.0
  %v6054 = vmax.f32 %v4723, 0.0
  %v6055 = vmax.f32 %v4726, 0.0
  %v6056 = vmax.f32 %v4729, 0.0
  %v6057 = vmax.f32 %v4732, 0.0
  %v6058 = vmax.f32 %v4735, 0.0
  %v6059 = vmax.f32 %v4738, 0.0
  %v6060 = vmax.f32 %v4741, 0.0
  %v6061 = vmax.f32 %v4744, 0.0
  %v6062 = vmax.f32 %v4747, 0.0
  %v6063 = vmax.f32 %v4750, 0.0
  %v6064 = vmax.f32 %v4753, 0.0
  %v6065 = vmax.f32 %v4756, 0.0
  %v6066 = vmax.f32 %v4759, 0.0
  %v6067 = vmax.f32 %v4762, 0.0
  %v6068 = vmax.f32 %v4765, 0.0
  %v6069 = vmax.f32 %v4768, 0.0
  %v6070 = vmax.f32 %v4771, 0.0
  %v6071 = vmax.f32 %v4774, 0.0
  %v6072 = vmax.f32 %v4777, 0.0
  %v6073 = vmax.f32 %v4780, 0.0
  %v6074 = vmax.f32 %v4783, 0.0
  %v6075 = vmax.f32 %v4786, 0.0
  %v6076 = vmax.f32 %v4789, 0.0
  %v6077 = vmax.f32 %v4792, 0.0
  %v6078 = vmax.f32 %v4795, 0.0
  %v6079 = vmax.f32 %v4798, 0.0
  %v6080 = vmax.f32 %v4801, 0.0
  %v6081 = vmax.f32 %v4804, 0.0
  %v6082 = vmax.f32 %v4807, 0.0
  %v6083 = vmax.f32 %v4810, 0.0
  %v6084 = vmax.f32 %v4813, 0.0
  %v6085 = vmax.f32 %v4816, 0.0
  %v6086 = vmax.f32 %v4819, 0.0
  %v6087 = vmax.f32 %v4822, 0.0
  %v6088 = vmax.f32 %v4825, 0.0
  %v6089 = vmax.f32 %v4828, 0.0
  %v6090 = vmax.f32 %v4831, 0.0
  %v6091 = vmax.f32 %v4834, 0.0
  %v6092 = vmax.f32 %v4837, 0.0
  %v6093 = vmax.f32 %v4840, 0.0
  %v6094 = vmax.f32 %v4843, 0.0
  %v6095 = vmax.f32 %v4846, 0.0
  %v6096 = vmax.f32 %v4849, 0.0
  %v6097 = vmax.f32 %v4852, 0.0
  %v6098 = vmax.f32 %v4855, 0.0
  %v6099 = vmax.f32 %v4858, 0.0
  %v6100 = vmax.f32 %v4861, 0.0
  %v6101 = vmax.f32 %v4864, 0.0
  %v6102 = vmax.f32 %v4867, 0.0
  %v6103 = vmax.f32 %v4870, 0.0
  %v6104 = vmax.f32 %v4873, 0.0
  %v6105 = vmax.f32 %v4876, 0.0
  %v6106 = vmax.f32 %v4879, 0.0
  %v6107 = vmax.f32 %v4882, 0.0
  %v6108 = vmax.f32 %v4885, 0.0
  %v6109 = vmax.f32 %v4888, 0.0
  %v6110 = vmax.f32 %v4891, 0.0
  %v6111 = vmax.f32 %v4894, 0.0
  %v6112 = vmax.f32 %v4897, 0.0
  %v6113 = vmax.f32 %v4900, 0.0
  %v6114 = vmax.f32 %v4903, 0.0
  %v6115 = vmax.f32 %v4906, 0.0
  %v6116 = vmax.f32 %v4909, 0.0
  %v6117 = vmax.f32 %v4912, 0.0
  %v6118 = vmax.f32 %v4915, 0.0
  %v6119 = vmax.f32 %v4918, 0.0
  %v6120 = vmax.f32 %v4921, 0.0
  %v6121 = vmax.f32 %v4924, 0.0
  %v6122 = vmax.f32 %v4927, 0.0
  %v6123 = vmax.f32 %v4930, 0.0
  %v6124 = vmax.f32 %v4933, 0.0
  %v6125 = vmax.f32 %v4936, 0.0
  %v6126 = vmax.f32 %v4939, 0.0
  %v6127 = vmax.f32 %v4942, 0.0
  %v6128 = vmax.f32 %v4945, 0.0
  %v6129 = vmax.f32 %v4948, 0.0
  %v6130 = vmax.f32 %v4951, 0.0
  %v6131 = vmax.f32 %v4954, 0.0
  %v6132 = vmax.f32 %v4957, 0.0
  %v6133 = vmax.f32 %v4960, 0.0
  %v6134 = vmax.f32 %v4963, 0.0
  %v6135 = vmax.f32 %v4966, 0.0
  %v6136 = vmax.f32 %v4969, 0.0
  %v6137 = vmax.f32 %v4972, 0.0
  %v6138 = vmax.f32 %v4975, 0.0
  %v6139 = vmax.f32 %v4978, 0.0
  %v6140 = vmax.f32 %v4981, 0.0
  %v6141 = vmax.f32 %v4984, 0.0
  %v6142 = vmax.f32 %v4987, 0.0
  %v6143 = vmax.f32 %v4990, 0.0
  %v6144 = vmax.f32 %v4993, 0.0
  %v6145 = vmax.f32 %v4996, 0.0
  %v6146 = vmax.f32 %v4999, 0.0
  %v6147 = vmax.f32 %v5002, 0.0
  %v6148 = vmax.f32 %v5005, 0.0
  %v6149 = vmax.f32 %v5008, 0.0
  %v6150 = vmax.f32 %v5011, 0.0
  %v6151 = vmax.f32 %v5014, 0.0
  %v6152 = vmax.f32 %v5017, 0.0
  %v6153 = vmax.f32 %v5020, 0.0
  %v6154 = vmax.f32 %v5023, 0.0
  %v6155 = vmax.f32 %v5026, 0.0
  %v6156 = vmax.f32 %v5029, 0.0
  %v6157 = vmax.f32 %v5032, 0.0
  %v6158 = vmax.f32 %v5035, 0.0
  %v6159 = vmax.f32 %v5038, 0.0
  %v6160 = vmax.f32 %v5041, 0.0
  %v6161 = vmax.f32 %v5044, 0.0
  %v6162 = vmax.f32 %v5047, 0.0
  %v6163 = vmax.f32 %v5050, 0.0
  %v6164 = vmax.f32 %v5053, 0.0
  %v6165 = vmax.f32 %v5056, 0.0
  %v6166 = vmax.f32 %v5059, 0.0
  %v6167 = vmax.f32 %v5062, 0.0
  %v6168 = vmax.f32 %v5065, 0.0
  %v6169 = vmax.f32 %v5068, 0.0
  %v6170 = vmax.f32 %v5071, 0.0
  %v6171 = vmax.f32 %v5074, 0.0
  %v6172 = vmax.f32 %v5077, 0.0
  %v6173 = vmax.f32 %v5080, 0.0
  %v6174 = vmax.f32 %v5083, 0.0
  %v6175 = vmax.f32 %v5086, 0.0
  %v6176 = vmax.f32 %v5089, 0.0
  %v6177 = vmax.f32 %v5092, 0.0
  %v6178 = vmax.f32 %v5095, 0.0
  %v6179 = vmax.f32 %v5098, 0.0
  %v6180 = vmax.f32 %v5101, 0.0
  %v6181 = vmax.f32 %v5104, 0.0
  %v6182 = vmax.f32 %v5107, 0.0
  %v6183 = vmax.f32 %v5110, 0.0
  %v6184 = vmax.f32 %v5113, 0.0
  %v6185 = vmax.f32 %v5116, 0.0
  %v6186 = vmax.f32 %v5119, 0.0
  %v6187 = vmax.f32 %v5122, 0.0
  %v6188 = vmax.f32 %v5125, 0.0
  %v6189 = vmax.f32 %v5128, 0.0
  %v6190 = vmax.f32 %v5131, 0.0
  %v6191 = vmax.f32 %v5134, 0.0
  %v6192 = vmax.f32 %v5137, 0.0
  %v6193 = vmax.f32 %v5140, 0.0
  %v6194 = vmax.f32 %v5143, 0.0
  %v6195 = vmax.f32 %v5146, 0.0
  %v6196 = vmax.f32 %v5149, 0.0
  %v6197 = vmax.f32 %v5152, 0.0
  %v6198 = vmax.f32 %v5155, 0.0
  %v6199 = vmax.f32 %v5158, 0.0
  %v6200 = vmax.f32 %v5161, 0.0
  %v6201 = vmax.f32 %v5164, 0.0
  %v6202 = vmax.f32 %v5167, 0.0
  %v6203 = vmax.f32 %v5170, 0.0
  %v6204 = vmax.f32 %v5173, 0.0
  %v6205 = vmax.f32 %v5176, 0.0
  %v6206 = vmax.f32 %v5179, 0.0
  %v6207 = vmax.f32 %v5182, 0.0
  %v6208 = vmax.f32 %v5185, 0.0
  %v6209 = vmax.f32 %v5188, 0.0
  %v6210 = vmax.f32 %v5191, 0.0
  %v6211 = vmax.f32 %v5194, 0.0
  %v6212 = vmax.f32 %v5197, 0.0
  %v6213 = vmax.f32 %v5200, 0.0
  %v6214 = vmax.f32 %v5203, 0.0
  %v6215 = vmax.f32 %v5206, 0.0
  %v6216 = vmax.f32 %v5209, 0.0
  %v6217 = vmax.f32 %v5212, 0.0
  %v6218 = vmax.f32 %v5215, 0.0
  %v6219 = vmax.f32 %v5218, 0.0
  %v6220 = vmax.f32 %v5221, 0.0
  %v6221 = vmax.f32 %v5224, 0.0
  %v6222 = vmax.f32 %v5227, 0.0
  %v6223 = vmax.f32 %v5230, 0.0
  %v6224 = vmax.f32 %v5233, 0.0
  %v6225 = vmax.f32 %v5236, 0.0
  %v6226 = vmax.f32 %v5239, 0.0
  %v6227 = vmax.f32 %v5242, 0.0
  %v6228 = vmax.f32 %v5245, 0.0
  %v6229 = vmax.f32 %v5248, 0.0
  %v6230 = vmax.f32 %v5251, 0.0
  %v6231 = vmax.f32 %v5254, 0.0
  %v6232 = vmax.f32 %v5257, 0.0
  %v6233 = vmax.f32 %v5260, 0.0
  %v6234 = vmax.f32 %v5263, 0.0
  %v6235 = vmax.f32 %v5266, 0.0
  %v6236 = vmax.f32 %v5269, 0.0
  %v6237 = vmax.f32 %v5272, 0.0
  %v6238 = vmax.f32 %v5275, 0.0
  %v6239 = vmax.f32 %v5278, 0.0
  %v6240 = vmax.f32 %v5281, 0.0
  %v6241 = vmax.f32 %v5284, 0.0
  %v6242 = vmax.f32 %v5287, 0.0
  %v6243 = vmax.f32 %v5290, 0.0
  %v6244 = vmax.f32 %v5293, 0.0
  %v6245 = vmax.f32 %v5296, 0.0
  %v6246 = vmax.f32 %v5299, 0.0
  %v6247 = vmax.f32 %v5302, 0.0
  %v6248 = vmax.f32 %v5305, 0.0
  %v6249 = vmax.f32 %v5308, 0.0
  %v6250 = vmax.f32 %v5311, 0.0
  %v6251 = vmax.f32 %v5314, 0.0
  %v6252 = vmax.f32 %v5317, 0.0
  %v6253 = vmax.f32 %v5320, 0.0
  %v6254 = vmax.f32 %v5323, 0.0
  %v6255 = vmax.f32 %v5326, 0.0
  %v6256 = vmax.f32 %v5329, 0.0
  %v6257 = vmax.f32 %v5332, 0.0
  %v6258 = vmax.f32 %v5335, 0.0
  %v6259 = vmax.f32 %v5338, 0.0
  %v6260 = vmax.f32 %v5341, 0.0
  %v6261 = vmax.f32 %v5344, 0.0
  %v6262 = vmax.f32 %v5347, 0.0
  %v6263 = vmax.f32 %v5350, 0.0
  %v6264 = vmax.f32 %v5353, 0.0
  %v6265 = vmax.f32 %v5356, 0.0
  %v6266 = vmax.f32 %v5359, 0.0
  %v6267 = vmax.f32 %v5362, 0.0
  %v6268 = vmax.f32 %v5365, 0.0
  %v6269 = vmax.f32 %v5368, 0.0
  %v6270 = vmax.f32 %v5371, 0.0
  %v6271 = vmax.f32 %v5374, 0.0
  %v6272 = vmax.f32 %v5377, 0.0
  %v6273 = vmax.f32 %v5380, 0.0
  %v6274 = vmax.f32 %v5383, 0.0
  %v6275 = vmax.f32 %v5386, 0.0
  %v6276 = vmax.f32 %v5389, 0.0
  %v6277 = vmax.f32 %v5392, 0.0
  %v6278 = vmax.f32 %v5395, 0.0
  %v6279 = vmax.f32 %v5398, 0.0
  %v6280 = vmax.f32 %v5401, 0.0
  %v6281 = vmax.f32 %v5404, 0.0
  %v6282 = vmax.f32 %v5407, 0.0
  %v6283 = vmax.f32 %v5410, 0.0
  %v6284 = vmax.f32 %v5413, 0.0
  %v6285 = vmax.f32 %v5416, 0.0
  %v6286 = vmax.f32 %v5419, 0.0
  %v6287 = vmax.f32 %v5422, 0.0
  %v6288 = vmax.f32 %v5425, 0.0
  %v6289 = vmax.f32 %v5428, 0.0
  %v6290 = vmax.f32 %v5431, 0.0
  %v6291 = vmax.f32 %v5434, 0.0
  %v6292 = vmax.f32 %v5437, 0.0
  %v6293 = vmax.f32 %v5440, 0.0
  %v6294 = vmax.f32 %v5443, 0.0
  %v6295 = vmax.f32 %v5446, 0.0
  %v6296 = vmax.f32 %v5449, 0.0
  %v6297 = vmax.f32 %v5452, 0.0
  %v6298 = vmax.f32 %v5455, 0.0
  %v6299 = vmax.f32 %v5458, 0.0
  %v6300 = vmax.f32 %v5461, 0.0
  %v6301 = vmax.f32 %v5464, 0.0
  %v6302 = vmax.f32 %v5467, 0.0
  %v6303 = vmax.f32 %v5470, 0.0
  %v6304 = vmax.f32 %v5473, 0.0
  %v6305 = vmax.f32 %v5476, 0.0
  %v6306 = vmax.f32 %v5479, 0.0
  %v6307 = vmax.f32 %v5482, 0.0
  %v6308 = vmax.f32 %v5485, 0.0
  %v6309 = vmax.f32 %v5488, 0.0
  %v6310 = vmax.f32 %v5491, 0.0
  %v6311 = vmax.f32 %v5494, 0.0
  %v6312 = vmax.f32 %v5497, 0.0
  %v6313 = vmax.f32 %v5500, 0.0
  %v6314 = vmax.f32 %v5503, 0.0
  %v6315 = vmax.f32 %v5506, 0.0
  %v6316 = vmax.f32 %v5509, 0.0
  %v6317 = vmax.f32 %v5512, 0.0
  %v6318 = vmax.f32 %v5515, 0.0
  %v6319 = vmax.f32 %v5518, 0.0
  %v6320 = vmax.f32 %v5521, 0.0
  %v6321 = vmax.f32 %v5524, 0.0
  %v6322 = vmax.f32 %v5527, 0.0
  %v6323 = vmax.f32 %v5530, 0.0
  %v6324 = vmax.f32 %v5533, 0.0
  %v6325 = vmax.f32 %v5536, 0.0
  %v6326 = vmax.f32 %v5539, 0.0
  %v6327 = vmax.f32 %v5542, 0.0
  %v6328 = vmax.f32 %v5544, %v5740
  %v6329 = vmax.f32 %v5545, %v5741
  %v6330 = vmax.f32 %v5546, %v5742
  %v6331 = vmax.f32 %v5547, %v5743
  %v6332 = vmax.f32 %v5548, %v5744
  %v6333 = vmax.f32 %v5549, %v5745
  %v6334 = vmax.f32 %v5550, %v5746
  %v6335 = vmax.f32 %v5551, %v5747
  %v6336 = vmax.f32 %v5552, %v5748
  %v6337 = vmax.f32 %v5553, %v5749
  %v6338 = vmax.f32 %v5554, %v5750
  %v6339 = vmax.f32 %v5555, %v5751
  %v6340 = vmax.f32 %v5556, %v5752
  %v6341 = vmax.f32 %v5557, %v5753
  %v6342 = vmax.f32 %v5558, %v5754
  %v6343 = vmax.f32 %v5559, %v5755
  %v6344 = vmax.f32 %v5560, %v5756
  %v6345 = vmax.f32 %v5561, %v5757
  %v6346 = vmax.f32 %v5562, %v5758
  %v6347 = vmax.f32 %v5563, %v5759
  %v6348 = vmax.f32 %v5564, %v5760
  %v6349 = vmax.f32 %v5565, %v5761
  %v6350 = vmax.f32 %v5566, %v5762
  %v6351 = vmax.f32 %v5567, %v5763
  %v6352 = vmax.f32 %v5568, %v5764
  %v6353 = vmax.f32 %v5569, %v5765
  %v6354 = vmax.f32 %v5570, %v5766
  %v6355 = vmax.f32 %v5571, %v5767
  %v6356 = vmax.f32 %v5572, %v5768
  %v6357 = vmax.f32 %v5573, %v5769
  %v6358 = vmax.f32 %v5574, %v5770
  %v6359 = vmax.f32 %v5575, %v5771
  %v6360 = vmax.f32 %v5576, %v5772
  %v6361 = vmax.f32 %v5577, %v5773
  %v6362 = vmax.f32 %v5578, %v5774
  %v6363 = vmax.f32 %v5579, %v5775
  %v6364 = vmax.f32 %v5580, %v5776
  %v6365 = vmax.f32 %v5581, %v5777
  %v6366 = vmax.f32 %v5582, %v5778
  %v6367 = vmax.f32 %v5583, %v5779
  %v6368 = vmax.f32 %v5584, %v5780
  %v6369 = vmax.f32 %v5585, %v5781
  %v6370 = vmax.f32 %v5586, %v5782
  %v6371 = vmax.f32 %v5587, %v5783
  %v6372 = vmax.f32 %v5588, %v5784
  %v6373 = vmax.f32 %v5589, %v5785
  %v6374 = vmax.f32 %v5590, %v5786
  %v6375 = vmax.f32 %v5591, %v5787
  %v6376 = vmax.f32 %v5592, %v5788
  %v6377 = vmax.f32 %v5593, %v5789
  %v6378 = vmax.f32 %v5594, %v5790
  %v6379 = vmax.f32 %v5595, %v5791
  %v6380 = vmax.f32 %v5596, %v5792
  %v6381 = vmax.f32 %v5597, %v5793
  %v6382 = vmax.f32 %v5598, %v5794
  %v6383 = vmax.f32 %v5599, %v5795
  %v6384 = vmax.f32 %v5600, %v5796
  %v6385 = vmax.f32 %v5601, %v5797
  %v6386 = vmax.f32 %v5602, %v5798
  %v6387 = vmax.f32 %v5603, %v5799
  %v6388 = vmax.f32 %v5604, %v5800
  %v6389 = vmax.f32 %v5605, %v5801
  %v6390 = vmax.f32 %v5606, %v5802
  %v6391 = vmax.f32 %v5607, %v5803
  %v6392 = vmax.f32 %v5608, %v5804
  %v6393 = vmax.f32 %v5609, %v5805
  %v6394 = vmax.f32 %v5610, %v5806
  %v6395 = vmax.f32 %v5611, %v5807
  %v6396 = vmax.f32 %v5612, %v5808
  %v6397 = vmax.f32 %v5613, %v5809
  %v6398 = vmax.f32 %v5614, %v5810
  %v6399 = vmax.f32 %v5615, %v5811
  %v6400 = vmax.f32 %v5616, %v5812
  %v6401 = vmax.f32 %v5617, %v5813
  %v6402 = vmax.f32 %v5618, %v5814
  %v6403 = vmax.f32 %v5619, %v5815
  %v6404 = vmax.f32 %v5620, %v5816
  %v6405 = vmax.f32 %v5621, %v5817
  %v6406 = vmax.f32 %v5622, %v5818
  %v6407 = vmax.f32 %v5623, %v5819
  %v6408 = vmax.f32 %v5624, %v5820
  %v6409 = vmax.f32 %v5625, %v5821
  %v6410 = vmax.f32 %v5626, %v5822
  %v6411 = vmax.f32 %v5627, %v5823
  %v6412 = vmax.f32 %v5628, %v5824
  %v6413 = vmax.f32 %v5629, %v5825
  %v6414 = vmax.f32 %v5630, %v5826
  %v6415 = vmax.f32 %v5631, %v5827
  %v6416 = vmax.f32 %v5632, %v5828
  %v6417 = vmax.f32 %v5633, %v5829
  %v6418 = vmax.f32 %v5634, %v5830
  %v6419 = vmax.f32 %v5635, %v5831
  %v6420 = vmax.f32 %v5636, %v5832
  %v6421 = vmax.f32 %v5637, %v5833
  %v6422 = vmax.f32 %v5638, %v5834
  %v6423 = vmax.f32 %v5639, %v5835
  %v6424 = vmax.f32 %v5640, %v5836
  %v6425 = vmax.f32 %v5641, %v5837
  %v6426 = vmax.f32 %v5642, %v5838
  %v6427 = vmax.f32 %v5643, %v5839
  %v6428 = vmax.f32 %v5644, %v5840
  %v6429 = vmax.f32 %v5645, %v5841
  %v6430 = vmax.f32 %v5646, %v5842
  %v6431 = vmax.f32 %v5647, %v5843
  %v6432 = vmax.f32 %v5648, %v5844
  %v6433 = vmax.f32 %v5649, %v5845
  %v6434 = vmax.f32 %v5650, %v5846
  %v6435 = vmax.f32 %v5651, %v5847
  %v6436 = vmax.f32 %v5652, %v5848
  %v6437 = vmax.f32 %v5653, %v5849
  %v6438 = vmax.f32 %v5654, %v5850
  %v6439 = vmax.f32 %v5655, %v5851
  %v6440 = vmax.f32 %v5656, %v5852
  %v6441 = vmax.f32 %v5657, %v5853
  %v6442 = vmax.f32 %v5658, %v5854
  %v6443 = vmax.f32 %v5659, %v5855
  %v6444 = vmax.f32 %v5660, %v5856
  %v6445 = vmax.f32 %v5661, %v5857
  %v6446 = vmax.f32 %v5662, %v5858
  %v6447 = vmax.f32 %v5663, %v5859
  %v6448 = vmax.f32 %v5664, %v5860
  %v6449 = vmax.f32 %v5665, %v5861
  %v6450 = vmax.f32 %v5666, %v5862
  %v6451 = vmax.f32 %v5667, %v5863
  %v6452 = vmax.f32 %v5668, %v5864
  %v6453 = vmax.f32 %v5669, %v5865
  %v6454 = vmax.f32 %v5670, %v5866
  %v6455 = vmax.f32 %v5671, %v5867
  %v6456 = vmax.f32 %v5672, %v5868
  %v6457 = vmax.f32 %v5673, %v5869
  %v6458 = vmax.f32 %v5674, %v5870
  %v6459 = vmax.f32 %v5675, %v5871
  %v6460 = vmax.f32 %v5676, %v5872
  %v6461 = vmax.f32 %v5677, %v5873
  %v6462 = vmax.f32 %v5678, %v5874
  %v6463 = vmax.f32 %v5679, %v5875
  %v6464 = vmax.f32 %v5680, %v5876
  %v6465 = vmax.f32 %v5681, %v5877
  %v6466 = vmax.f32 %v5682, %v5878
  %v6467 = vmax.f32 %v5683, %v5879
  %v6468 = vmax.f32 %v5684, %v5880
  %v6469 = vmax.f32 %v5685, %v5881
  %v6470 = vmax.f32 %v5686, %v5882
  %v6471 = vmax.f32 %v5687, %v5883
  %v6472 = vmax.f32 %v5688, %v5884
  %v6473 = vmax.f32 %v5689, %v5885
  %v6474 = vmax.f32 %v5690, %v5886
  %v6475 = vmax.f32 %v5691, %v5887
  %v6476 = vmax.f32 %v5692, %v5888
  %v6477 = vmax.f32 %v5693, %v5889
  %v6478 = vmax.f32 %v5694, %v5890
  %v6479 = vmax.f32 %v5695, %v5891
  %v6480 = vmax.f32 %v5696, %v5892
  %v6481 = vmax.f32 %v5697, %v5893
  %v6482 = vmax.f32 %v5698, %v5894
  %v6483 = vmax.f32 %v5699, %v5895
  %v6484 = vmax.f32 %v5700, %v5896
  %v6485 = vmax.f32 %v5701, %v5897
  %v6486 = vmax.f32 %v5702, %v5898
  %v6487 = vmax.f32 %v5703, %v5899
  %v6488 = vmax.f32 %v5704, %v5900
  %v6489 = vmax.f32 %v5705, %v5901
  %v6490 = vmax.f32 %v5706, %v5902
  %v6491 = vmax.f32 %v5707, %v5903
  %v6492 = vmax.f32 %v5708, %v5904
  %v6493 = vmax.f32 %v5709, %v5905
  %v6494 = vmax.f32 %v5710, %v5906
  %v6495 = vmax.f32 %v5711, %v5907
  %v6496 = vmax.f32 %v5712, %v5908
  %v6497 = vmax.f32 %v5713, %v5909
  %v6498 = vmax.f32 %v5714, %v5910
  %v6499 = vmax.f32 %v5715, %v5911
  %v6500 = vmax.f32 %v5716, %v5912
  %v6501 = vmax.f32 %v5717, %v5913
  %v6502 = vmax.f32 %v5718, %v5914
  %v6503 = vmax.f32 %v5719, %v5915
  %v6504 = vmax.f32 %v5720, %v5916
  %v6505 = vmax.f32 %v5721, %v5917
  %v6506 = vmax.f32 %v5722, %v5918
  %v6507 = vmax.f32 %v5723, %v5919
  %v6508 = vmax.f32 %v5724, %v5920
  %v6509 = vmax.f32 %v5725, %v5921
  %v6510 = vmax.f32 %v5726, %v5922
  %v6511 = vmax.f32 %v5727, %v5923
  %v6512 = vmax.f32 %v5728, %v5924
  %v6513 = vmax.f32 %v5729, %v5925
  %v6514 = vmax.f32 %v5730, %v5926
  %v6515 = vmax.f32 %v5731, %v5927
  %v6516 = vmax.f32 %v5732, %v5928
  %v6517 = vmax.f32 %v5733, %v5929
  %v6518 = vmax.f32 %v5734, %v5930
  %v6519 = vmax.f32 %v5735, %v5931
  %v6520 = vmax.f32 %v5736, %v5932
  %v6521 = vmax.f32 %v5737, %v5933
  %v6522 = vmax.f32 %v5738, %v5934
  %v6523 = vmax.f32 %v5739, %v5935
  %v6524 = vmax.f32 %v5936, %v6132
  %v6525 = vmax.f32 %v5937, %v6133
  %v6526 = vmax.f32 %v5938, %v6134
  %v6527 = vmax.f32 %v5939, %v6135
  %v6528 = vmax.f32 %v5940, %v6136
  %v6529 = vmax.f32 %v5941, %v6137
  %v6530 = vmax.f32 %v5942, %v6138
  %v6531 = vmax.f32 %v5943, %v6139
  %v6532 = vmax.f32 %v5944, %v6140
  %v6533 = vmax.f32 %v5945, %v6141
  %v6534 = vmax.f32 %v5946, %v6142
  %v6535 = vmax.f32 %v5947, %v6143
  %v6536 = vmax.f32 %v5948, %v6144
  %v6537 = vmax.f32 %v5949, %v6145
  %v6538 = vmax.f32 %v5950, %v6146
  %v6539 = vmax.f32 %v5951, %v6147
  %v6540 = vmax.f32 %v5952, %v6148
  %v6541 = vmax.f32 %v5953, %v6149
  %v6542 = vmax.f32 %v5954, %v6150
  %v6543 = vmax.f32 %v5955, %v6151
  %v6544 = vmax.f32 %v5956, %v6152
  %v6545 = vmax.f32 %v5957, %v6153
  %v6546 = vmax.f32 %v5958, %v6154
  %v6547 = vmax.f32 %v5959, %v6155
  %v6548 = vmax.f32 %v5960, %v6156
  %v6549 = vmax.f32 %v5961, %v6157
  %v6550 = vmax.f32 %v5962, %v6158
  %v6551 = vmax.f32 %v5963, %v6159
  %v6552 = vmax.f32 %v5964, %v6160
  %v6553 = vmax.f32 %v5965, %v6161
  %v6554 = vmax.f32 %v5966, %v6162
  %v6555 = vmax.f32 %v5967, %v6163
  %v6556 = vmax.f32 %v5968, %v6164
  %v6557 = vmax.f32 %v5969, %v6165
  %v6558 = vmax.f32 %v5970, %v6166
  %v6559 = vmax.f32 %v5971, %v6167
  %v6560 = vmax.f32 %v5972, %v6168
  %v6561 = vmax.f32 %v5973, %v6169
  %v6562 = vmax.f32 %v5974, %v6170
  %v6563 = vmax.f32 %v5975, %v6171
  %v6564 = vmax.f32 %v5976, %v6172
  %v6565 = vmax.f32 %v5977, %v6173
  %v6566 = vmax.f32 %v5978, %v6174
  %v6567 = vmax.f32 %v5979, %v6175
  %v6568 = vmax.f32 %v5980, %v6176
  %v6569 = vmax.f32 %v5981, %v6177
  %v6570 = vmax.f32 %v5982, %v6178
  %v6571 = vmax.f32 %v5983, %v6179
  %v6572 = vmax.f32 %v5984, %v6180
  %v6573 = vmax.f32 %v5985, %v6181
  %v6574 = vmax.f32 %v5986, %v6182
  %v6575 = vmax.f32 %v5987, %v6183
  %v6576 = vmax.f32 %v5988, %v6184
  %v6577 = vmax.f32 %v5989, %v6185
  %v6578 = vmax.f32 %v5990, %v6186
  %v6579 = vmax.f32 %v5991, %v6187
  %v6580 = vmax.f32 %v5992, %v6188
  %v6581 = vmax.f32 %v5993, %v6189
  %v6582 = vmax.f32 %v5994, %v6190
  %v6583 = vmax.f32 %v5995, %v6191
  %v6584 = vmax.f32 %v5996, %v6192
  %v6585 = vmax.f32 %v5997, %v6193
  %v6586 = vmax.f32 %v5998, %v6194
  %v6587 = vmax.f32 %v5999, %v6195
  %v6588 = vmax.f32 %v6000, %v6196
  %v6589 = vmax.f32 %v6001, %v6197
  %v6590 = vmax.f32 %v6002, %v6198
  %v6591 = vmax.f32 %v6003, %v6199
  %v6592 = vmax.f32 %v6004, %v6200
  %v6593 = vmax.f32 %v6005, %v6201
  %v6594 = vmax.f32 %v6006, %v6202
  %v6595 = vmax.f32 %v6007, %v6203
  %v6596 = vmax.f32 %v6008, %v6204
  %v6597 = vmax.f32 %v6009, %v6205
  %v6598 = vmax.f32 %v6010, %v6206
  %v6599 = vmax.f32 %v6011, %v6207
  %v6600 = vmax.f32 %v6012, %v6208
  %v6601 = vmax.f32 %v6013, %v6209
  %v6602 = vmax.f32 %v6014, %v6210
  %v6603 = vmax.f32 %v6015, %v6211
  %v6604 = vmax.f32 %v6016, %v6212
  %v6605 = vmax.f32 %v6017, %v6213
  %v6606 = vmax.f32 %v6018, %v6214
  %v6607 = vmax.f32 %v6019, %v6215
  %v6608 = vmax.f32 %v6020, %v6216
  %v6609 = vmax.f32 %v6021, %v6217
  %v6610 = vmax.f32 %v6022, %v6218
  %v6611 = vmax.f32 %v6023, %v6219
  %v6612 = vmax.f32 %v6024, %v6220
  %v6613 = vmax.f32 %v6025, %v6221
  %v6614 = vmax.f32 %v6026, %v6222
  %v6615 = vmax.f32 %v6027, %v6223
  %v6616 = vmax.f32 %v6028, %v6224
  %v6617 = vmax.f32 %v6029, %v6225
  %v6618 = vmax.f32 %v6030, %v6226
  %v6619 = vmax.f32 %v6031, %v6227
  %v6620 = vmax.f32 %v6032, %v6228
  %v6621 = vmax.f32 %v6033, %v6229
  %v6622 = vmax.f32 %v6034, %v6230
  %v6623 = vmax.f32 %v6035, %v6231
  %v6624 = vmax.f32 %v6036, %v6232
  %v6625 = vmax.f32 %v6037, %v6233
  %v6626 = vmax.f32 %v6038, %v6234
  %v6627 = vmax.f32 %v6039, %v6235
  %v6628 = vmax.f32 %v6040, %v6236
  %v6629 = vmax.f32 %v6041, %v6237
  %v6630 = vmax.f32 %v6042, %v6238
  %v6631 = vmax.f32 %v6043, %v6239
  %v6632 = vmax.f32 %v6044, %v6240
  %v6633 = vmax.f32 %v6045, %v6241
  %v6634 = vmax.f32 %v6046, %v6242
  %v6635 = vmax.f32 %v6047, %v6243
  %v6636 = vmax.f32 %v6048, %v6244
  %v6637 = vmax.f32 %v6049, %v6245
  %v6638 = vmax.f32 %v6050, %v6246
  %v6639 = vmax.f32 %v6051, %v6247
  %v6640 = vmax.f32 %v6052, %v6248
  %v6641 = vmax.f32 %v6053, %v6249
  %v6642 = vmax.f32 %v6054, %v6250
  %v6643 = vmax.f32 %v6055, %v6251
  %v6644 = vmax.f32 %v6056, %v6252
  %v6645 = vmax.f32 %v6057, %v6253
  %v6646 = vmax.f32 %v6058, %v6254
  %v6647 = vmax.f32 %v6059, %v6255
  %v6648 = vmax.f32 %v6060, %v6256
  %v6649 = vmax.f32 %v6061, %v6257
  %v6650 = vmax.f32 %v6062, %v6258
  %v6651 = vmax.f32 %v6063, %v6259
  %v6652 = vmax.f32 %v6064, %v6260
  %v6653 = vmax.f32 %v6065, %v6261
  %v6654 = vmax.f32 %v6066, %v6262
  %v6655 = vmax.f32 %v6067, %v6263
  %v6656 = vmax.f32 %v6068, %v6264
  %v6657 = vmax.f32 %v6069, %v6265
  %v6658 = vmax.f32 %v6070, %v6266
  %v6659 = vmax.f32 %v6071, %v6267
  %v6660 = vmax.f32 %v6072, %v6268
  %v6661 = vmax.f32 %v6073, %v6269
  %v6662 = vmax.f32 %v6074, %v6270
  %v6663 = vmax.f32 %v6075, %v6271
  %v6664 = vmax.f32 %v6076, %v6272
  %v6665 = vmax.f32 %v6077, %v6273
  %v6666 = vmax.f32 %v6078, %v6274
  %v6667 = vmax.f32 %v6079, %v6275
  %v6668 = vmax.f32 %v6080, %v6276
  %v6669 = vmax.f32 %v6081, %v6277
  %v6670 = vmax.f32 %v6082, %v6278
  %v6671 = vmax.f32 %v6083, %v6279
  %v6672 = vmax.f32 %v6084, %v6280
  %v6673 = vmax.f32 %v6085, %v6281
  %v6674 = vmax.f32 %v6086, %v6282
  %v6675 = vmax.f32 %v6087, %v6283
  %v6676 = vmax.f32 %v6088, %v6284
  %v6677 = vmax.f32 %v6089, %v6285
  %v6678 = vmax.f32 %v6090, %v6286
  %v6679 = vmax.f32 %v6091, %v6287
  %v6680 = vmax.f32 %v6092, %v6288
  %v6681 = vmax.f32 %v6093, %v6289
  %v6682 = vmax.f32 %v6094, %v6290
  %v6683 = vmax.f32 %v6095, %v6291
  %v6684 = vmax.f32 %v6096, %v6292
  %v6685 = vmax.f32 %v6097, %v6293
  %v6686 = vmax.f32 %v6098, %v6294
  %v6687 = vmax.f32 %v6099, %v6295
  %v6688 = vmax.f32 %v6100, %v6296
  %v6689 = vmax.f32 %v6101, %v6297
  %v6690 = vmax.f32 %v6102, %v6298
  %v6691 = vmax.f32 %v6103, %v6299
  %v6692 = vmax.f32 %v6104, %v6300
  %v6693 = vmax.f32 %v6105, %v6301
  %v6694 = vmax.f32 %v6106, %v6302
  %v6695 = vmax.f32 %v6107, %v6303
  %v6696 = vmax.f32 %v6108, %v6304
  %v6697 = vmax.f32 %v6109, %v6305
  %v6698 = vmax.f32 %v6110, %v6306
  %v6699 = vmax.f32 %v6111, %v6307
  %v6700 = vmax.f32 %v6112, %v6308
  %v6701 = vmax.f32 %v6113, %v6309
  %v6702 = vmax.f32 %v6114, %v6310
  %v6703 = vmax.f32 %v6115, %v6311
  %v6704 = vmax.f32 %v6116, %v6312
  %v6705 = vmax.f32 %v6117, %v6313
  %v6706 = vmax.f32 %v6118, %v6314
  %v6707 = vmax.f32 %v6119, %v6315
  %v6708 = vmax.f32 %v6120, %v6316
  %v6709 = vmax.f32 %v6121, %v6317
  %v6710 = vmax.f32 %v6122, %v6318
  %v6711 = vmax.f32 %v6123, %v6319
  %v6712 = vmax.f32 %v6124, %v6320
  %v6713 = vmax.f32 %v6125, %v6321
  %v6714 = vmax.f32 %v6126, %v6322
  %v6715 = vmax.f32 %v6127, %v6323
  %v6716 = vmax.f32 %v6128, %v6324
  %v6717 = vmax.f32 %v6129, %v6325
  %v6718 = vmax.f32 %v6130, %v6326
  %v6719 = vmax.f32 %v6131, %v6327
  %v6720 = vmax.f32 %v6328, %v6524
  %v6721 = vmax.f32 %v6329, %v6525
  %v6722 = vmax.f32 %v6330, %v6526
  %v6723 = vmax.f32 %v6331, %v6527
  %v6724 = vmax.f32 %v6332, %v6528
  %v6725 = vmax.f32 %v6333, %v6529
  %v6726 = vmax.f32 %v6334, %v6530
  %v6727 = vmax.f32 %v6335, %v6531
  %v6728 = vmax.f32 %v6336, %v6532
  %v6729 = vmax.f32 %v6337, %v6533
  %v6730 = vmax.f32 %v6338, %v6534
  %v6731 = vmax.f32 %v6339, %v6535
  %v6732 = vmax.f32 %v6340, %v6536
  %v6733 = vmax.f32 %v6341, %v6537
  %v6734 = vmax.f32 %v6342, %v6538
  %v6735 = vmax.f32 %v6343, %v6539
  %v6736 = vmax.f32 %v6344, %v6540
  %v6737 = vmax.f32 %v6345, %v6541
  %v6738 = vmax.f32 %v6346, %v6542
  %v6739 = vmax.f32 %v6347, %v6543
  %v6740 = vmax.f32 %v6348, %v6544
  %v6741 = vmax.f32 %v6349, %v6545
  %v6742 = vmax.f32 %v6350, %v6546
  %v6743 = vmax.f32 %v6351, %v6547
  %v6744 = vmax.f32 %v6352, %v6548
  %v6745 = vmax.f32 %v6353, %v6549
  %v6746 = vmax.f32 %v6354, %v6550
  %v6747 = vmax.f32 %v6355, %v6551
  %v6748 = vmax.f32 %v6356, %v6552
  %v6749 = vmax.f32 %v6357, %v6553
  %v6750 = vmax.f32 %v6358, %v6554
  %v6751 = vmax.f32 %v6359, %v6555
  %v6752 = vmax.f32 %v6360, %v6556
  %v6753 = vmax.f32 %v6361, %v6557
  %v6754 = vmax.f32 %v6362, %v6558
  %v6755 = vmax.f32 %v6363, %v6559
  %v6756 = vmax.f32 %v6364, %v6560
  %v6757 = vmax.f32 %v6365, %v6561
  %v6758 = vmax.f32 %v6366, %v6562
  %v6759 = vmax.f32 %v6367, %v6563
  %v6760 = vmax.f32 %v6368, %v6564
  %v6761 = vmax.f32 %v6369, %v6565
  %v6762 = vmax.f32 %v6370, %v6566
  %v6763 = vmax.f32 %v6371, %v6567
  %v6764 = vmax.f32 %v6372, %v6568
  %v6765 = vmax.f32 %v6373, %v6569
  %v6766 = vmax.f32 %v6374, %v6570
  %v6767 = vmax.f32 %v6375, %v6571
  %v6768 = vmax.f32 %v6376, %v6572
  %v6769 = vmax.f32 %v6377, %v6573
  %v6770 = vmax.f32 %v6378, %v6574
  %v6771 = vmax.f32 %v6379, %v6575
  %v6772 = vmax.f32 %v6380, %v6576
  %v6773 = vmax.f32 %v6381, %v6577
  %v6774 = vmax.f32 %v6382, %v6578
  %v6775 = vmax.f32 %v6383, %v6579
  %v6776 = vmax.f32 %v6384, %v6580
  %v6777 = vmax.f32 %v6385, %v6581
  %v6778 = vmax.f32 %v6386, %v6582
  %v6779 = vmax.f32 %v6387, %v6583
  %v6780 = vmax.f32 %v6388, %v6584
  %v6781 = vmax.f32 %v6389, %v6585
  %v6782 = vmax.f32 %v6390, %v6586
  %v6783 = vmax.f32 %v6391, %v6587
  %v6784 = vmax.f32 %v6392, %v6588
  %v6785 = vmax.f32 %v6393, %v6589
  %v6786 = vmax.f32 %v6394, %v6590
  %v6787 = vmax.f32 %v6395, %v6591
  %v6788 = vmax.f32 %v6396, %v6592
  %v6789 = vmax.f32 %v6397, %v6593
  %v6790 = vmax.f32 %v6398, %v6594
  %v6791 = vmax.f32 %v6399, %v6595
  %v6792 = vmax.f32 %v6400, %v6596
  %v6793 = vmax.f32 %v6401, %v6597
  %v6794 = vmax.f32 %v6402, %v6598
  %v6795 = vmax.f32 %v6403, %v6599
  %v6796 = vmax.f32 %v6404, %v6600
  %v6797 = vmax.f32 %v6405, %v6601
  %v6798 = vmax.f32 %v6406, %v6602
  %v6799 = vmax.f32 %v6407, %v6603
  %v6800 = vmax.f32 %v6408, %v6604
  %v6801 = vmax.f32 %v6409, %v6605
  %v6802 = vmax.f32 %v6410, %v6606
  %v6803 = vmax.f32 %v6411, %v6607
  %v6804 = vmax.f32 %v6412, %v6608
  %v6805 = vmax.f32 %v6413, %v6609
  %v6806 = vmax.f32 %v6414, %v6610
  %v6807 = vmax.f32 %v6415, %v6611
  %v6808 = vmax.f32 %v6416, %v6612
  %v6809 = vmax.f32 %v6417, %v6613
  %v6810 = vmax.f32 %v6418, %v6614
  %v6811 = vmax.f32 %v6419, %v6615
  %v6812 = vmax.f32 %v6420, %v6616
  %v6813 = vmax.f32 %v6421, %v6617
  %v6814 = vmax.f32 %v6422, %v6618
  %v6815 = vmax.f32 %v6423, %v6619
  %v6816 = vmax.f32 %v6424, %v6620
  %v6817 = vmax.f32 %v6425, %v6621
  %v6818 = vmax.f32 %v6426, %v6622
  %v6819 = vmax.f32 %v6427, %v6623
  %v6820 = vmax.f32 %v6428, %v6624
  %v6821 = vmax.f32 %v6429, %v6625
  %v6822 = vmax.f32 %v6430, %v6626
  %v6823 = vmax.f32 %v6431, %v6627
  %v6824 = vmax.f32 %v6432, %v6628
  %v6825 = vmax.f32 %v6433, %v6629
  %v6826 = vmax.f32 %v6434, %v6630
  %v6827 = vmax.f32 %v6435, %v6631
  %v6828 = vmax.f32 %v6436, %v6632
  %v6829 = vmax.f32 %v6437, %v6633
  %v6830 = vmax.f32 %v6438, %v6634
  %v6831 = vmax.f32 %v6439, %v6635
  %v6832 = vmax.f32 %v6440, %v6636
  %v6833 = vmax.f32 %v6441, %v6637
  %v6834 = vmax.f32 %v6442, %v6638
  %v6835 = vmax.f32 %v6443, %v6639
  %v6836 = vmax.f32 %v6444, %v6640
  %v6837 = vmax.f32 %v6445, %v6641
  %v6838 = vmax.f32 %v6446, %v6642
  %v6839 = vmax.f32 %v6447, %v6643
  %v6840 = vmax.f32 %v6448, %v6644
  %v6841 = vmax.f32 %v6449, %v6645
  %v6842 = vmax.f32 %v6450, %v6646
  %v6843 = vmax.f32 %v6451, %v6647
  %v6844 = vmax.f32 %v6452, %v6648
  %v6845 = vmax.f32 %v6453, %v6649
  %v6846 = vmax.f32 %v6454, %v6650
  %v6847 = vmax.f32 %v6455, %v6651
  %v6848 = vmax.f32 %v6456, %v6652
  %v6849 = vmax.f32 %v6457, %v6653
  %v6850 = vmax.f32 %v6458, %v6654
  %v6851 = vmax.f32 %v6459, %v6655
  %v6852 = vmax.f32 %v6460, %v6656
  %v6853 = vmax.f32 %v6461, %v6657
  %v6854 = vmax.f32 %v6462, %v6658
  %v6855 = vmax.f32 %v6463, %v6659
  %v6856 = vmax.f32 %v6464, %v6660
  %v6857 = vmax.f32 %v6465, %v6661
  %v6858 = vmax.f32 %v6466, %v6662
  %v6859 = vmax.f32 %v6467, %v6663
  %v6860 = vmax.f32 %v6468, %v6664
  %v6861 = vmax.f32 %v6469, %v6665
  %v6862 = vmax.f32 %v6470, %v6666
  %v6863 = vmax.f32 %v6471, %v6667
  %v6864 = vmax.f32 %v6472, %v6668
  %v6865 = vmax.f32 %v6473, %v6669
  %v6866 = vmax.f32 %v6474, %v6670
  %v6867 = vmax.f32 %v6475, %v6671
  %v6868 = vmax.f32 %v6476, %v6672
  %v6869 = vmax.f32 %v6477, %v6673
  %v6870 = vmax.f32 %v6478, %v6674
  %v6871 = vmax.f32 %v6479, %v6675
  %v6872 = vmax.f32 %v6480, %v6676
  %v6873 = vmax.f32 %v6481, %v6677
  %v6874 = vmax.f32 %v6482, %v6678
  %v6875 = vmax.f32 %v6483, %v6679
  %v6876 = vmax.f32 %v6484, %v6680
  %v6877 = vmax.f32 %v6485, %v6681
  %v6878 = vmax.f32 %v6486, %v6682
  %v6879 = vmax.f32 %v6487, %v6683
  %v6880 = vmax.f32 %v6488, %v6684
  %v6881 = vmax.f32 %v6489, %v6685
  %v6882 = vmax.f32 %v6490, %v6686
  %v6883 = vmax.f32 %v6491, %v6687
  %v6884 = vmax.f32 %v6492, %v6688
  %v6885 = vmax.f32 %v6493, %v6689
  %v6886 = vmax.f32 %v6494, %v6690
  %v6887 = vmax.f32 %v6495, %v6691
  %v6888 = vmax.f32 %v6496, %v6692
  %v6889 = vmax.f32 %v6497, %v6693
  %v6890 = vmax.f32 %v6498, %v6694
  %v6891 = vmax.f32 %v6499, %v6695
  %v6892 = vmax.f32 %v6500, %v6696
  %v6893 = vmax.f32 %v6501, %v6697
  %v6894 = vmax.f32 %v6502, %v6698
  %v6895 = vmax.f32 %v6503, %v6699
  %v6896 = vmax.f32 %v6504, %v6700
  %v6897 = vmax.f32 %v6505, %v6701
  %v6898 = vmax.f32 %v6506, %v6702
  %v6899 = vmax.f32 %v6507, %v6703
  %v6900 = vmax.f32 %v6508, %v6704
  %v6901 = vmax.f32 %v6509, %v6705
  %v6902 = vmax.f32 %v6510, %v6706
  %v6903 = vmax.f32 %v6511, %v6707
  %v6904 = vmax.f32 %v6512, %v6708
  %v6905 = vmax.f32 %v6513, %v6709
  %v6906 = vmax.f32 %v6514, %v6710
  %v6907 = vmax.f32 %v6515, %v6711
  %v6908 = vmax.f32 %v6516, %v6712
  %v6909 = vmax.f32 %v6517, %v6713
  %v6910 = vmax.f32 %v6518, %v6714
  %v6911 = vmax.f32 %v6519, %v6715
  %v6912 = vmax.f32 %v6520, %v6716
  %v6913 = vmax.f32 %v6521, %v6717
  %v6914 = vmax.f32 %v6522, %v6718
  %v6915 = vmax.f32 %v6523, %v6719
  %v6916 = vld [vmem:[%s3] sm:$0x1]
  %v6917 = vld [vmem:[%s4] sm:$0x1]
  %vm6918 = vcmask 48128
  %v6919 = vsel %vm6918, %v6720, 0.0
  %v6920 = vsel %vm6918, %v6721, 0.0
  %v6921 = vadd.f32 %v6919, %v6920
  %v6922 = vsel %vm6918, %v6722, 0.0
  %v6923 = vadd.f32 %v6921, %v6922
  %v6924 = vsel %vm6918, %v6723, 0.0
  %v6925 = vadd.f32 %v6923, %v6924
  %v6926 = vsel %vm6918, %v6724, 0.0
  %v6927 = vadd.f32 %v6925, %v6926
  %v6928 = vsel %vm6918, %v6725, 0.0
  %v6929 = vadd.f32 %v6927, %v6928
  %v6930 = vsel %vm6918, %v6726, 0.0
  %v6931 = vadd.f32 %v6929, %v6930
  %v6932 = vsel %vm6918, %v6727, 0.0
  %v6933 = vadd.f32 %v6931, %v6932
  %v6934 = vsel %vm6918, %v6728, 0.0
  %v6935 = vadd.f32 %v6933, %v6934
  %v6936 = vsel %vm6918, %v6729, 0.0
  %v6937 = vadd.f32 %v6935, %v6936
  %v6938 = vsel %vm6918, %v6730, 0.0
  %v6939 = vadd.f32 %v6937, %v6938
  %v6940 = vsel %vm6918, %v6731, 0.0
  %v6941 = vadd.f32 %v6939, %v6940
  %v6942 = vsel %vm6918, %v6732, 0.0
  %v6943 = vadd.f32 %v6941, %v6942
  %v6944 = vsel %vm6918, %v6733, 0.0
  %v6945 = vadd.f32 %v6943, %v6944
  %v6946 = vsel %vm6918, %v6734, 0.0
  %v6947 = vadd.f32 %v6945, %v6946
  %v6948 = vsel %vm6918, %v6735, 0.0
  %v6949 = vadd.f32 %v6947, %v6948
  %v6950 = vsel %vm6918, %v6736, 0.0
  %v6951 = vadd.f32 %v6949, %v6950
  %v6952 = vsel %vm6918, %v6737, 0.0
  %v6953 = vadd.f32 %v6951, %v6952
  %v6954 = vsel %vm6918, %v6738, 0.0
  %v6955 = vadd.f32 %v6953, %v6954
  %v6956 = vsel %vm6918, %v6739, 0.0
  %v6957 = vadd.f32 %v6955, %v6956
  %v6958 = vsel %vm6918, %v6740, 0.0
  %v6959 = vadd.f32 %v6957, %v6958
  %v6960 = vsel %vm6918, %v6741, 0.0
  %v6961 = vadd.f32 %v6959, %v6960
  %v6962 = vsel %vm6918, %v6742, 0.0
  %v6963 = vadd.f32 %v6961, %v6962
  %v6964 = vsel %vm6918, %v6743, 0.0
  %v6965 = vadd.f32 %v6963, %v6964
  %v6966 = vsel %vm6918, %v6744, 0.0
  %v6967 = vadd.f32 %v6965, %v6966
  %v6968 = vsel %vm6918, %v6745, 0.0
  %v6969 = vadd.f32 %v6967, %v6968
  %v6970 = vsel %vm6918, %v6746, 0.0
  %v6971 = vadd.f32 %v6969, %v6970
  %v6972 = vsel %vm6918, %v6747, 0.0
  %v6973 = vadd.f32 %v6971, %v6972
  %v6974 = vsel %vm6918, %v6748, 0.0
  %v6975 = vadd.f32 %v6973, %v6974
  %v6976 = vsel %vm6918, %v6749, 0.0
  %v6977 = vadd.f32 %v6975, %v6976
  %v6978 = vsel %vm6918, %v6750, 0.0
  %v6979 = vadd.f32 %v6977, %v6978
  %v6980 = vsel %vm6918, %v6751, 0.0
  %v6981 = vadd.f32 %v6979, %v6980
  %v6982 = vsel %vm6918, %v6752, 0.0
  %v6983 = vadd.f32 %v6981, %v6982
  %v6984 = vsel %vm6918, %v6753, 0.0
  %v6985 = vadd.f32 %v6983, %v6984
  %v6986 = vsel %vm6918, %v6754, 0.0
  %v6987 = vadd.f32 %v6985, %v6986
  %v6988 = vsel %vm6918, %v6755, 0.0
  %v6989 = vadd.f32 %v6987, %v6988
  %v6990 = vsel %vm6918, %v6756, 0.0
  %v6991 = vadd.f32 %v6989, %v6990
  %v6992 = vsel %vm6918, %v6757, 0.0
  %v6993 = vadd.f32 %v6991, %v6992
  %v6994 = vsel %vm6918, %v6758, 0.0
  %v6995 = vadd.f32 %v6993, %v6994
  %v6996 = vsel %vm6918, %v6759, 0.0
  %v6997 = vadd.f32 %v6995, %v6996
  %v6998 = vsel %vm6918, %v6760, 0.0
  %v6999 = vadd.f32 %v6997, %v6998
  %v7000 = vsel %vm6918, %v6761, 0.0
  %v7001 = vadd.f32 %v6999, %v7000
  %v7002 = vsel %vm6918, %v6762, 0.0
  %v7003 = vadd.f32 %v7001, %v7002
  %v7004 = vsel %vm6918, %v6763, 0.0
  %v7005 = vadd.f32 %v7003, %v7004
  %v7006 = vsel %vm6918, %v6764, 0.0
  %v7007 = vadd.f32 %v7005, %v7006
  %v7008 = vsel %vm6918, %v6765, 0.0
  %v7009 = vadd.f32 %v7007, %v7008
  %v7010 = vsel %vm6918, %v6766, 0.0
  %v7011 = vadd.f32 %v7009, %v7010
  %v7012 = vsel %vm6918, %v6767, 0.0
  %v7013 = vadd.f32 %v7011, %v7012
  %v7014 = vsel %vm6918, %v6768, 0.0
  %v7015 = vadd.f32 %v7013, %v7014
  %v7016 = vsel %vm6918, %v6769, 0.0
  %v7017 = vadd.f32 %v7015, %v7016
  %v7018 = vsel %vm6918, %v6770, 0.0
  %v7019 = vadd.f32 %v7017, %v7018
  %v7020 = vsel %vm6918, %v6771, 0.0
  %v7021 = vadd.f32 %v7019, %v7020
  %v7022 = vsel %vm6918, %v6772, 0.0
  %v7023 = vadd.f32 %v7021, %v7022
  %v7024 = vsel %vm6918, %v6773, 0.0
  %v7025 = vadd.f32 %v7023, %v7024
  %v7026 = vsel %vm6918, %v6774, 0.0
  %v7027 = vadd.f32 %v7025, %v7026
  %v7028 = vsel %vm6918, %v6775, 0.0
  %v7029 = vadd.f32 %v7027, %v7028
  %v7030 = vsel %vm6918, %v6776, 0.0
  %v7031 = vadd.f32 %v7029, %v7030
  %v7032 = vsel %vm6918, %v6777, 0.0
  %v7033 = vadd.f32 %v7031, %v7032
  %v7034 = vsel %vm6918, %v6778, 0.0
  %v7035 = vadd.f32 %v7033, %v7034
  %v7036 = vsel %vm6918, %v6779, 0.0
  %v7037 = vadd.f32 %v7035, %v7036
  %v7038 = vsel %vm6918, %v6780, 0.0
  %v7039 = vadd.f32 %v7037, %v7038
  %v7040 = vsel %vm6918, %v6781, 0.0
  %v7041 = vadd.f32 %v7039, %v7040
  %v7042 = vsel %vm6918, %v6782, 0.0
  %v7043 = vadd.f32 %v7041, %v7042
  %v7044 = vsel %vm6918, %v6783, 0.0
  %v7045 = vadd.f32 %v7043, %v7044
  %v7046 = vsel %vm6918, %v6784, 0.0
  %v7047 = vadd.f32 %v7045, %v7046
  %v7048 = vsel %vm6918, %v6785, 0.0
  %v7049 = vadd.f32 %v7047, %v7048
  %v7050 = vsel %vm6918, %v6786, 0.0
  %v7051 = vadd.f32 %v7049, %v7050
  %v7052 = vsel %vm6918, %v6787, 0.0
  %v7053 = vadd.f32 %v7051, %v7052
  %v7054 = vsel %vm6918, %v6788, 0.0
  %v7055 = vadd.f32 %v7053, %v7054
  %v7056 = vsel %vm6918, %v6789, 0.0
  %v7057 = vadd.f32 %v7055, %v7056
  %v7058 = vsel %vm6918, %v6790, 0.0
  %v7059 = vadd.f32 %v7057, %v7058
  %v7060 = vsel %vm6918, %v6791, 0.0
  %v7061 = vadd.f32 %v7059, %v7060
  %v7062 = vsel %vm6918, %v6792, 0.0
  %v7063 = vadd.f32 %v7061, %v7062
  %v7064 = vsel %vm6918, %v6793, 0.0
  %v7065 = vadd.f32 %v7063, %v7064
  %v7066 = vsel %vm6918, %v6794, 0.0
  %v7067 = vadd.f32 %v7065, %v7066
  %v7068 = vsel %vm6918, %v6795, 0.0
  %v7069 = vadd.f32 %v7067, %v7068
  %v7070 = vsel %vm6918, %v6796, 0.0
  %v7071 = vadd.f32 %v7069, %v7070
  %v7072 = vsel %vm6918, %v6797, 0.0
  %v7073 = vadd.f32 %v7071, %v7072
  %v7074 = vsel %vm6918, %v6798, 0.0
  %v7075 = vadd.f32 %v7073, %v7074
  %v7076 = vsel %vm6918, %v6799, 0.0
  %v7077 = vadd.f32 %v7075, %v7076
  %v7078 = vsel %vm6918, %v6800, 0.0
  %v7079 = vadd.f32 %v7077, %v7078
  %v7080 = vsel %vm6918, %v6801, 0.0
  %v7081 = vadd.f32 %v7079, %v7080
  %v7082 = vsel %vm6918, %v6802, 0.0
  %v7083 = vadd.f32 %v7081, %v7082
  %v7084 = vsel %vm6918, %v6803, 0.0
  %v7085 = vadd.f32 %v7083, %v7084
  %v7086 = vsel %vm6918, %v6804, 0.0
  %v7087 = vadd.f32 %v7085, %v7086
  %v7088 = vsel %vm6918, %v6805, 0.0
  %v7089 = vadd.f32 %v7087, %v7088
  %v7090 = vsel %vm6918, %v6806, 0.0
  %v7091 = vadd.f32 %v7089, %v7090
  %v7092 = vsel %vm6918, %v6807, 0.0
  %v7093 = vadd.f32 %v7091, %v7092
  %v7094 = vsel %vm6918, %v6808, 0.0
  %v7095 = vadd.f32 %v7093, %v7094
  %v7096 = vsel %vm6918, %v6809, 0.0
  %v7097 = vadd.f32 %v7095, %v7096
  %v7098 = vsel %vm6918, %v6810, 0.0
  %v7099 = vadd.f32 %v7097, %v7098
  %v7100 = vsel %vm6918, %v6811, 0.0
  %v7101 = vadd.f32 %v7099, %v7100
  %v7102 = vsel %vm6918, %v6812, 0.0
  %v7103 = vadd.f32 %v7101, %v7102
  %v7104 = vsel %vm6918, %v6813, 0.0
  %v7105 = vadd.f32 %v7103, %v7104
  %v7106 = vsel %vm6918, %v6814, 0.0
  %v7107 = vadd.f32 %v7105, %v7106
  %v7108 = vsel %vm6918, %v6815, 0.0
  %v7109 = vadd.f32 %v7107, %v7108
  %v7110 = vsel %vm6918, %v6816, 0.0
  %v7111 = vadd.f32 %v7109, %v7110
  %v7112 = vsel %vm6918, %v6817, 0.0
  %v7113 = vadd.f32 %v7111, %v7112
  %v7114 = vsel %vm6918, %v6818, 0.0
  %v7115 = vadd.f32 %v7113, %v7114
  %v7116 = vsel %vm6918, %v6819, 0.0
  %v7117 = vadd.f32 %v7115, %v7116
  %v7118 = vsel %vm6918, %v6820, 0.0
  %v7119 = vadd.f32 %v7117, %v7118
  %v7120 = vsel %vm6918, %v6821, 0.0
  %v7121 = vadd.f32 %v7119, %v7120
  %v7122 = vsel %vm6918, %v6822, 0.0
  %v7123 = vadd.f32 %v7121, %v7122
  %v7124 = vsel %vm6918, %v6823, 0.0
  %v7125 = vadd.f32 %v7123, %v7124
  %v7126 = vsel %vm6918, %v6824, 0.0
  %v7127 = vadd.f32 %v7125, %v7126
  %v7128 = vsel %vm6918, %v6825, 0.0
  %v7129 = vadd.f32 %v7127, %v7128
  %v7130 = vsel %vm6918, %v6826, 0.0
  %v7131 = vadd.f32 %v7129, %v7130
  %v7132 = vsel %vm6918, %v6827, 0.0
  %v7133 = vadd.f32 %v7131, %v7132
  %v7134 = vsel %vm6918, %v6828, 0.0
  %v7135 = vadd.f32 %v7133, %v7134
  %v7136 = vsel %vm6918, %v6829, 0.0
  %v7137 = vadd.f32 %v7135, %v7136
  %v7138 = vsel %vm6918, %v6830, 0.0
  %v7139 = vadd.f32 %v7137, %v7138
  %v7140 = vsel %vm6918, %v6831, 0.0
  %v7141 = vadd.f32 %v7139, %v7140
  %v7142 = vsel %vm6918, %v6832, 0.0
  %v7143 = vadd.f32 %v7141, %v7142
  %v7144 = vsel %vm6918, %v6833, 0.0
  %v7145 = vadd.f32 %v7143, %v7144
  %v7146 = vsel %vm6918, %v6834, 0.0
  %v7147 = vadd.f32 %v7145, %v7146
  %v7148 = vsel %vm6918, %v6835, 0.0
  %v7149 = vadd.f32 %v7147, %v7148
  %v7150 = vsel %vm6918, %v6836, 0.0
  %v7151 = vadd.f32 %v7149, %v7150
  %v7152 = vsel %vm6918, %v6837, 0.0
  %v7153 = vadd.f32 %v7151, %v7152
  %v7154 = vsel %vm6918, %v6838, 0.0
  %v7155 = vadd.f32 %v7153, %v7154
  %v7156 = vsel %vm6918, %v6839, 0.0
  %v7157 = vadd.f32 %v7155, %v7156
  %v7158 = vsel %vm6918, %v6840, 0.0
  %v7159 = vadd.f32 %v7157, %v7158
  %v7160 = vsel %vm6918, %v6841, 0.0
  %v7161 = vadd.f32 %v7159, %v7160
  %v7162 = vsel %vm6918, %v6842, 0.0
  %v7163 = vadd.f32 %v7161, %v7162
  %v7164 = vsel %vm6918, %v6843, 0.0
  %v7165 = vadd.f32 %v7163, %v7164
  %v7166 = vsel %vm6918, %v6844, 0.0
  %v7167 = vadd.f32 %v7165, %v7166
  %v7168 = vsel %vm6918, %v6845, 0.0
  %v7169 = vadd.f32 %v7167, %v7168
  %v7170 = vsel %vm6918, %v6846, 0.0
  %v7171 = vadd.f32 %v7169, %v7170
  %v7172 = vsel %vm6918, %v6847, 0.0
  %v7173 = vadd.f32 %v7171, %v7172
  %v7174 = vsel %vm6918, %v6848, 0.0
  %v7175 = vadd.f32 %v7173, %v7174
  %v7176 = vsel %vm6918, %v6849, 0.0
  %v7177 = vadd.f32 %v7175, %v7176
  %v7178 = vsel %vm6918, %v6850, 0.0
  %v7179 = vadd.f32 %v7177, %v7178
  %v7180 = vsel %vm6918, %v6851, 0.0
  %v7181 = vadd.f32 %v7179, %v7180
  %v7182 = vsel %vm6918, %v6852, 0.0
  %v7183 = vadd.f32 %v7181, %v7182
  %v7184 = vsel %vm6918, %v6853, 0.0
  %v7185 = vadd.f32 %v7183, %v7184
  %v7186 = vsel %vm6918, %v6854, 0.0
  %v7187 = vadd.f32 %v7185, %v7186
  %v7188 = vsel %vm6918, %v6855, 0.0
  %v7189 = vadd.f32 %v7187, %v7188
  %v7190 = vsel %vm6918, %v6856, 0.0
  %v7191 = vadd.f32 %v7189, %v7190
  %v7192 = vsel %vm6918, %v6857, 0.0
  %v7193 = vadd.f32 %v7191, %v7192
  %v7194 = vsel %vm6918, %v6858, 0.0
  %v7195 = vadd.f32 %v7193, %v7194
  %v7196 = vsel %vm6918, %v6859, 0.0
  %v7197 = vadd.f32 %v7195, %v7196
  %v7198 = vsel %vm6918, %v6860, 0.0
  %v7199 = vadd.f32 %v7197, %v7198
  %v7200 = vsel %vm6918, %v6861, 0.0
  %v7201 = vadd.f32 %v7199, %v7200
  %v7202 = vsel %vm6918, %v6862, 0.0
  %v7203 = vadd.f32 %v7201, %v7202
  %v7204 = vsel %vm6918, %v6863, 0.0
  %v7205 = vadd.f32 %v7203, %v7204
  %v7206 = vsel %vm6918, %v6864, 0.0
  %v7207 = vadd.f32 %v7205, %v7206
  %v7208 = vsel %vm6918, %v6865, 0.0
  %v7209 = vadd.f32 %v7207, %v7208
  %v7210 = vsel %vm6918, %v6866, 0.0
  %v7211 = vadd.f32 %v7209, %v7210
  %v7212 = vsel %vm6918, %v6867, 0.0
  %v7213 = vadd.f32 %v7211, %v7212
  %v7214 = vsel %vm6918, %v6868, 0.0
  %v7215 = vadd.f32 %v7213, %v7214
  %v7216 = vsel %vm6918, %v6869, 0.0
  %v7217 = vadd.f32 %v7215, %v7216
  %v7218 = vsel %vm6918, %v6870, 0.0
  %v7219 = vadd.f32 %v7217, %v7218
  %v7220 = vsel %vm6918, %v6871, 0.0
  %v7221 = vadd.f32 %v7219, %v7220
  %v7222 = vsel %vm6918, %v6872, 0.0
  %v7223 = vadd.f32 %v7221, %v7222
  %v7224 = vsel %vm6918, %v6873, 0.0
  %v7225 = vadd.f32 %v7223, %v7224
  %v7226 = vsel %vm6918, %v6874, 0.0
  %v7227 = vadd.f32 %v7225, %v7226
  %v7228 = vsel %vm6918, %v6875, 0.0
  %v7229 = vadd.f32 %v7227, %v7228
  %v7230 = vsel %vm6918, %v6876, 0.0
  %v7231 = vadd.f32 %v7229, %v7230
  %v7232 = vsel %vm6918, %v6877, 0.0
  %v7233 = vadd.f32 %v7231, %v7232
  %v7234 = vsel %vm6918, %v6878, 0.0
  %v7235 = vadd.f32 %v7233, %v7234
  %v7236 = vsel %vm6918, %v6879, 0.0
  %v7237 = vadd.f32 %v7235, %v7236
  %v7238 = vsel %vm6918, %v6880, 0.0
  %v7239 = vadd.f32 %v7237, %v7238
  %v7240 = vsel %vm6918, %v6881, 0.0
  %v7241 = vadd.f32 %v7239, %v7240
  %v7242 = vsel %vm6918, %v6882, 0.0
  %v7243 = vadd.f32 %v7241, %v7242
  %v7244 = vsel %vm6918, %v6883, 0.0
  %v7245 = vadd.f32 %v7243, %v7244
  %v7246 = vsel %vm6918, %v6884, 0.0
  %v7247 = vadd.f32 %v7245, %v7246
  %v7248 = vsel %vm6918, %v6885, 0.0
  %v7249 = vadd.f32 %v7247, %v7248
  %v7250 = vsel %vm6918, %v6886, 0.0
  %v7251 = vadd.f32 %v7249, %v7250
  %v7252 = vsel %vm6918, %v6887, 0.0
  %v7253 = vadd.f32 %v7251, %v7252
  %v7254 = vsel %vm6918, %v6888, 0.0
  %v7255 = vadd.f32 %v7253, %v7254
  %v7256 = vsel %vm6918, %v6889, 0.0
  %v7257 = vadd.f32 %v7255, %v7256
  %v7258 = vsel %vm6918, %v6890, 0.0
  %v7259 = vadd.f32 %v7257, %v7258
  %v7260 = vsel %vm6918, %v6891, 0.0
  %v7261 = vadd.f32 %v7259, %v7260
  %v7262 = vsel %vm6918, %v6892, 0.0
  %v7263 = vadd.f32 %v7261, %v7262
  %v7264 = vsel %vm6918, %v6893, 0.0
  %v7265 = vadd.f32 %v7263, %v7264
  %v7266 = vsel %vm6918, %v6894, 0.0
  %v7267 = vadd.f32 %v7265, %v7266
  %v7268 = vsel %vm6918, %v6895, 0.0
  %v7269 = vadd.f32 %v7267, %v7268
  %v7270 = vsel %vm6918, %v6896, 0.0
  %v7271 = vadd.f32 %v7269, %v7270
  %v7272 = vsel %vm6918, %v6897, 0.0
  %v7273 = vadd.f32 %v7271, %v7272
  %v7274 = vsel %vm6918, %v6898, 0.0
  %v7275 = vadd.f32 %v7273, %v7274
  %v7276 = vsel %vm6918, %v6899, 0.0
  %v7277 = vadd.f32 %v7275, %v7276
  %v7278 = vsel %vm6918, %v6900, 0.0
  %v7279 = vadd.f32 %v7277, %v7278
  %v7280 = vsel %vm6918, %v6901, 0.0
  %v7281 = vadd.f32 %v7279, %v7280
  %v7282 = vsel %vm6918, %v6902, 0.0
  %v7283 = vadd.f32 %v7281, %v7282
  %v7284 = vsel %vm6918, %v6903, 0.0
  %v7285 = vadd.f32 %v7283, %v7284
  %v7286 = vsel %vm6918, %v6904, 0.0
  %v7287 = vadd.f32 %v7285, %v7286
  %v7288 = vsel %vm6918, %v6905, 0.0
  %v7289 = vadd.f32 %v7287, %v7288
  %v7290 = vsel %vm6918, %v6906, 0.0
  %v7291 = vadd.f32 %v7289, %v7290
  %v7292 = vsel %vm6918, %v6907, 0.0
  %v7293 = vadd.f32 %v7291, %v7292
  %v7294 = vsel %vm6918, %v6908, 0.0
  %v7295 = vadd.f32 %v7293, %v7294
  %v7296 = vsel %vm6918, %v6909, 0.0
  %v7297 = vadd.f32 %v7295, %v7296
  %v7298 = vsel %vm6918, %v6910, 0.0
  %v7299 = vadd.f32 %v7297, %v7298
  %v7300 = vsel %vm6918, %v6911, 0.0
  %v7301 = vadd.f32 %v7299, %v7300
  %v7302 = vsel %vm6918, %v6912, 0.0
  %v7303 = vadd.f32 %v7301, %v7302
  %v7304 = vsel %vm6918, %v6913, 0.0
  %v7305 = vadd.f32 %v7303, %v7304
  %v7306 = vsel %vm6918, %v6914, 0.0
  %v7307 = vadd.f32 %v7305, %v7306
  %v7308 = vsel %vm6918, %v6915, 0.0
  %v7309 = vadd.f32 %v7307, %v7308
  %v7310 = vrot.slane %v7309, 4
  %v7311 = vadd.f32 %v7309, %v7310
  %v7312 = vrot.slane %v7311, 2
  %v7313 = vadd.f32 %v7311, %v7312
  %v7314 = vrot.slane %v7313, 1
  %v7315 = vadd.f32 %v7313, %v7314
  %v7316 = vrcp.pop 1568.0
  %v7317 = vmul.f32 1568.0, %v7316
  %v7318 = vsub.f32 1.0, %v7317
  %v7319 = vmul.f32 %v7316, %v7318
  %v7320 = vadd.f32 %v7316, %v7319
  %vm7321 = vweird.f32 %v7316
  %v7322 = vsel %vm7321, %v7316, %v7320
  %v7323 = vmul.f32 %v7315, %v7322
  %v7324 = vsub.f32 %v6720, %v7323
  %v7325 = vsub.f32 %v6721, %v7323
  %v7326 = vsub.f32 %v6722, %v7323
  %v7327 = vsub.f32 %v6723, %v7323
  %v7328 = vsub.f32 %v6724, %v7323
  %v7329 = vsub.f32 %v6725, %v7323
  %v7330 = vsub.f32 %v6726, %v7323
  %v7331 = vsub.f32 %v6727, %v7323
  %v7332 = vsub.f32 %v6728, %v7323
  %v7333 = vsub.f32 %v6729, %v7323
  %v7334 = vsub.f32 %v6730, %v7323
  %v7335 = vsub.f32 %v6731, %v7323
  %v7336 = vsub.f32 %v6732, %v7323
  %v7337 = vsub.f32 %v6733, %v7323
  %v7338 = vsub.f32 %v6734, %v7323
  %v7339 = vsub.f32 %v6735, %v7323
  %v7340 = vsub.f32 %v6736, %v7323
  %v7341 = vsub.f32 %v6737, %v7323
  %v7342 = vsub.f32 %v6738, %v7323
  %v7343 = vsub.f32 %v6739, %v7323
  %v7344 = vsub.f32 %v6740, %v7323
  %v7345 = vsub.f32 %v6741, %v7323
  %v7346 = vsub.f32 %v6742, %v7323
  %v7347 = vsub.f32 %v6743, %v7323
  %v7348 = vsub.f32 %v6744, %v7323
  %v7349 = vsub.f32 %v6745, %v7323
  %v7350 = vsub.f32 %v6746, %v7323
  %v7351 = vsub.f32 %v6747, %v7323
  %v7352 = vsub.f32 %v6748, %v7323
  %v7353 = vsub.f32 %v6749, %v7323
  %v7354 = vsub.f32 %v6750, %v7323
  %v7355 = vsub.f32 %v6751, %v7323
  %v7356 = vsub.f32 %v6752, %v7323
  %v7357 = vsub.f32 %v6753, %v7323
  %v7358 = vsub.f32 %v6754, %v7323
  %v7359 = vsub.f32 %v6755, %v7323
  %v7360 = vsub.f32 %v6756, %v7323
  %v7361 = vsub.f32 %v6757, %v7323
  %v7362 = vsub.f32 %v6758, %v7323
  %v7363 = vsub.f32 %v6759, %v7323
  %v7364 = vsub.f32 %v6760, %v7323
  %v7365 = vsub.f32 %v6761, %v7323
  %v7366 = vsub.f32 %v6762, %v7323
  %v7367 = vsub.f32 %v6763, %v7323
  %v7368 = vsub.f32 %v6764, %v7323
  %v7369 = vsub.f32 %v6765, %v7323
  %v7370 = vsub.f32 %v6766, %v7323
  %v7371 = vsub.f32 %v6767, %v7323
  %v7372 = vsub.f32 %v6768, %v7323
  %v7373 = vsub.f32 %v6769, %v7323
  %v7374 = vsub.f32 %v6770, %v7323
  %v7375 = vsub.f32 %v6771, %v7323
  %v7376 = vsub.f32 %v6772, %v7323
  %v7377 = vsub.f32 %v6773, %v7323
  %v7378 = vsub.f32 %v6774, %v7323
  %v7379 = vsub.f32 %v6775, %v7323
  %v7380 = vsub.f32 %v6776, %v7323
  %v7381 = vsub.f32 %v6777, %v7323
  %v7382 = vsub.f32 %v6778, %v7323
  %v7383 = vsub.f32 %v6779, %v7323
  %v7384 = vsub.f32 %v6780, %v7323
  %v7385 = vsub.f32 %v6781, %v7323
  %v7386 = vsub.f32 %v6782, %v7323
  %v7387 = vsub.f32 %v6783, %v7323
  %v7388 = vsub.f32 %v6784, %v7323
  %v7389 = vsub.f32 %v6785, %v7323
  %v7390 = vsub.f32 %v6786, %v7323
  %v7391 = vsub.f32 %v6787, %v7323
  %v7392 = vsub.f32 %v6788, %v7323
  %v7393 = vsub.f32 %v6789, %v7323
  %v7394 = vsub.f32 %v6790, %v7323
  %v7395 = vsub.f32 %v6791, %v7323
  %v7396 = vsub.f32 %v6792, %v7323
  %v7397 = vsub.f32 %v6793, %v7323
  %v7398 = vsub.f32 %v6794, %v7323
  %v7399 = vsub.f32 %v6795, %v7323
  %v7400 = vsub.f32 %v6796, %v7323
  %v7401 = vsub.f32 %v6797, %v7323
  %v7402 = vsub.f32 %v6798, %v7323
  %v7403 = vsub.f32 %v6799, %v7323
  %v7404 = vsub.f32 %v6800, %v7323
  %v7405 = vsub.f32 %v6801, %v7323
  %v7406 = vsub.f32 %v6802, %v7323
  %v7407 = vsub.f32 %v6803, %v7323
  %v7408 = vsub.f32 %v6804, %v7323
  %v7409 = vsub.f32 %v6805, %v7323
  %v7410 = vsub.f32 %v6806, %v7323
  %v7411 = vsub.f32 %v6807, %v7323
  %v7412 = vsub.f32 %v6808, %v7323
  %v7413 = vsub.f32 %v6809, %v7323
  %v7414 = vsub.f32 %v6810, %v7323
  %v7415 = vsub.f32 %v6811, %v7323
  %v7416 = vsub.f32 %v6812, %v7323
  %v7417 = vsub.f32 %v6813, %v7323
  %v7418 = vsub.f32 %v6814, %v7323
  %v7419 = vsub.f32 %v6815, %v7323
  %v7420 = vsub.f32 %v6816, %v7323
  %v7421 = vsub.f32 %v6817, %v7323
  %v7422 = vsub.f32 %v6818, %v7323
  %v7423 = vsub.f32 %v6819, %v7323
  %v7424 = vsub.f32 %v6820, %v7323
  %v7425 = vsub.f32 %v6821, %v7323
  %v7426 = vsub.f32 %v6822, %v7323
  %v7427 = vsub.f32 %v6823, %v7323
  %v7428 = vsub.f32 %v6824, %v7323
  %v7429 = vsub.f32 %v6825, %v7323
  %v7430 = vsub.f32 %v6826, %v7323
  %v7431 = vsub.f32 %v6827, %v7323
  %v7432 = vsub.f32 %v6828, %v7323
  %v7433 = vsub.f32 %v6829, %v7323
  %v7434 = vsub.f32 %v6830, %v7323
  %v7435 = vsub.f32 %v6831, %v7323
  %v7436 = vsub.f32 %v6832, %v7323
  %v7437 = vsub.f32 %v6833, %v7323
  %v7438 = vsub.f32 %v6834, %v7323
  %v7439 = vsub.f32 %v6835, %v7323
  %v7440 = vsub.f32 %v6836, %v7323
  %v7441 = vsub.f32 %v6837, %v7323
  %v7442 = vsub.f32 %v6838, %v7323
  %v7443 = vsub.f32 %v6839, %v7323
  %v7444 = vsub.f32 %v6840, %v7323
  %v7445 = vsub.f32 %v6841, %v7323
  %v7446 = vsub.f32 %v6842, %v7323
  %v7447 = vsub.f32 %v6843, %v7323
  %v7448 = vsub.f32 %v6844, %v7323
  %v7449 = vsub.f32 %v6845, %v7323
  %v7450 = vsub.f32 %v6846, %v7323
  %v7451 = vsub.f32 %v6847, %v7323
  %v7452 = vsub.f32 %v6848, %v7323
  %v7453 = vsub.f32 %v6849, %v7323
  %v7454 = vsub.f32 %v6850, %v7323
  %v7455 = vsub.f32 %v6851, %v7323
  %v7456 = vsub.f32 %v6852, %v7323
  %v7457 = vsub.f32 %v6853, %v7323
  %v7458 = vsub.f32 %v6854, %v7323
  %v7459 = vsub.f32 %v6855, %v7323
  %v7460 = vsub.f32 %v6856, %v7323
  %v7461 = vsub.f32 %v6857, %v7323
  %v7462 = vsub.f32 %v6858, %v7323
  %v7463 = vsub.f32 %v6859, %v7323
  %v7464 = vsub.f32 %v6860, %v7323
  %v7465 = vsub.f32 %v6861, %v7323
  %v7466 = vsub.f32 %v6862, %v7323
  %v7467 = vsub.f32 %v6863, %v7323
  %v7468 = vsub.f32 %v6864, %v7323
  %v7469 = vsub.f32 %v6865, %v7323
  %v7470 = vsub.f32 %v6866, %v7323
  %v7471 = vsub.f32 %v6867, %v7323
  %v7472 = vsub.f32 %v6868, %v7323
  %v7473 = vsub.f32 %v6869, %v7323
  %v7474 = vsub.f32 %v6870, %v7323
  %v7475 = vsub.f32 %v6871, %v7323
  %v7476 = vsub.f32 %v6872, %v7323
  %v7477 = vsub.f32 %v6873, %v7323
  %v7478 = vsub.f32 %v6874, %v7323
  %v7479 = vsub.f32 %v6875, %v7323
  %v7480 = vsub.f32 %v6876, %v7323
  %v7481 = vsub.f32 %v6877, %v7323
  %v7482 = vsub.f32 %v6878, %v7323
  %v7483 = vsub.f32 %v6879, %v7323
  %v7484 = vsub.f32 %v6880, %v7323
  %v7485 = vsub.f32 %v6881, %v7323
  %v7486 = vsub.f32 %v6882, %v7323
  %v7487 = vsub.f32 %v6883, %v7323
  %v7488 = vsub.f32 %v6884, %v7323
  %v7489 = vsub.f32 %v6885, %v7323
  %v7490 = vsub.f32 %v6886, %v7323
  %v7491 = vsub.f32 %v6887, %v7323
  %v7492 = vsub.f32 %v6888, %v7323
  %v7493 = vsub.f32 %v6889, %v7323
  %v7494 = vsub.f32 %v6890, %v7323
  %v7495 = vsub.f32 %v6891, %v7323
  %v7496 = vsub.f32 %v6892, %v7323
  %v7497 = vsub.f32 %v6893, %v7323
  %v7498 = vsub.f32 %v6894, %v7323
  %v7499 = vsub.f32 %v6895, %v7323
  %v7500 = vsub.f32 %v6896, %v7323
  %v7501 = vsub.f32 %v6897, %v7323
  %v7502 = vsub.f32 %v6898, %v7323
  %v7503 = vsub.f32 %v6899, %v7323
  %v7504 = vsub.f32 %v6900, %v7323
  %v7505 = vsub.f32 %v6901, %v7323
  %v7506 = vsub.f32 %v6902, %v7323
  %v7507 = vsub.f32 %v6903, %v7323
  %v7508 = vsub.f32 %v6904, %v7323
  %v7509 = vsub.f32 %v6905, %v7323
  %v7510 = vsub.f32 %v6906, %v7323
  %v7511 = vsub.f32 %v6907, %v7323
  %v7512 = vsub.f32 %v6908, %v7323
  %v7513 = vsub.f32 %v6909, %v7323
  %v7514 = vsub.f32 %v6910, %v7323
  %v7515 = vsub.f32 %v6911, %v7323
  %v7516 = vsub.f32 %v6912, %v7323
  %v7517 = vsub.f32 %v6913, %v7323
  %v7518 = vsub.f32 %v6914, %v7323
  %v7519 = vsub.f32 %v6915, %v7323
  %v7520 = vmul.f32 %v7324, %v7324
  %v7521 = vmul.f32 %v7325, %v7325
  %v7522 = vmul.f32 %v7326, %v7326
  %v7523 = vmul.f32 %v7327, %v7327
  %v7524 = vmul.f32 %v7328, %v7328
  %v7525 = vmul.f32 %v7329, %v7329
  %v7526 = vmul.f32 %v7330, %v7330
  %v7527 = vmul.f32 %v7331, %v7331
  %v7528 = vmul.f32 %v7332, %v7332
  %v7529 = vmul.f32 %v7333, %v7333
  %v7530 = vmul.f32 %v7334, %v7334
  %v7531 = vmul.f32 %v7335, %v7335
  %v7532 = vmul.f32 %v7336, %v7336
  %v7533 = vmul.f32 %v7337, %v7337
  %v7534 = vmul.f32 %v7338, %v7338
  %v7535 = vmul.f32 %v7339, %v7339
  %v7536 = vmul.f32 %v7340, %v7340
  %v7537 = vmul.f32 %v7341, %v7341
  %v7538 = vmul.f32 %v7342, %v7342
  %v7539 = vmul.f32 %v7343, %v7343
  %v7540 = vmul.f32 %v7344, %v7344
  %v7541 = vmul.f32 %v7345, %v7345
  %v7542 = vmul.f32 %v7346, %v7346
  %v7543 = vmul.f32 %v7347, %v7347
  %v7544 = vmul.f32 %v7348, %v7348
  %v7545 = vmul.f32 %v7349, %v7349
  %v7546 = vmul.f32 %v7350, %v7350
  %v7547 = vmul.f32 %v7351, %v7351
  %v7548 = vmul.f32 %v7352, %v7352
  %v7549 = vmul.f32 %v7353, %v7353
  %v7550 = vmul.f32 %v7354, %v7354
  %v7551 = vmul.f32 %v7355, %v7355
  %v7552 = vmul.f32 %v7356, %v7356
  %v7553 = vmul.f32 %v7357, %v7357
  %v7554 = vmul.f32 %v7358, %v7358
  %v7555 = vmul.f32 %v7359, %v7359
  %v7556 = vmul.f32 %v7360, %v7360
  %v7557 = vmul.f32 %v7361, %v7361
  %v7558 = vmul.f32 %v7362, %v7362
  %v7559 = vmul.f32 %v7363, %v7363
  %v7560 = vmul.f32 %v7364, %v7364
  %v7561 = vmul.f32 %v7365, %v7365
  %v7562 = vmul.f32 %v7366, %v7366
  %v7563 = vmul.f32 %v7367, %v7367
  %v7564 = vmul.f32 %v7368, %v7368
  %v7565 = vmul.f32 %v7369, %v7369
  %v7566 = vmul.f32 %v7370, %v7370
  %v7567 = vmul.f32 %v7371, %v7371
  %v7568 = vmul.f32 %v7372, %v7372
  %v7569 = vmul.f32 %v7373, %v7373
  %v7570 = vmul.f32 %v7374, %v7374
  %v7571 = vmul.f32 %v7375, %v7375
  %v7572 = vmul.f32 %v7376, %v7376
  %v7573 = vmul.f32 %v7377, %v7377
  %v7574 = vmul.f32 %v7378, %v7378
  %v7575 = vmul.f32 %v7379, %v7379
  %v7576 = vmul.f32 %v7380, %v7380
  %v7577 = vmul.f32 %v7381, %v7381
  %v7578 = vmul.f32 %v7382, %v7382
  %v7579 = vmul.f32 %v7383, %v7383
  %v7580 = vmul.f32 %v7384, %v7384
  %v7581 = vmul.f32 %v7385, %v7385
  %v7582 = vmul.f32 %v7386, %v7386
  %v7583 = vmul.f32 %v7387, %v7387
  %v7584 = vmul.f32 %v7388, %v7388
  %v7585 = vmul.f32 %v7389, %v7389
  %v7586 = vmul.f32 %v7390, %v7390
  %v7587 = vmul.f32 %v7391, %v7391
  %v7588 = vmul.f32 %v7392, %v7392
  %v7589 = vmul.f32 %v7393, %v7393
  %v7590 = vmul.f32 %v7394, %v7394
  %v7591 = vmul.f32 %v7395, %v7395
  %v7592 = vmul.f32 %v7396, %v7396
  %v7593 = vmul.f32 %v7397, %v7397
  %v7594 = vmul.f32 %v7398, %v7398
  %v7595 = vmul.f32 %v7399, %v7399
  %v7596 = vmul.f32 %v7400, %v7400
  %v7597 = vmul.f32 %v7401, %v7401
  %v7598 = vmul.f32 %v7402, %v7402
  %v7599 = vmul.f32 %v7403, %v7403
  %v7600 = vmul.f32 %v7404, %v7404
  %v7601 = vmul.f32 %v7405, %v7405
  %v7602 = vmul.f32 %v7406, %v7406
  %v7603 = vmul.f32 %v7407, %v7407
  %v7604 = vmul.f32 %v7408, %v7408
  %v7605 = vmul.f32 %v7409, %v7409
  %v7606 = vmul.f32 %v7410, %v7410
  %v7607 = vmul.f32 %v7411, %v7411
  %v7608 = vmul.f32 %v7412, %v7412
  %v7609 = vmul.f32 %v7413, %v7413
  %v7610 = vmul.f32 %v7414, %v7414
  %v7611 = vmul.f32 %v7415, %v7415
  %v7612 = vmul.f32 %v7416, %v7416
  %v7613 = vmul.f32 %v7417, %v7417
  %v7614 = vmul.f32 %v7418, %v7418
  %v7615 = vmul.f32 %v7419, %v7419
  %v7616 = vmul.f32 %v7420, %v7420
  %v7617 = vmul.f32 %v7421, %v7421
  %v7618 = vmul.f32 %v7422, %v7422
  %v7619 = vmul.f32 %v7423, %v7423
  %v7620 = vmul.f32 %v7424, %v7424
  %v7621 = vmul.f32 %v7425, %v7425
  %v7622 = vmul.f32 %v7426, %v7426
  %v7623 = vmul.f32 %v7427, %v7427
  %v7624 = vmul.f32 %v7428, %v7428
  %v7625 = vmul.f32 %v7429, %v7429
  %v7626 = vmul.f32 %v7430, %v7430
  %v7627 = vmul.f32 %v7431, %v7431
  %v7628 = vmul.f32 %v7432, %v7432
  %v7629 = vmul.f32 %v7433, %v7433
  %v7630 = vmul.f32 %v7434, %v7434
  %v7631 = vmul.f32 %v7435, %v7435
  %v7632 = vmul.f32 %v7436, %v7436
  %v7633 = vmul.f32 %v7437, %v7437
  %v7634 = vmul.f32 %v7438, %v7438
  %v7635 = vmul.f32 %v7439, %v7439
  %v7636 = vmul.f32 %v7440, %v7440
  %v7637 = vmul.f32 %v7441, %v7441
  %v7638 = vmul.f32 %v7442, %v7442
  %v7639 = vmul.f32 %v7443, %v7443
  %v7640 = vmul.f32 %v7444, %v7444
  %v7641 = vmul.f32 %v7445, %v7445
  %v7642 = vmul.f32 %v7446, %v7446
  %v7643 = vmul.f32 %v7447, %v7447
  %v7644 = vmul.f32 %v7448, %v7448
  %v7645 = vmul.f32 %v7449, %v7449
  %v7646 = vmul.f32 %v7450, %v7450
  %v7647 = vmul.f32 %v7451, %v7451
  %v7648 = vmul.f32 %v7452, %v7452
  %v7649 = vmul.f32 %v7453, %v7453
  %v7650 = vmul.f32 %v7454, %v7454
  %v7651 = vmul.f32 %v7455, %v7455
  %v7652 = vmul.f32 %v7456, %v7456
  %v7653 = vmul.f32 %v7457, %v7457
  %v7654 = vmul.f32 %v7458, %v7458
  %v7655 = vmul.f32 %v7459, %v7459
  %v7656 = vmul.f32 %v7460, %v7460
  %v7657 = vmul.f32 %v7461, %v7461
  %v7658 = vmul.f32 %v7462, %v7462
  %v7659 = vmul.f32 %v7463, %v7463
  %v7660 = vmul.f32 %v7464, %v7464
  %v7661 = vmul.f32 %v7465, %v7465
  %v7662 = vmul.f32 %v7466, %v7466
  %v7663 = vmul.f32 %v7467, %v7467
  %v7664 = vmul.f32 %v7468, %v7468
  %v7665 = vmul.f32 %v7469, %v7469
  %v7666 = vmul.f32 %v7470, %v7470
  %v7667 = vmul.f32 %v7471, %v7471
  %v7668 = vmul.f32 %v7472, %v7472
  %v7669 = vmul.f32 %v7473, %v7473
  %v7670 = vmul.f32 %v7474, %v7474
  %v7671 = vmul.f32 %v7475, %v7475
  %v7672 = vmul.f32 %v7476, %v7476
  %v7673 = vmul.f32 %v7477, %v7477
  %v7674 = vmul.f32 %v7478, %v7478
  %v7675 = vmul.f32 %v7479, %v7479
  %v7676 = vmul.f32 %v7480, %v7480
  %v7677 = vmul.f32 %v7481, %v7481
  %v7678 = vmul.f32 %v7482, %v7482
  %v7679 = vmul.f32 %v7483, %v7483
  %v7680 = vmul.f32 %v7484, %v7484
  %v7681 = vmul.f32 %v7485, %v7485
  %v7682 = vmul.f32 %v7486, %v7486
  %v7683 = vmul.f32 %v7487, %v7487
  %v7684 = vmul.f32 %v7488, %v7488
  %v7685 = vmul.f32 %v7489, %v7489
  %v7686 = vmul.f32 %v7490, %v7490
  %v7687 = vmul.f32 %v7491, %v7491
  %v7688 = vmul.f32 %v7492, %v7492
  %v7689 = vmul.f32 %v7493, %v7493
  %v7690 = vmul.f32 %v7494, %v7494
  %v7691 = vmul.f32 %v7495, %v7495
  %v7692 = vmul.f32 %v7496, %v7496
  %v7693 = vmul.f32 %v7497, %v7497
  %v7694 = vmul.f32 %v7498, %v7498
  %v7695 = vmul.f32 %v7499, %v7499
  %v7696 = vmul.f32 %v7500, %v7500
  %v7697 = vmul.f32 %v7501, %v7501
  %v7698 = vmul.f32 %v7502, %v7502
  %v7699 = vmul.f32 %v7503, %v7503
  %v7700 = vmul.f32 %v7504, %v7504
  %v7701 = vmul.f32 %v7505, %v7505
  %v7702 = vmul.f32 %v7506, %v7506
  %v7703 = vmul.f32 %v7507, %v7507
  %v7704 = vmul.f32 %v7508, %v7508
  %v7705 = vmul.f32 %v7509, %v7509
  %v7706 = vmul.f32 %v7510, %v7510
  %v7707 = vmul.f32 %v7511, %v7511
  %v7708 = vmul.f32 %v7512, %v7512
  %v7709 = vmul.f32 %v7513, %v7513
  %v7710 = vmul.f32 %v7514, %v7514
  %v7711 = vmul.f32 %v7515, %v7515
  %v7712 = vmul.f32 %v7516, %v7516
  %v7713 = vmul.f32 %v7517, %v7517
  %v7714 = vmul.f32 %v7518, %v7518
  %v7715 = vmul.f32 %v7519, %v7519
  %v7716 = vsel %vm6918, %v7520, 0.0
  %v7717 = vsel %vm6918, %v7521, 0.0
  %v7718 = vadd.f32 %v7716, %v7717
  %v7719 = vsel %vm6918, %v7522, 0.0
  %v7720 = vadd.f32 %v7718, %v7719
  %v7721 = vsel %vm6918, %v7523, 0.0
  %v7722 = vadd.f32 %v7720, %v7721
  %v7723 = vsel %vm6918, %v7524, 0.0
  %v7724 = vadd.f32 %v7722, %v7723
  %v7725 = vsel %vm6918, %v7525, 0.0
  %v7726 = vadd.f32 %v7724, %v7725
  %v7727 = vsel %vm6918, %v7526, 0.0
  %v7728 = vadd.f32 %v7726, %v7727
  %v7729 = vsel %vm6918, %v7527, 0.0
  %v7730 = vadd.f32 %v7728, %v7729
  %v7731 = vsel %vm6918, %v7528, 0.0
  %v7732 = vadd.f32 %v7730, %v7731
  %v7733 = vsel %vm6918, %v7529, 0.0
  %v7734 = vadd.f32 %v7732, %v7733
  %v7735 = vsel %vm6918, %v7530, 0.0
  %v7736 = vadd.f32 %v7734, %v7735
  %v7737 = vsel %vm6918, %v7531, 0.0
  %v7738 = vadd.f32 %v7736, %v7737
  %v7739 = vsel %vm6918, %v7532, 0.0
  %v7740 = vadd.f32 %v7738, %v7739
  %v7741 = vsel %vm6918, %v7533, 0.0
  %v7742 = vadd.f32 %v7740, %v7741
  %v7743 = vsel %vm6918, %v7534, 0.0
  %v7744 = vadd.f32 %v7742, %v7743
  %v7745 = vsel %vm6918, %v7535, 0.0
  %v7746 = vadd.f32 %v7744, %v7745
  %v7747 = vsel %vm6918, %v7536, 0.0
  %v7748 = vadd.f32 %v7746, %v7747
  %v7749 = vsel %vm6918, %v7537, 0.0
  %v7750 = vadd.f32 %v7748, %v7749
  %v7751 = vsel %vm6918, %v7538, 0.0
  %v7752 = vadd.f32 %v7750, %v7751
  %v7753 = vsel %vm6918, %v7539, 0.0
  %v7754 = vadd.f32 %v7752, %v7753
  %v7755 = vsel %vm6918, %v7540, 0.0
  %v7756 = vadd.f32 %v7754, %v7755
  %v7757 = vsel %vm6918, %v7541, 0.0
  %v7758 = vadd.f32 %v7756, %v7757
  %v7759 = vsel %vm6918, %v7542, 0.0
  %v7760 = vadd.f32 %v7758, %v7759
  %v7761 = vsel %vm6918, %v7543, 0.0
  %v7762 = vadd.f32 %v7760, %v7761
  %v7763 = vsel %vm6918, %v7544, 0.0
  %v7764 = vadd.f32 %v7762, %v7763
  %v7765 = vsel %vm6918, %v7545, 0.0
  %v7766 = vadd.f32 %v7764, %v7765
  %v7767 = vsel %vm6918, %v7546, 0.0
  %v7768 = vadd.f32 %v7766, %v7767
  %v7769 = vsel %vm6918, %v7547, 0.0
  %v7770 = vadd.f32 %v7768, %v7769
  %v7771 = vsel %vm6918, %v7548, 0.0
  %v7772 = vadd.f32 %v7770, %v7771
  %v7773 = vsel %vm6918, %v7549, 0.0
  %v7774 = vadd.f32 %v7772, %v7773
  %v7775 = vsel %vm6918, %v7550, 0.0
  %v7776 = vadd.f32 %v7774, %v7775
  %v7777 = vsel %vm6918, %v7551, 0.0
  %v7778 = vadd.f32 %v7776, %v7777
  %v7779 = vsel %vm6918, %v7552, 0.0
  %v7780 = vadd.f32 %v7778, %v7779
  %v7781 = vsel %vm6918, %v7553, 0.0
  %v7782 = vadd.f32 %v7780, %v7781
  %v7783 = vsel %vm6918, %v7554, 0.0
  %v7784 = vadd.f32 %v7782, %v7783
  %v7785 = vsel %vm6918, %v7555, 0.0
  %v7786 = vadd.f32 %v7784, %v7785
  %v7787 = vsel %vm6918, %v7556, 0.0
  %v7788 = vadd.f32 %v7786, %v7787
  %v7789 = vsel %vm6918, %v7557, 0.0
  %v7790 = vadd.f32 %v7788, %v7789
  %v7791 = vsel %vm6918, %v7558, 0.0
  %v7792 = vadd.f32 %v7790, %v7791
  %v7793 = vsel %vm6918, %v7559, 0.0
  %v7794 = vadd.f32 %v7792, %v7793
  %v7795 = vsel %vm6918, %v7560, 0.0
  %v7796 = vadd.f32 %v7794, %v7795
  %v7797 = vsel %vm6918, %v7561, 0.0
  %v7798 = vadd.f32 %v7796, %v7797
  %v7799 = vsel %vm6918, %v7562, 0.0
  %v7800 = vadd.f32 %v7798, %v7799
  %v7801 = vsel %vm6918, %v7563, 0.0
  %v7802 = vadd.f32 %v7800, %v7801
  %v7803 = vsel %vm6918, %v7564, 0.0
  %v7804 = vadd.f32 %v7802, %v7803
  %v7805 = vsel %vm6918, %v7565, 0.0
  %v7806 = vadd.f32 %v7804, %v7805
  %v7807 = vsel %vm6918, %v7566, 0.0
  %v7808 = vadd.f32 %v7806, %v7807
  %v7809 = vsel %vm6918, %v7567, 0.0
  %v7810 = vadd.f32 %v7808, %v7809
  %v7811 = vsel %vm6918, %v7568, 0.0
  %v7812 = vadd.f32 %v7810, %v7811
  %v7813 = vsel %vm6918, %v7569, 0.0
  %v7814 = vadd.f32 %v7812, %v7813
  %v7815 = vsel %vm6918, %v7570, 0.0
  %v7816 = vadd.f32 %v7814, %v7815
  %v7817 = vsel %vm6918, %v7571, 0.0
  %v7818 = vadd.f32 %v7816, %v7817
  %v7819 = vsel %vm6918, %v7572, 0.0
  %v7820 = vadd.f32 %v7818, %v7819
  %v7821 = vsel %vm6918, %v7573, 0.0
  %v7822 = vadd.f32 %v7820, %v7821
  %v7823 = vsel %vm6918, %v7574, 0.0
  %v7824 = vadd.f32 %v7822, %v7823
  %v7825 = vsel %vm6918, %v7575, 0.0
  %v7826 = vadd.f32 %v7824, %v7825
  %v7827 = vsel %vm6918, %v7576, 0.0
  %v7828 = vadd.f32 %v7826, %v7827
  %v7829 = vsel %vm6918, %v7577, 0.0
  %v7830 = vadd.f32 %v7828, %v7829
  %v7831 = vsel %vm6918, %v7578, 0.0
  %v7832 = vadd.f32 %v7830, %v7831
  %v7833 = vsel %vm6918, %v7579, 0.0
  %v7834 = vadd.f32 %v7832, %v7833
  %v7835 = vsel %vm6918, %v7580, 0.0
  %v7836 = vadd.f32 %v7834, %v7835
  %v7837 = vsel %vm6918, %v7581, 0.0
  %v7838 = vadd.f32 %v7836, %v7837
  %v7839 = vsel %vm6918, %v7582, 0.0
  %v7840 = vadd.f32 %v7838, %v7839
  %v7841 = vsel %vm6918, %v7583, 0.0
  %v7842 = vadd.f32 %v7840, %v7841
  %v7843 = vsel %vm6918, %v7584, 0.0
  %v7844 = vadd.f32 %v7842, %v7843
  %v7845 = vsel %vm6918, %v7585, 0.0
  %v7846 = vadd.f32 %v7844, %v7845
  %v7847 = vsel %vm6918, %v7586, 0.0
  %v7848 = vadd.f32 %v7846, %v7847
  %v7849 = vsel %vm6918, %v7587, 0.0
  %v7850 = vadd.f32 %v7848, %v7849
  %v7851 = vsel %vm6918, %v7588, 0.0
  %v7852 = vadd.f32 %v7850, %v7851
  %v7853 = vsel %vm6918, %v7589, 0.0
  %v7854 = vadd.f32 %v7852, %v7853
  %v7855 = vsel %vm6918, %v7590, 0.0
  %v7856 = vadd.f32 %v7854, %v7855
  %v7857 = vsel %vm6918, %v7591, 0.0
  %v7858 = vadd.f32 %v7856, %v7857
  %v7859 = vsel %vm6918, %v7592, 0.0
  %v7860 = vadd.f32 %v7858, %v7859
  %v7861 = vsel %vm6918, %v7593, 0.0
  %v7862 = vadd.f32 %v7860, %v7861
  %v7863 = vsel %vm6918, %v7594, 0.0
  %v7864 = vadd.f32 %v7862, %v7863
  %v7865 = vsel %vm6918, %v7595, 0.0
  %v7866 = vadd.f32 %v7864, %v7865
  %v7867 = vsel %vm6918, %v7596, 0.0
  %v7868 = vadd.f32 %v7866, %v7867
  %v7869 = vsel %vm6918, %v7597, 0.0
  %v7870 = vadd.f32 %v7868, %v7869
  %v7871 = vsel %vm6918, %v7598, 0.0
  %v7872 = vadd.f32 %v7870, %v7871
  %v7873 = vsel %vm6918, %v7599, 0.0
  %v7874 = vadd.f32 %v7872, %v7873
  %v7875 = vsel %vm6918, %v7600, 0.0
  %v7876 = vadd.f32 %v7874, %v7875
  %v7877 = vsel %vm6918, %v7601, 0.0
  %v7878 = vadd.f32 %v7876, %v7877
  %v7879 = vsel %vm6918, %v7602, 0.0
  %v7880 = vadd.f32 %v7878, %v7879
  %v7881 = vsel %vm6918, %v7603, 0.0
  %v7882 = vadd.f32 %v7880, %v7881
  %v7883 = vsel %vm6918, %v7604, 0.0
  %v7884 = vadd.f32 %v7882, %v7883
  %v7885 = vsel %vm6918, %v7605, 0.0
  %v7886 = vadd.f32 %v7884, %v7885
  %v7887 = vsel %vm6918, %v7606, 0.0
  %v7888 = vadd.f32 %v7886, %v7887
  %v7889 = vsel %vm6918, %v7607, 0.0
  %v7890 = vadd.f32 %v7888, %v7889
  %v7891 = vsel %vm6918, %v7608, 0.0
  %v7892 = vadd.f32 %v7890, %v7891
  %v7893 = vsel %vm6918, %v7609, 0.0
  %v7894 = vadd.f32 %v7892, %v7893
  %v7895 = vsel %vm6918, %v7610, 0.0
  %v7896 = vadd.f32 %v7894, %v7895
  %v7897 = vsel %vm6918, %v7611, 0.0
  %v7898 = vadd.f32 %v7896, %v7897
  %v7899 = vsel %vm6918, %v7612, 0.0
  %v7900 = vadd.f32 %v7898, %v7899
  %v7901 = vsel %vm6918, %v7613, 0.0
  %v7902 = vadd.f32 %v7900, %v7901
  %v7903 = vsel %vm6918, %v7614, 0.0
  %v7904 = vadd.f32 %v7902, %v7903
  %v7905 = vsel %vm6918, %v7615, 0.0
  %v7906 = vadd.f32 %v7904, %v7905
  %v7907 = vsel %vm6918, %v7616, 0.0
  %v7908 = vadd.f32 %v7906, %v7907
  %v7909 = vsel %vm6918, %v7617, 0.0
  %v7910 = vadd.f32 %v7908, %v7909
  %v7911 = vsel %vm6918, %v7618, 0.0
  %v7912 = vadd.f32 %v7910, %v7911
  %v7913 = vsel %vm6918, %v7619, 0.0
  %v7914 = vadd.f32 %v7912, %v7913
  %v7915 = vsel %vm6918, %v7620, 0.0
  %v7916 = vadd.f32 %v7914, %v7915
  %v7917 = vsel %vm6918, %v7621, 0.0
  %v7918 = vadd.f32 %v7916, %v7917
  %v7919 = vsel %vm6918, %v7622, 0.0
  %v7920 = vadd.f32 %v7918, %v7919
  %v7921 = vsel %vm6918, %v7623, 0.0
  %v7922 = vadd.f32 %v7920, %v7921
  %v7923 = vsel %vm6918, %v7624, 0.0
  %v7924 = vadd.f32 %v7922, %v7923
  %v7925 = vsel %vm6918, %v7625, 0.0
  %v7926 = vadd.f32 %v7924, %v7925
  %v7927 = vsel %vm6918, %v7626, 0.0
  %v7928 = vadd.f32 %v7926, %v7927
  %v7929 = vsel %vm6918, %v7627, 0.0
  %v7930 = vadd.f32 %v7928, %v7929
  %v7931 = vsel %vm6918, %v7628, 0.0
  %v7932 = vadd.f32 %v7930, %v7931
  %v7933 = vsel %vm6918, %v7629, 0.0
  %v7934 = vadd.f32 %v7932, %v7933
  %v7935 = vsel %vm6918, %v7630, 0.0
  %v7936 = vadd.f32 %v7934, %v7935
  %v7937 = vsel %vm6918, %v7631, 0.0
  %v7938 = vadd.f32 %v7936, %v7937
  %v7939 = vsel %vm6918, %v7632, 0.0
  %v7940 = vadd.f32 %v7938, %v7939
  %v7941 = vsel %vm6918, %v7633, 0.0
  %v7942 = vadd.f32 %v7940, %v7941
  %v7943 = vsel %vm6918, %v7634, 0.0
  %v7944 = vadd.f32 %v7942, %v7943
  %v7945 = vsel %vm6918, %v7635, 0.0
  %v7946 = vadd.f32 %v7944, %v7945
  %v7947 = vsel %vm6918, %v7636, 0.0
  %v7948 = vadd.f32 %v7946, %v7947
  %v7949 = vsel %vm6918, %v7637, 0.0
  %v7950 = vadd.f32 %v7948, %v7949
  %v7951 = vsel %vm6918, %v7638, 0.0
  %v7952 = vadd.f32 %v7950, %v7951
  %v7953 = vsel %vm6918, %v7639, 0.0
  %v7954 = vadd.f32 %v7952, %v7953
  %v7955 = vsel %vm6918, %v7640, 0.0
  %v7956 = vadd.f32 %v7954, %v7955
  %v7957 = vsel %vm6918, %v7641, 0.0
  %v7958 = vadd.f32 %v7956, %v7957
  %v7959 = vsel %vm6918, %v7642, 0.0
  %v7960 = vadd.f32 %v7958, %v7959
  %v7961 = vsel %vm6918, %v7643, 0.0
  %v7962 = vadd.f32 %v7960, %v7961
  %v7963 = vsel %vm6918, %v7644, 0.0
  %v7964 = vadd.f32 %v7962, %v7963
  %v7965 = vsel %vm6918, %v7645, 0.0
  %v7966 = vadd.f32 %v7964, %v7965
  %v7967 = vsel %vm6918, %v7646, 0.0
  %v7968 = vadd.f32 %v7966, %v7967
  %v7969 = vsel %vm6918, %v7647, 0.0
  %v7970 = vadd.f32 %v7968, %v7969
  %v7971 = vsel %vm6918, %v7648, 0.0
  %v7972 = vadd.f32 %v7970, %v7971
  %v7973 = vsel %vm6918, %v7649, 0.0
  %v7974 = vadd.f32 %v7972, %v7973
  %v7975 = vsel %vm6918, %v7650, 0.0
  %v7976 = vadd.f32 %v7974, %v7975
  %v7977 = vsel %vm6918, %v7651, 0.0
  %v7978 = vadd.f32 %v7976, %v7977
  %v7979 = vsel %vm6918, %v7652, 0.0
  %v7980 = vadd.f32 %v7978, %v7979
  %v7981 = vsel %vm6918, %v7653, 0.0
  %v7982 = vadd.f32 %v7980, %v7981
  %v7983 = vsel %vm6918, %v7654, 0.0
  %v7984 = vadd.f32 %v7982, %v7983
  %v7985 = vsel %vm6918, %v7655, 0.0
  %v7986 = vadd.f32 %v7984, %v7985
  %v7987 = vsel %vm6918, %v7656, 0.0
  %v7988 = vadd.f32 %v7986, %v7987
  %v7989 = vsel %vm6918, %v7657, 0.0
  %v7990 = vadd.f32 %v7988, %v7989
  %v7991 = vsel %vm6918, %v7658, 0.0
  %v7992 = vadd.f32 %v7990, %v7991
  %v7993 = vsel %vm6918, %v7659, 0.0
  %v7994 = vadd.f32 %v7992, %v7993
  %v7995 = vsel %vm6918, %v7660, 0.0
  %v7996 = vadd.f32 %v7994, %v7995
  %v7997 = vsel %vm6918, %v7661, 0.0
  %v7998 = vadd.f32 %v7996, %v7997
  %v7999 = vsel %vm6918, %v7662, 0.0
  %v8000 = vadd.f32 %v7998, %v7999
  %v8001 = vsel %vm6918, %v7663, 0.0
  %v8002 = vadd.f32 %v8000, %v8001
  %v8003 = vsel %vm6918, %v7664, 0.0
  %v8004 = vadd.f32 %v8002, %v8003
  %v8005 = vsel %vm6918, %v7665, 0.0
  %v8006 = vadd.f32 %v8004, %v8005
  %v8007 = vsel %vm6918, %v7666, 0.0
  %v8008 = vadd.f32 %v8006, %v8007
  %v8009 = vsel %vm6918, %v7667, 0.0
  %v8010 = vadd.f32 %v8008, %v8009
  %v8011 = vsel %vm6918, %v7668, 0.0
  %v8012 = vadd.f32 %v8010, %v8011
  %v8013 = vsel %vm6918, %v7669, 0.0
  %v8014 = vadd.f32 %v8012, %v8013
  %v8015 = vsel %vm6918, %v7670, 0.0
  %v8016 = vadd.f32 %v8014, %v8015
  %v8017 = vsel %vm6918, %v7671, 0.0
  %v8018 = vadd.f32 %v8016, %v8017
  %v8019 = vsel %vm6918, %v7672, 0.0
  %v8020 = vadd.f32 %v8018, %v8019
  %v8021 = vsel %vm6918, %v7673, 0.0
  %v8022 = vadd.f32 %v8020, %v8021
  %v8023 = vsel %vm6918, %v7674, 0.0
  %v8024 = vadd.f32 %v8022, %v8023
  %v8025 = vsel %vm6918, %v7675, 0.0
  %v8026 = vadd.f32 %v8024, %v8025
  %v8027 = vsel %vm6918, %v7676, 0.0
  %v8028 = vadd.f32 %v8026, %v8027
  %v8029 = vsel %vm6918, %v7677, 0.0
  %v8030 = vadd.f32 %v8028, %v8029
  %v8031 = vsel %vm6918, %v7678, 0.0
  %v8032 = vadd.f32 %v8030, %v8031
  %v8033 = vsel %vm6918, %v7679, 0.0
  %v8034 = vadd.f32 %v8032, %v8033
  %v8035 = vsel %vm6918, %v7680, 0.0
  %v8036 = vadd.f32 %v8034, %v8035
  %v8037 = vsel %vm6918, %v7681, 0.0
  %v8038 = vadd.f32 %v8036, %v8037
  %v8039 = vsel %vm6918, %v7682, 0.0
  %v8040 = vadd.f32 %v8038, %v8039
  %v8041 = vsel %vm6918, %v7683, 0.0
  %v8042 = vadd.f32 %v8040, %v8041
  %v8043 = vsel %vm6918, %v7684, 0.0
  %v8044 = vadd.f32 %v8042, %v8043
  %v8045 = vsel %vm6918, %v7685, 0.0
  %v8046 = vadd.f32 %v8044, %v8045
  %v8047 = vsel %vm6918, %v7686, 0.0
  %v8048 = vadd.f32 %v8046, %v8047
  %v8049 = vsel %vm6918, %v7687, 0.0
  %v8050 = vadd.f32 %v8048, %v8049
  %v8051 = vsel %vm6918, %v7688, 0.0
  %v8052 = vadd.f32 %v8050, %v8051
  %v8053 = vsel %vm6918, %v7689, 0.0
  %v8054 = vadd.f32 %v8052, %v8053
  %v8055 = vsel %vm6918, %v7690, 0.0
  %v8056 = vadd.f32 %v8054, %v8055
  %v8057 = vsel %vm6918, %v7691, 0.0
  %v8058 = vadd.f32 %v8056, %v8057
  %v8059 = vsel %vm6918, %v7692, 0.0
  %v8060 = vadd.f32 %v8058, %v8059
  %v8061 = vsel %vm6918, %v7693, 0.0
  %v8062 = vadd.f32 %v8060, %v8061
  %v8063 = vsel %vm6918, %v7694, 0.0
  %v8064 = vadd.f32 %v8062, %v8063
  %v8065 = vsel %vm6918, %v7695, 0.0
  %v8066 = vadd.f32 %v8064, %v8065
  %v8067 = vsel %vm6918, %v7696, 0.0
  %v8068 = vadd.f32 %v8066, %v8067
  %v8069 = vsel %vm6918, %v7697, 0.0
  %v8070 = vadd.f32 %v8068, %v8069
  %v8071 = vsel %vm6918, %v7698, 0.0
  %v8072 = vadd.f32 %v8070, %v8071
  %v8073 = vsel %vm6918, %v7699, 0.0
  %v8074 = vadd.f32 %v8072, %v8073
  %v8075 = vsel %vm6918, %v7700, 0.0
  %v8076 = vadd.f32 %v8074, %v8075
  %v8077 = vsel %vm6918, %v7701, 0.0
  %v8078 = vadd.f32 %v8076, %v8077
  %v8079 = vsel %vm6918, %v7702, 0.0
  %v8080 = vadd.f32 %v8078, %v8079
  %v8081 = vsel %vm6918, %v7703, 0.0
  %v8082 = vadd.f32 %v8080, %v8081
  %v8083 = vsel %vm6918, %v7704, 0.0
  %v8084 = vadd.f32 %v8082, %v8083
  %v8085 = vsel %vm6918, %v7705, 0.0
  %v8086 = vadd.f32 %v8084, %v8085
  %v8087 = vsel %vm6918, %v7706, 0.0
  %v8088 = vadd.f32 %v8086, %v8087
  %v8089 = vsel %vm6918, %v7707, 0.0
  %v8090 = vadd.f32 %v8088, %v8089
  %v8091 = vsel %vm6918, %v7708, 0.0
  %v8092 = vadd.f32 %v8090, %v8091
  %v8093 = vsel %vm6918, %v7709, 0.0
  %v8094 = vadd.f32 %v8092, %v8093
  %v8095 = vsel %vm6918, %v7710, 0.0
  %v8096 = vadd.f32 %v8094, %v8095
  %v8097 = vsel %vm6918, %v7711, 0.0
  %v8098 = vadd.f32 %v8096, %v8097
  %v8099 = vsel %vm6918, %v7712, 0.0
  %v8100 = vadd.f32 %v8098, %v8099
  %v8101 = vsel %vm6918, %v7713, 0.0
  %v8102 = vadd.f32 %v8100, %v8101
  %v8103 = vsel %vm6918, %v7714, 0.0
  %v8104 = vadd.f32 %v8102, %v8103
  %v8105 = vsel %vm6918, %v7715, 0.0
  %v8106 = vadd.f32 %v8104, %v8105
  %v8107 = vrot.slane %v8106, 4
  %v8108 = vadd.f32 %v8106, %v8107
  %v8109 = vrot.slane %v8108, 2
  %v8110 = vadd.f32 %v8108, %v8109
  %v8111 = vrot.slane %v8110, 1
  %v8112 = vadd.f32 %v8110, %v8111
  %v8113 = vmul.f32 %v8112, %v7322
  %v8114 = vadd.f32 %v8113, 1e-05
  %v8115 = vrsqrt.pop %v8114
  %v8116 = vmul.f32 %v8115, %v8114
  %v8117 = vmul.f32 %v8116, %v8115
  %v8118 = vmul.f32 0.5, %v8117
  %v8119 = vsub.f32 1.5, %v8118
  %v8120 = vmul.f32 %v8115, %v8119
  %vm8121 = vweird.f32 %v8114
  %vm8122 = vweird.f32 %v8115
  %vm8123 = vmor %vm8121, %vm8122
  %v8124 = vsel %vm8123, %v8115, %v8120
  %v8125 = vmul.f32 %v6916, %v8124
  %v8126 = vmul.f32 %v7323, %v8125
  %v8127 = vsub.f32 %v6917, %v8126
  %v8129 = vperm.slane %v8125, 0
  %v8131 = vmul.f32 %v6720, %v8129
  %v8132 = vmul.f32 %v6721, %v8129
  %v8133 = vmul.f32 %v6722, %v8129
  %v8134 = vmul.f32 %v6723, %v8129
  %v8135 = vmul.f32 %v6724, %v8129
  %v8136 = vmul.f32 %v6725, %v8129
  %v8137 = vmul.f32 %v6726, %v8129
  %v8138 = vmul.f32 %v6727, %v8129
  %v8139 = vmul.f32 %v6728, %v8129
  %v8140 = vmul.f32 %v6729, %v8129
  %v8141 = vmul.f32 %v6730, %v8129
  %v8142 = vmul.f32 %v6731, %v8129
  %v8143 = vmul.f32 %v6732, %v8129
  %v8144 = vmul.f32 %v6733, %v8129
  %v8145 = vmul.f32 %v6734, %v8129
  %v8146 = vmul.f32 %v6735, %v8129
  %v8147 = vmul.f32 %v6736, %v8129
  %v8148 = vmul.f32 %v6737, %v8129
  %v8149 = vmul.f32 %v6738, %v8129
  %v8150 = vmul.f32 %v6739, %v8129
  %v8151 = vmul.f32 %v6740, %v8129
  %v8152 = vmul.f32 %v6741, %v8129
  %v8153 = vmul.f32 %v6742, %v8129
  %v8154 = vmul.f32 %v6743, %v8129
  %v8155 = vmul.f32 %v6744, %v8129
  %v8156 = vmul.f32 %v6745, %v8129
  %v8157 = vmul.f32 %v6746, %v8129
  %v8158 = vmul.f32 %v6747, %v8129
  %v8159 = vmul.f32 %v6748, %v8129
  %v8160 = vmul.f32 %v6749, %v8129
  %v8161 = vmul.f32 %v6750, %v8129
  %v8162 = vmul.f32 %v6751, %v8129
  %v8163 = vmul.f32 %v6752, %v8129
  %v8164 = vmul.f32 %v6753, %v8129
  %v8165 = vmul.f32 %v6754, %v8129
  %v8166 = vmul.f32 %v6755, %v8129
  %v8167 = vmul.f32 %v6756, %v8129
  %v8168 = vmul.f32 %v6757, %v8129
  %v8169 = vmul.f32 %v6758, %v8129
  %v8170 = vmul.f32 %v6759, %v8129
  %v8171 = vmul.f32 %v6760, %v8129
  %v8172 = vmul.f32 %v6761, %v8129
  %v8173 = vmul.f32 %v6762, %v8129
  %v8174 = vmul.f32 %v6763, %v8129
  %v8175 = vmul.f32 %v6764, %v8129
  %v8176 = vmul.f32 %v6765, %v8129
  %v8177 = vmul.f32 %v6766, %v8129
  %v8178 = vmul.f32 %v6767, %v8129
  %v8179 = vmul.f32 %v6768, %v8129
  %v8180 = vmul.f32 %v6769, %v8129
  %v8181 = vmul.f32 %v6770, %v8129
  %v8182 = vmul.f32 %v6771, %v8129
  %v8183 = vmul.f32 %v6772, %v8129
  %v8184 = vmul.f32 %v6773, %v8129
  %v8185 = vmul.f32 %v6774, %v8129
  %v8186 = vmul.f32 %v6775, %v8129
  %v8187 = vmul.f32 %v6776, %v8129
  %v8188 = vmul.f32 %v6777, %v8129
  %v8189 = vmul.f32 %v6778, %v8129
  %v8190 = vmul.f32 %v6779, %v8129
  %v8191 = vmul.f32 %v6780, %v8129
  %v8192 = vmul.f32 %v6781, %v8129
  %v8193 = vmul.f32 %v6782, %v8129
  %v8194 = vmul.f32 %v6783, %v8129
  %v8195 = vmul.f32 %v6784, %v8129
  %v8196 = vmul.f32 %v6785, %v8129
  %v8197 = vmul.f32 %v6786, %v8129
  %v8198 = vmul.f32 %v6787, %v8129
  %v8199 = vmul.f32 %v6788, %v8129
  %v8200 = vmul.f32 %v6789, %v8129
  %v8201 = vmul.f32 %v6790, %v8129
  %v8202 = vmul.f32 %v6791, %v8129
  %v8203 = vmul.f32 %v6792, %v8129
  %v8204 = vmul.f32 %v6793, %v8129
  %v8205 = vmul.f32 %v6794, %v8129
  %v8206 = vmul.f32 %v6795, %v8129
  %v8207 = vmul.f32 %v6796, %v8129
  %v8208 = vmul.f32 %v6797, %v8129
  %v8209 = vmul.f32 %v6798, %v8129
  %v8210 = vmul.f32 %v6799, %v8129
  %v8211 = vmul.f32 %v6800, %v8129
  %v8212 = vmul.f32 %v6801, %v8129
  %v8213 = vmul.f32 %v6802, %v8129
  %v8214 = vmul.f32 %v6803, %v8129
  %v8215 = vmul.f32 %v6804, %v8129
  %v8216 = vmul.f32 %v6805, %v8129
  %v8217 = vmul.f32 %v6806, %v8129
  %v8218 = vmul.f32 %v6807, %v8129
  %v8219 = vmul.f32 %v6808, %v8129
  %v8220 = vmul.f32 %v6809, %v8129
  %v8221 = vmul.f32 %v6810, %v8129
  %v8222 = vmul.f32 %v6811, %v8129
  %v8223 = vmul.f32 %v6812, %v8129
  %v8224 = vmul.f32 %v6813, %v8129
  %v8225 = vmul.f32 %v6814, %v8129
  %v8226 = vmul.f32 %v6815, %v8129
  %v8227 = vmul.f32 %v6816, %v8129
  %v8228 = vmul.f32 %v6817, %v8129
  %v8229 = vmul.f32 %v6818, %v8129
  %v8230 = vmul.f32 %v6819, %v8129
  %v8231 = vmul.f32 %v6820, %v8129
  %v8232 = vmul.f32 %v6821, %v8129
  %v8233 = vmul.f32 %v6822, %v8129
  %v8234 = vmul.f32 %v6823, %v8129
  %v8235 = vmul.f32 %v6824, %v8129
  %v8236 = vmul.f32 %v6825, %v8129
  %v8237 = vmul.f32 %v6826, %v8129
  %v8238 = vmul.f32 %v6827, %v8129
  %v8239 = vmul.f32 %v6828, %v8129
  %v8240 = vmul.f32 %v6829, %v8129
  %v8241 = vmul.f32 %v6830, %v8129
  %v8242 = vmul.f32 %v6831, %v8129
  %v8243 = vmul.f32 %v6832, %v8129
  %v8244 = vmul.f32 %v6833, %v8129
  %v8245 = vmul.f32 %v6834, %v8129
  %v8246 = vmul.f32 %v6835, %v8129
  %v8247 = vmul.f32 %v6836, %v8129
  %v8248 = vmul.f32 %v6837, %v8129
  %v8249 = vmul.f32 %v6838, %v8129
  %v8250 = vmul.f32 %v6839, %v8129
  %v8251 = vmul.f32 %v6840, %v8129
  %v8252 = vmul.f32 %v6841, %v8129
  %v8253 = vmul.f32 %v6842, %v8129
  %v8254 = vmul.f32 %v6843, %v8129
  %v8255 = vmul.f32 %v6844, %v8129
  %v8256 = vmul.f32 %v6845, %v8129
  %v8257 = vmul.f32 %v6846, %v8129
  %v8258 = vmul.f32 %v6847, %v8129
  %v8259 = vmul.f32 %v6848, %v8129
  %v8260 = vmul.f32 %v6849, %v8129
  %v8261 = vmul.f32 %v6850, %v8129
  %v8262 = vmul.f32 %v6851, %v8129
  %v8263 = vmul.f32 %v6852, %v8129
  %v8264 = vmul.f32 %v6853, %v8129
  %v8265 = vmul.f32 %v6854, %v8129
  %v8266 = vmul.f32 %v6855, %v8129
  %v8267 = vmul.f32 %v6856, %v8129
  %v8268 = vmul.f32 %v6857, %v8129
  %v8269 = vmul.f32 %v6858, %v8129
  %v8270 = vmul.f32 %v6859, %v8129
  %v8271 = vmul.f32 %v6860, %v8129
  %v8272 = vmul.f32 %v6861, %v8129
  %v8273 = vmul.f32 %v6862, %v8129
  %v8274 = vmul.f32 %v6863, %v8129
  %v8275 = vmul.f32 %v6864, %v8129
  %v8276 = vmul.f32 %v6865, %v8129
  %v8277 = vmul.f32 %v6866, %v8129
  %v8278 = vmul.f32 %v6867, %v8129
  %v8279 = vmul.f32 %v6868, %v8129
  %v8280 = vmul.f32 %v6869, %v8129
  %v8281 = vmul.f32 %v6870, %v8129
  %v8282 = vmul.f32 %v6871, %v8129
  %v8283 = vmul.f32 %v6872, %v8129
  %v8284 = vmul.f32 %v6873, %v8129
  %v8285 = vmul.f32 %v6874, %v8129
  %v8286 = vmul.f32 %v6875, %v8129
  %v8287 = vmul.f32 %v6876, %v8129
  %v8288 = vmul.f32 %v6877, %v8129
  %v8289 = vmul.f32 %v6878, %v8129
  %v8290 = vmul.f32 %v6879, %v8129
  %v8291 = vmul.f32 %v6880, %v8129
  %v8292 = vmul.f32 %v6881, %v8129
  %v8293 = vmul.f32 %v6882, %v8129
  %v8294 = vmul.f32 %v6883, %v8129
  %v8295 = vmul.f32 %v6884, %v8129
  %v8296 = vmul.f32 %v6885, %v8129
  %v8297 = vmul.f32 %v6886, %v8129
  %v8298 = vmul.f32 %v6887, %v8129
  %v8299 = vmul.f32 %v6888, %v8129
  %v8300 = vmul.f32 %v6889, %v8129
  %v8301 = vmul.f32 %v6890, %v8129
  %v8302 = vmul.f32 %v6891, %v8129
  %v8303 = vmul.f32 %v6892, %v8129
  %v8304 = vmul.f32 %v6893, %v8129
  %v8305 = vmul.f32 %v6894, %v8129
  %v8306 = vmul.f32 %v6895, %v8129
  %v8307 = vmul.f32 %v6896, %v8129
  %v8308 = vmul.f32 %v6897, %v8129
  %v8309 = vmul.f32 %v6898, %v8129
  %v8310 = vmul.f32 %v6899, %v8129
  %v8311 = vmul.f32 %v6900, %v8129
  %v8312 = vmul.f32 %v6901, %v8129
  %v8313 = vmul.f32 %v6902, %v8129
  %v8314 = vmul.f32 %v6903, %v8129
  %v8315 = vmul.f32 %v6904, %v8129
  %v8316 = vmul.f32 %v6905, %v8129
  %v8317 = vmul.f32 %v6906, %v8129
  %v8318 = vmul.f32 %v6907, %v8129
  %v8319 = vmul.f32 %v6908, %v8129
  %v8320 = vmul.f32 %v6909, %v8129
  %v8321 = vmul.f32 %v6910, %v8129
  %v8322 = vmul.f32 %v6911, %v8129
  %v8323 = vmul.f32 %v6912, %v8129
  %v8324 = vmul.f32 %v6913, %v8129
  %v8325 = vmul.f32 %v6914, %v8129
  %v8326 = vmul.f32 %v6915, %v8129
  %v8328 = vperm.slane %v8127, 0
  %v8330 = vadd.f32 %v8131, %v8328
  %v8331 = vadd.f32 %v8132, %v8328
  %v8332 = vadd.f32 %v8133, %v8328
  %v8333 = vadd.f32 %v8134, %v8328
  %v8334 = vadd.f32 %v8135, %v8328
  %v8335 = vadd.f32 %v8136, %v8328
  %v8336 = vadd.f32 %v8137, %v8328
  %v8337 = vadd.f32 %v8138, %v8328
  %v8338 = vadd.f32 %v8139, %v8328
  %v8339 = vadd.f32 %v8140, %v8328
  %v8340 = vadd.f32 %v8141, %v8328
  %v8341 = vadd.f32 %v8142, %v8328
  %v8342 = vadd.f32 %v8143, %v8328
  %v8343 = vadd.f32 %v8144, %v8328
  %v8344 = vadd.f32 %v8145, %v8328
  %v8345 = vadd.f32 %v8146, %v8328
  %v8346 = vadd.f32 %v8147, %v8328
  %v8347 = vadd.f32 %v8148, %v8328
  %v8348 = vadd.f32 %v8149, %v8328
  %v8349 = vadd.f32 %v8150, %v8328
  %v8350 = vadd.f32 %v8151, %v8328
  %v8351 = vadd.f32 %v8152, %v8328
  %v8352 = vadd.f32 %v8153, %v8328
  %v8353 = vadd.f32 %v8154, %v8328
  %v8354 = vadd.f32 %v8155, %v8328
  %v8355 = vadd.f32 %v8156, %v8328
  %v8356 = vadd.f32 %v8157, %v8328
  %v8357 = vadd.f32 %v8158, %v8328
  %v8358 = vadd.f32 %v8159, %v8328
  %v8359 = vadd.f32 %v8160, %v8328
  %v8360 = vadd.f32 %v8161, %v8328
  %v8361 = vadd.f32 %v8162, %v8328
  %v8362 = vadd.f32 %v8163, %v8328
  %v8363 = vadd.f32 %v8164, %v8328
  %v8364 = vadd.f32 %v8165, %v8328
  %v8365 = vadd.f32 %v8166, %v8328
  %v8366 = vadd.f32 %v8167, %v8328
  %v8367 = vadd.f32 %v8168, %v8328
  %v8368 = vadd.f32 %v8169, %v8328
  %v8369 = vadd.f32 %v8170, %v8328
  %v8370 = vadd.f32 %v8171, %v8328
  %v8371 = vadd.f32 %v8172, %v8328
  %v8372 = vadd.f32 %v8173, %v8328
  %v8373 = vadd.f32 %v8174, %v8328
  %v8374 = vadd.f32 %v8175, %v8328
  %v8375 = vadd.f32 %v8176, %v8328
  %v8376 = vadd.f32 %v8177, %v8328
  %v8377 = vadd.f32 %v8178, %v8328
  %v8378 = vadd.f32 %v8179, %v8328
  %v8379 = vadd.f32 %v8180, %v8328
  %v8380 = vadd.f32 %v8181, %v8328
  %v8381 = vadd.f32 %v8182, %v8328
  %v8382 = vadd.f32 %v8183, %v8328
  %v8383 = vadd.f32 %v8184, %v8328
  %v8384 = vadd.f32 %v8185, %v8328
  %v8385 = vadd.f32 %v8186, %v8328
  %v8386 = vadd.f32 %v8187, %v8328
  %v8387 = vadd.f32 %v8188, %v8328
  %v8388 = vadd.f32 %v8189, %v8328
  %v8389 = vadd.f32 %v8190, %v8328
  %v8390 = vadd.f32 %v8191, %v8328
  %v8391 = vadd.f32 %v8192, %v8328
  %v8392 = vadd.f32 %v8193, %v8328
  %v8393 = vadd.f32 %v8194, %v8328
  %v8394 = vadd.f32 %v8195, %v8328
  %v8395 = vadd.f32 %v8196, %v8328
  %v8396 = vadd.f32 %v8197, %v8328
  %v8397 = vadd.f32 %v8198, %v8328
  %v8398 = vadd.f32 %v8199, %v8328
  %v8399 = vadd.f32 %v8200, %v8328
  %v8400 = vadd.f32 %v8201, %v8328
  %v8401 = vadd.f32 %v8202, %v8328
  %v8402 = vadd.f32 %v8203, %v8328
  %v8403 = vadd.f32 %v8204, %v8328
  %v8404 = vadd.f32 %v8205, %v8328
  %v8405 = vadd.f32 %v8206, %v8328
  %v8406 = vadd.f32 %v8207, %v8328
  %v8407 = vadd.f32 %v8208, %v8328
  %v8408 = vadd.f32 %v8209, %v8328
  %v8409 = vadd.f32 %v8210, %v8328
  %v8410 = vadd.f32 %v8211, %v8328
  %v8411 = vadd.f32 %v8212, %v8328
  %v8412 = vadd.f32 %v8213, %v8328
  %v8413 = vadd.f32 %v8214, %v8328
  %v8414 = vadd.f32 %v8215, %v8328
  %v8415 = vadd.f32 %v8216, %v8328
  %v8416 = vadd.f32 %v8217, %v8328
  %v8417 = vadd.f32 %v8218, %v8328
  %v8418 = vadd.f32 %v8219, %v8328
  %v8419 = vadd.f32 %v8220, %v8328
  %v8420 = vadd.f32 %v8221, %v8328
  %v8421 = vadd.f32 %v8222, %v8328
  %v8422 = vadd.f32 %v8223, %v8328
  %v8423 = vadd.f32 %v8224, %v8328
  %v8424 = vadd.f32 %v8225, %v8328
  %v8425 = vadd.f32 %v8226, %v8328
  %v8426 = vadd.f32 %v8227, %v8328
  %v8427 = vadd.f32 %v8228, %v8328
  %v8428 = vadd.f32 %v8229, %v8328
  %v8429 = vadd.f32 %v8230, %v8328
  %v8430 = vadd.f32 %v8231, %v8328
  %v8431 = vadd.f32 %v8232, %v8328
  %v8432 = vadd.f32 %v8233, %v8328
  %v8433 = vadd.f32 %v8234, %v8328
  %v8434 = vadd.f32 %v8235, %v8328
  %v8435 = vadd.f32 %v8236, %v8328
  %v8436 = vadd.f32 %v8237, %v8328
  %v8437 = vadd.f32 %v8238, %v8328
  %v8438 = vadd.f32 %v8239, %v8328
  %v8439 = vadd.f32 %v8240, %v8328
  %v8440 = vadd.f32 %v8241, %v8328
  %v8441 = vadd.f32 %v8242, %v8328
  %v8442 = vadd.f32 %v8243, %v8328
  %v8443 = vadd.f32 %v8244, %v8328
  %v8444 = vadd.f32 %v8245, %v8328
  %v8445 = vadd.f32 %v8246, %v8328
  %v8446 = vadd.f32 %v8247, %v8328
  %v8447 = vadd.f32 %v8248, %v8328
  %v8448 = vadd.f32 %v8249, %v8328
  %v8449 = vadd.f32 %v8250, %v8328
  %v8450 = vadd.f32 %v8251, %v8328
  %v8451 = vadd.f32 %v8252, %v8328
  %v8452 = vadd.f32 %v8253, %v8328
  %v8453 = vadd.f32 %v8254, %v8328
  %v8454 = vadd.f32 %v8255, %v8328
  %v8455 = vadd.f32 %v8256, %v8328
  %v8456 = vadd.f32 %v8257, %v8328
  %v8457 = vadd.f32 %v8258, %v8328
  %v8458 = vadd.f32 %v8259, %v8328
  %v8459 = vadd.f32 %v8260, %v8328
  %v8460 = vadd.f32 %v8261, %v8328
  %v8461 = vadd.f32 %v8262, %v8328
  %v8462 = vadd.f32 %v8263, %v8328
  %v8463 = vadd.f32 %v8264, %v8328
  %v8464 = vadd.f32 %v8265, %v8328
  %v8465 = vadd.f32 %v8266, %v8328
  %v8466 = vadd.f32 %v8267, %v8328
  %v8467 = vadd.f32 %v8268, %v8328
  %v8468 = vadd.f32 %v8269, %v8328
  %v8469 = vadd.f32 %v8270, %v8328
  %v8470 = vadd.f32 %v8271, %v8328
  %v8471 = vadd.f32 %v8272, %v8328
  %v8472 = vadd.f32 %v8273, %v8328
  %v8473 = vadd.f32 %v8274, %v8328
  %v8474 = vadd.f32 %v8275, %v8328
  %v8475 = vadd.f32 %v8276, %v8328
  %v8476 = vadd.f32 %v8277, %v8328
  %v8477 = vadd.f32 %v8278, %v8328
  %v8478 = vadd.f32 %v8279, %v8328
  %v8479 = vadd.f32 %v8280, %v8328
  %v8480 = vadd.f32 %v8281, %v8328
  %v8481 = vadd.f32 %v8282, %v8328
  %v8482 = vadd.f32 %v8283, %v8328
  %v8483 = vadd.f32 %v8284, %v8328
  %v8484 = vadd.f32 %v8285, %v8328
  %v8485 = vadd.f32 %v8286, %v8328
  %v8486 = vadd.f32 %v8287, %v8328
  %v8487 = vadd.f32 %v8288, %v8328
  %v8488 = vadd.f32 %v8289, %v8328
  %v8489 = vadd.f32 %v8290, %v8328
  %v8490 = vadd.f32 %v8291, %v8328
  %v8491 = vadd.f32 %v8292, %v8328
  %v8492 = vadd.f32 %v8293, %v8328
  %v8493 = vadd.f32 %v8294, %v8328
  %v8494 = vadd.f32 %v8295, %v8328
  %v8495 = vadd.f32 %v8296, %v8328
  %v8496 = vadd.f32 %v8297, %v8328
  %v8497 = vadd.f32 %v8298, %v8328
  %v8498 = vadd.f32 %v8299, %v8328
  %v8499 = vadd.f32 %v8300, %v8328
  %v8500 = vadd.f32 %v8301, %v8328
  %v8501 = vadd.f32 %v8302, %v8328
  %v8502 = vadd.f32 %v8303, %v8328
  %v8503 = vadd.f32 %v8304, %v8328
  %v8504 = vadd.f32 %v8305, %v8328
  %v8505 = vadd.f32 %v8306, %v8328
  %v8506 = vadd.f32 %v8307, %v8328
  %v8507 = vadd.f32 %v8308, %v8328
  %v8508 = vadd.f32 %v8309, %v8328
  %v8509 = vadd.f32 %v8310, %v8328
  %v8510 = vadd.f32 %v8311, %v8328
  %v8511 = vadd.f32 %v8312, %v8328
  %v8512 = vadd.f32 %v8313, %v8328
  %v8513 = vadd.f32 %v8314, %v8328
  %v8514 = vadd.f32 %v8315, %v8328
  %v8515 = vadd.f32 %v8316, %v8328
  %v8516 = vadd.f32 %v8317, %v8328
  %v8517 = vadd.f32 %v8318, %v8328
  %v8518 = vadd.f32 %v8319, %v8328
  %v8519 = vadd.f32 %v8320, %v8328
  %v8520 = vadd.f32 %v8321, %v8328
  %v8521 = vadd.f32 %v8322, %v8328
  %v8522 = vadd.f32 %v8323, %v8328
  %v8523 = vadd.f32 %v8324, %v8328
  %v8524 = vadd.f32 %v8325, %v8328
  %v8525 = vadd.f32 %v8326, %v8328
  %8526 = vst.msk [vmem:[%s5] sm:$0xff] %vm6918, %v8330
  %8527 = vst.msk [vmem:[%s5 + $0x8] sm:$0xff] %vm6918, %v8331
  %8528 = vst.msk [vmem:[%s5 + $0x10] sm:$0xff] %vm6918, %v8332
  %8529 = vst.msk [vmem:[%s5 + $0x18] sm:$0xff] %vm6918, %v8333
  %8530 = vst.msk [vmem:[%s5 + $0x20] sm:$0xff] %vm6918, %v8334
  %8531 = vst.msk [vmem:[%s5 + $0x28] sm:$0xff] %vm6918, %v8335
  %8532 = vst.msk [vmem:[%s5 + $0x30] sm:$0xff] %vm6918, %v8336
  %8533 = vst.msk [vmem:[%s5 + $0x38] sm:$0xff] %vm6918, %v8337
  %8534 = vst.msk [vmem:[%s5 + $0x40] sm:$0xff] %vm6918, %v8338
  %8535 = vst.msk [vmem:[%s5 + $0x48] sm:$0xff] %vm6918, %v8339
  %8536 = vst.msk [vmem:[%s5 + $0x50] sm:$0xff] %vm6918, %v8340
  %8537 = vst.msk [vmem:[%s5 + $0x58] sm:$0xff] %vm6918, %v8341
  %8538 = vst.msk [vmem:[%s5 + $0x60] sm:$0xff] %vm6918, %v8342
  %8539 = vst.msk [vmem:[%s5 + $0x68] sm:$0xff] %vm6918, %v8343
  %8540 = vst.msk [vmem:[%s5 + $0x70] sm:$0xff] %vm6918, %v8344
  %8541 = vst.msk [vmem:[%s5 + $0x78] sm:$0xff] %vm6918, %v8345
  %8542 = vst.msk [vmem:[%s5 + $0x80] sm:$0xff] %vm6918, %v8346
  %8543 = vst.msk [vmem:[%s5 + $0x88] sm:$0xff] %vm6918, %v8347
  %8544 = vst.msk [vmem:[%s5 + $0x90] sm:$0xff] %vm6918, %v8348
  %8545 = vst.msk [vmem:[%s5 + $0x98] sm:$0xff] %vm6918, %v8349
  %8546 = vst.msk [vmem:[%s5 + $0xa0] sm:$0xff] %vm6918, %v8350
  %8547 = vst.msk [vmem:[%s5 + $0xa8] sm:$0xff] %vm6918, %v8351
  %8548 = vst.msk [vmem:[%s5 + $0xb0] sm:$0xff] %vm6918, %v8352
  %8549 = vst.msk [vmem:[%s5 + $0xb8] sm:$0xff] %vm6918, %v8353
  %8550 = vst.msk [vmem:[%s5 + $0xc0] sm:$0xff] %vm6918, %v8354
  %8551 = vst.msk [vmem:[%s5 + $0xc8] sm:$0xff] %vm6918, %v8355
  %8552 = vst.msk [vmem:[%s5 + $0xd0] sm:$0xff] %vm6918, %v8356
  %8553 = vst.msk [vmem:[%s5 + $0xd8] sm:$0xff] %vm6918, %v8357
  %8554 = vst.msk [vmem:[%s5 + $0xe0] sm:$0xff] %vm6918, %v8358
  %8555 = vst.msk [vmem:[%s5 + $0xe8] sm:$0xff] %vm6918, %v8359
  %8556 = vst.msk [vmem:[%s5 + $0xf0] sm:$0xff] %vm6918, %v8360
  %8557 = vst.msk [vmem:[%s5 + $0xf8] sm:$0xff] %vm6918, %v8361
  %8558 = vst.msk [vmem:[%s5 + $0x100] sm:$0xff] %vm6918, %v8362
  %8559 = vst.msk [vmem:[%s5 + $0x108] sm:$0xff] %vm6918, %v8363
  %8560 = vst.msk [vmem:[%s5 + $0x110] sm:$0xff] %vm6918, %v8364
  %8561 = vst.msk [vmem:[%s5 + $0x118] sm:$0xff] %vm6918, %v8365
  %8562 = vst.msk [vmem:[%s5 + $0x120] sm:$0xff] %vm6918, %v8366
  %8563 = vst.msk [vmem:[%s5 + $0x128] sm:$0xff] %vm6918, %v8367
  %8564 = vst.msk [vmem:[%s5 + $0x130] sm:$0xff] %vm6918, %v8368
  %8565 = vst.msk [vmem:[%s5 + $0x138] sm:$0xff] %vm6918, %v8369
  %8566 = vst.msk [vmem:[%s5 + $0x140] sm:$0xff] %vm6918, %v8370
  %8567 = vst.msk [vmem:[%s5 + $0x148] sm:$0xff] %vm6918, %v8371
  %8568 = vst.msk [vmem:[%s5 + $0x150] sm:$0xff] %vm6918, %v8372
  %8569 = vst.msk [vmem:[%s5 + $0x158] sm:$0xff] %vm6918, %v8373
  %8570 = vst.msk [vmem:[%s5 + $0x160] sm:$0xff] %vm6918, %v8374
  %8571 = vst.msk [vmem:[%s5 + $0x168] sm:$0xff] %vm6918, %v8375
  %8572 = vst.msk [vmem:[%s5 + $0x170] sm:$0xff] %vm6918, %v8376
  %8573 = vst.msk [vmem:[%s5 + $0x178] sm:$0xff] %vm6918, %v8377
  %8574 = vst.msk [vmem:[%s5 + $0x180] sm:$0xff] %vm6918, %v8378
  %8575 = vst.msk [vmem:[%s5 + $0x188] sm:$0xff] %vm6918, %v8379
  %8576 = vst.msk [vmem:[%s5 + $0x190] sm:$0xff] %vm6918, %v8380
  %8577 = vst.msk [vmem:[%s5 + $0x198] sm:$0xff] %vm6918, %v8381
  %8578 = vst.msk [vmem:[%s5 + $0x1a0] sm:$0xff] %vm6918, %v8382
  %8579 = vst.msk [vmem:[%s5 + $0x1a8] sm:$0xff] %vm6918, %v8383
  %8580 = vst.msk [vmem:[%s5 + $0x1b0] sm:$0xff] %vm6918, %v8384
  %8581 = vst.msk [vmem:[%s5 + $0x1b8] sm:$0xff] %vm6918, %v8385
  %8582 = vst.msk [vmem:[%s5 + $0x1c0] sm:$0xff] %vm6918, %v8386
  %8583 = vst.msk [vmem:[%s5 + $0x1c8] sm:$0xff] %vm6918, %v8387
  %8584 = vst.msk [vmem:[%s5 + $0x1d0] sm:$0xff] %vm6918, %v8388
  %8585 = vst.msk [vmem:[%s5 + $0x1d8] sm:$0xff] %vm6918, %v8389
  %8586 = vst.msk [vmem:[%s5 + $0x1e0] sm:$0xff] %vm6918, %v8390
  %8587 = vst.msk [vmem:[%s5 + $0x1e8] sm:$0xff] %vm6918, %v8391
  %8588 = vst.msk [vmem:[%s5 + $0x1f0] sm:$0xff] %vm6918, %v8392
  %8589 = vst.msk [vmem:[%s5 + $0x1f8] sm:$0xff] %vm6918, %v8393
  %8590 = vst.msk [vmem:[%s5 + $0x200] sm:$0xff] %vm6918, %v8394
  %8591 = vst.msk [vmem:[%s5 + $0x208] sm:$0xff] %vm6918, %v8395
  %8592 = vst.msk [vmem:[%s5 + $0x210] sm:$0xff] %vm6918, %v8396
  %8593 = vst.msk [vmem:[%s5 + $0x218] sm:$0xff] %vm6918, %v8397
  %8594 = vst.msk [vmem:[%s5 + $0x220] sm:$0xff] %vm6918, %v8398
  %8595 = vst.msk [vmem:[%s5 + $0x228] sm:$0xff] %vm6918, %v8399
  %8596 = vst.msk [vmem:[%s5 + $0x230] sm:$0xff] %vm6918, %v8400
  %8597 = vst.msk [vmem:[%s5 + $0x238] sm:$0xff] %vm6918, %v8401
  %8598 = vst.msk [vmem:[%s5 + $0x240] sm:$0xff] %vm6918, %v8402
  %8599 = vst.msk [vmem:[%s5 + $0x248] sm:$0xff] %vm6918, %v8403
  %8600 = vst.msk [vmem:[%s5 + $0x250] sm:$0xff] %vm6918, %v8404
  %8601 = vst.msk [vmem:[%s5 + $0x258] sm:$0xff] %vm6918, %v8405
  %8602 = vst.msk [vmem:[%s5 + $0x260] sm:$0xff] %vm6918, %v8406
  %8603 = vst.msk [vmem:[%s5 + $0x268] sm:$0xff] %vm6918, %v8407
  %8604 = vst.msk [vmem:[%s5 + $0x270] sm:$0xff] %vm6918, %v8408
  %8605 = vst.msk [vmem:[%s5 + $0x278] sm:$0xff] %vm6918, %v8409
  %8606 = vst.msk [vmem:[%s5 + $0x280] sm:$0xff] %vm6918, %v8410
  %8607 = vst.msk [vmem:[%s5 + $0x288] sm:$0xff] %vm6918, %v8411
  %8608 = vst.msk [vmem:[%s5 + $0x290] sm:$0xff] %vm6918, %v8412
  %8609 = vst.msk [vmem:[%s5 + $0x298] sm:$0xff] %vm6918, %v8413
  %8610 = vst.msk [vmem:[%s5 + $0x2a0] sm:$0xff] %vm6918, %v8414
  %8611 = vst.msk [vmem:[%s5 + $0x2a8] sm:$0xff] %vm6918, %v8415
  %8612 = vst.msk [vmem:[%s5 + $0x2b0] sm:$0xff] %vm6918, %v8416
  %8613 = vst.msk [vmem:[%s5 + $0x2b8] sm:$0xff] %vm6918, %v8417
  %8614 = vst.msk [vmem:[%s5 + $0x2c0] sm:$0xff] %vm6918, %v8418
  %8615 = vst.msk [vmem:[%s5 + $0x2c8] sm:$0xff] %vm6918, %v8419
  %8616 = vst.msk [vmem:[%s5 + $0x2d0] sm:$0xff] %vm6918, %v8420
  %8617 = vst.msk [vmem:[%s5 + $0x2d8] sm:$0xff] %vm6918, %v8421
  %8618 = vst.msk [vmem:[%s5 + $0x2e0] sm:$0xff] %vm6918, %v8422
  %8619 = vst.msk [vmem:[%s5 + $0x2e8] sm:$0xff] %vm6918, %v8423
  %8620 = vst.msk [vmem:[%s5 + $0x2f0] sm:$0xff] %vm6918, %v8424
  %8621 = vst.msk [vmem:[%s5 + $0x2f8] sm:$0xff] %vm6918, %v8425
  %8622 = vst.msk [vmem:[%s5 + $0x300] sm:$0xff] %vm6918, %v8426
  %8623 = vst.msk [vmem:[%s5 + $0x308] sm:$0xff] %vm6918, %v8427
  %8624 = vst.msk [vmem:[%s5 + $0x310] sm:$0xff] %vm6918, %v8428
  %8625 = vst.msk [vmem:[%s5 + $0x318] sm:$0xff] %vm6918, %v8429
  %8626 = vst.msk [vmem:[%s5 + $0x320] sm:$0xff] %vm6918, %v8430
  %8627 = vst.msk [vmem:[%s5 + $0x328] sm:$0xff] %vm6918, %v8431
  %8628 = vst.msk [vmem:[%s5 + $0x330] sm:$0xff] %vm6918, %v8432
  %8629 = vst.msk [vmem:[%s5 + $0x338] sm:$0xff] %vm6918, %v8433
  %8630 = vst.msk [vmem:[%s5 + $0x340] sm:$0xff] %vm6918, %v8434
  %8631 = vst.msk [vmem:[%s5 + $0x348] sm:$0xff] %vm6918, %v8435
  %8632 = vst.msk [vmem:[%s5 + $0x350] sm:$0xff] %vm6918, %v8436
  %8633 = vst.msk [vmem:[%s5 + $0x358] sm:$0xff] %vm6918, %v8437
  %8634 = vst.msk [vmem:[%s5 + $0x360] sm:$0xff] %vm6918, %v8438
  %8635 = vst.msk [vmem:[%s5 + $0x368] sm:$0xff] %vm6918, %v8439
  %8636 = vst.msk [vmem:[%s5 + $0x370] sm:$0xff] %vm6918, %v8440
  %8637 = vst.msk [vmem:[%s5 + $0x378] sm:$0xff] %vm6918, %v8441
  %8638 = vst.msk [vmem:[%s5 + $0x380] sm:$0xff] %vm6918, %v8442
  %8639 = vst.msk [vmem:[%s5 + $0x388] sm:$0xff] %vm6918, %v8443
  %8640 = vst.msk [vmem:[%s5 + $0x390] sm:$0xff] %vm6918, %v8444
  %8641 = vst.msk [vmem:[%s5 + $0x398] sm:$0xff] %vm6918, %v8445
  %8642 = vst.msk [vmem:[%s5 + $0x3a0] sm:$0xff] %vm6918, %v8446
  %8643 = vst.msk [vmem:[%s5 + $0x3a8] sm:$0xff] %vm6918, %v8447
  %8644 = vst.msk [vmem:[%s5 + $0x3b0] sm:$0xff] %vm6918, %v8448
  %8645 = vst.msk [vmem:[%s5 + $0x3b8] sm:$0xff] %vm6918, %v8449
  %8646 = vst.msk [vmem:[%s5 + $0x3c0] sm:$0xff] %vm6918, %v8450
  %8647 = vst.msk [vmem:[%s5 + $0x3c8] sm:$0xff] %vm6918, %v8451
  %8648 = vst.msk [vmem:[%s5 + $0x3d0] sm:$0xff] %vm6918, %v8452
  %8649 = vst.msk [vmem:[%s5 + $0x3d8] sm:$0xff] %vm6918, %v8453
  %8650 = vst.msk [vmem:[%s5 + $0x3e0] sm:$0xff] %vm6918, %v8454
  %8651 = vst.msk [vmem:[%s5 + $0x3e8] sm:$0xff] %vm6918, %v8455
  %8652 = vst.msk [vmem:[%s5 + $0x3f0] sm:$0xff] %vm6918, %v8456
  %8653 = vst.msk [vmem:[%s5 + $0x3f8] sm:$0xff] %vm6918, %v8457
  %8654 = vst.msk [vmem:[%s5 + $0x400] sm:$0xff] %vm6918, %v8458
  %8655 = vst.msk [vmem:[%s5 + $0x408] sm:$0xff] %vm6918, %v8459
  %8656 = vst.msk [vmem:[%s5 + $0x410] sm:$0xff] %vm6918, %v8460
  %8657 = vst.msk [vmem:[%s5 + $0x418] sm:$0xff] %vm6918, %v8461
  %8658 = vst.msk [vmem:[%s5 + $0x420] sm:$0xff] %vm6918, %v8462
  %8659 = vst.msk [vmem:[%s5 + $0x428] sm:$0xff] %vm6918, %v8463
  %8660 = vst.msk [vmem:[%s5 + $0x430] sm:$0xff] %vm6918, %v8464
  %8661 = vst.msk [vmem:[%s5 + $0x438] sm:$0xff] %vm6918, %v8465
  %8662 = vst.msk [vmem:[%s5 + $0x440] sm:$0xff] %vm6918, %v8466
  %8663 = vst.msk [vmem:[%s5 + $0x448] sm:$0xff] %vm6918, %v8467
  %8664 = vst.msk [vmem:[%s5 + $0x450] sm:$0xff] %vm6918, %v8468
  %8665 = vst.msk [vmem:[%s5 + $0x458] sm:$0xff] %vm6918, %v8469
  %8666 = vst.msk [vmem:[%s5 + $0x460] sm:$0xff] %vm6918, %v8470
  %8667 = vst.msk [vmem:[%s5 + $0x468] sm:$0xff] %vm6918, %v8471
  %8668 = vst.msk [vmem:[%s5 + $0x470] sm:$0xff] %vm6918, %v8472
  %8669 = vst.msk [vmem:[%s5 + $0x478] sm:$0xff] %vm6918, %v8473
  %8670 = vst.msk [vmem:[%s5 + $0x480] sm:$0xff] %vm6918, %v8474
  %8671 = vst.msk [vmem:[%s5 + $0x488] sm:$0xff] %vm6918, %v8475
  %8672 = vst.msk [vmem:[%s5 + $0x490] sm:$0xff] %vm6918, %v8476
  %8673 = vst.msk [vmem:[%s5 + $0x498] sm:$0xff] %vm6918, %v8477
  %8674 = vst.msk [vmem:[%s5 + $0x4a0] sm:$0xff] %vm6918, %v8478
  %8675 = vst.msk [vmem:[%s5 + $0x4a8] sm:$0xff] %vm6918, %v8479
  %8676 = vst.msk [vmem:[%s5 + $0x4b0] sm:$0xff] %vm6918, %v8480
  %8677 = vst.msk [vmem:[%s5 + $0x4b8] sm:$0xff] %vm6918, %v8481
  %8678 = vst.msk [vmem:[%s5 + $0x4c0] sm:$0xff] %vm6918, %v8482
  %8679 = vst.msk [vmem:[%s5 + $0x4c8] sm:$0xff] %vm6918, %v8483
  %8680 = vst.msk [vmem:[%s5 + $0x4d0] sm:$0xff] %vm6918, %v8484
  %8681 = vst.msk [vmem:[%s5 + $0x4d8] sm:$0xff] %vm6918, %v8485
  %8682 = vst.msk [vmem:[%s5 + $0x4e0] sm:$0xff] %vm6918, %v8486
  %8683 = vst.msk [vmem:[%s5 + $0x4e8] sm:$0xff] %vm6918, %v8487
  %8684 = vst.msk [vmem:[%s5 + $0x4f0] sm:$0xff] %vm6918, %v8488
  %8685 = vst.msk [vmem:[%s5 + $0x4f8] sm:$0xff] %vm6918, %v8489
  %8686 = vst.msk [vmem:[%s5 + $0x500] sm:$0xff] %vm6918, %v8490
  %8687 = vst.msk [vmem:[%s5 + $0x508] sm:$0xff] %vm6918, %v8491
  %8688 = vst.msk [vmem:[%s5 + $0x510] sm:$0xff] %vm6918, %v8492
  %8689 = vst.msk [vmem:[%s5 + $0x518] sm:$0xff] %vm6918, %v8493
  %8690 = vst.msk [vmem:[%s5 + $0x520] sm:$0xff] %vm6918, %v8494
  %8691 = vst.msk [vmem:[%s5 + $0x528] sm:$0xff] %vm6918, %v8495
  %8692 = vst.msk [vmem:[%s5 + $0x530] sm:$0xff] %vm6918, %v8496
  %8693 = vst.msk [vmem:[%s5 + $0x538] sm:$0xff] %vm6918, %v8497
  %8694 = vst.msk [vmem:[%s5 + $0x540] sm:$0xff] %vm6918, %v8498
  %8695 = vst.msk [vmem:[%s5 + $0x548] sm:$0xff] %vm6918, %v8499
  %8696 = vst.msk [vmem:[%s5 + $0x550] sm:$0xff] %vm6918, %v8500
  %8697 = vst.msk [vmem:[%s5 + $0x558] sm:$0xff] %vm6918, %v8501
  %8698 = vst.msk [vmem:[%s5 + $0x560] sm:$0xff] %vm6918, %v8502
  %8699 = vst.msk [vmem:[%s5 + $0x568] sm:$0xff] %vm6918, %v8503
  %8700 = vst.msk [vmem:[%s5 + $0x570] sm:$0xff] %vm6918, %v8504
  %8701 = vst.msk [vmem:[%s5 + $0x578] sm:$0xff] %vm6918, %v8505
  %8702 = vst.msk [vmem:[%s5 + $0x580] sm:$0xff] %vm6918, %v8506
  %8703 = vst.msk [vmem:[%s5 + $0x588] sm:$0xff] %vm6918, %v8507
  %8704 = vst.msk [vmem:[%s5 + $0x590] sm:$0xff] %vm6918, %v8508
  %8705 = vst.msk [vmem:[%s5 + $0x598] sm:$0xff] %vm6918, %v8509
  %8706 = vst.msk [vmem:[%s5 + $0x5a0] sm:$0xff] %vm6918, %v8510
  %8707 = vst.msk [vmem:[%s5 + $0x5a8] sm:$0xff] %vm6918, %v8511
  %8708 = vst.msk [vmem:[%s5 + $0x5b0] sm:$0xff] %vm6918, %v8512
  %8709 = vst.msk [vmem:[%s5 + $0x5b8] sm:$0xff] %vm6918, %v8513
  %8710 = vst.msk [vmem:[%s5 + $0x5c0] sm:$0xff] %vm6918, %v8514
  %8711 = vst.msk [vmem:[%s5 + $0x5c8] sm:$0xff] %vm6918, %v8515
  %8712 = vst.msk [vmem:[%s5 + $0x5d0] sm:$0xff] %vm6918, %v8516
  %8713 = vst.msk [vmem:[%s5 + $0x5d8] sm:$0xff] %vm6918, %v8517
  %8714 = vst.msk [vmem:[%s5 + $0x5e0] sm:$0xff] %vm6918, %v8518
  %8715 = vst.msk [vmem:[%s5 + $0x5e8] sm:$0xff] %vm6918, %v8519
  %8716 = vst.msk [vmem:[%s5 + $0x5f0] sm:$0xff] %vm6918, %v8520
  %8717 = vst.msk [vmem:[%s5 + $0x5f8] sm:$0xff] %vm6918, %v8521
  %8718 = vst.msk [vmem:[%s5 + $0x600] sm:$0xff] %vm6918, %v8522
  %8719 = vst.msk [vmem:[%s5 + $0x608] sm:$0xff] %vm6918, %v8523
  %8720 = vst.msk [vmem:[%s5 + $0x610] sm:$0xff] %vm6918, %v8524
  %8721 = vst.msk [vmem:[%s5 + $0x618] sm:$0xff] %vm6918, %v8525
  // Predicated region
  $region22: #{forward.4} parent=0 // pred_check
    _
  $region23: #{forward.4} parent=0 // pred_check_branch
    %8723 = sbr.rel (0) target = $region25
  $region24: #{forward.4} parent=0 // pred_region
    _
  $region25: #{forward.4} parent=0 // pred_fallthru
    _
  // Predicated region
  $region26: #{forward.4} parent=0 // pred_check
    _
  $region27: #{forward.4} parent=0 // pred_check_branch
    %8725 = sbr.rel (0) target = $region29
  $region28: #{forward.4} parent=0 // pred_region
    _
  $region29: #{forward.4} parent=0 // pred_fallthru
    _

// kernel: forward.5
$region0: #{forward.5}
  #allocation0 [shape = 'u32[]', space=smem, size = 0x4, offset = 0x4, fixed_abs, tag = 'smem constant byte address 0x4 - core index']
  #allocation1 [shape = 'u32[72,128]{1,0:T(1,128)}', space=vmem, size = 0x9000, scoped, tag = 'internal scratch']
  %s0 = inlined_call_operand.vmem [shape: f32[1152,150], index: 0, kind: input, shape index: {}]
  %s1 = inlined_call_operand.vmem [shape: f32[150,16], index: 1, kind: input, shape index: {}]
  %s2 = inlined_call_operand.vmem [shape: f32[1,16], index: 2, kind: input, shape index: {}]
  %s3 = inlined_call_operand.vmem [shape: f32[1,16], index: 3, kind: input, shape index: {}]
  %s4 = inlined_call_operand.vmem [shape: f32[1,16], index: 4, kind: input, shape index: {}]
  %s5 = inlined_call_operand.vmem [shape: f32[288,16], index: 5, kind: output, shape index: {}]
  %s6 = sld [smem:[#allocation0]]
  $region30: #{forward.5} parent=0
    _
  %s8 = ssub.s32 1, %s6
  %s9 = scalar_select 0, %s8, %s6
  // Predicated region
  $region2: #{forward.5} parent=0 // pred_check
    _
  $region3: #{forward.5} parent=0 // pred_check_branch
    %11 = sbr.rel (0) target = $region5
  $region4: #{forward.5} parent=0 // pred_region
    _
  $region5: #{forward.5} parent=0 // pred_fallthru
    _
  // Predicated region
  $region6: #{forward.5} parent=0 // pred_check
    _
  $region7: #{forward.5} parent=0 // pred_check_branch
    %13 = sbr.rel (0) target = $region9
  $region8: #{forward.5} parent=0 // pred_region
    _
  $region9: #{forward.5} parent=0 // pred_fallthru
    _
  // Predicated region
  $region10: #{forward.5} parent=0 // pred_check
    _
  $region11: #{forward.5} parent=0 // pred_check_branch
    %15 = sbr.rel (0) target = $region13
  $region12: #{forward.5} parent=0 // pred_region
    _
  $region13: #{forward.5} parent=0 // pred_fallthru
    _
  // Predicated region
  $region14: #{forward.5} parent=0 // pred_check
    _
  $region15: #{forward.5} parent=0 // pred_check_branch
    %17 = sbr.rel (0) target = $region17
  $region16: #{forward.5} parent=0 // pred_region
    _
  $region17: #{forward.5} parent=0 // pred_fallthru
    _
  // Predicated region
  $region18: #{forward.5} parent=0 // pred_check
    _
  $region19: #{forward.5} parent=0 // pred_check_branch
    %19 = sbr.rel (0) target = $region21
  $region20: #{forward.5} parent=0 // pred_region
    _
  $region21: #{forward.5} parent=0 // pred_fallthru
    _
  %v20 = vld [vmem:[%s0] sm:$0xff]
  %v21 = vld [vmem:[%s0 + $0x8] sm:$0xff]
  %v22 = vld [vmem:[%s0 + $0x10] sm:$0xff]
  %v23 = vld [vmem:[%s0 + $0x18] sm:$0xff]
  %v24 = vld [vmem:[%s0 + $0x20] sm:$0xff]
  %v25 = vld [vmem:[%s0 + $0x28] sm:$0xff]
  %v26 = vld [vmem:[%s0 + $0x30] sm:$0xff]
  %v27 = vld [vmem:[%s0 + $0x38] sm:$0xff]
  %v28 = vld [vmem:[%s0 + $0x40] sm:$0xff]
  %v29 = vld [vmem:[%s0 + $0x48] sm:$0xff]
  %v30 = vld [vmem:[%s0 + $0x50] sm:$0xff]
  %v31 = vld [vmem:[%s0 + $0x58] sm:$0xff]
  %v32 = vld [vmem:[%s0 + $0x60] sm:$0xff]
  %v33 = vld [vmem:[%s0 + $0x68] sm:$0xff]
  %v34 = vld [vmem:[%s0 + $0x70] sm:$0xff]
  %v35 = vld [vmem:[%s0 + $0x78] sm:$0xff]
  %v36 = vld [vmem:[%s0 + $0x80] sm:$0xff]
  %v37 = vld [vmem:[%s0 + $0x88] sm:$0xff]
  %v38 = vld [vmem:[%s0 + $0x90] sm:$0xff]
  %v39 = vld [vmem:[%s0 + $0x98] sm:$0xff]
  %v40 = vld [vmem:[%s0 + $0xa0] sm:$0xff]
  %v41 = vld [vmem:[%s0 + $0xa8] sm:$0xff]
  %v42 = vld [vmem:[%s0 + $0xb0] sm:$0xff]
  %v43 = vld [vmem:[%s0 + $0xb8] sm:$0xff]
  %v44 = vld [vmem:[%s0 + $0xc0] sm:$0xff]
  %v45 = vld [vmem:[%s0 + $0xc8] sm:$0xff]
  %v46 = vld [vmem:[%s0 + $0xd0] sm:$0xff]
  %v47 = vld [vmem:[%s0 + $0xd8] sm:$0xff]
  %v48 = vld [vmem:[%s0 + $0xe0] sm:$0xff]
  %v49 = vld [vmem:[%s0 + $0xe8] sm:$0xff]
  %v50 = vld [vmem:[%s0 + $0xf0] sm:$0xff]
  %v51 = vld [vmem:[%s0 + $0xf8] sm:$0xff]
  %v52 = vld [vmem:[%s0 + $0x100] sm:$0xff]
  %v53 = vld [vmem:[%s0 + $0x108] sm:$0xff]
  %v54 = vld [vmem:[%s0 + $0x110] sm:$0xff]
  %v55 = vld [vmem:[%s0 + $0x118] sm:$0xff]
  %v56 = vld [vmem:[%s0 + $0x120] sm:$0xff]
  %v57 = vld [vmem:[%s0 + $0x128] sm:$0xff]
  %v58 = vld [vmem:[%s0 + $0x130] sm:$0xff]
  %v59 = vld [vmem:[%s0 + $0x138] sm:$0xff]
  %v60 = vld [vmem:[%s0 + $0x140] sm:$0xff]
  %v61 = vld [vmem:[%s0 + $0x148] sm:$0xff]
  %v62 = vld [vmem:[%s0 + $0x150] sm:$0xff]
  %v63 = vld [vmem:[%s0 + $0x158] sm:$0xff]
  %v64 = vld [vmem:[%s0 + $0x160] sm:$0xff]
  %v65 = vld [vmem:[%s0 + $0x168] sm:$0xff]
  %v66 = vld [vmem:[%s0 + $0x170] sm:$0xff]
  %v67 = vld [vmem:[%s0 + $0x178] sm:$0xff]
  %v68 = vld [vmem:[%s0 + $0x180] sm:$0xff]
  %v69 = vld [vmem:[%s0 + $0x188] sm:$0xff]
  %v70 = vld [vmem:[%s0 + $0x190] sm:$0xff]
  %v71 = vld [vmem:[%s0 + $0x198] sm:$0xff]
  %v72 = vld [vmem:[%s0 + $0x1a0] sm:$0xff]
  %v73 = vld [vmem:[%s0 + $0x1a8] sm:$0xff]
  %v74 = vld [vmem:[%s0 + $0x1b0] sm:$0xff]
  %v75 = vld [vmem:[%s0 + $0x1b8] sm:$0xff]
  %v76 = vld [vmem:[%s0 + $0x1c0] sm:$0xff]
  %v77 = vld [vmem:[%s0 + $0x1c8] sm:$0xff]
  %v78 = vld [vmem:[%s0 + $0x1d0] sm:$0xff]
  %v79 = vld [vmem:[%s0 + $0x1d8] sm:$0xff]
  %v80 = vld [vmem:[%s0 + $0x1e0] sm:$0xff]
  %v81 = vld [vmem:[%s0 + $0x1e8] sm:$0xff]
  %v82 = vld [vmem:[%s0 + $0x1f0] sm:$0xff]
  %v83 = vld [vmem:[%s0 + $0x1f8] sm:$0xff]
  %v84 = vld [vmem:[%s0 + $0x200] sm:$0xff]
  %v85 = vld [vmem:[%s0 + $0x208] sm:$0xff]
  %v86 = vld [vmem:[%s0 + $0x210] sm:$0xff]
  %v87 = vld [vmem:[%s0 + $0x218] sm:$0xff]
  %v88 = vld [vmem:[%s0 + $0x220] sm:$0xff]
  %v89 = vld [vmem:[%s0 + $0x228] sm:$0xff]
  %v90 = vld [vmem:[%s0 + $0x230] sm:$0xff]
  %v91 = vld [vmem:[%s0 + $0x238] sm:$0xff]
  %v92 = vld [vmem:[%s0 + $0x240] sm:$0xff]
  %v93 = vld [vmem:[%s0 + $0x248] sm:$0xff]
  %v94 = vld [vmem:[%s0 + $0x250] sm:$0xff]
  %v95 = vld [vmem:[%s0 + $0x258] sm:$0xff]
  %v96 = vld [vmem:[%s0 + $0x260] sm:$0xff]
  %v97 = vld [vmem:[%s0 + $0x268] sm:$0xff]
  %v98 = vld [vmem:[%s0 + $0x270] sm:$0xff]
  %v99 = vld [vmem:[%s0 + $0x278] sm:$0xff]
  %v100 = vld [vmem:[%s0 + $0x280] sm:$0xff]
  %v101 = vld [vmem:[%s0 + $0x288] sm:$0xff]
  %v102 = vld [vmem:[%s0 + $0x290] sm:$0xff]
  %v103 = vld [vmem:[%s0 + $0x298] sm:$0xff]
  %v104 = vld [vmem:[%s0 + $0x2a0] sm:$0xff]
  %v105 = vld [vmem:[%s0 + $0x2a8] sm:$0xff]
  %v106 = vld [vmem:[%s0 + $0x2b0] sm:$0xff]
  %v107 = vld [vmem:[%s0 + $0x2b8] sm:$0xff]
  %v108 = vld [vmem:[%s0 + $0x2c0] sm:$0xff]
  %v109 = vld [vmem:[%s0 + $0x2c8] sm:$0xff]
  %v110 = vld [vmem:[%s0 + $0x2d0] sm:$0xff]
  %v111 = vld [vmem:[%s0 + $0x2d8] sm:$0xff]
  %v112 = vld [vmem:[%s0 + $0x2e0] sm:$0xff]
  %v113 = vld [vmem:[%s0 + $0x2e8] sm:$0xff]
  %v114 = vld [vmem:[%s0 + $0x2f0] sm:$0xff]
  %v115 = vld [vmem:[%s0 + $0x2f8] sm:$0xff]
  %v116 = vld [vmem:[%s0 + $0x300] sm:$0xff]
  %v117 = vld [vmem:[%s0 + $0x308] sm:$0xff]
  %v118 = vld [vmem:[%s0 + $0x310] sm:$0xff]
  %v119 = vld [vmem:[%s0 + $0x318] sm:$0xff]
  %v120 = vld [vmem:[%s0 + $0x320] sm:$0xff]
  %v121 = vld [vmem:[%s0 + $0x328] sm:$0xff]
  %v122 = vld [vmem:[%s0 + $0x330] sm:$0xff]
  %v123 = vld [vmem:[%s0 + $0x338] sm:$0xff]
  %v124 = vld [vmem:[%s0 + $0x340] sm:$0xff]
  %v125 = vld [vmem:[%s0 + $0x348] sm:$0xff]
  %v126 = vld [vmem:[%s0 + $0x350] sm:$0xff]
  %v127 = vld [vmem:[%s0 + $0x358] sm:$0xff]
  %v128 = vld [vmem:[%s0 + $0x360] sm:$0xff]
  %v129 = vld [vmem:[%s0 + $0x368] sm:$0xff]
  %v130 = vld [vmem:[%s0 + $0x370] sm:$0xff]
  %v131 = vld [vmem:[%s0 + $0x378] sm:$0xff]
  %v132 = vld [vmem:[%s0 + $0x380] sm:$0xff]
  %v133 = vld [vmem:[%s0 + $0x388] sm:$0xff]
  %v134 = vld [vmem:[%s0 + $0x390] sm:$0xff]
  %v135 = vld [vmem:[%s0 + $0x398] sm:$0xff]
  %v136 = vld [vmem:[%s0 + $0x3a0] sm:$0xff]
  %v137 = vld [vmem:[%s0 + $0x3a8] sm:$0xff]
  %v138 = vld [vmem:[%s0 + $0x3b0] sm:$0xff]
  %v139 = vld [vmem:[%s0 + $0x3b8] sm:$0xff]
  %v140 = vld [vmem:[%s0 + $0x3c0] sm:$0xff]
  %v141 = vld [vmem:[%s0 + $0x3c8] sm:$0xff]
  %v142 = vld [vmem:[%s0 + $0x3d0] sm:$0xff]
  %v143 = vld [vmem:[%s0 + $0x3d8] sm:$0xff]
  %v144 = vld [vmem:[%s0 + $0x3e0] sm:$0xff]
  %v145 = vld [vmem:[%s0 + $0x3e8] sm:$0xff]
  %v146 = vld [vmem:[%s0 + $0x3f0] sm:$0xff]
  %v147 = vld [vmem:[%s0 + $0x3f8] sm:$0xff]
  %v148 = vld [vmem:[%s0 + $0x400] sm:$0xff]
  %v149 = vld [vmem:[%s0 + $0x408] sm:$0xff]
  %v150 = vld [vmem:[%s0 + $0x410] sm:$0xff]
  %v151 = vld [vmem:[%s0 + $0x418] sm:$0xff]
  %v152 = vld [vmem:[%s0 + $0x420] sm:$0xff]
  %v153 = vld [vmem:[%s0 + $0x428] sm:$0xff]
  %v154 = vld [vmem:[%s0 + $0x430] sm:$0xff]
  %v155 = vld [vmem:[%s0 + $0x438] sm:$0xff]
  %v156 = vld [vmem:[%s0 + $0x440] sm:$0xff]
  %v157 = vld [vmem:[%s0 + $0x448] sm:$0xff]
  %v158 = vld [vmem:[%s0 + $0x450] sm:$0xff]
  %v159 = vld [vmem:[%s0 + $0x458] sm:$0xff]
  %v160 = vld [vmem:[%s0 + $0x460] sm:$0xff]
  %v161 = vld [vmem:[%s0 + $0x468] sm:$0xff]
  %v162 = vld [vmem:[%s0 + $0x470] sm:$0xff]
  %v163 = vld [vmem:[%s0 + $0x478] sm:$0xff]
  %v164 = vld [vmem:[%s0 + $0x480] sm:$0xff]
  %v165 = vld [vmem:[%s0 + $0x488] sm:$0xff]
  %v166 = vld [vmem:[%s0 + $0x490] sm:$0xff]
  %v167 = vld [vmem:[%s0 + $0x498] sm:$0xff]
  %v168 = vld [vmem:[%s0 + $0x4a0] sm:$0xff]
  %v169 = vld [vmem:[%s0 + $0x4a8] sm:$0xff]
  %v170 = vld [vmem:[%s0 + $0x4b0] sm:$0xff]
  %v171 = vld [vmem:[%s0 + $0x4b8] sm:$0xff]
  %v172 = vld [vmem:[%s0 + $0x4c0] sm:$0xff]
  %v173 = vld [vmem:[%s0 + $0x4c8] sm:$0xff]
  %v174 = vld [vmem:[%s0 + $0x4d0] sm:$0xff]
  %v175 = vld [vmem:[%s0 + $0x4d8] sm:$0xff]
  %v176 = vld [vmem:[%s0 + $0x4e0] sm:$0xff]
  %v177 = vld [vmem:[%s0 + $0x4e8] sm:$0xff]
  %v178 = vld [vmem:[%s0 + $0x4f0] sm:$0xff]
  %v179 = vld [vmem:[%s0 + $0x4f8] sm:$0xff]
  %v180 = vld [vmem:[%s0 + $0x500] sm:$0xff]
  %v181 = vld [vmem:[%s0 + $0x508] sm:$0xff]
  %v182 = vld [vmem:[%s0 + $0x510] sm:$0xff]
  %v183 = vld [vmem:[%s0 + $0x518] sm:$0xff]
  %v184 = vld [vmem:[%s0 + $0x520] sm:$0xff]
  %v185 = vld [vmem:[%s0 + $0x528] sm:$0xff]
  %v186 = vld [vmem:[%s0 + $0x530] sm:$0xff]
  %v187 = vld [vmem:[%s0 + $0x538] sm:$0xff]
  %v188 = vld [vmem:[%s0 + $0x540] sm:$0xff]
  %v189 = vld [vmem:[%s0 + $0x548] sm:$0xff]
  %v190 = vld [vmem:[%s0 + $0x550] sm:$0xff]
  %v191 = vld [vmem:[%s0 + $0x558] sm:$0xff]
  %v192 = vld [vmem:[%s0 + $0x560] sm:$0xff]
  %v193 = vld [vmem:[%s0 + $0x568] sm:$0xff]
  %v194 = vld [vmem:[%s0 + $0x570] sm:$0xff]
  %v195 = vld [vmem:[%s0 + $0x578] sm:$0xff]
  %v196 = vld [vmem:[%s0 + $0x580] sm:$0xff]
  %v197 = vld [vmem:[%s0 + $0x588] sm:$0xff]
  %v198 = vld [vmem:[%s0 + $0x590] sm:$0xff]
  %v199 = vld [vmem:[%s0 + $0x598] sm:$0xff]
  %v200 = vld [vmem:[%s0 + $0x5a0] sm:$0xff]
  %v201 = vld [vmem:[%s0 + $0x5a8] sm:$0xff]
  %v202 = vld [vmem:[%s0 + $0x5b0] sm:$0xff]
  %v203 = vld [vmem:[%s0 + $0x5b8] sm:$0xff]
  %v204 = vld [vmem:[%s0 + $0x5c0] sm:$0xff]
  %v205 = vld [vmem:[%s0 + $0x5c8] sm:$0xff]
  %v206 = vld [vmem:[%s0 + $0x5d0] sm:$0xff]
  %v207 = vld [vmem:[%s0 + $0x5d8] sm:$0xff]
  %v208 = vld [vmem:[%s0 + $0x5e0] sm:$0xff]
  %v209 = vld [vmem:[%s0 + $0x5e8] sm:$0xff]
  %v210 = vld [vmem:[%s0 + $0x5f0] sm:$0xff]
  %v211 = vld [vmem:[%s0 + $0x5f8] sm:$0xff]
  %v212 = vld [vmem:[%s0 + $0x600] sm:$0xff]
  %v213 = vld [vmem:[%s0 + $0x608] sm:$0xff]
  %v214 = vld [vmem:[%s0 + $0x610] sm:$0xff]
  %v215 = vld [vmem:[%s0 + $0x618] sm:$0xff]
  %v216 = vld [vmem:[%s0 + $0x620] sm:$0xff]
  %v217 = vld [vmem:[%s0 + $0x628] sm:$0xff]
  %v218 = vld [vmem:[%s0 + $0x630] sm:$0xff]
  %v219 = vld [vmem:[%s0 + $0x638] sm:$0xff]
  %v220 = vld [vmem:[%s0 + $0x640] sm:$0xff]
  %v221 = vld [vmem:[%s0 + $0x648] sm:$0xff]
  %v222 = vld [vmem:[%s0 + $0x650] sm:$0xff]
  %v223 = vld [vmem:[%s0 + $0x658] sm:$0xff]
  %v224 = vld [vmem:[%s0 + $0x660] sm:$0xff]
  %v225 = vld [vmem:[%s0 + $0x668] sm:$0xff]
  %v226 = vld [vmem:[%s0 + $0x670] sm:$0xff]
  %v227 = vld [vmem:[%s0 + $0x678] sm:$0xff]
  %v228 = vld [vmem:[%s0 + $0x680] sm:$0xff]
  %v229 = vld [vmem:[%s0 + $0x688] sm:$0xff]
  %v230 = vld [vmem:[%s0 + $0x690] sm:$0xff]
  %v231 = vld [vmem:[%s0 + $0x698] sm:$0xff]
  %v232 = vld [vmem:[%s0 + $0x6a0] sm:$0xff]
  %v233 = vld [vmem:[%s0 + $0x6a8] sm:$0xff]
  %v234 = vld [vmem:[%s0 + $0x6b0] sm:$0xff]
  %v235 = vld [vmem:[%s0 + $0x6b8] sm:$0xff]
  %v236 = vld [vmem:[%s0 + $0x6c0] sm:$0xff]
  %v237 = vld [vmem:[%s0 + $0x6c8] sm:$0xff]
  %v238 = vld [vmem:[%s0 + $0x6d0] sm:$0xff]
  %v239 = vld [vmem:[%s0 + $0x6d8] sm:$0xff]
  %v240 = vld [vmem:[%s0 + $0x6e0] sm:$0xff]
  %v241 = vld [vmem:[%s0 + $0x6e8] sm:$0xff]
  %v242 = vld [vmem:[%s0 + $0x6f0] sm:$0xff]
  %v243 = vld [vmem:[%s0 + $0x6f8] sm:$0xff]
  %v244 = vld [vmem:[%s0 + $0x700] sm:$0xff]
  %v245 = vld [vmem:[%s0 + $0x708] sm:$0xff]
  %v246 = vld [vmem:[%s0 + $0x710] sm:$0xff]
  %v247 = vld [vmem:[%s0 + $0x718] sm:$0xff]
  %v248 = vld [vmem:[%s0 + $0x720] sm:$0xff]
  %v249 = vld [vmem:[%s0 + $0x728] sm:$0xff]
  %v250 = vld [vmem:[%s0 + $0x730] sm:$0xff]
  %v251 = vld [vmem:[%s0 + $0x738] sm:$0xff]
  %v252 = vld [vmem:[%s0 + $0x740] sm:$0xff]
  %v253 = vld [vmem:[%s0 + $0x748] sm:$0xff]
  %v254 = vld [vmem:[%s0 + $0x750] sm:$0xff]
  %v255 = vld [vmem:[%s0 + $0x758] sm:$0xff]
  %v256 = vld [vmem:[%s0 + $0x760] sm:$0xff]
  %v257 = vld [vmem:[%s0 + $0x768] sm:$0xff]
  %v258 = vld [vmem:[%s0 + $0x770] sm:$0xff]
  %v259 = vld [vmem:[%s0 + $0x778] sm:$0xff]
  %v260 = vld [vmem:[%s0 + $0x780] sm:$0xff]
  %v261 = vld [vmem:[%s0 + $0x788] sm:$0xff]
  %v262 = vld [vmem:[%s0 + $0x790] sm:$0xff]
  %v263 = vld [vmem:[%s0 + $0x798] sm:$0xff]
  %v264 = vld [vmem:[%s0 + $0x7a0] sm:$0xff]
  %v265 = vld [vmem:[%s0 + $0x7a8] sm:$0xff]
  %v266 = vld [vmem:[%s0 + $0x7b0] sm:$0xff]
  %v267 = vld [vmem:[%s0 + $0x7b8] sm:$0xff]
  %v268 = vld [vmem:[%s0 + $0x7c0] sm:$0xff]
  %v269 = vld [vmem:[%s0 + $0x7c8] sm:$0xff]
  %v270 = vld [vmem:[%s0 + $0x7d0] sm:$0xff]
  %v271 = vld [vmem:[%s0 + $0x7d8] sm:$0xff]
  %v272 = vld [vmem:[%s0 + $0x7e0] sm:$0xff]
  %v273 = vld [vmem:[%s0 + $0x7e8] sm:$0xff]
  %v274 = vld [vmem:[%s0 + $0x7f0] sm:$0xff]
  %v275 = vld [vmem:[%s0 + $0x7f8] sm:$0xff]
  %v276 = vld [vmem:[%s0 + $0x800] sm:$0xff]
  %v277 = vld [vmem:[%s0 + $0x808] sm:$0xff]
  %v278 = vld [vmem:[%s0 + $0x810] sm:$0xff]
  %v279 = vld [vmem:[%s0 + $0x818] sm:$0xff]
  %v280 = vld [vmem:[%s0 + $0x820] sm:$0xff]
  %v281 = vld [vmem:[%s0 + $0x828] sm:$0xff]
  %v282 = vld [vmem:[%s0 + $0x830] sm:$0xff]
  %v283 = vld [vmem:[%s0 + $0x838] sm:$0xff]
  %v284 = vld [vmem:[%s0 + $0x840] sm:$0xff]
  %v285 = vld [vmem:[%s0 + $0x848] sm:$0xff]
  %v286 = vld [vmem:[%s0 + $0x850] sm:$0xff]
  %v287 = vld [vmem:[%s0 + $0x858] sm:$0xff]
  %v288 = vld [vmem:[%s0 + $0x860] sm:$0xff]
  %v289 = vld [vmem:[%s0 + $0x868] sm:$0xff]
  %v290 = vld [vmem:[%s0 + $0x870] sm:$0xff]
  %v291 = vld [vmem:[%s0 + $0x878] sm:$0xff]
  %v292 = vld [vmem:[%s0 + $0x880] sm:$0xff]
  %v293 = vld [vmem:[%s0 + $0x888] sm:$0xff]
  %v294 = vld [vmem:[%s0 + $0x890] sm:$0xff]
  %v295 = vld [vmem:[%s0 + $0x898] sm:$0xff]
  %v296 = vld [vmem:[%s0 + $0x8a0] sm:$0xff]
  %v297 = vld [vmem:[%s0 + $0x8a8] sm:$0xff]
  %v298 = vld [vmem:[%s0 + $0x8b0] sm:$0xff]
  %v299 = vld [vmem:[%s0 + $0x8b8] sm:$0xff]
  %v300 = vld [vmem:[%s0 + $0x8c0] sm:$0xff]
  %v301 = vld [vmem:[%s0 + $0x8c8] sm:$0xff]
  %v302 = vld [vmem:[%s0 + $0x8d0] sm:$0xff]
  %v303 = vld [vmem:[%s0 + $0x8d8] sm:$0xff]
  %v304 = vld [vmem:[%s0 + $0x8e0] sm:$0xff]
  %v305 = vld [vmem:[%s0 + $0x8e8] sm:$0xff]
  %v306 = vld [vmem:[%s0 + $0x8f0] sm:$0xff]
  %v307 = vld [vmem:[%s0 + $0x8f8] sm:$0xff]
  %v308 = vld [vmem:[%s1] sm:$0xff]
  %v309 = vld [vmem:[%s1 + $0x8] sm:$0xff]
  %v310 = vld [vmem:[%s1 + $0x10] sm:$0xff]
  %v311 = vld [vmem:[%s1 + $0x18] sm:$0xff]
  %v312 = vld [vmem:[%s1 + $0x20] sm:$0xff]
  %v313 = vld [vmem:[%s1 + $0x28] sm:$0xff]
  %v314 = vld [vmem:[%s1 + $0x30] sm:$0xff]
  %v315 = vld [vmem:[%s1 + $0x38] sm:$0xff]
  %v316 = vld [vmem:[%s1 + $0x40] sm:$0xff]
  %v317 = vld [vmem:[%s1 + $0x48] sm:$0xff]
  %v318 = vld [vmem:[%s1 + $0x50] sm:$0xff]
  %v319 = vld [vmem:[%s1 + $0x58] sm:$0xff]
  %v320 = vld [vmem:[%s1 + $0x60] sm:$0xff]
  %v321 = vld [vmem:[%s1 + $0x68] sm:$0xff]
  %v322 = vld [vmem:[%s1 + $0x70] sm:$0xff]
  %v323 = vld [vmem:[%s1 + $0x78] sm:$0xff]
  %v324 = vld [vmem:[%s1 + $0x80] sm:$0xff]
  %v325 = vld [vmem:[%s1 + $0x88] sm:$0xff]
  %v326 = vld [vmem:[%s1 + $0x90] sm:$0x3f]
  %v327 = vld [vmem:[%s2] sm:$0x1]
  %v329 = vperm.slane %v327, 0
  %vm331 = vcmask 179200
  %v333 = vsel %vm331, %v21, 0
  %v336 = vsel %vm331, %v23, 0
  %v339 = vsel %vm331, %v25, 0
  %v342 = vsel %vm331, %v27, 0
  %v345 = vsel %vm331, %v29, 0
  %v348 = vsel %vm331, %v31, 0
  %v351 = vsel %vm331, %v33, 0
  %v354 = vsel %vm331, %v35, 0
  %v357 = vsel %vm331, %v37, 0
  %v360 = vsel %vm331, %v39, 0
  %v363 = vsel %vm331, %v41, 0
  %v366 = vsel %vm331, %v43, 0
  %v369 = vsel %vm331, %v45, 0
  %v372 = vsel %vm331, %v47, 0
  %v375 = vsel %vm331, %v49, 0
  %v378 = vsel %vm331, %v51, 0
  %v381 = vsel %vm331, %v53, 0
  %v384 = vsel %vm331, %v55, 0
  %v387 = vsel %vm331, %v57, 0
  %v390 = vsel %vm331, %v59, 0
  %v393 = vsel %vm331, %v61, 0
  %v396 = vsel %vm331, %v63, 0
  %v399 = vsel %vm331, %v65, 0
  %v402 = vsel %vm331, %v67, 0
  %v405 = vsel %vm331, %v69, 0
  %v408 = vsel %vm331, %v71, 0
  %v411 = vsel %vm331, %v73, 0
  %v414 = vsel %vm331, %v75, 0
  %v417 = vsel %vm331, %v77, 0
  %v420 = vsel %vm331, %v79, 0
  %v423 = vsel %vm331, %v81, 0
  %v426 = vsel %vm331, %v83, 0
  %v429 = vsel %vm331, %v85, 0
  %v432 = vsel %vm331, %v87, 0
  %v435 = vsel %vm331, %v89, 0
  %v438 = vsel %vm331, %v91, 0
  %v441 = vsel %vm331, %v93, 0
  %v444 = vsel %vm331, %v95, 0
  %v447 = vsel %vm331, %v97, 0
  %v450 = vsel %vm331, %v99, 0
  %v453 = vsel %vm331, %v101, 0
  %v456 = vsel %vm331, %v103, 0
  %v459 = vsel %vm331, %v105, 0
  %v462 = vsel %vm331, %v107, 0
  %v465 = vsel %vm331, %v109, 0
  %v468 = vsel %vm331, %v111, 0
  %v471 = vsel %vm331, %v113, 0
  %v474 = vsel %vm331, %v115, 0
  %v477 = vsel %vm331, %v117, 0
  %v480 = vsel %vm331, %v119, 0
  %v483 = vsel %vm331, %v121, 0
  %v486 = vsel %vm331, %v123, 0
  %v489 = vsel %vm331, %v125, 0
  %v492 = vsel %vm331, %v127, 0
  %v495 = vsel %vm331, %v129, 0
  %v498 = vsel %vm331, %v131, 0
  %v501 = vsel %vm331, %v133, 0
  %v504 = vsel %vm331, %v135, 0
  %v507 = vsel %vm331, %v137, 0
  %v510 = vsel %vm331, %v139, 0
  %v513 = vsel %vm331, %v141, 0
  %v516 = vsel %vm331, %v143, 0
  %v519 = vsel %vm331, %v145, 0
  %v522 = vsel %vm331, %v147, 0
  %v525 = vsel %vm331, %v149, 0
  %v528 = vsel %vm331, %v151, 0
  %v531 = vsel %vm331, %v153, 0
  %v534 = vsel %vm331, %v155, 0
  %v537 = vsel %vm331, %v157, 0
  %v540 = vsel %vm331, %v159, 0
  %v543 = vsel %vm331, %v161, 0
  %v546 = vsel %vm331, %v163, 0
  %v549 = vsel %vm331, %v165, 0
  %v552 = vsel %vm331, %v167, 0
  %v555 = vsel %vm331, %v169, 0
  %v558 = vsel %vm331, %v171, 0
  %v561 = vsel %vm331, %v173, 0
  %v564 = vsel %vm331, %v175, 0
  %v567 = vsel %vm331, %v177, 0
  %v570 = vsel %vm331, %v179, 0
  %v573 = vsel %vm331, %v181, 0
  %v576 = vsel %vm331, %v183, 0
  %v579 = vsel %vm331, %v185, 0
  %v582 = vsel %vm331, %v187, 0
  %v585 = vsel %vm331, %v189, 0
  %v588 = vsel %vm331, %v191, 0
  %v591 = vsel %vm331, %v193, 0
  %v594 = vsel %vm331, %v195, 0
  %v597 = vsel %vm331, %v197, 0
  %v600 = vsel %vm331, %v199, 0
  %v603 = vsel %vm331, %v201, 0
  %v606 = vsel %vm331, %v203, 0
  %v609 = vsel %vm331, %v205, 0
  %v612 = vsel %vm331, %v207, 0
  %v615 = vsel %vm331, %v209, 0
  %v618 = vsel %vm331, %v211, 0
  %v621 = vsel %vm331, %v213, 0
  %v624 = vsel %vm331, %v215, 0
  %v627 = vsel %vm331, %v217, 0
  %v630 = vsel %vm331, %v219, 0
  %v633 = vsel %vm331, %v221, 0
  %v636 = vsel %vm331, %v223, 0
  %v639 = vsel %vm331, %v225, 0
  %v642 = vsel %vm331, %v227, 0
  %v645 = vsel %vm331, %v229, 0
  %v648 = vsel %vm331, %v231, 0
  %v651 = vsel %vm331, %v233, 0
  %v654 = vsel %vm331, %v235, 0
  %v657 = vsel %vm331, %v237, 0
  %v660 = vsel %vm331, %v239, 0
  %v663 = vsel %vm331, %v241, 0
  %v666 = vsel %vm331, %v243, 0
  %v669 = vsel %vm331, %v245, 0
  %v672 = vsel %vm331, %v247, 0
  %v675 = vsel %vm331, %v249, 0
  %v678 = vsel %vm331, %v251, 0
  %v681 = vsel %vm331, %v253, 0
  %v684 = vsel %vm331, %v255, 0
  %v687 = vsel %vm331, %v257, 0
  %v690 = vsel %vm331, %v259, 0
  %v693 = vsel %vm331, %v261, 0
  %v696 = vsel %vm331, %v263, 0
  %v699 = vsel %vm331, %v265, 0
  %v702 = vsel %vm331, %v267, 0
  %v705 = vsel %vm331, %v269, 0
  %v708 = vsel %vm331, %v271, 0
  %v711 = vsel %vm331, %v273, 0
  %v714 = vsel %vm331, %v275, 0
  %v717 = vsel %vm331, %v277, 0
  %v720 = vsel %vm331, %v279, 0
  %v723 = vsel %vm331, %v281, 0
  %v726 = vsel %vm331, %v283, 0
  %v729 = vsel %vm331, %v285, 0
  %v732 = vsel %vm331, %v287, 0
  %v735 = vsel %vm331, %v289, 0
  %v738 = vsel %vm331, %v291, 0
  %v741 = vsel %vm331, %v293, 0
  %v744 = vsel %vm331, %v295, 0
  %v747 = vsel %vm331, %v297, 0
  %v750 = vsel %vm331, %v299, 0
  %v753 = vsel %vm331, %v301, 0
  %v756 = vsel %vm331, %v303, 0
  %v759 = vsel %vm331, %v305, 0
  %v762 = vsel %vm331, %v307, 0
  %vm764 = vcmask 1045504
  %v766 = vsel %vm764, %v326, 0
  %768 = vmatpush.msra.mxu0 %v323
  %769 = vmatpush.msra.mxu0 %v322
  %770 = vmatpush.msra.mxu0 %v321
  %771 = vmatpush.msra.mxu0 %v320
  %772 = vmatpush.msra.mxu0 %v319
  %773 = vmatpush.msra.mxu0 %v318
  %774 = vmatpush.msra.mxu0 %v317
  %775 = vmatpush.msra.mxu0 %v316
  %776 = vmatpush.msra.mxu0 %v315
  %777 = vmatpush.msra.mxu0 %v314
  %778 = vmatpush.msra.mxu0 %v313
  %779 = vmatpush.msra.mxu0 %v312
  %780 = vmatpush.msra.mxu0 %v311
  %781 = vmatpush.msra.mxu0 %v310
  %782 = vmatpush.msra.mxu0 %v309
  %783 = vmatpush.msra.mxu0 %v308
  %784 = vmatmul.f32.gmra.mxu0 %v20
  %v785 = vpop.f32.mrf.mxu0
  %v786 = vadd.f32 %v329, %v785
  %787 = vmatmul.f32.gmra.mxu0 %v22
  %v788 = vpop.f32.mrf.mxu0
  %v789 = vadd.f32 %v329, %v788
  %790 = vmatmul.f32.gmra.mxu0 %v24
  %v791 = vpop.f32.mrf.mxu0
  %v792 = vadd.f32 %v329, %v791
  %793 = vmatmul.f32.gmra.mxu0 %v26
  %v794 = vpop.f32.mrf.mxu0
  %v795 = vadd.f32 %v329, %v794
  %796 = vmatmul.f32.gmra.mxu0 %v28
  %v797 = vpop.f32.mrf.mxu0
  %v798 = vadd.f32 %v329, %v797
  %799 = vmatmul.f32.gmra.mxu0 %v30
  %v800 = vpop.f32.mrf.mxu0
  %v801 = vadd.f32 %v329, %v800
  %802 = vmatmul.f32.gmra.mxu0 %v32
  %v803 = vpop.f32.mrf.mxu0
  %v804 = vadd.f32 %v329, %v803
  %805 = vmatmul.f32.gmra.mxu0 %v34
  %v806 = vpop.f32.mrf.mxu0
  %v807 = vadd.f32 %v329, %v806
  %808 = vmatmul.f32.gmra.mxu0 %v36
  %v809 = vpop.f32.mrf.mxu0
  %v810 = vadd.f32 %v329, %v809
  %811 = vmatmul.f32.gmra.mxu0 %v38
  %v812 = vpop.f32.mrf.mxu0
  %v813 = vadd.f32 %v329, %v812
  %814 = vmatmul.f32.gmra.mxu0 %v40
  %v815 = vpop.f32.mrf.mxu0
  %v816 = vadd.f32 %v329, %v815
  %817 = vmatmul.f32.gmra.mxu0 %v42
  %v818 = vpop.f32.mrf.mxu0
  %v819 = vadd.f32 %v329, %v818
  %820 = vmatmul.f32.gmra.mxu0 %v44
  %v821 = vpop.f32.mrf.mxu0
  %v822 = vadd.f32 %v329, %v821
  %823 = vmatmul.f32.gmra.mxu0 %v46
  %v824 = vpop.f32.mrf.mxu0
  %v825 = vadd.f32 %v329, %v824
  %826 = vmatmul.f32.gmra.mxu0 %v48
  %v827 = vpop.f32.mrf.mxu0
  %v828 = vadd.f32 %v329, %v827
  %829 = vmatmul.f32.gmra.mxu0 %v50
  %v830 = vpop.f32.mrf.mxu0
  %v831 = vadd.f32 %v329, %v830
  %832 = vmatmul.f32.gmra.mxu0 %v52
  %v833 = vpop.f32.mrf.mxu0
  %v834 = vadd.f32 %v329, %v833
  %835 = vmatmul.f32.gmra.mxu0 %v54
  %v836 = vpop.f32.mrf.mxu0
  %v837 = vadd.f32 %v329, %v836
  %838 = vmatmul.f32.gmra.mxu0 %v56
  %v839 = vpop.f32.mrf.mxu0
  %v840 = vadd.f32 %v329, %v839
  %841 = vmatmul.f32.gmra.mxu0 %v58
  %v842 = vpop.f32.mrf.mxu0
  %v843 = vadd.f32 %v329, %v842
  %844 = vmatmul.f32.gmra.mxu0 %v60
  %v845 = vpop.f32.mrf.mxu0
  %v846 = vadd.f32 %v329, %v845
  %847 = vmatmul.f32.gmra.mxu0 %v62
  %v848 = vpop.f32.mrf.mxu0
  %v849 = vadd.f32 %v329, %v848
  %850 = vmatmul.f32.gmra.mxu0 %v64
  %v851 = vpop.f32.mrf.mxu0
  %v852 = vadd.f32 %v329, %v851
  %853 = vmatmul.f32.gmra.mxu0 %v66
  %v854 = vpop.f32.mrf.mxu0
  %v855 = vadd.f32 %v329, %v854
  %856 = vmatmul.f32.gmra.mxu0 %v68
  %v857 = vpop.f32.mrf.mxu0
  %v858 = vadd.f32 %v329, %v857
  %859 = vmatmul.f32.gmra.mxu0 %v70
  %v860 = vpop.f32.mrf.mxu0
  %v861 = vadd.f32 %v329, %v860
  %862 = vmatmul.f32.gmra.mxu0 %v72
  %v863 = vpop.f32.mrf.mxu0
  %v864 = vadd.f32 %v329, %v863
  %865 = vmatmul.f32.gmra.mxu0 %v74
  %v866 = vpop.f32.mrf.mxu0
  %v867 = vadd.f32 %v329, %v866
  %868 = vmatmul.f32.gmra.mxu0 %v76
  %v869 = vpop.f32.mrf.mxu0
  %v870 = vadd.f32 %v329, %v869
  %871 = vmatmul.f32.gmra.mxu0 %v78
  %v872 = vpop.f32.mrf.mxu0
  %v873 = vadd.f32 %v329, %v872
  %874 = vmatmul.f32.gmra.mxu0 %v80
  %v875 = vpop.f32.mrf.mxu0
  %v876 = vadd.f32 %v329, %v875
  %877 = vmatmul.f32.gmra.mxu0 %v82
  %v878 = vpop.f32.mrf.mxu0
  %v879 = vadd.f32 %v329, %v878
  %880 = vmatmul.f32.gmra.mxu0 %v84
  %v881 = vpop.f32.mrf.mxu0
  %v882 = vadd.f32 %v329, %v881
  %883 = vmatmul.f32.gmra.mxu0 %v86
  %v884 = vpop.f32.mrf.mxu0
  %v885 = vadd.f32 %v329, %v884
  %886 = vmatmul.f32.gmra.mxu0 %v88
  %v887 = vpop.f32.mrf.mxu0
  %v888 = vadd.f32 %v329, %v887
  %889 = vmatmul.f32.gmra.mxu0 %v90
  %v890 = vpop.f32.mrf.mxu0
  %v891 = vadd.f32 %v329, %v890
  %892 = vmatmul.f32.gmra.mxu0 %v92
  %v893 = vpop.f32.mrf.mxu0
  %v894 = vadd.f32 %v329, %v893
  %895 = vmatmul.f32.gmra.mxu0 %v94
  %v896 = vpop.f32.mrf.mxu0
  %v897 = vadd.f32 %v329, %v896
  %898 = vmatmul.f32.gmra.mxu0 %v96
  %v899 = vpop.f32.mrf.mxu0
  %v900 = vadd.f32 %v329, %v899
  %901 = vmatmul.f32.gmra.mxu0 %v98
  %v902 = vpop.f32.mrf.mxu0
  %v903 = vadd.f32 %v329, %v902
  %904 = vmatmul.f32.gmra.mxu0 %v100
  %v905 = vpop.f32.mrf.mxu0
  %v906 = vadd.f32 %v329, %v905
  %907 = vmatmul.f32.gmra.mxu0 %v102
  %v908 = vpop.f32.mrf.mxu0
  %v909 = vadd.f32 %v329, %v908
  %910 = vmatmul.f32.gmra.mxu0 %v104
  %v911 = vpop.f32.mrf.mxu0
  %v912 = vadd.f32 %v329, %v911
  %913 = vmatmul.f32.gmra.mxu0 %v106
  %v914 = vpop.f32.mrf.mxu0
  %v915 = vadd.f32 %v329, %v914
  %916 = vmatmul.f32.gmra.mxu0 %v108
  %v917 = vpop.f32.mrf.mxu0
  %v918 = vadd.f32 %v329, %v917
  %919 = vmatmul.f32.gmra.mxu0 %v110
  %v920 = vpop.f32.mrf.mxu0
  %v921 = vadd.f32 %v329, %v920
  %922 = vmatmul.f32.gmra.mxu0 %v112
  %v923 = vpop.f32.mrf.mxu0
  %v924 = vadd.f32 %v329, %v923
  %925 = vmatmul.f32.gmra.mxu0 %v114
  %v926 = vpop.f32.mrf.mxu0
  %v927 = vadd.f32 %v329, %v926
  %928 = vmatmul.f32.gmra.mxu0 %v116
  %v929 = vpop.f32.mrf.mxu0
  %v930 = vadd.f32 %v329, %v929
  %931 = vmatmul.f32.gmra.mxu0 %v118
  %v932 = vpop.f32.mrf.mxu0
  %v933 = vadd.f32 %v329, %v932
  %934 = vmatmul.f32.gmra.mxu0 %v120
  %v935 = vpop.f32.mrf.mxu0
  %v936 = vadd.f32 %v329, %v935
  %937 = vmatmul.f32.gmra.mxu0 %v122
  %v938 = vpop.f32.mrf.mxu0
  %v939 = vadd.f32 %v329, %v938
  %940 = vmatmul.f32.gmra.mxu0 %v124
  %v941 = vpop.f32.mrf.mxu0
  %v942 = vadd.f32 %v329, %v941
  %943 = vmatmul.f32.gmra.mxu0 %v126
  %v944 = vpop.f32.mrf.mxu0
  %v945 = vadd.f32 %v329, %v944
  %946 = vmatmul.f32.gmra.mxu0 %v128
  %v947 = vpop.f32.mrf.mxu0
  %v948 = vadd.f32 %v329, %v947
  %949 = vmatmul.f32.gmra.mxu0 %v130
  %v950 = vpop.f32.mrf.mxu0
  %v951 = vadd.f32 %v329, %v950
  %952 = vmatmul.f32.gmra.mxu0 %v132
  %v953 = vpop.f32.mrf.mxu0
  %v954 = vadd.f32 %v329, %v953
  %955 = vmatmul.f32.gmra.mxu0 %v134
  %v956 = vpop.f32.mrf.mxu0
  %v957 = vadd.f32 %v329, %v956
  %958 = vmatmul.f32.gmra.mxu0 %v136
  %v959 = vpop.f32.mrf.mxu0
  %v960 = vadd.f32 %v329, %v959
  %961 = vmatmul.f32.gmra.mxu0 %v138
  %v962 = vpop.f32.mrf.mxu0
  %v963 = vadd.f32 %v329, %v962
  %964 = vmatmul.f32.gmra.mxu0 %v140
  %v965 = vpop.f32.mrf.mxu0
  %v966 = vadd.f32 %v329, %v965
  %967 = vmatmul.f32.gmra.mxu0 %v142
  %v968 = vpop.f32.mrf.mxu0
  %v969 = vadd.f32 %v329, %v968
  %970 = vmatmul.f32.gmra.mxu0 %v144
  %v971 = vpop.f32.mrf.mxu0
  %v972 = vadd.f32 %v329, %v971
  %973 = vmatmul.f32.gmra.mxu0 %v146
  %v974 = vpop.f32.mrf.mxu0
  %v975 = vadd.f32 %v329, %v974
  %976 = vmatmul.f32.gmra.mxu0 %v148
  %v977 = vpop.f32.mrf.mxu0
  %v978 = vadd.f32 %v329, %v977
  %979 = vmatmul.f32.gmra.mxu0 %v150
  %v980 = vpop.f32.mrf.mxu0
  %v981 = vadd.f32 %v329, %v980
  %982 = vmatmul.f32.gmra.mxu0 %v152
  %v983 = vpop.f32.mrf.mxu0
  %v984 = vadd.f32 %v329, %v983
  %985 = vmatmul.f32.gmra.mxu0 %v154
  %v986 = vpop.f32.mrf.mxu0
  %v987 = vadd.f32 %v329, %v986
  %988 = vmatmul.f32.gmra.mxu0 %v156
  %v989 = vpop.f32.mrf.mxu0
  %v990 = vadd.f32 %v329, %v989
  %991 = vmatmul.f32.gmra.mxu0 %v158
  %v992 = vpop.f32.mrf.mxu0
  %v993 = vadd.f32 %v329, %v992
  %994 = vmatmul.f32.gmra.mxu0 %v160
  %v995 = vpop.f32.mrf.mxu0
  %v996 = vadd.f32 %v329, %v995
  %997 = vmatmul.f32.gmra.mxu0 %v162
  %v998 = vpop.f32.mrf.mxu0
  %v999 = vadd.f32 %v329, %v998
  %1000 = vmatmul.f32.gmra.mxu0 %v164
  %v1001 = vpop.f32.mrf.mxu0
  %v1002 = vadd.f32 %v329, %v1001
  %1003 = vmatmul.f32.gmra.mxu0 %v166
  %v1004 = vpop.f32.mrf.mxu0
  %v1005 = vadd.f32 %v329, %v1004
  %1006 = vmatmul.f32.gmra.mxu0 %v168
  %v1007 = vpop.f32.mrf.mxu0
  %v1008 = vadd.f32 %v329, %v1007
  %1009 = vmatmul.f32.gmra.mxu0 %v170
  %v1010 = vpop.f32.mrf.mxu0
  %v1011 = vadd.f32 %v329, %v1010
  %1012 = vmatmul.f32.gmra.mxu0 %v172
  %v1013 = vpop.f32.mrf.mxu0
  %v1014 = vadd.f32 %v329, %v1013
  %1015 = vmatmul.f32.gmra.mxu0 %v174
  %v1016 = vpop.f32.mrf.mxu0
  %v1017 = vadd.f32 %v329, %v1016
  %1018 = vmatmul.f32.gmra.mxu0 %v176
  %v1019 = vpop.f32.mrf.mxu0
  %v1020 = vadd.f32 %v329, %v1019
  %1021 = vmatmul.f32.gmra.mxu0 %v178
  %v1022 = vpop.f32.mrf.mxu0
  %v1023 = vadd.f32 %v329, %v1022
  %1024 = vmatmul.f32.gmra.mxu0 %v180
  %v1025 = vpop.f32.mrf.mxu0
  %v1026 = vadd.f32 %v329, %v1025
  %1027 = vmatmul.f32.gmra.mxu0 %v182
  %v1028 = vpop.f32.mrf.mxu0
  %v1029 = vadd.f32 %v329, %v1028
  %1030 = vmatmul.f32.gmra.mxu0 %v184
  %v1031 = vpop.f32.mrf.mxu0
  %v1032 = vadd.f32 %v329, %v1031
  %1033 = vmatmul.f32.gmra.mxu0 %v186
  %v1034 = vpop.f32.mrf.mxu0
  %v1035 = vadd.f32 %v329, %v1034
  %1036 = vmatmul.f32.gmra.mxu0 %v188
  %v1037 = vpop.f32.mrf.mxu0
  %v1038 = vadd.f32 %v329, %v1037
  %1039 = vmatmul.f32.gmra.mxu0 %v190
  %v1040 = vpop.f32.mrf.mxu0
  %v1041 = vadd.f32 %v329, %v1040
  %1042 = vmatmul.f32.gmra.mxu0 %v192
  %v1043 = vpop.f32.mrf.mxu0
  %v1044 = vadd.f32 %v329, %v1043
  %1045 = vmatmul.f32.gmra.mxu0 %v194
  %v1046 = vpop.f32.mrf.mxu0
  %v1047 = vadd.f32 %v329, %v1046
  %1048 = vmatmul.f32.gmra.mxu0 %v196
  %v1049 = vpop.f32.mrf.mxu0
  %v1050 = vadd.f32 %v329, %v1049
  %1051 = vmatmul.f32.gmra.mxu0 %v198
  %v1052 = vpop.f32.mrf.mxu0
  %v1053 = vadd.f32 %v329, %v1052
  %1054 = vmatmul.f32.gmra.mxu0 %v200
  %v1055 = vpop.f32.mrf.mxu0
  %v1056 = vadd.f32 %v329, %v1055
  %1057 = vmatmul.f32.gmra.mxu0 %v202
  %v1058 = vpop.f32.mrf.mxu0
  %v1059 = vadd.f32 %v329, %v1058
  %1060 = vmatmul.f32.gmra.mxu0 %v204
  %v1061 = vpop.f32.mrf.mxu0
  %v1062 = vadd.f32 %v329, %v1061
  %1063 = vmatmul.f32.gmra.mxu0 %v206
  %v1064 = vpop.f32.mrf.mxu0
  %v1065 = vadd.f32 %v329, %v1064
  %1066 = vmatmul.f32.gmra.mxu0 %v208
  %v1067 = vpop.f32.mrf.mxu0
  %v1068 = vadd.f32 %v329, %v1067
  %1069 = vmatmul.f32.gmra.mxu0 %v210
  %v1070 = vpop.f32.mrf.mxu0
  %v1071 = vadd.f32 %v329, %v1070
  %1072 = vmatmul.f32.gmra.mxu0 %v212
  %v1073 = vpop.f32.mrf.mxu0
  %v1074 = vadd.f32 %v329, %v1073
  %1075 = vmatmul.f32.gmra.mxu0 %v214
  %v1076 = vpop.f32.mrf.mxu0
  %v1077 = vadd.f32 %v329, %v1076
  %1078 = vmatmul.f32.gmra.mxu0 %v216
  %v1079 = vpop.f32.mrf.mxu0
  %v1080 = vadd.f32 %v329, %v1079
  %1081 = vmatmul.f32.gmra.mxu0 %v218
  %v1082 = vpop.f32.mrf.mxu0
  %v1083 = vadd.f32 %v329, %v1082
  %1084 = vmatmul.f32.gmra.mxu0 %v220
  %v1085 = vpop.f32.mrf.mxu0
  %v1086 = vadd.f32 %v329, %v1085
  %1087 = vmatmul.f32.gmra.mxu0 %v222
  %v1088 = vpop.f32.mrf.mxu0
  %v1089 = vadd.f32 %v329, %v1088
  %1090 = vmatmul.f32.gmra.mxu0 %v224
  %v1091 = vpop.f32.mrf.mxu0
  %v1092 = vadd.f32 %v329, %v1091
  %1093 = vmatmul.f32.gmra.mxu0 %v226
  %v1094 = vpop.f32.mrf.mxu0
  %v1095 = vadd.f32 %v329, %v1094
  %1096 = vmatmul.f32.gmra.mxu0 %v228
  %v1097 = vpop.f32.mrf.mxu0
  %v1098 = vadd.f32 %v329, %v1097
  %1099 = vmatmul.f32.gmra.mxu0 %v230
  %v1100 = vpop.f32.mrf.mxu0
  %v1101 = vadd.f32 %v329, %v1100
  %1102 = vmatmul.f32.gmra.mxu0 %v232
  %v1103 = vpop.f32.mrf.mxu0
  %v1104 = vadd.f32 %v329, %v1103
  %1105 = vmatmul.f32.gmra.mxu0 %v234
  %v1106 = vpop.f32.mrf.mxu0
  %v1107 = vadd.f32 %v329, %v1106
  %1108 = vmatmul.f32.gmra.mxu0 %v236
  %v1109 = vpop.f32.mrf.mxu0
  %v1110 = vadd.f32 %v329, %v1109
  %1111 = vmatmul.f32.gmra.mxu0 %v238
  %v1112 = vpop.f32.mrf.mxu0
  %v1113 = vadd.f32 %v329, %v1112
  %1114 = vmatmul.f32.gmra.mxu0 %v240
  %v1115 = vpop.f32.mrf.mxu0
  %v1116 = vadd.f32 %v329, %v1115
  %1117 = vmatmul.f32.gmra.mxu0 %v242
  %v1118 = vpop.f32.mrf.mxu0
  %v1119 = vadd.f32 %v329, %v1118
  %1120 = vmatmul.f32.gmra.mxu0 %v244
  %v1121 = vpop.f32.mrf.mxu0
  %v1122 = vadd.f32 %v329, %v1121
  %1123 = vmatmul.f32.gmra.mxu0 %v246
  %v1124 = vpop.f32.mrf.mxu0
  %v1125 = vadd.f32 %v329, %v1124
  %1126 = vmatmul.f32.gmra.mxu0 %v248
  %v1127 = vpop.f32.mrf.mxu0
  %v1128 = vadd.f32 %v329, %v1127
  %1129 = vmatmul.f32.gmra.mxu0 %v250
  %v1130 = vpop.f32.mrf.mxu0
  %v1131 = vadd.f32 %v329, %v1130
  %1132 = vmatmul.f32.gmra.mxu0 %v252
  %v1133 = vpop.f32.mrf.mxu0
  %v1134 = vadd.f32 %v329, %v1133
  %1135 = vmatmul.f32.gmra.mxu0 %v254
  %v1136 = vpop.f32.mrf.mxu0
  %v1137 = vadd.f32 %v329, %v1136
  %1138 = vmatmul.f32.gmra.mxu0 %v256
  %v1139 = vpop.f32.mrf.mxu0
  %v1140 = vadd.f32 %v329, %v1139
  %1141 = vmatmul.f32.gmra.mxu0 %v258
  %v1142 = vpop.f32.mrf.mxu0
  %v1143 = vadd.f32 %v329, %v1142
  %1144 = vmatmul.f32.gmra.mxu0 %v260
  %v1145 = vpop.f32.mrf.mxu0
  %v1146 = vadd.f32 %v329, %v1145
  %1147 = vmatmul.f32.gmra.mxu0 %v262
  %v1148 = vpop.f32.mrf.mxu0
  %v1149 = vadd.f32 %v329, %v1148
  %1150 = vmatmul.f32.gmra.mxu0 %v264
  %v1151 = vpop.f32.mrf.mxu0
  %v1152 = vadd.f32 %v329, %v1151
  %1153 = vmatmul.f32.gmra.mxu0 %v266
  %v1154 = vpop.f32.mrf.mxu0
  %v1155 = vadd.f32 %v329, %v1154
  %1156 = vmatmul.f32.gmra.mxu0 %v268
  %v1157 = vpop.f32.mrf.mxu0
  %v1158 = vadd.f32 %v329, %v1157
  %1159 = vmatmul.f32.gmra.mxu0 %v270
  %v1160 = vpop.f32.mrf.mxu0
  %v1161 = vadd.f32 %v329, %v1160
  %1162 = vmatmul.f32.gmra.mxu0 %v272
  %v1163 = vpop.f32.mrf.mxu0
  %v1164 = vadd.f32 %v329, %v1163
  %1165 = vmatmul.f32.gmra.mxu0 %v274
  %v1166 = vpop.f32.mrf.mxu0
  %v1167 = vadd.f32 %v329, %v1166
  %1168 = vmatmul.f32.gmra.mxu0 %v276
  %v1169 = vpop.f32.mrf.mxu0
  %v1170 = vadd.f32 %v329, %v1169
  %1171 = vmatmul.f32.gmra.mxu0 %v278
  %v1172 = vpop.f32.mrf.mxu0
  %v1173 = vadd.f32 %v329, %v1172
  %1174 = vmatmul.f32.gmra.mxu0 %v280
  %v1175 = vpop.f32.mrf.mxu0
  %v1176 = vadd.f32 %v329, %v1175
  %1177 = vmatmul.f32.gmra.mxu0 %v282
  %v1178 = vpop.f32.mrf.mxu0
  %v1179 = vadd.f32 %v329, %v1178
  %1180 = vmatmul.f32.gmra.mxu0 %v284
  %v1181 = vpop.f32.mrf.mxu0
  %v1182 = vadd.f32 %v329, %v1181
  %1183 = vmatmul.f32.gmra.mxu0 %v286
  %v1184 = vpop.f32.mrf.mxu0
  %v1185 = vadd.f32 %v329, %v1184
  %1186 = vmatmul.f32.gmra.mxu0 %v288
  %v1187 = vpop.f32.mrf.mxu0
  %v1188 = vadd.f32 %v329, %v1187
  %1189 = vmatmul.f32.gmra.mxu0 %v290
  %v1190 = vpop.f32.mrf.mxu0
  %v1191 = vadd.f32 %v329, %v1190
  %1192 = vmatmul.f32.gmra.mxu0 %v292
  %v1193 = vpop.f32.mrf.mxu0
  %v1194 = vadd.f32 %v329, %v1193
  %1195 = vmatmul.f32.gmra.mxu0 %v294
  %v1196 = vpop.f32.mrf.mxu0
  %v1197 = vadd.f32 %v329, %v1196
  %1198 = vmatmul.f32.gmra.mxu0 %v296
  %v1199 = vpop.f32.mrf.mxu0
  %v1200 = vadd.f32 %v329, %v1199
  %1201 = vmatmul.f32.gmra.mxu0 %v298
  %v1202 = vpop.f32.mrf.mxu0
  %v1203 = vadd.f32 %v329, %v1202
  %1204 = vmatmul.f32.gmra.mxu0 %v300
  %v1205 = vpop.f32.mrf.mxu0
  %v1206 = vadd.f32 %v329, %v1205
  %1207 = vmatmul.f32.gmra.mxu0 %v302
  %v1208 = vpop.f32.mrf.mxu0
  %v1209 = vadd.f32 %v329, %v1208
  %1210 = vmatmul.f32.gmra.mxu0 %v304
  %v1211 = vpop.f32.mrf.mxu0
  %v1212 = vadd.f32 %v329, %v1211
  %1213 = vmatmul.f32.gmra.mxu0 %v306
  %v1214 = vpop.f32.mrf.mxu0
  %v1215 = vadd.f32 %v329, %v1214
  %1216 = vdwg.mxu0
  %1217 = vmatpush.msra.mxu0 0.0
  %1218 = vmatpush.msra.mxu0 0.0
  %1219 = vmatpush.msra.mxu0 0.0
  %1220 = vmatpush.msra.mxu0 0.0
  %1221 = vmatpush.msra.mxu0 0.0
  %1222 = vmatpush.msra.mxu0 0.0
  %1223 = vmatpush.msra.mxu0 0.0
  %1224 = vmatpush.msra.mxu0 0.0
  %1225 = vmatpush.msra.mxu0 0.0
  %1226 = vmatpush.msra.mxu0 0.0
  %1227 = vmatpush.msra.mxu0 0.0
  %1228 = vmatpush.msra.mxu0 0.0
  %1229 = vmatpush.msra.mxu0 0.0
  %1230 = vmatpush.msra.mxu0 %v766
  %1231 = vmatpush.msra.mxu0 %v325
  %1232 = vmatpush.msra.mxu0 %v324
  %1233 = vmatmul.f32.gmra.mxu0 %v333
  %v1234 = vpop.f32.mrf.mxu0
  %v1235 = vadd.f32 %v786, %v1234
  %1236 = vmatmul.f32.gmra.mxu0 %v336
  %v1237 = vpop.f32.mrf.mxu0
  %v1238 = vadd.f32 %v789, %v1237
  %1239 = vmatmul.f32.gmra.mxu0 %v339
  %v1240 = vpop.f32.mrf.mxu0
  %v1241 = vadd.f32 %v792, %v1240
  %1242 = vmatmul.f32.gmra.mxu0 %v342
  %v1243 = vpop.f32.mrf.mxu0
  %v1244 = vadd.f32 %v795, %v1243
  %1245 = vmatmul.f32.gmra.mxu0 %v345
  %v1246 = vpop.f32.mrf.mxu0
  %v1247 = vadd.f32 %v798, %v1246
  %1248 = vmatmul.f32.gmra.mxu0 %v348
  %v1249 = vpop.f32.mrf.mxu0
  %v1250 = vadd.f32 %v801, %v1249
  %1251 = vmatmul.f32.gmra.mxu0 %v351
  %v1252 = vpop.f32.mrf.mxu0
  %v1253 = vadd.f32 %v804, %v1252
  %1254 = vmatmul.f32.gmra.mxu0 %v354
  %v1255 = vpop.f32.mrf.mxu0
  %v1256 = vadd.f32 %v807, %v1255
  %1257 = vmatmul.f32.gmra.mxu0 %v357
  %v1258 = vpop.f32.mrf.mxu0
  %v1259 = vadd.f32 %v810, %v1258
  %1260 = vmatmul.f32.gmra.mxu0 %v360
  %v1261 = vpop.f32.mrf.mxu0
  %v1262 = vadd.f32 %v813, %v1261
  %1263 = vmatmul.f32.gmra.mxu0 %v363
  %v1264 = vpop.f32.mrf.mxu0
  %v1265 = vadd.f32 %v816, %v1264
  %1266 = vmatmul.f32.gmra.mxu0 %v366
  %v1267 = vpop.f32.mrf.mxu0
  %v1268 = vadd.f32 %v819, %v1267
  %1269 = vmatmul.f32.gmra.mxu0 %v369
  %v1270 = vpop.f32.mrf.mxu0
  %v1271 = vadd.f32 %v822, %v1270
  %1272 = vmatmul.f32.gmra.mxu0 %v372
  %v1273 = vpop.f32.mrf.mxu0
  %v1274 = vadd.f32 %v825, %v1273
  %1275 = vmatmul.f32.gmra.mxu0 %v375
  %v1276 = vpop.f32.mrf.mxu0
  %v1277 = vadd.f32 %v828, %v1276
  %1278 = vmatmul.f32.gmra.mxu0 %v378
  %v1279 = vpop.f32.mrf.mxu0
  %v1280 = vadd.f32 %v831, %v1279
  %1281 = vmatmul.f32.gmra.mxu0 %v381
  %v1282 = vpop.f32.mrf.mxu0
  %v1283 = vadd.f32 %v834, %v1282
  %1284 = vmatmul.f32.gmra.mxu0 %v384
  %v1285 = vpop.f32.mrf.mxu0
  %v1286 = vadd.f32 %v837, %v1285
  %1287 = vmatmul.f32.gmra.mxu0 %v387
  %v1288 = vpop.f32.mrf.mxu0
  %v1289 = vadd.f32 %v840, %v1288
  %1290 = vmatmul.f32.gmra.mxu0 %v390
  %v1291 = vpop.f32.mrf.mxu0
  %v1292 = vadd.f32 %v843, %v1291
  %1293 = vmatmul.f32.gmra.mxu0 %v393
  %v1294 = vpop.f32.mrf.mxu0
  %v1295 = vadd.f32 %v846, %v1294
  %1296 = vmatmul.f32.gmra.mxu0 %v396
  %v1297 = vpop.f32.mrf.mxu0
  %v1298 = vadd.f32 %v849, %v1297
  %1299 = vmatmul.f32.gmra.mxu0 %v399
  %v1300 = vpop.f32.mrf.mxu0
  %v1301 = vadd.f32 %v852, %v1300
  %1302 = vmatmul.f32.gmra.mxu0 %v402
  %v1303 = vpop.f32.mrf.mxu0
  %v1304 = vadd.f32 %v855, %v1303
  %1305 = vmatmul.f32.gmra.mxu0 %v405
  %v1306 = vpop.f32.mrf.mxu0
  %v1307 = vadd.f32 %v858, %v1306
  %1308 = vmatmul.f32.gmra.mxu0 %v408
  %v1309 = vpop.f32.mrf.mxu0
  %v1310 = vadd.f32 %v861, %v1309
  %1311 = vmatmul.f32.gmra.mxu0 %v411
  %v1312 = vpop.f32.mrf.mxu0
  %v1313 = vadd.f32 %v864, %v1312
  %1314 = vmatmul.f32.gmra.mxu0 %v414
  %v1315 = vpop.f32.mrf.mxu0
  %v1316 = vadd.f32 %v867, %v1315
  %1317 = vmatmul.f32.gmra.mxu0 %v417
  %v1318 = vpop.f32.mrf.mxu0
  %v1319 = vadd.f32 %v870, %v1318
  %1320 = vmatmul.f32.gmra.mxu0 %v420
  %v1321 = vpop.f32.mrf.mxu0
  %v1322 = vadd.f32 %v873, %v1321
  %1323 = vmatmul.f32.gmra.mxu0 %v423
  %v1324 = vpop.f32.mrf.mxu0
  %v1325 = vadd.f32 %v876, %v1324
  %1326 = vmatmul.f32.gmra.mxu0 %v426
  %v1327 = vpop.f32.mrf.mxu0
  %v1328 = vadd.f32 %v879, %v1327
  %1329 = vmatmul.f32.gmra.mxu0 %v429
  %v1330 = vpop.f32.mrf.mxu0
  %v1331 = vadd.f32 %v882, %v1330
  %1332 = vmatmul.f32.gmra.mxu0 %v432
  %v1333 = vpop.f32.mrf.mxu0
  %v1334 = vadd.f32 %v885, %v1333
  %1335 = vmatmul.f32.gmra.mxu0 %v435
  %v1336 = vpop.f32.mrf.mxu0
  %v1337 = vadd.f32 %v888, %v1336
  %1338 = vmatmul.f32.gmra.mxu0 %v438
  %v1339 = vpop.f32.mrf.mxu0
  %v1340 = vadd.f32 %v891, %v1339
  %1341 = vmatmul.f32.gmra.mxu0 %v441
  %v1342 = vpop.f32.mrf.mxu0
  %v1343 = vadd.f32 %v894, %v1342
  %1344 = vmatmul.f32.gmra.mxu0 %v444
  %v1345 = vpop.f32.mrf.mxu0
  %v1346 = vadd.f32 %v897, %v1345
  %1347 = vmatmul.f32.gmra.mxu0 %v447
  %v1348 = vpop.f32.mrf.mxu0
  %v1349 = vadd.f32 %v900, %v1348
  %1350 = vmatmul.f32.gmra.mxu0 %v450
  %v1351 = vpop.f32.mrf.mxu0
  %v1352 = vadd.f32 %v903, %v1351
  %1353 = vmatmul.f32.gmra.mxu0 %v453
  %v1354 = vpop.f32.mrf.mxu0
  %v1355 = vadd.f32 %v906, %v1354
  %1356 = vmatmul.f32.gmra.mxu0 %v456
  %v1357 = vpop.f32.mrf.mxu0
  %v1358 = vadd.f32 %v909, %v1357
  %1359 = vmatmul.f32.gmra.mxu0 %v459
  %v1360 = vpop.f32.mrf.mxu0
  %v1361 = vadd.f32 %v912, %v1360
  %1362 = vmatmul.f32.gmra.mxu0 %v462
  %v1363 = vpop.f32.mrf.mxu0
  %v1364 = vadd.f32 %v915, %v1363
  %1365 = vmatmul.f32.gmra.mxu0 %v465
  %v1366 = vpop.f32.mrf.mxu0
  %v1367 = vadd.f32 %v918, %v1366
  %1368 = vmatmul.f32.gmra.mxu0 %v468
  %v1369 = vpop.f32.mrf.mxu0
  %v1370 = vadd.f32 %v921, %v1369
  %1371 = vmatmul.f32.gmra.mxu0 %v471
  %v1372 = vpop.f32.mrf.mxu0
  %v1373 = vadd.f32 %v924, %v1372
  %1374 = vmatmul.f32.gmra.mxu0 %v474
  %v1375 = vpop.f32.mrf.mxu0
  %v1376 = vadd.f32 %v927, %v1375
  %1377 = vmatmul.f32.gmra.mxu0 %v477
  %v1378 = vpop.f32.mrf.mxu0
  %v1379 = vadd.f32 %v930, %v1378
  %1380 = vmatmul.f32.gmra.mxu0 %v480
  %v1381 = vpop.f32.mrf.mxu0
  %v1382 = vadd.f32 %v933, %v1381
  %1383 = vmatmul.f32.gmra.mxu0 %v483
  %v1384 = vpop.f32.mrf.mxu0
  %v1385 = vadd.f32 %v936, %v1384
  %1386 = vmatmul.f32.gmra.mxu0 %v486
  %v1387 = vpop.f32.mrf.mxu0
  %v1388 = vadd.f32 %v939, %v1387
  %1389 = vmatmul.f32.gmra.mxu0 %v489
  %v1390 = vpop.f32.mrf.mxu0
  %v1391 = vadd.f32 %v942, %v1390
  %1392 = vmatmul.f32.gmra.mxu0 %v492
  %v1393 = vpop.f32.mrf.mxu0
  %v1394 = vadd.f32 %v945, %v1393
  %1395 = vmatmul.f32.gmra.mxu0 %v495
  %v1396 = vpop.f32.mrf.mxu0
  %v1397 = vadd.f32 %v948, %v1396
  %1398 = vmatmul.f32.gmra.mxu0 %v498
  %v1399 = vpop.f32.mrf.mxu0
  %v1400 = vadd.f32 %v951, %v1399
  %1401 = vmatmul.f32.gmra.mxu0 %v501
  %v1402 = vpop.f32.mrf.mxu0
  %v1403 = vadd.f32 %v954, %v1402
  %1404 = vmatmul.f32.gmra.mxu0 %v504
  %v1405 = vpop.f32.mrf.mxu0
  %v1406 = vadd.f32 %v957, %v1405
  %1407 = vmatmul.f32.gmra.mxu0 %v507
  %v1408 = vpop.f32.mrf.mxu0
  %v1409 = vadd.f32 %v960, %v1408
  %1410 = vmatmul.f32.gmra.mxu0 %v510
  %v1411 = vpop.f32.mrf.mxu0
  %v1412 = vadd.f32 %v963, %v1411
  %1413 = vmatmul.f32.gmra.mxu0 %v513
  %v1414 = vpop.f32.mrf.mxu0
  %v1415 = vadd.f32 %v966, %v1414
  %1416 = vmatmul.f32.gmra.mxu0 %v516
  %v1417 = vpop.f32.mrf.mxu0
  %v1418 = vadd.f32 %v969, %v1417
  %1419 = vmatmul.f32.gmra.mxu0 %v519
  %v1420 = vpop.f32.mrf.mxu0
  %v1421 = vadd.f32 %v972, %v1420
  %1422 = vmatmul.f32.gmra.mxu0 %v522
  %v1423 = vpop.f32.mrf.mxu0
  %v1424 = vadd.f32 %v975, %v1423
  %1425 = vmatmul.f32.gmra.mxu0 %v525
  %v1426 = vpop.f32.mrf.mxu0
  %v1427 = vadd.f32 %v978, %v1426
  %1428 = vmatmul.f32.gmra.mxu0 %v528
  %v1429 = vpop.f32.mrf.mxu0
  %v1430 = vadd.f32 %v981, %v1429
  %1431 = vmatmul.f32.gmra.mxu0 %v531
  %v1432 = vpop.f32.mrf.mxu0
  %v1433 = vadd.f32 %v984, %v1432
  %1434 = vmatmul.f32.gmra.mxu0 %v534
  %v1435 = vpop.f32.mrf.mxu0
  %v1436 = vadd.f32 %v987, %v1435
  %1437 = vmatmul.f32.gmra.mxu0 %v537
  %v1438 = vpop.f32.mrf.mxu0
  %v1439 = vadd.f32 %v990, %v1438
  %1440 = vmatmul.f32.gmra.mxu0 %v540
  %v1441 = vpop.f32.mrf.mxu0
  %v1442 = vadd.f32 %v993, %v1441
  %1443 = vmatmul.f32.gmra.mxu0 %v543
  %v1444 = vpop.f32.mrf.mxu0
  %v1445 = vadd.f32 %v996, %v1444
  %1446 = vmatmul.f32.gmra.mxu0 %v546
  %v1447 = vpop.f32.mrf.mxu0
  %v1448 = vadd.f32 %v999, %v1447
  %1449 = vmatmul.f32.gmra.mxu0 %v549
  %v1450 = vpop.f32.mrf.mxu0
  %v1451 = vadd.f32 %v1002, %v1450
  %1452 = vmatmul.f32.gmra.mxu0 %v552
  %v1453 = vpop.f32.mrf.mxu0
  %v1454 = vadd.f32 %v1005, %v1453
  %1455 = vmatmul.f32.gmra.mxu0 %v555
  %v1456 = vpop.f32.mrf.mxu0
  %v1457 = vadd.f32 %v1008, %v1456
  %1458 = vmatmul.f32.gmra.mxu0 %v558
  %v1459 = vpop.f32.mrf.mxu0
  %v1460 = vadd.f32 %v1011, %v1459
  %1461 = vmatmul.f32.gmra.mxu0 %v561
  %v1462 = vpop.f32.mrf.mxu0
  %v1463 = vadd.f32 %v1014, %v1462
  %1464 = vmatmul.f32.gmra.mxu0 %v564
  %v1465 = vpop.f32.mrf.mxu0
  %v1466 = vadd.f32 %v1017, %v1465
  %1467 = vmatmul.f32.gmra.mxu0 %v567
  %v1468 = vpop.f32.mrf.mxu0
  %v1469 = vadd.f32 %v1020, %v1468
  %1470 = vmatmul.f32.gmra.mxu0 %v570
  %v1471 = vpop.f32.mrf.mxu0
  %v1472 = vadd.f32 %v1023, %v1471
  %1473 = vmatmul.f32.gmra.mxu0 %v573
  %v1474 = vpop.f32.mrf.mxu0
  %v1475 = vadd.f32 %v1026, %v1474
  %1476 = vmatmul.f32.gmra.mxu0 %v576
  %v1477 = vpop.f32.mrf.mxu0
  %v1478 = vadd.f32 %v1029, %v1477
  %1479 = vmatmul.f32.gmra.mxu0 %v579
  %v1480 = vpop.f32.mrf.mxu0
  %v1481 = vadd.f32 %v1032, %v1480
  %1482 = vmatmul.f32.gmra.mxu0 %v582
  %v1483 = vpop.f32.mrf.mxu0
  %v1484 = vadd.f32 %v1035, %v1483
  %1485 = vmatmul.f32.gmra.mxu0 %v585
  %v1486 = vpop.f32.mrf.mxu0
  %v1487 = vadd.f32 %v1038, %v1486
  %1488 = vmatmul.f32.gmra.mxu0 %v588
  %v1489 = vpop.f32.mrf.mxu0
  %v1490 = vadd.f32 %v1041, %v1489
  %1491 = vmatmul.f32.gmra.mxu0 %v591
  %v1492 = vpop.f32.mrf.mxu0
  %v1493 = vadd.f32 %v1044, %v1492
  %1494 = vmatmul.f32.gmra.mxu0 %v594
  %v1495 = vpop.f32.mrf.mxu0
  %v1496 = vadd.f32 %v1047, %v1495
  %1497 = vmatmul.f32.gmra.mxu0 %v597
  %v1498 = vpop.f32.mrf.mxu0
  %v1499 = vadd.f32 %v1050, %v1498
  %1500 = vmatmul.f32.gmra.mxu0 %v600
  %v1501 = vpop.f32.mrf.mxu0
  %v1502 = vadd.f32 %v1053, %v1501
  %1503 = vmatmul.f32.gmra.mxu0 %v603
  %v1504 = vpop.f32.mrf.mxu0
  %v1505 = vadd.f32 %v1056, %v1504
  %1506 = vmatmul.f32.gmra.mxu0 %v606
  %v1507 = vpop.f32.mrf.mxu0
  %v1508 = vadd.f32 %v1059, %v1507
  %1509 = vmatmul.f32.gmra.mxu0 %v609
  %v1510 = vpop.f32.mrf.mxu0
  %v1511 = vadd.f32 %v1062, %v1510
  %1512 = vmatmul.f32.gmra.mxu0 %v612
  %v1513 = vpop.f32.mrf.mxu0
  %v1514 = vadd.f32 %v1065, %v1513
  %1515 = vmatmul.f32.gmra.mxu0 %v615
  %v1516 = vpop.f32.mrf.mxu0
  %v1517 = vadd.f32 %v1068, %v1516
  %1518 = vmatmul.f32.gmra.mxu0 %v618
  %v1519 = vpop.f32.mrf.mxu0
  %v1520 = vadd.f32 %v1071, %v1519
  %1521 = vmatmul.f32.gmra.mxu0 %v621
  %v1522 = vpop.f32.mrf.mxu0
  %v1523 = vadd.f32 %v1074, %v1522
  %1524 = vmatmul.f32.gmra.mxu0 %v624
  %v1525 = vpop.f32.mrf.mxu0
  %v1526 = vadd.f32 %v1077, %v1525
  %1527 = vmatmul.f32.gmra.mxu0 %v627
  %v1528 = vpop.f32.mrf.mxu0
  %v1529 = vadd.f32 %v1080, %v1528
  %1530 = vmatmul.f32.gmra.mxu0 %v630
  %v1531 = vpop.f32.mrf.mxu0
  %v1532 = vadd.f32 %v1083, %v1531
  %1533 = vmatmul.f32.gmra.mxu0 %v633
  %v1534 = vpop.f32.mrf.mxu0
  %v1535 = vadd.f32 %v1086, %v1534
  %1536 = vmatmul.f32.gmra.mxu0 %v636
  %v1537 = vpop.f32.mrf.mxu0
  %v1538 = vadd.f32 %v1089, %v1537
  %1539 = vmatmul.f32.gmra.mxu0 %v639
  %v1540 = vpop.f32.mrf.mxu0
  %v1541 = vadd.f32 %v1092, %v1540
  %1542 = vmatmul.f32.gmra.mxu0 %v642
  %v1543 = vpop.f32.mrf.mxu0
  %v1544 = vadd.f32 %v1095, %v1543
  %1545 = vmatmul.f32.gmra.mxu0 %v645
  %v1546 = vpop.f32.mrf.mxu0
  %v1547 = vadd.f32 %v1098, %v1546
  %1548 = vmatmul.f32.gmra.mxu0 %v648
  %v1549 = vpop.f32.mrf.mxu0
  %v1550 = vadd.f32 %v1101, %v1549
  %1551 = vmatmul.f32.gmra.mxu0 %v651
  %v1552 = vpop.f32.mrf.mxu0
  %v1553 = vadd.f32 %v1104, %v1552
  %1554 = vmatmul.f32.gmra.mxu0 %v654
  %v1555 = vpop.f32.mrf.mxu0
  %v1556 = vadd.f32 %v1107, %v1555
  %1557 = vmatmul.f32.gmra.mxu0 %v657
  %v1558 = vpop.f32.mrf.mxu0
  %v1559 = vadd.f32 %v1110, %v1558
  %1560 = vmatmul.f32.gmra.mxu0 %v660
  %v1561 = vpop.f32.mrf.mxu0
  %v1562 = vadd.f32 %v1113, %v1561
  %1563 = vmatmul.f32.gmra.mxu0 %v663
  %v1564 = vpop.f32.mrf.mxu0
  %v1565 = vadd.f32 %v1116, %v1564
  %1566 = vmatmul.f32.gmra.mxu0 %v666
  %v1567 = vpop.f32.mrf.mxu0
  %v1568 = vadd.f32 %v1119, %v1567
  %1569 = vmatmul.f32.gmra.mxu0 %v669
  %v1570 = vpop.f32.mrf.mxu0
  %v1571 = vadd.f32 %v1122, %v1570
  %1572 = vmatmul.f32.gmra.mxu0 %v672
  %v1573 = vpop.f32.mrf.mxu0
  %v1574 = vadd.f32 %v1125, %v1573
  %1575 = vmatmul.f32.gmra.mxu0 %v675
  %v1576 = vpop.f32.mrf.mxu0
  %v1577 = vadd.f32 %v1128, %v1576
  %1578 = vmatmul.f32.gmra.mxu0 %v678
  %v1579 = vpop.f32.mrf.mxu0
  %v1580 = vadd.f32 %v1131, %v1579
  %1581 = vmatmul.f32.gmra.mxu0 %v681
  %v1582 = vpop.f32.mrf.mxu0
  %v1583 = vadd.f32 %v1134, %v1582
  %1584 = vmatmul.f32.gmra.mxu0 %v684
  %v1585 = vpop.f32.mrf.mxu0
  %v1586 = vadd.f32 %v1137, %v1585
  %1587 = vmatmul.f32.gmra.mxu0 %v687
  %v1588 = vpop.f32.mrf.mxu0
  %v1589 = vadd.f32 %v1140, %v1588
  %1590 = vmatmul.f32.gmra.mxu0 %v690
  %v1591 = vpop.f32.mrf.mxu0
  %v1592 = vadd.f32 %v1143, %v1591
  %1593 = vmatmul.f32.gmra.mxu0 %v693
  %v1594 = vpop.f32.mrf.mxu0
  %v1595 = vadd.f32 %v1146, %v1594
  %1596 = vmatmul.f32.gmra.mxu0 %v696
  %v1597 = vpop.f32.mrf.mxu0
  %v1598 = vadd.f32 %v1149, %v1597
  %1599 = vmatmul.f32.gmra.mxu0 %v699
  %v1600 = vpop.f32.mrf.mxu0
  %v1601 = vadd.f32 %v1152, %v1600
  %1602 = vmatmul.f32.gmra.mxu0 %v702
  %v1603 = vpop.f32.mrf.mxu0
  %v1604 = vadd.f32 %v1155, %v1603
  %1605 = vmatmul.f32.gmra.mxu0 %v705
  %v1606 = vpop.f32.mrf.mxu0
  %v1607 = vadd.f32 %v1158, %v1606
  %1608 = vmatmul.f32.gmra.mxu0 %v708
  %v1609 = vpop.f32.mrf.mxu0
  %v1610 = vadd.f32 %v1161, %v1609
  %1611 = vmatmul.f32.gmra.mxu0 %v711
  %v1612 = vpop.f32.mrf.mxu0
  %v1613 = vadd.f32 %v1164, %v1612
  %1614 = vmatmul.f32.gmra.mxu0 %v714
  %v1615 = vpop.f32.mrf.mxu0
  %v1616 = vadd.f32 %v1167, %v1615
  %1617 = vmatmul.f32.gmra.mxu0 %v717
  %v1618 = vpop.f32.mrf.mxu0
  %v1619 = vadd.f32 %v1170, %v1618
  %1620 = vmatmul.f32.gmra.mxu0 %v720
  %v1621 = vpop.f32.mrf.mxu0
  %v1622 = vadd.f32 %v1173, %v1621
  %1623 = vmatmul.f32.gmra.mxu0 %v723
  %v1624 = vpop.f32.mrf.mxu0
  %v1625 = vadd.f32 %v1176, %v1624
  %1626 = vmatmul.f32.gmra.mxu0 %v726
  %v1627 = vpop.f32.mrf.mxu0
  %v1628 = vadd.f32 %v1179, %v1627
  %1629 = vmatmul.f32.gmra.mxu0 %v729
  %v1630 = vpop.f32.mrf.mxu0
  %v1631 = vadd.f32 %v1182, %v1630
  %1632 = vmatmul.f32.gmra.mxu0 %v732
  %v1633 = vpop.f32.mrf.mxu0
  %v1634 = vadd.f32 %v1185, %v1633
  %1635 = vmatmul.f32.gmra.mxu0 %v735
  %v1636 = vpop.f32.mrf.mxu0
  %v1637 = vadd.f32 %v1188, %v1636
  %1638 = vmatmul.f32.gmra.mxu0 %v738
  %v1639 = vpop.f32.mrf.mxu0
  %v1640 = vadd.f32 %v1191, %v1639
  %1641 = vmatmul.f32.gmra.mxu0 %v741
  %v1642 = vpop.f32.mrf.mxu0
  %v1643 = vadd.f32 %v1194, %v1642
  %1644 = vmatmul.f32.gmra.mxu0 %v744
  %v1645 = vpop.f32.mrf.mxu0
  %v1646 = vadd.f32 %v1197, %v1645
  %1647 = vmatmul.f32.gmra.mxu0 %v747
  %v1648 = vpop.f32.mrf.mxu0
  %v1649 = vadd.f32 %v1200, %v1648
  %1650 = vmatmul.f32.gmra.mxu0 %v750
  %v1651 = vpop.f32.mrf.mxu0
  %v1652 = vadd.f32 %v1203, %v1651
  %1653 = vmatmul.f32.gmra.mxu0 %v753
  %v1654 = vpop.f32.mrf.mxu0
  %v1655 = vadd.f32 %v1206, %v1654
  %1656 = vmatmul.f32.gmra.mxu0 %v756
  %v1657 = vpop.f32.mrf.mxu0
  %v1658 = vadd.f32 %v1209, %v1657
  %1659 = vmatmul.f32.gmra.mxu0 %v759
  %v1660 = vpop.f32.mrf.mxu0
  %v1661 = vadd.f32 %v1212, %v1660
  %1662 = vmatmul.f32.gmra.mxu0 %v762
  %v1663 = vpop.f32.mrf.mxu0
  %v1664 = vadd.f32 %v1215, %v1663
  %1665 = vdwg.mxu0
  %v1666 = vmax.f32 %v1235, 0.0
  %v1667 = vmax.f32 %v1238, 0.0
  %v1668 = vmax.f32 %v1241, 0.0
  %v1669 = vmax.f32 %v1244, 0.0
  %v1670 = vmax.f32 %v1247, 0.0
  %v1671 = vmax.f32 %v1250, 0.0
  %v1672 = vmax.f32 %v1253, 0.0
  %v1673 = vmax.f32 %v1256, 0.0
  %v1674 = vmax.f32 %v1259, 0.0
  %v1675 = vmax.f32 %v1262, 0.0
  %v1676 = vmax.f32 %v1265, 0.0
  %v1677 = vmax.f32 %v1268, 0.0
  %v1678 = vmax.f32 %v1271, 0.0
  %v1679 = vmax.f32 %v1274, 0.0
  %v1680 = vmax.f32 %v1277, 0.0
  %v1681 = vmax.f32 %v1280, 0.0
  %v1682 = vmax.f32 %v1283, 0.0
  %v1683 = vmax.f32 %v1286, 0.0
  %v1684 = vmax.f32 %v1289, 0.0
  %v1685 = vmax.f32 %v1292, 0.0
  %v1686 = vmax.f32 %v1295, 0.0
  %v1687 = vmax.f32 %v1298, 0.0
  %v1688 = vmax.f32 %v1301, 0.0
  %v1689 = vmax.f32 %v1304, 0.0
  %v1690 = vmax.f32 %v1307, 0.0
  %v1691 = vmax.f32 %v1310, 0.0
  %v1692 = vmax.f32 %v1313, 0.0
  %v1693 = vmax.f32 %v1316, 0.0
  %v1694 = vmax.f32 %v1319, 0.0
  %v1695 = vmax.f32 %v1322, 0.0
  %v1696 = vmax.f32 %v1325, 0.0
  %v1697 = vmax.f32 %v1328, 0.0
  %v1698 = vmax.f32 %v1331, 0.0
  %v1699 = vmax.f32 %v1334, 0.0
  %v1700 = vmax.f32 %v1337, 0.0
  %v1701 = vmax.f32 %v1340, 0.0
  %v1702 = vmax.f32 %v1343, 0.0
  %v1703 = vmax.f32 %v1346, 0.0
  %v1704 = vmax.f32 %v1349, 0.0
  %v1705 = vmax.f32 %v1352, 0.0
  %v1706 = vmax.f32 %v1355, 0.0
  %v1707 = vmax.f32 %v1358, 0.0
  %v1708 = vmax.f32 %v1361, 0.0
  %v1709 = vmax.f32 %v1364, 0.0
  %v1710 = vmax.f32 %v1367, 0.0
  %v1711 = vmax.f32 %v1370, 0.0
  %v1712 = vmax.f32 %v1373, 0.0
  %v1713 = vmax.f32 %v1376, 0.0
  %v1714 = vmax.f32 %v1379, 0.0
  %v1715 = vmax.f32 %v1382, 0.0
  %v1716 = vmax.f32 %v1385, 0.0
  %v1717 = vmax.f32 %v1388, 0.0
  %v1718 = vmax.f32 %v1391, 0.0
  %v1719 = vmax.f32 %v1394, 0.0
  %v1720 = vmax.f32 %v1397, 0.0
  %v1721 = vmax.f32 %v1400, 0.0
  %v1722 = vmax.f32 %v1403, 0.0
  %v1723 = vmax.f32 %v1406, 0.0
  %v1724 = vmax.f32 %v1409, 0.0
  %v1725 = vmax.f32 %v1412, 0.0
  %v1726 = vmax.f32 %v1415, 0.0
  %v1727 = vmax.f32 %v1418, 0.0
  %v1728 = vmax.f32 %v1421, 0.0
  %v1729 = vmax.f32 %v1424, 0.0
  %v1730 = vmax.f32 %v1427, 0.0
  %v1731 = vmax.f32 %v1430, 0.0
  %v1732 = vmax.f32 %v1433, 0.0
  %v1733 = vmax.f32 %v1436, 0.0
  %v1734 = vmax.f32 %v1439, 0.0
  %v1735 = vmax.f32 %v1442, 0.0
  %v1736 = vmax.f32 %v1445, 0.0
  %v1737 = vmax.f32 %v1448, 0.0
  %v1738 = vmax.f32 %v1451, 0.0
  %v1739 = vmax.f32 %v1454, 0.0
  %v1740 = vmax.f32 %v1457, 0.0
  %v1741 = vmax.f32 %v1460, 0.0
  %v1742 = vmax.f32 %v1463, 0.0
  %v1743 = vmax.f32 %v1466, 0.0
  %v1744 = vmax.f32 %v1469, 0.0
  %v1745 = vmax.f32 %v1472, 0.0
  %v1746 = vmax.f32 %v1475, 0.0
  %v1747 = vmax.f32 %v1478, 0.0
  %v1748 = vmax.f32 %v1481, 0.0
  %v1749 = vmax.f32 %v1484, 0.0
  %v1750 = vmax.f32 %v1487, 0.0
  %v1751 = vmax.f32 %v1490, 0.0
  %v1752 = vmax.f32 %v1493, 0.0
  %v1753 = vmax.f32 %v1496, 0.0
  %v1754 = vmax.f32 %v1499, 0.0
  %v1755 = vmax.f32 %v1502, 0.0
  %v1756 = vmax.f32 %v1505, 0.0
  %v1757 = vmax.f32 %v1508, 0.0
  %v1758 = vmax.f32 %v1511, 0.0
  %v1759 = vmax.f32 %v1514, 0.0
  %v1760 = vmax.f32 %v1517, 0.0
  %v1761 = vmax.f32 %v1520, 0.0
  %v1762 = vmax.f32 %v1523, 0.0
  %v1763 = vmax.f32 %v1526, 0.0
  %v1764 = vmax.f32 %v1529, 0.0
  %v1765 = vmax.f32 %v1532, 0.0
  %v1766 = vmax.f32 %v1535, 0.0
  %v1767 = vmax.f32 %v1538, 0.0
  %v1768 = vmax.f32 %v1541, 0.0
  %v1769 = vmax.f32 %v1544, 0.0
  %v1770 = vmax.f32 %v1547, 0.0
  %v1771 = vmax.f32 %v1550, 0.0
  %v1772 = vmax.f32 %v1553, 0.0
  %v1773 = vmax.f32 %v1556, 0.0
  %v1774 = vmax.f32 %v1559, 0.0
  %v1775 = vmax.f32 %v1562, 0.0
  %v1776 = vmax.f32 %v1565, 0.0
  %v1777 = vmax.f32 %v1568, 0.0
  %v1778 = vmax.f32 %v1571, 0.0
  %v1779 = vmax.f32 %v1574, 0.0
  %v1780 = vmax.f32 %v1577, 0.0
  %v1781 = vmax.f32 %v1580, 0.0
  %v1782 = vmax.f32 %v1583, 0.0
  %v1783 = vmax.f32 %v1586, 0.0
  %v1784 = vmax.f32 %v1589, 0.0
  %v1785 = vmax.f32 %v1592, 0.0
  %v1786 = vmax.f32 %v1595, 0.0
  %v1787 = vmax.f32 %v1598, 0.0
  %v1788 = vmax.f32 %v1601, 0.0
  %v1789 = vmax.f32 %v1604, 0.0
  %v1790 = vmax.f32 %v1607, 0.0
  %v1791 = vmax.f32 %v1610, 0.0
  %v1792 = vmax.f32 %v1613, 0.0
  %v1793 = vmax.f32 %v1616, 0.0
  %v1794 = vmax.f32 %v1619, 0.0
  %v1795 = vmax.f32 %v1622, 0.0
  %v1796 = vmax.f32 %v1625, 0.0
  %v1797 = vmax.f32 %v1628, 0.0
  %v1798 = vmax.f32 %v1631, 0.0
  %v1799 = vmax.f32 %v1634, 0.0
  %v1800 = vmax.f32 %v1637, 0.0
  %v1801 = vmax.f32 %v1640, 0.0
  %v1802 = vmax.f32 %v1643, 0.0
  %v1803 = vmax.f32 %v1646, 0.0
  %v1804 = vmax.f32 %v1649, 0.0
  %v1805 = vmax.f32 %v1652, 0.0
  %v1806 = vmax.f32 %v1655, 0.0
  %v1807 = vmax.f32 %v1658, 0.0
  %v1808 = vmax.f32 %v1661, 0.0
  %v1809 = vmax.f32 %v1664, 0.0
  %v1810 = vmax.f32 %v1666, %v1702
  %v1811 = vmax.f32 %v1667, %v1703
  %v1812 = vmax.f32 %v1668, %v1704
  %v1813 = vmax.f32 %v1669, %v1705
  %v1814 = vmax.f32 %v1670, %v1706
  %v1815 = vmax.f32 %v1671, %v1707
  %v1816 = vmax.f32 %v1672, %v1708
  %v1817 = vmax.f32 %v1673, %v1709
  %v1818 = vmax.f32 %v1674, %v1710
  %v1819 = vmax.f32 %v1675, %v1711
  %v1820 = vmax.f32 %v1676, %v1712
  %v1821 = vmax.f32 %v1677, %v1713
  %v1822 = vmax.f32 %v1678, %v1714
  %v1823 = vmax.f32 %v1679, %v1715
  %v1824 = vmax.f32 %v1680, %v1716
  %v1825 = vmax.f32 %v1681, %v1717
  %v1826 = vmax.f32 %v1682, %v1718
  %v1827 = vmax.f32 %v1683, %v1719
  %v1828 = vmax.f32 %v1684, %v1720
  %v1829 = vmax.f32 %v1685, %v1721
  %v1830 = vmax.f32 %v1686, %v1722
  %v1831 = vmax.f32 %v1687, %v1723
  %v1832 = vmax.f32 %v1688, %v1724
  %v1833 = vmax.f32 %v1689, %v1725
  %v1834 = vmax.f32 %v1690, %v1726
  %v1835 = vmax.f32 %v1691, %v1727
  %v1836 = vmax.f32 %v1692, %v1728
  %v1837 = vmax.f32 %v1693, %v1729
  %v1838 = vmax.f32 %v1694, %v1730
  %v1839 = vmax.f32 %v1695, %v1731
  %v1840 = vmax.f32 %v1696, %v1732
  %v1841 = vmax.f32 %v1697, %v1733
  %v1842 = vmax.f32 %v1698, %v1734
  %v1843 = vmax.f32 %v1699, %v1735
  %v1844 = vmax.f32 %v1700, %v1736
  %v1845 = vmax.f32 %v1701, %v1737
  %v1846 = vmax.f32 %v1738, %v1774
  %v1847 = vmax.f32 %v1739, %v1775
  %v1848 = vmax.f32 %v1740, %v1776
  %v1849 = vmax.f32 %v1741, %v1777
  %v1850 = vmax.f32 %v1742, %v1778
  %v1851 = vmax.f32 %v1743, %v1779
  %v1852 = vmax.f32 %v1744, %v1780
  %v1853 = vmax.f32 %v1745, %v1781
  %v1854 = vmax.f32 %v1746, %v1782
  %v1855 = vmax.f32 %v1747, %v1783
  %v1856 = vmax.f32 %v1748, %v1784
  %v1857 = vmax.f32 %v1749, %v1785
  %v1858 = vmax.f32 %v1750, %v1786
  %v1859 = vmax.f32 %v1751, %v1787
  %v1860 = vmax.f32 %v1752, %v1788
  %v1861 = vmax.f32 %v1753, %v1789
  %v1862 = vmax.f32 %v1754, %v1790
  %v1863 = vmax.f32 %v1755, %v1791
  %v1864 = vmax.f32 %v1756, %v1792
  %v1865 = vmax.f32 %v1757, %v1793
  %v1866 = vmax.f32 %v1758, %v1794
  %v1867 = vmax.f32 %v1759, %v1795
  %v1868 = vmax.f32 %v1760, %v1796
  %v1869 = vmax.f32 %v1761, %v1797
  %v1870 = vmax.f32 %v1762, %v1798
  %v1871 = vmax.f32 %v1763, %v1799
  %v1872 = vmax.f32 %v1764, %v1800
  %v1873 = vmax.f32 %v1765, %v1801
  %v1874 = vmax.f32 %v1766, %v1802
  %v1875 = vmax.f32 %v1767, %v1803
  %v1876 = vmax.f32 %v1768, %v1804
  %v1877 = vmax.f32 %v1769, %v1805
  %v1878 = vmax.f32 %v1770, %v1806
  %v1879 = vmax.f32 %v1771, %v1807
  %v1880 = vmax.f32 %v1772, %v1808
  %v1881 = vmax.f32 %v1773, %v1809
  %v1882 = vmax.f32 %v1810, %v1846
  %v1883 = vmax.f32 %v1811, %v1847
  %v1884 = vmax.f32 %v1812, %v1848
  %v1885 = vmax.f32 %v1813, %v1849
  %v1886 = vmax.f32 %v1814, %v1850
  %v1887 = vmax.f32 %v1815, %v1851
  %v1888 = vmax.f32 %v1816, %v1852
  %v1889 = vmax.f32 %v1817, %v1853
  %v1890 = vmax.f32 %v1818, %v1854
  %v1891 = vmax.f32 %v1819, %v1855
  %v1892 = vmax.f32 %v1820, %v1856
  %v1893 = vmax.f32 %v1821, %v1857
  %v1894 = vmax.f32 %v1822, %v1858
  %v1895 = vmax.f32 %v1823, %v1859
  %v1896 = vmax.f32 %v1824, %v1860
  %v1897 = vmax.f32 %v1825, %v1861
  %v1898 = vmax.f32 %v1826, %v1862
  %v1899 = vmax.f32 %v1827, %v1863
  %v1900 = vmax.f32 %v1828, %v1864
  %v1901 = vmax.f32 %v1829, %v1865
  %v1902 = vmax.f32 %v1830, %v1866
  %v1903 = vmax.f32 %v1831, %v1867
  %v1904 = vmax.f32 %v1832, %v1868
  %v1905 = vmax.f32 %v1833, %v1869
  %v1906 = vmax.f32 %v1834, %v1870
  %v1907 = vmax.f32 %v1835, %v1871
  %v1908 = vmax.f32 %v1836, %v1872
  %v1909 = vmax.f32 %v1837, %v1873
  %v1910 = vmax.f32 %v1838, %v1874
  %v1911 = vmax.f32 %v1839, %v1875
  %v1912 = vmax.f32 %v1840, %v1876
  %v1913 = vmax.f32 %v1841, %v1877
  %v1914 = vmax.f32 %v1842, %v1878
  %v1915 = vmax.f32 %v1843, %v1879
  %v1916 = vmax.f32 %v1844, %v1880
  %v1917 = vmax.f32 %v1845, %v1881
  %v1918 = vld [vmem:[%s3] sm:$0x1]
  %v1919 = vld [vmem:[%s4] sm:$0x1]
  %vm1920 = vcmask 130048
  %v1921 = vsel %vm1920, %v1882, 0.0
  %v1922 = vsel %vm1920, %v1883, 0.0
  %v1923 = vadd.f32 %v1921, %v1922
  %v1924 = vsel %vm1920, %v1884, 0.0
  %v1925 = vadd.f32 %v1923, %v1924
  %v1926 = vsel %vm1920, %v1885, 0.0
  %v1927 = vadd.f32 %v1925, %v1926
  %v1928 = vsel %vm1920, %v1886, 0.0
  %v1929 = vadd.f32 %v1927, %v1928
  %v1930 = vsel %vm1920, %v1887, 0.0
  %v1931 = vadd.f32 %v1929, %v1930
  %v1932 = vsel %vm1920, %v1888, 0.0
  %v1933 = vadd.f32 %v1931, %v1932
  %v1934 = vsel %vm1920, %v1889, 0.0
  %v1935 = vadd.f32 %v1933, %v1934
  %v1936 = vsel %vm1920, %v1890, 0.0
  %v1937 = vadd.f32 %v1935, %v1936
  %v1938 = vsel %vm1920, %v1891, 0.0
  %v1939 = vadd.f32 %v1937, %v1938
  %v1940 = vsel %vm1920, %v1892, 0.0
  %v1941 = vadd.f32 %v1939, %v1940
  %v1942 = vsel %vm1920, %v1893, 0.0
  %v1943 = vadd.f32 %v1941, %v1942
  %v1944 = vsel %vm1920, %v1894, 0.0
  %v1945 = vadd.f32 %v1943, %v1944
  %v1946 = vsel %vm1920, %v1895, 0.0
  %v1947 = vadd.f32 %v1945, %v1946
  %v1948 = vsel %vm1920, %v1896, 0.0
  %v1949 = vadd.f32 %v1947, %v1948
  %v1950 = vsel %vm1920, %v1897, 0.0
  %v1951 = vadd.f32 %v1949, %v1950
  %v1952 = vsel %vm1920, %v1898, 0.0
  %v1953 = vadd.f32 %v1951, %v1952
  %v1954 = vsel %vm1920, %v1899, 0.0
  %v1955 = vadd.f32 %v1953, %v1954
  %v1956 = vsel %vm1920, %v1900, 0.0
  %v1957 = vadd.f32 %v1955, %v1956
  %v1958 = vsel %vm1920, %v1901, 0.0
  %v1959 = vadd.f32 %v1957, %v1958
  %v1960 = vsel %vm1920, %v1902, 0.0
  %v1961 = vadd.f32 %v1959, %v1960
  %v1962 = vsel %vm1920, %v1903, 0.0
  %v1963 = vadd.f32 %v1961, %v1962
  %v1964 = vsel %vm1920, %v1904, 0.0
  %v1965 = vadd.f32 %v1963, %v1964
  %v1966 = vsel %vm1920, %v1905, 0.0
  %v1967 = vadd.f32 %v1965, %v1966
  %v1968 = vsel %vm1920, %v1906, 0.0
  %v1969 = vadd.f32 %v1967, %v1968
  %v1970 = vsel %vm1920, %v1907, 0.0
  %v1971 = vadd.f32 %v1969, %v1970
  %v1972 = vsel %vm1920, %v1908, 0.0
  %v1973 = vadd.f32 %v1971, %v1972
  %v1974 = vsel %vm1920, %v1909, 0.0
  %v1975 = vadd.f32 %v1973, %v1974
  %v1976 = vsel %vm1920, %v1910, 0.0
  %v1977 = vadd.f32 %v1975, %v1976
  %v1978 = vsel %vm1920, %v1911, 0.0
  %v1979 = vadd.f32 %v1977, %v1978
  %v1980 = vsel %vm1920, %v1912, 0.0
  %v1981 = vadd.f32 %v1979, %v1980
  %v1982 = vsel %vm1920, %v1913, 0.0
  %v1983 = vadd.f32 %v1981, %v1982
  %v1984 = vsel %vm1920, %v1914, 0.0
  %v1985 = vadd.f32 %v1983, %v1984
  %v1986 = vsel %vm1920, %v1915, 0.0
  %v1987 = vadd.f32 %v1985, %v1986
  %v1988 = vsel %vm1920, %v1916, 0.0
  %v1989 = vadd.f32 %v1987, %v1988
  %v1990 = vsel %vm1920, %v1917, 0.0
  %v1991 = vadd.f32 %v1989, %v1990
  %v1992 = vrot.slane %v1991, 4
  %v1993 = vadd.f32 %v1991, %v1992
  %v1994 = vrot.slane %v1993, 2
  %v1995 = vadd.f32 %v1993, %v1994
  %v1996 = vrot.slane %v1995, 1
  %v1997 = vadd.f32 %v1995, %v1996
  %v1998 = vrcp.pop 288.0
  %v1999 = vmul.f32 288.0, %v1998
  %v2000 = vsub.f32 1.0, %v1999
  %v2001 = vmul.f32 %v1998, %v2000
  %v2002 = vadd.f32 %v1998, %v2001
  %vm2003 = vweird.f32 %v1998
  %v2004 = vsel %vm2003, %v1998, %v2002
  %v2005 = vmul.f32 %v1997, %v2004
  %v2006 = vsub.f32 %v1882, %v2005
  %v2007 = vsub.f32 %v1883, %v2005
  %v2008 = vsub.f32 %v1884, %v2005
  %v2009 = vsub.f32 %v1885, %v2005
  %v2010 = vsub.f32 %v1886, %v2005
  %v2011 = vsub.f32 %v1887, %v2005
  %v2012 = vsub.f32 %v1888, %v2005
  %v2013 = vsub.f32 %v1889, %v2005
  %v2014 = vsub.f32 %v1890, %v2005
  %v2015 = vsub.f32 %v1891, %v2005
  %v2016 = vsub.f32 %v1892, %v2005
  %v2017 = vsub.f32 %v1893, %v2005
  %v2018 = vsub.f32 %v1894, %v2005
  %v2019 = vsub.f32 %v1895, %v2005
  %v2020 = vsub.f32 %v1896, %v2005
  %v2021 = vsub.f32 %v1897, %v2005
  %v2022 = vsub.f32 %v1898, %v2005
  %v2023 = vsub.f32 %v1899, %v2005
  %v2024 = vsub.f32 %v1900, %v2005
  %v2025 = vsub.f32 %v1901, %v2005
  %v2026 = vsub.f32 %v1902, %v2005
  %v2027 = vsub.f32 %v1903, %v2005
  %v2028 = vsub.f32 %v1904, %v2005
  %v2029 = vsub.f32 %v1905, %v2005
  %v2030 = vsub.f32 %v1906, %v2005
  %v2031 = vsub.f32 %v1907, %v2005
  %v2032 = vsub.f32 %v1908, %v2005
  %v2033 = vsub.f32 %v1909, %v2005
  %v2034 = vsub.f32 %v1910, %v2005
  %v2035 = vsub.f32 %v1911, %v2005
  %v2036 = vsub.f32 %v1912, %v2005
  %v2037 = vsub.f32 %v1913, %v2005
  %v2038 = vsub.f32 %v1914, %v2005
  %v2039 = vsub.f32 %v1915, %v2005
  %v2040 = vsub.f32 %v1916, %v2005
  %v2041 = vsub.f32 %v1917, %v2005
  %v2042 = vmul.f32 %v2006, %v2006
  %v2043 = vmul.f32 %v2007, %v2007
  %v2044 = vmul.f32 %v2008, %v2008
  %v2045 = vmul.f32 %v2009, %v2009
  %v2046 = vmul.f32 %v2010, %v2010
  %v2047 = vmul.f32 %v2011, %v2011
  %v2048 = vmul.f32 %v2012, %v2012
  %v2049 = vmul.f32 %v2013, %v2013
  %v2050 = vmul.f32 %v2014, %v2014
  %v2051 = vmul.f32 %v2015, %v2015
  %v2052 = vmul.f32 %v2016, %v2016
  %v2053 = vmul.f32 %v2017, %v2017
  %v2054 = vmul.f32 %v2018, %v2018
  %v2055 = vmul.f32 %v2019, %v2019
  %v2056 = vmul.f32 %v2020, %v2020
  %v2057 = vmul.f32 %v2021, %v2021
  %v2058 = vmul.f32 %v2022, %v2022
  %v2059 = vmul.f32 %v2023, %v2023
  %v2060 = vmul.f32 %v2024, %v2024
  %v2061 = vmul.f32 %v2025, %v2025
  %v2062 = vmul.f32 %v2026, %v2026
  %v2063 = vmul.f32 %v2027, %v2027
  %v2064 = vmul.f32 %v2028, %v2028
  %v2065 = vmul.f32 %v2029, %v2029
  %v2066 = vmul.f32 %v2030, %v2030
  %v2067 = vmul.f32 %v2031, %v2031
  %v2068 = vmul.f32 %v2032, %v2032
  %v2069 = vmul.f32 %v2033, %v2033
  %v2070 = vmul.f32 %v2034, %v2034
  %v2071 = vmul.f32 %v2035, %v2035
  %v2072 = vmul.f32 %v2036, %v2036
  %v2073 = vmul.f32 %v2037, %v2037
  %v2074 = vmul.f32 %v2038, %v2038
  %v2075 = vmul.f32 %v2039, %v2039
  %v2076 = vmul.f32 %v2040, %v2040
  %v2077 = vmul.f32 %v2041, %v2041
  %v2078 = vsel %vm1920, %v2042, 0.0
  %v2079 = vsel %vm1920, %v2043, 0.0
  %v2080 = vadd.f32 %v2078, %v2079
  %v2081 = vsel %vm1920, %v2044, 0.0
  %v2082 = vadd.f32 %v2080, %v2081
  %v2083 = vsel %vm1920, %v2045, 0.0
  %v2084 = vadd.f32 %v2082, %v2083
  %v2085 = vsel %vm1920, %v2046, 0.0
  %v2086 = vadd.f32 %v2084, %v2085
  %v2087 = vsel %vm1920, %v2047, 0.0
  %v2088 = vadd.f32 %v2086, %v2087
  %v2089 = vsel %vm1920, %v2048, 0.0
  %v2090 = vadd.f32 %v2088, %v2089
  %v2091 = vsel %vm1920, %v2049, 0.0
  %v2092 = vadd.f32 %v2090, %v2091
  %v2093 = vsel %vm1920, %v2050, 0.0
  %v2094 = vadd.f32 %v2092, %v2093
  %v2095 = vsel %vm1920, %v2051, 0.0
  %v2096 = vadd.f32 %v2094, %v2095
  %v2097 = vsel %vm1920, %v2052, 0.0
  %v2098 = vadd.f32 %v2096, %v2097
  %v2099 = vsel %vm1920, %v2053, 0.0
  %v2100 = vadd.f32 %v2098, %v2099
  %v2101 = vsel %vm1920, %v2054, 0.0
  %v2102 = vadd.f32 %v2100, %v2101
  %v2103 = vsel %vm1920, %v2055, 0.0
  %v2104 = vadd.f32 %v2102, %v2103
  %v2105 = vsel %vm1920, %v2056, 0.0
  %v2106 = vadd.f32 %v2104, %v2105
  %v2107 = vsel %vm1920, %v2057, 0.0
  %v2108 = vadd.f32 %v2106, %v2107
  %v2109 = vsel %vm1920, %v2058, 0.0
  %v2110 = vadd.f32 %v2108, %v2109
  %v2111 = vsel %vm1920, %v2059, 0.0
  %v2112 = vadd.f32 %v2110, %v2111
  %v2113 = vsel %vm1920, %v2060, 0.0
  %v2114 = vadd.f32 %v2112, %v2113
  %v2115 = vsel %vm1920, %v2061, 0.0
  %v2116 = vadd.f32 %v2114, %v2115
  %v2117 = vsel %vm1920, %v2062, 0.0
  %v2118 = vadd.f32 %v2116, %v2117
  %v2119 = vsel %vm1920, %v2063, 0.0
  %v2120 = vadd.f32 %v2118, %v2119
  %v2121 = vsel %vm1920, %v2064, 0.0
  %v2122 = vadd.f32 %v2120, %v2121
  %v2123 = vsel %vm1920, %v2065, 0.0
  %v2124 = vadd.f32 %v2122, %v2123
  %v2125 = vsel %vm1920, %v2066, 0.0
  %v2126 = vadd.f32 %v2124, %v2125
  %v2127 = vsel %vm1920, %v2067, 0.0
  %v2128 = vadd.f32 %v2126, %v2127
  %v2129 = vsel %vm1920, %v2068, 0.0
  %v2130 = vadd.f32 %v2128, %v2129
  %v2131 = vsel %vm1920, %v2069, 0.0
  %v2132 = vadd.f32 %v2130, %v2131
  %v2133 = vsel %vm1920, %v2070, 0.0
  %v2134 = vadd.f32 %v2132, %v2133
  %v2135 = vsel %vm1920, %v2071, 0.0
  %v2136 = vadd.f32 %v2134, %v2135
  %v2137 = vsel %vm1920, %v2072, 0.0
  %v2138 = vadd.f32 %v2136, %v2137
  %v2139 = vsel %vm1920, %v2073, 0.0
  %v2140 = vadd.f32 %v2138, %v2139
  %v2141 = vsel %vm1920, %v2074, 0.0
  %v2142 = vadd.f32 %v2140, %v2141
  %v2143 = vsel %vm1920, %v2075, 0.0
  %v2144 = vadd.f32 %v2142, %v2143
  %v2145 = vsel %vm1920, %v2076, 0.0
  %v2146 = vadd.f32 %v2144, %v2145
  %v2147 = vsel %vm1920, %v2077, 0.0
  %v2148 = vadd.f32 %v2146, %v2147
  %v2149 = vrot.slane %v2148, 4
  %v2150 = vadd.f32 %v2148, %v2149
  %v2151 = vrot.slane %v2150, 2
  %v2152 = vadd.f32 %v2150, %v2151
  %v2153 = vrot.slane %v2152, 1
  %v2154 = vadd.f32 %v2152, %v2153
  %v2155 = vmul.f32 %v2154, %v2004
  %v2156 = vadd.f32 %v2155, 1e-05
  %v2157 = vrsqrt.pop %v2156
  %v2158 = vmul.f32 %v2157, %v2156
  %v2159 = vmul.f32 %v2158, %v2157
  %v2160 = vmul.f32 0.5, %v2159
  %v2161 = vsub.f32 1.5, %v2160
  %v2162 = vmul.f32 %v2157, %v2161
  %vm2163 = vweird.f32 %v2156
  %vm2164 = vweird.f32 %v2157
  %vm2165 = vmor %vm2163, %vm2164
  %v2166 = vsel %vm2165, %v2157, %v2162
  %v2167 = vmul.f32 %v1918, %v2166
  %v2168 = vmul.f32 %v2005, %v2167
  %v2169 = vsub.f32 %v1919, %v2168
  %v2171 = vperm.slane %v2167, 0
  %v2173 = vmul.f32 %v1882, %v2171
  %v2174 = vmul.f32 %v1883, %v2171
  %v2175 = vmul.f32 %v1884, %v2171
  %v2176 = vmul.f32 %v1885, %v2171
  %v2177 = vmul.f32 %v1886, %v2171
  %v2178 = vmul.f32 %v1887, %v2171
  %v2179 = vmul.f32 %v1888, %v2171
  %v2180 = vmul.f32 %v1889, %v2171
  %v2181 = vmul.f32 %v1890, %v2171
  %v2182 = vmul.f32 %v1891, %v2171
  %v2183 = vmul.f32 %v1892, %v2171
  %v2184 = vmul.f32 %v1893, %v2171
  %v2185 = vmul.f32 %v1894, %v2171
  %v2186 = vmul.f32 %v1895, %v2171
  %v2187 = vmul.f32 %v1896, %v2171
  %v2188 = vmul.f32 %v1897, %v2171
  %v2189 = vmul.f32 %v1898, %v2171
  %v2190 = vmul.f32 %v1899, %v2171
  %v2191 = vmul.f32 %v1900, %v2171
  %v2192 = vmul.f32 %v1901, %v2171
  %v2193 = vmul.f32 %v1902, %v2171
  %v2194 = vmul.f32 %v1903, %v2171
  %v2195 = vmul.f32 %v1904, %v2171
  %v2196 = vmul.f32 %v1905, %v2171
  %v2197 = vmul.f32 %v1906, %v2171
  %v2198 = vmul.f32 %v1907, %v2171
  %v2199 = vmul.f32 %v1908, %v2171
  %v2200 = vmul.f32 %v1909, %v2171
  %v2201 = vmul.f32 %v1910, %v2171
  %v2202 = vmul.f32 %v1911, %v2171
  %v2203 = vmul.f32 %v1912, %v2171
  %v2204 = vmul.f32 %v1913, %v2171
  %v2205 = vmul.f32 %v1914, %v2171
  %v2206 = vmul.f32 %v1915, %v2171
  %v2207 = vmul.f32 %v1916, %v2171
  %v2208 = vmul.f32 %v1917, %v2171
  %v2210 = vperm.slane %v2169, 0
  %v2212 = vadd.f32 %v2173, %v2210
  %v2213 = vadd.f32 %v2174, %v2210
  %v2214 = vadd.f32 %v2175, %v2210
  %v2215 = vadd.f32 %v2176, %v2210
  %v2216 = vadd.f32 %v2177, %v2210
  %v2217 = vadd.f32 %v2178, %v2210
  %v2218 = vadd.f32 %v2179, %v2210
  %v2219 = vadd.f32 %v2180, %v2210
  %v2220 = vadd.f32 %v2181, %v2210
  %v2221 = vadd.f32 %v2182, %v2210
  %v2222 = vadd.f32 %v2183, %v2210
  %v2223 = vadd.f32 %v2184, %v2210
  %v2224 = vadd.f32 %v2185, %v2210
  %v2225 = vadd.f32 %v2186, %v2210
  %v2226 = vadd.f32 %v2187, %v2210
  %v2227 = vadd.f32 %v2188, %v2210
  %v2228 = vadd.f32 %v2189, %v2210
  %v2229 = vadd.f32 %v2190, %v2210
  %v2230 = vadd.f32 %v2191, %v2210
  %v2231 = vadd.f32 %v2192, %v2210
  %v2232 = vadd.f32 %v2193, %v2210
  %v2233 = vadd.f32 %v2194, %v2210
  %v2234 = vadd.f32 %v2195, %v2210
  %v2235 = vadd.f32 %v2196, %v2210
  %v2236 = vadd.f32 %v2197, %v2210
  %v2237 = vadd.f32 %v2198, %v2210
  %v2238 = vadd.f32 %v2199, %v2210
  %v2239 = vadd.f32 %v2200, %v2210
  %v2240 = vadd.f32 %v2201, %v2210
  %v2241 = vadd.f32 %v2202, %v2210
  %v2242 = vadd.f32 %v2203, %v2210
  %v2243 = vadd.f32 %v2204, %v2210
  %v2244 = vadd.f32 %v2205, %v2210
  %v2245 = vadd.f32 %v2206, %v2210
  %v2246 = vadd.f32 %v2207, %v2210
  %v2247 = vadd.f32 %v2208, %v2210
  %2248 = vst.msk [vmem:[%s5] sm:$0xff] %vm1920, %v2212
  %2249 = vst.msk [vmem:[%s5 + $0x8] sm:$0xff] %vm1920, %v2213
  %2250 = vst.msk [vmem:[%s5 + $0x10] sm:$0xff] %vm1920, %v2214
  %2251 = vst.msk [vmem:[%s5 + $0x18] sm:$0xff] %vm1920, %v2215
  %2252 = vst.msk [vmem:[%s5 + $0x20] sm:$0xff] %vm1920, %v2216
  %2253 = vst.msk [vmem:[%s5 + $0x28] sm:$0xff] %vm1920, %v2217
  %2254 = vst.msk [vmem:[%s5 + $0x30] sm:$0xff] %vm1920, %v2218
  %2255 = vst.msk [vmem:[%s5 + $0x38] sm:$0xff] %vm1920, %v2219
  %2256 = vst.msk [vmem:[%s5 + $0x40] sm:$0xff] %vm1920, %v2220
  %2257 = vst.msk [vmem:[%s5 + $0x48] sm:$0xff] %vm1920, %v2221
  %2258 = vst.msk [vmem:[%s5 + $0x50] sm:$0xff] %vm1920, %v2222
  %2259 = vst.msk [vmem:[%s5 + $0x58] sm:$0xff] %vm1920, %v2223
  %2260 = vst.msk [vmem:[%s5 + $0x60] sm:$0xff] %vm1920, %v2224
  %2261 = vst.msk [vmem:[%s5 + $0x68] sm:$0xff] %vm1920, %v2225
  %2262 = vst.msk [vmem:[%s5 + $0x70] sm:$0xff] %vm1920, %v2226
  %2263 = vst.msk [vmem:[%s5 + $0x78] sm:$0xff] %vm1920, %v2227
  %2264 = vst.msk [vmem:[%s5 + $0x80] sm:$0xff] %vm1920, %v2228
  %2265 = vst.msk [vmem:[%s5 + $0x88] sm:$0xff] %vm1920, %v2229
  %2266 = vst.msk [vmem:[%s5 + $0x90] sm:$0xff] %vm1920, %v2230
  %2267 = vst.msk [vmem:[%s5 + $0x98] sm:$0xff] %vm1920, %v2231
  %2268 = vst.msk [vmem:[%s5 + $0xa0] sm:$0xff] %vm1920, %v2232
  %2269 = vst.msk [vmem:[%s5 + $0xa8] sm:$0xff] %vm1920, %v2233
  %2270 = vst.msk [vmem:[%s5 + $0xb0] sm:$0xff] %vm1920, %v2234
  %2271 = vst.msk [vmem:[%s5 + $0xb8] sm:$0xff] %vm1920, %v2235
  %2272 = vst.msk [vmem:[%s5 + $0xc0] sm:$0xff] %vm1920, %v2236
  %2273 = vst.msk [vmem:[%s5 + $0xc8] sm:$0xff] %vm1920, %v2237
  %2274 = vst.msk [vmem:[%s5 + $0xd0] sm:$0xff] %vm1920, %v2238
  %2275 = vst.msk [vmem:[%s5 + $0xd8] sm:$0xff] %vm1920, %v2239
  %2276 = vst.msk [vmem:[%s5 + $0xe0] sm:$0xff] %vm1920, %v2240
  %2277 = vst.msk [vmem:[%s5 + $0xe8] sm:$0xff] %vm1920, %v2241
  %2278 = vst.msk [vmem:[%s5 + $0xf0] sm:$0xff] %vm1920, %v2242
  %2279 = vst.msk [vmem:[%s5 + $0xf8] sm:$0xff] %vm1920, %v2243
  %2280 = vst.msk [vmem:[%s5 + $0x100] sm:$0xff] %vm1920, %v2244
  %2281 = vst.msk [vmem:[%s5 + $0x108] sm:$0xff] %vm1920, %v2245
  %2282 = vst.msk [vmem:[%s5 + $0x110] sm:$0xff] %vm1920, %v2246
  %2283 = vst.msk [vmem:[%s5 + $0x118] sm:$0xff] %vm1920, %v2247
  // Predicated region
  $region22: #{forward.5} parent=0 // pred_check
    _
  $region23: #{forward.5} parent=0 // pred_check_branch
    %2285 = sbr.rel (0) target = $region25
  $region24: #{forward.5} parent=0 // pred_region
    _
  $region25: #{forward.5} parent=0 // pred_fallthru
    _
  // Predicated region
  $region26: #{forward.5} parent=0 // pred_check
    _
  $region27: #{forward.5} parent=0 // pred_check_branch
    %2287 = sbr.rel (0) target = $region29
  $region28: #{forward.5} parent=0 // pred_region
    _
  $region29: #{forward.5} parent=0 // pred_fallthru
    _

// kernel: forward.6
$region0: #{forward.6}
  #allocation0 [shape = 'u32[]', space=smem, size = 0x4, offset = 0x4, fixed_abs, tag = 'smem constant byte address 0x4 - core index']
  #allocation1 [shape = 'u32[72,128]{1,0:T(1,128)}', space=vmem, size = 0x9000, scoped, tag = 'internal scratch']
  %s0 = inlined_call_operand.vmem [shape: f32[128,400], index: 0, kind: input, shape index: {}]
  %s1 = inlined_call_operand.vmem [shape: f32[400,32], index: 1, kind: input, shape index: {}]
  %s2 = inlined_call_operand.vmem [shape: f32[1,32], index: 2, kind: input, shape index: {}]
  %s3 = inlined_call_operand.vmem [shape: f32[1,32], index: 3, kind: input, shape index: {}]
  %s4 = inlined_call_operand.vmem [shape: f32[1,32], index: 4, kind: input, shape index: {}]
  %s5 = inlined_call_operand.vmem [shape: f32[32,32], index: 5, kind: output, shape index: {}]
  %s6 = sld [smem:[#allocation0]]
  $region30: #{forward.6} parent=0
    _
  %s8 = ssub.s32 1, %s6
  %s9 = scalar_select 0, %s8, %s6
  // Predicated region
  $region2: #{forward.6} parent=0 // pred_check
    _
  $region3: #{forward.6} parent=0 // pred_check_branch
    %11 = sbr.rel (0) target = $region5
  $region4: #{forward.6} parent=0 // pred_region
    _
  $region5: #{forward.6} parent=0 // pred_fallthru
    _
  // Predicated region
  $region6: #{forward.6} parent=0 // pred_check
    _
  $region7: #{forward.6} parent=0 // pred_check_branch
    %13 = sbr.rel (0) target = $region9
  $region8: #{forward.6} parent=0 // pred_region
    _
  $region9: #{forward.6} parent=0 // pred_fallthru
    _
  // Predicated region
  $region10: #{forward.6} parent=0 // pred_check
    _
  $region11: #{forward.6} parent=0 // pred_check_branch
    %15 = sbr.rel (0) target = $region13
  $region12: #{forward.6} parent=0 // pred_region
    _
  $region13: #{forward.6} parent=0 // pred_fallthru
    _
  // Predicated region
  $region14: #{forward.6} parent=0 // pred_check
    _
  $region15: #{forward.6} parent=0 // pred_check_branch
    %17 = sbr.rel (0) target = $region17
  $region16: #{forward.6} parent=0 // pred_region
    _
  $region17: #{forward.6} parent=0 // pred_fallthru
    _
  // Predicated region
  $region18: #{forward.6} parent=0 // pred_check
    _
  $region19: #{forward.6} parent=0 // pred_check_branch
    %19 = sbr.rel (0) target = $region21
  $region20: #{forward.6} parent=0 // pred_region
    _
  $region21: #{forward.6} parent=0 // pred_fallthru
    _
  %v20 = vld [vmem:[%s0] sm:$0xff]
  %v21 = vld [vmem:[%s0 + $0x8] sm:$0xff]
  %v22 = vld [vmem:[%s0 + $0x10] sm:$0xff]
  %v23 = vld [vmem:[%s0 + $0x18] sm:$0xff]
  %v24 = vld [vmem:[%s0 + $0x20] sm:$0xff]
  %v25 = vld [vmem:[%s0 + $0x28] sm:$0xff]
  %v26 = vld [vmem:[%s0 + $0x30] sm:$0xff]
  %v27 = vld [vmem:[%s0 + $0x38] sm:$0xff]
  %v28 = vld [vmem:[%s0 + $0x40] sm:$0xff]
  %v29 = vld [vmem:[%s0 + $0x48] sm:$0xff]
  %v30 = vld [vmem:[%s0 + $0x50] sm:$0xff]
  %v31 = vld [vmem:[%s0 + $0x58] sm:$0xff]
  %v32 = vld [vmem:[%s0 + $0x60] sm:$0xff]
  %v33 = vld [vmem:[%s0 + $0x68] sm:$0xff]
  %v34 = vld [vmem:[%s0 + $0x70] sm:$0xff]
  %v35 = vld [vmem:[%s0 + $0x78] sm:$0xff]
  %v36 = vld [vmem:[%s0 + $0x80] sm:$0xff]
  %v37 = vld [vmem:[%s0 + $0x88] sm:$0xff]
  %v38 = vld [vmem:[%s0 + $0x90] sm:$0xff]
  %v39 = vld [vmem:[%s0 + $0x98] sm:$0xff]
  %v40 = vld [vmem:[%s0 + $0xa0] sm:$0xff]
  %v41 = vld [vmem:[%s0 + $0xa8] sm:$0xff]
  %v42 = vld [vmem:[%s0 + $0xb0] sm:$0xff]
  %v43 = vld [vmem:[%s0 + $0xb8] sm:$0xff]
  %v44 = vld [vmem:[%s0 + $0xc0] sm:$0xff]
  %v45 = vld [vmem:[%s0 + $0xc8] sm:$0xff]
  %v46 = vld [vmem:[%s0 + $0xd0] sm:$0xff]
  %v47 = vld [vmem:[%s0 + $0xd8] sm:$0xff]
  %v48 = vld [vmem:[%s0 + $0xe0] sm:$0xff]
  %v49 = vld [vmem:[%s0 + $0xe8] sm:$0xff]
  %v50 = vld [vmem:[%s0 + $0xf0] sm:$0xff]
  %v51 = vld [vmem:[%s0 + $0xf8] sm:$0xff]
  %v52 = vld [vmem:[%s0 + $0x100] sm:$0xff]
  %v53 = vld [vmem:[%s0 + $0x108] sm:$0xff]
  %v54 = vld [vmem:[%s0 + $0x110] sm:$0xff]
  %v55 = vld [vmem:[%s0 + $0x118] sm:$0xff]
  %v56 = vld [vmem:[%s0 + $0x120] sm:$0xff]
  %v57 = vld [vmem:[%s0 + $0x128] sm:$0xff]
  %v58 = vld [vmem:[%s0 + $0x130] sm:$0xff]
  %v59 = vld [vmem:[%s0 + $0x138] sm:$0xff]
  %v60 = vld [vmem:[%s0 + $0x140] sm:$0xff]
  %v61 = vld [vmem:[%s0 + $0x148] sm:$0xff]
  %v62 = vld [vmem:[%s0 + $0x150] sm:$0xff]
  %v63 = vld [vmem:[%s0 + $0x158] sm:$0xff]
  %v64 = vld [vmem:[%s0 + $0x160] sm:$0xff]
  %v65 = vld [vmem:[%s0 + $0x168] sm:$0xff]
  %v66 = vld [vmem:[%s0 + $0x170] sm:$0xff]
  %v67 = vld [vmem:[%s0 + $0x178] sm:$0xff]
  %v68 = vld [vmem:[%s0 + $0x180] sm:$0xff]
  %v69 = vld [vmem:[%s0 + $0x188] sm:$0xff]
  %v70 = vld [vmem:[%s0 + $0x190] sm:$0xff]
  %v71 = vld [vmem:[%s0 + $0x198] sm:$0xff]
  %v72 = vld [vmem:[%s0 + $0x1a0] sm:$0xff]
  %v73 = vld [vmem:[%s0 + $0x1a8] sm:$0xff]
  %v74 = vld [vmem:[%s0 + $0x1b0] sm:$0xff]
  %v75 = vld [vmem:[%s0 + $0x1b8] sm:$0xff]
  %v76 = vld [vmem:[%s0 + $0x1c0] sm:$0xff]
  %v77 = vld [vmem:[%s0 + $0x1c8] sm:$0xff]
  %v78 = vld [vmem:[%s0 + $0x1d0] sm:$0xff]
  %v79 = vld [vmem:[%s0 + $0x1d8] sm:$0xff]
  %v80 = vld [vmem:[%s0 + $0x1e0] sm:$0xff]
  %v81 = vld [vmem:[%s0 + $0x1e8] sm:$0xff]
  %v82 = vld [vmem:[%s0 + $0x1f0] sm:$0xff]
  %v83 = vld [vmem:[%s0 + $0x1f8] sm:$0xff]
  %v84 = vld [vmem:[%s1] sm:$0xff]
  %v85 = vld [vmem:[%s1 + $0x8] sm:$0xff]
  %v86 = vld [vmem:[%s1 + $0x10] sm:$0xff]
  %v87 = vld [vmem:[%s1 + $0x18] sm:$0xff]
  %v88 = vld [vmem:[%s1 + $0x20] sm:$0xff]
  %v89 = vld [vmem:[%s1 + $0x28] sm:$0xff]
  %v90 = vld [vmem:[%s1 + $0x30] sm:$0xff]
  %v91 = vld [vmem:[%s1 + $0x38] sm:$0xff]
  %v92 = vld [vmem:[%s1 + $0x40] sm:$0xff]
  %v93 = vld [vmem:[%s1 + $0x48] sm:$0xff]
  %v94 = vld [vmem:[%s1 + $0x50] sm:$0xff]
  %v95 = vld [vmem:[%s1 + $0x58] sm:$0xff]
  %v96 = vld [vmem:[%s1 + $0x60] sm:$0xff]
  %v97 = vld [vmem:[%s1 + $0x68] sm:$0xff]
  %v98 = vld [vmem:[%s1 + $0x70] sm:$0xff]
  %v99 = vld [vmem:[%s1 + $0x78] sm:$0xff]
  %v100 = vld [vmem:[%s1 + $0x80] sm:$0xff]
  %v101 = vld [vmem:[%s1 + $0x88] sm:$0xff]
  %v102 = vld [vmem:[%s1 + $0x90] sm:$0xff]
  %v103 = vld [vmem:[%s1 + $0x98] sm:$0xff]
  %v104 = vld [vmem:[%s1 + $0xa0] sm:$0xff]
  %v105 = vld [vmem:[%s1 + $0xa8] sm:$0xff]
  %v106 = vld [vmem:[%s1 + $0xb0] sm:$0xff]
  %v107 = vld [vmem:[%s1 + $0xb8] sm:$0xff]
  %v108 = vld [vmem:[%s1 + $0xc0] sm:$0xff]
  %v109 = vld [vmem:[%s1 + $0xc8] sm:$0xff]
  %v110 = vld [vmem:[%s1 + $0xd0] sm:$0xff]
  %v111 = vld [vmem:[%s1 + $0xd8] sm:$0xff]
  %v112 = vld [vmem:[%s1 + $0xe0] sm:$0xff]
  %v113 = vld [vmem:[%s1 + $0xe8] sm:$0xff]
  %v114 = vld [vmem:[%s1 + $0xf0] sm:$0xff]
  %v115 = vld [vmem:[%s1 + $0xf8] sm:$0xff]
  %v116 = vld [vmem:[%s1 + $0x100] sm:$0xff]
  %v117 = vld [vmem:[%s1 + $0x108] sm:$0xff]
  %v118 = vld [vmem:[%s1 + $0x110] sm:$0xff]
  %v119 = vld [vmem:[%s1 + $0x118] sm:$0xff]
  %v120 = vld [vmem:[%s1 + $0x120] sm:$0xff]
  %v121 = vld [vmem:[%s1 + $0x128] sm:$0xff]
  %v122 = vld [vmem:[%s1 + $0x130] sm:$0xff]
  %v123 = vld [vmem:[%s1 + $0x138] sm:$0xff]
  %v124 = vld [vmem:[%s1 + $0x140] sm:$0xff]
  %v125 = vld [vmem:[%s1 + $0x148] sm:$0xff]
  %v126 = vld [vmem:[%s1 + $0x150] sm:$0xff]
  %v127 = vld [vmem:[%s1 + $0x158] sm:$0xff]
  %v128 = vld [vmem:[%s1 + $0x160] sm:$0xff]
  %v129 = vld [vmem:[%s1 + $0x168] sm:$0xff]
  %v130 = vld [vmem:[%s1 + $0x170] sm:$0xff]
  %v131 = vld [vmem:[%s1 + $0x178] sm:$0xff]
  %v132 = vld [vmem:[%s1 + $0x180] sm:$0xff]
  %v133 = vld [vmem:[%s1 + $0x188] sm:$0xff]
  %v134 = vld [vmem:[%s2] sm:$0x1]
  %v136 = vperm.slane %v134, 0
  %vm138 = vcmask 130048
  %v140 = vsel %vm138, %v23, 0
  %v143 = vsel %vm138, %v27, 0
  %v146 = vsel %vm138, %v31, 0
  %v149 = vsel %vm138, %v35, 0
  %v152 = vsel %vm138, %v39, 0
  %v155 = vsel %vm138, %v43, 0
  %v158 = vsel %vm138, %v47, 0
  %v161 = vsel %vm138, %v51, 0
  %v164 = vsel %vm138, %v55, 0
  %v167 = vsel %vm138, %v59, 0
  %v170 = vsel %vm138, %v63, 0
  %v173 = vsel %vm138, %v67, 0
  %v176 = vsel %vm138, %v71, 0
  %v179 = vsel %vm138, %v75, 0
  %v182 = vsel %vm138, %v79, 0
  %v185 = vsel %vm138, %v83, 0
  %187 = vmatpush.msra.mxu0 %v99
  %188 = vmatpush.msra.mxu0 %v98
  %189 = vmatpush.msra.mxu0 %v97
  %190 = vmatpush.msra.mxu0 %v96
  %191 = vmatpush.msra.mxu0 %v95
  %192 = vmatpush.msra.mxu0 %v94
  %193 = vmatpush.msra.mxu0 %v93
  %194 = vmatpush.msra.mxu0 %v92
  %195 = vmatpush.msra.mxu0 %v91
  %196 = vmatpush.msra.mxu0 %v90
  %197 = vmatpush.msra.mxu0 %v89
  %198 = vmatpush.msra.mxu0 %v88
  %199 = vmatpush.msra.mxu0 %v87
  %200 = vmatpush.msra.mxu0 %v86
  %201 = vmatpush.msra.mxu0 %v85
  %202 = vmatpush.msra.mxu0 %v84
  %203 = vmatmul.f32.gmra.mxu0 %v20
  %v204 = vpop.f32.mrf.mxu0
  %v205 = vadd.f32 %v136, %v204
  %206 = vmatmul.f32.gmra.mxu0 %v24
  %v207 = vpop.f32.mrf.mxu0
  %v208 = vadd.f32 %v136, %v207
  %209 = vmatmul.f32.gmra.mxu0 %v28
  %v210 = vpop.f32.mrf.mxu0
  %v211 = vadd.f32 %v136, %v210
  %212 = vmatmul.f32.gmra.mxu0 %v32
  %v213 = vpop.f32.mrf.mxu0
  %v214 = vadd.f32 %v136, %v213
  %215 = vmatmul.f32.gmra.mxu0 %v36
  %v216 = vpop.f32.mrf.mxu0
  %v217 = vadd.f32 %v136, %v216
  %218 = vmatmul.f32.gmra.mxu0 %v40
  %v219 = vpop.f32.mrf.mxu0
  %v220 = vadd.f32 %v136, %v219
  %221 = vmatmul.f32.gmra.mxu0 %v44
  %v222 = vpop.f32.mrf.mxu0
  %v223 = vadd.f32 %v136, %v222
  %224 = vmatmul.f32.gmra.mxu0 %v48
  %v225 = vpop.f32.mrf.mxu0
  %v226 = vadd.f32 %v136, %v225
  %227 = vmatmul.f32.gmra.mxu0 %v52
  %v228 = vpop.f32.mrf.mxu0
  %v229 = vadd.f32 %v136, %v228
  %230 = vmatmul.f32.gmra.mxu0 %v56
  %v231 = vpop.f32.mrf.mxu0
  %v232 = vadd.f32 %v136, %v231
  %233 = vmatmul.f32.gmra.mxu0 %v60
  %v234 = vpop.f32.mrf.mxu0
  %v235 = vadd.f32 %v136, %v234
  %236 = vmatmul.f32.gmra.mxu0 %v64
  %v237 = vpop.f32.mrf.mxu0
  %v238 = vadd.f32 %v136, %v237
  %239 = vmatmul.f32.gmra.mxu0 %v68
  %v240 = vpop.f32.mrf.mxu0
  %v241 = vadd.f32 %v136, %v240
  %242 = vmatmul.f32.gmra.mxu0 %v72
  %v243 = vpop.f32.mrf.mxu0
  %v244 = vadd.f32 %v136, %v243
  %245 = vmatmul.f32.gmra.mxu0 %v76
  %v246 = vpop.f32.mrf.mxu0
  %v247 = vadd.f32 %v136, %v246
  %248 = vmatmul.f32.gmra.mxu0 %v80
  %v249 = vpop.f32.mrf.mxu0
  %v250 = vadd.f32 %v136, %v249
  %251 = vdwg.mxu0
  %252 = vmatpush.msra.mxu0 %v115
  %253 = vmatpush.msra.mxu0 %v114
  %254 = vmatpush.msra.mxu0 %v113
  %255 = vmatpush.msra.mxu0 %v112
  %256 = vmatpush.msra.mxu0 %v111
  %257 = vmatpush.msra.mxu0 %v110
  %258 = vmatpush.msra.mxu0 %v109
  %259 = vmatpush.msra.mxu0 %v108
  %260 = vmatpush.msra.mxu0 %v107
  %261 = vmatpush.msra.mxu0 %v106
  %262 = vmatpush.msra.mxu0 %v105
  %263 = vmatpush.msra.mxu0 %v104
  %264 = vmatpush.msra.mxu0 %v103
  %265 = vmatpush.msra.mxu0 %v102
  %266 = vmatpush.msra.mxu0 %v101
  %267 = vmatpush.msra.mxu0 %v100
  %268 = vmatmul.f32.gmra.mxu0 %v21
  %v269 = vpop.f32.mrf.mxu0
  %v270 = vadd.f32 %v205, %v269
  %271 = vmatmul.f32.gmra.mxu0 %v25
  %v272 = vpop.f32.mrf.mxu0
  %v273 = vadd.f32 %v208, %v272
  %274 = vmatmul.f32.gmra.mxu0 %v29
  %v275 = vpop.f32.mrf.mxu0
  %v276 = vadd.f32 %v211, %v275
  %277 = vmatmul.f32.gmra.mxu0 %v33
  %v278 = vpop.f32.mrf.mxu0
  %v279 = vadd.f32 %v214, %v278
  %280 = vmatmul.f32.gmra.mxu0 %v37
  %v281 = vpop.f32.mrf.mxu0
  %v282 = vadd.f32 %v217, %v281
  %283 = vmatmul.f32.gmra.mxu0 %v41
  %v284 = vpop.f32.mrf.mxu0
  %v285 = vadd.f32 %v220, %v284
  %286 = vmatmul.f32.gmra.mxu0 %v45
  %v287 = vpop.f32.mrf.mxu0
  %v288 = vadd.f32 %v223, %v287
  %289 = vmatmul.f32.gmra.mxu0 %v49
  %v290 = vpop.f32.mrf.mxu0
  %v291 = vadd.f32 %v226, %v290
  %292 = vmatmul.f32.gmra.mxu0 %v53
  %v293 = vpop.f32.mrf.mxu0
  %v294 = vadd.f32 %v229, %v293
  %295 = vmatmul.f32.gmra.mxu0 %v57
  %v296 = vpop.f32.mrf.mxu0
  %v297 = vadd.f32 %v232, %v296
  %298 = vmatmul.f32.gmra.mxu0 %v61
  %v299 = vpop.f32.mrf.mxu0
  %v300 = vadd.f32 %v235, %v299
  %301 = vmatmul.f32.gmra.mxu0 %v65
  %v302 = vpop.f32.mrf.mxu0
  %v303 = vadd.f32 %v238, %v302
  %304 = vmatmul.f32.gmra.mxu0 %v69
  %v305 = vpop.f32.mrf.mxu0
  %v306 = vadd.f32 %v241, %v305
  %307 = vmatmul.f32.gmra.mxu0 %v73
  %v308 = vpop.f32.mrf.mxu0
  %v309 = vadd.f32 %v244, %v308
  %310 = vmatmul.f32.gmra.mxu0 %v77
  %v311 = vpop.f32.mrf.mxu0
  %v312 = vadd.f32 %v247, %v311
  %313 = vmatmul.f32.gmra.mxu0 %v81
  %v314 = vpop.f32.mrf.mxu0
  %v315 = vadd.f32 %v250, %v314
  %316 = vdwg.mxu0
  %317 = vmatpush.msra.mxu0 %v131
  %318 = vmatpush.msra.mxu0 %v130
  %319 = vmatpush.msra.mxu0 %v129
  %320 = vmatpush.msra.mxu0 %v128
  %321 = vmatpush.msra.mxu0 %v127
  %322 = vmatpush.msra.mxu0 %v126
  %323 = vmatpush.msra.mxu0 %v125
  %324 = vmatpush.msra.mxu0 %v124
  %325 = vmatpush.msra.mxu0 %v123
  %326 = vmatpush.msra.mxu0 %v122
  %327 = vmatpush.msra.mxu0 %v121
  %328 = vmatpush.msra.mxu0 %v120
  %329 = vmatpush.msra.mxu0 %v119
  %330 = vmatpush.msra.mxu0 %v118
  %331 = vmatpush.msra.mxu0 %v117
  %332 = vmatpush.msra.mxu0 %v116
  %333 = vmatmul.f32.gmra.mxu0 %v22
  %v334 = vpop.f32.mrf.mxu0
  %v335 = vadd.f32 %v270, %v334
  %336 = vmatmul.f32.gmra.mxu0 %v26
  %v337 = vpop.f32.mrf.mxu0
  %v338 = vadd.f32 %v273, %v337
  %339 = vmatmul.f32.gmra.mxu0 %v30
  %v340 = vpop.f32.mrf.mxu0
  %v341 = vadd.f32 %v276, %v340
  %342 = vmatmul.f32.gmra.mxu0 %v34
  %v343 = vpop.f32.mrf.mxu0
  %v344 = vadd.f32 %v279, %v343
  %345 = vmatmul.f32.gmra.mxu0 %v38
  %v346 = vpop.f32.mrf.mxu0
  %v347 = vadd.f32 %v282, %v346
  %348 = vmatmul.f32.gmra.mxu0 %v42
  %v349 = vpop.f32.mrf.mxu0
  %v350 = vadd.f32 %v285, %v349
  %351 = vmatmul.f32.gmra.mxu0 %v46
  %v352 = vpop.f32.mrf.mxu0
  %v353 = vadd.f32 %v288, %v352
  %354 = vmatmul.f32.gmra.mxu0 %v50
  %v355 = vpop.f32.mrf.mxu0
  %v356 = vadd.f32 %v291, %v355
  %357 = vmatmul.f32.gmra.mxu0 %v54
  %v358 = vpop.f32.mrf.mxu0
  %v359 = vadd.f32 %v294, %v358
  %360 = vmatmul.f32.gmra.mxu0 %v58
  %v361 = vpop.f32.mrf.mxu0
  %v362 = vadd.f32 %v297, %v361
  %363 = vmatmul.f32.gmra.mxu0 %v62
  %v364 = vpop.f32.mrf.mxu0
  %v365 = vadd.f32 %v300, %v364
  %366 = vmatmul.f32.gmra.mxu0 %v66
  %v367 = vpop.f32.mrf.mxu0
  %v368 = vadd.f32 %v303, %v367
  %369 = vmatmul.f32.gmra.mxu0 %v70
  %v370 = vpop.f32.mrf.mxu0
  %v371 = vadd.f32 %v306, %v370
  %372 = vmatmul.f32.gmra.mxu0 %v74
  %v373 = vpop.f32.mrf.mxu0
  %v374 = vadd.f32 %v309, %v373
  %375 = vmatmul.f32.gmra.mxu0 %v78
  %v376 = vpop.f32.mrf.mxu0
  %v377 = vadd.f32 %v312, %v376
  %378 = vmatmul.f32.gmra.mxu0 %v82
  %v379 = vpop.f32.mrf.mxu0
  %v380 = vadd.f32 %v315, %v379
  %381 = vdwg.mxu0
  %382 = vmatpush.msra.mxu0 0.0
  %383 = vmatpush.msra.mxu0 0.0
  %384 = vmatpush.msra.mxu0 0.0
  %385 = vmatpush.msra.mxu0 0.0
  %386 = vmatpush.msra.mxu0 0.0
  %387 = vmatpush.msra.mxu0 0.0
  %388 = vmatpush.msra.mxu0 0.0
  %389 = vmatpush.msra.mxu0 0.0
  %390 = vmatpush.msra.mxu0 0.0
  %391 = vmatpush.msra.mxu0 0.0
  %392 = vmatpush.msra.mxu0 0.0
  %393 = vmatpush.msra.mxu0 0.0
  %394 = vmatpush.msra.mxu0 0.0
  %395 = vmatpush.msra.mxu0 0.0
  %396 = vmatpush.msra.mxu0 %v133
  %397 = vmatpush.msra.mxu0 %v132
  %398 = vmatmul.f32.gmra.mxu0 %v140
  %v399 = vpop.f32.mrf.mxu0
  %v400 = vadd.f32 %v335, %v399
  %401 = vmatmul.f32.gmra.mxu0 %v143
  %v402 = vpop.f32.mrf.mxu0
  %v403 = vadd.f32 %v338, %v402
  %404 = vmatmul.f32.gmra.mxu0 %v146
  %v405 = vpop.f32.mrf.mxu0
  %v406 = vadd.f32 %v341, %v405
  %407 = vmatmul.f32.gmra.mxu0 %v149
  %v408 = vpop.f32.mrf.mxu0
  %v409 = vadd.f32 %v344, %v408
  %410 = vmatmul.f32.gmra.mxu0 %v152
  %v411 = vpop.f32.mrf.mxu0
  %v412 = vadd.f32 %v347, %v411
  %413 = vmatmul.f32.gmra.mxu0 %v155
  %v414 = vpop.f32.mrf.mxu0
  %v415 = vadd.f32 %v350, %v414
  %416 = vmatmul.f32.gmra.mxu0 %v158
  %v417 = vpop.f32.mrf.mxu0
  %v418 = vadd.f32 %v353, %v417
  %419 = vmatmul.f32.gmra.mxu0 %v161
  %v420 = vpop.f32.mrf.mxu0
  %v421 = vadd.f32 %v356, %v420
  %422 = vmatmul.f32.gmra.mxu0 %v164
  %v423 = vpop.f32.mrf.mxu0
  %v424 = vadd.f32 %v359, %v423
  %425 = vmatmul.f32.gmra.mxu0 %v167
  %v426 = vpop.f32.mrf.mxu0
  %v427 = vadd.f32 %v362, %v426
  %428 = vmatmul.f32.gmra.mxu0 %v170
  %v429 = vpop.f32.mrf.mxu0
  %v430 = vadd.f32 %v365, %v429
  %431 = vmatmul.f32.gmra.mxu0 %v173
  %v432 = vpop.f32.mrf.mxu0
  %v433 = vadd.f32 %v368, %v432
  %434 = vmatmul.f32.gmra.mxu0 %v176
  %v435 = vpop.f32.mrf.mxu0
  %v436 = vadd.f32 %v371, %v435
  %437 = vmatmul.f32.gmra.mxu0 %v179
  %v438 = vpop.f32.mrf.mxu0
  %v439 = vadd.f32 %v374, %v438
  %440 = vmatmul.f32.gmra.mxu0 %v182
  %v441 = vpop.f32.mrf.mxu0
  %v442 = vadd.f32 %v377, %v441
  %443 = vmatmul.f32.gmra.mxu0 %v185
  %v444 = vpop.f32.mrf.mxu0
  %v445 = vadd.f32 %v380, %v444
  %446 = vdwg.mxu0
  %v447 = vmax.f32 %v400, 0.0
  %v448 = vmax.f32 %v403, 0.0
  %v449 = vmax.f32 %v406, 0.0
  %v450 = vmax.f32 %v409, 0.0
  %v451 = vmax.f32 %v412, 0.0
  %v452 = vmax.f32 %v415, 0.0
  %v453 = vmax.f32 %v418, 0.0
  %v454 = vmax.f32 %v421, 0.0
  %v455 = vmax.f32 %v424, 0.0
  %v456 = vmax.f32 %v427, 0.0
  %v457 = vmax.f32 %v430, 0.0
  %v458 = vmax.f32 %v433, 0.0
  %v459 = vmax.f32 %v436, 0.0
  %v460 = vmax.f32 %v439, 0.0
  %v461 = vmax.f32 %v442, 0.0
  %v462 = vmax.f32 %v445, 0.0
  %v463 = vmax.f32 %v447, %v451
  %v464 = vmax.f32 %v448, %v452
  %v465 = vmax.f32 %v449, %v453
  %v466 = vmax.f32 %v450, %v454
  %v467 = vmax.f32 %v455, %v459
  %v468 = vmax.f32 %v456, %v460
  %v469 = vmax.f32 %v457, %v461
  %v470 = vmax.f32 %v458, %v462
  %v471 = vmax.f32 %v463, %v467
  %v472 = vmax.f32 %v464, %v468
  %v473 = vmax.f32 %v465, %v469
  %v474 = vmax.f32 %v466, %v470
  %v475 = vld [vmem:[%s3] sm:$0x1]
  %v476 = vld [vmem:[%s4] sm:$0x1]
  %vm477 = vcmask 261120
  %v478 = vsel %vm477, %v471, 0.0
  %v479 = vsel %vm477, %v472, 0.0
  %v480 = vadd.f32 %v478, %v479
  %v481 = vsel %vm477, %v473, 0.0
  %v482 = vadd.f32 %v480, %v481
  %v483 = vsel %vm477, %v474, 0.0
  %v484 = vadd.f32 %v482, %v483
  %v485 = vrot.slane %v484, 4
  %v486 = vadd.f32 %v484, %v485
  %v487 = vrot.slane %v486, 2
  %v488 = vadd.f32 %v486, %v487
  %v489 = vrot.slane %v488, 1
  %v490 = vadd.f32 %v488, %v489
  %v491 = vrcp.pop 32.0
  %v492 = vmul.f32 32.0, %v491
  %v493 = vsub.f32 1.0, %v492
  %v494 = vmul.f32 %v491, %v493
  %v495 = vadd.f32 %v491, %v494
  %vm496 = vweird.f32 %v491
  %v497 = vsel %vm496, %v491, %v495
  %v498 = vmul.f32 %v490, %v497
  %v499 = vsub.f32 %v471, %v498
  %v500 = vsub.f32 %v472, %v498
  %v501 = vsub.f32 %v473, %v498
  %v502 = vsub.f32 %v474, %v498
  %v503 = vmul.f32 %v499, %v499
  %v504 = vmul.f32 %v500, %v500
  %v505 = vmul.f32 %v501, %v501
  %v506 = vmul.f32 %v502, %v502
  %v507 = vsel %vm477, %v503, 0.0
  %v508 = vsel %vm477, %v504, 0.0
  %v509 = vadd.f32 %v507, %v508
  %v510 = vsel %vm477, %v505, 0.0
  %v511 = vadd.f32 %v509, %v510
  %v512 = vsel %vm477, %v506, 0.0
  %v513 = vadd.f32 %v511, %v512
  %v514 = vrot.slane %v513, 4
  %v515 = vadd.f32 %v513, %v514
  %v516 = vrot.slane %v515, 2
  %v517 = vadd.f32 %v515, %v516
  %v518 = vrot.slane %v517, 1
  %v519 = vadd.f32 %v517, %v518
  %v520 = vmul.f32 %v519, %v497
  %v521 = vadd.f32 %v520, 1e-05
  %v522 = vrsqrt.pop %v521
  %v523 = vmul.f32 %v522, %v521
  %v524 = vmul.f32 %v523, %v522
  %v525 = vmul.f32 0.5, %v524
  %v526 = vsub.f32 1.5, %v525
  %v527 = vmul.f32 %v522, %v526
  %vm528 = vweird.f32 %v521
  %vm529 = vweird.f32 %v522
  %vm530 = vmor %vm528, %vm529
  %v531 = vsel %vm530, %v522, %v527
  %v532 = vmul.f32 %v475, %v531
  %v533 = vmul.f32 %v498, %v532
  %v534 = vsub.f32 %v476, %v533
  %v536 = vperm.slane %v532, 0
  %v538 = vmul.f32 %v471, %v536
  %v539 = vmul.f32 %v472, %v536
  %v540 = vmul.f32 %v473, %v536
  %v541 = vmul.f32 %v474, %v536
  %v543 = vperm.slane %v534, 0
  %v545 = vadd.f32 %v538, %v543
  %v546 = vadd.f32 %v539, %v543
  %v547 = vadd.f32 %v540, %v543
  %v548 = vadd.f32 %v541, %v543
  %549 = vst.msk [vmem:[%s5] sm:$0xff] %vm477, %v545
  %550 = vst.msk [vmem:[%s5 + $0x8] sm:$0xff] %vm477, %v546
  %551 = vst.msk [vmem:[%s5 + $0x10] sm:$0xff] %vm477, %v547
  %552 = vst.msk [vmem:[%s5 + $0x18] sm:$0xff] %vm477, %v548
  // Predicated region
  $region22: #{forward.6} parent=0 // pred_check
    _
  $region23: #{forward.6} parent=0 // pred_check_branch
    %554 = sbr.rel (0) target = $region25
  $region24: #{forward.6} parent=0 // pred_region
    _
  $region25: #{forward.6} parent=0 // pred_fallthru
    _
  // Predicated region
  $region26: #{forward.6} parent=0 // pred_check
    _
  $region27: #{forward.6} parent=0 // pred_check_branch
    %556 = sbr.rel (0) target = $region29
  $region28: #{forward.6} parent=0 // pred_region
    _
  $region29: #{forward.6} parent=0 // pred_fallthru
    _

// kernel: forward.7
$region0: #{forward.7}
  #allocation0 [shape = 'u32[]', space=smem, size = 0x4, offset = 0x4, fixed_abs, tag = 'smem constant byte address 0x4 - core index']
  #allocation1 [shape = 'u32[72,128]{1,0:T(1,128)}', space=vmem, size = 0x9000, scoped, tag = 'internal scratch']
  %s0 = inlined_call_operand.vmem [shape: f32[2,512], index: 0, kind: input, shape index: {}]
  %s1 = inlined_call_operand.vmem [shape: f32[512,512], index: 1, kind: input, shape index: {}]
  %s2 = inlined_call_operand.vmem [shape: f32[1,512], index: 2, kind: input, shape index: {}]
  %s3 = inlined_call_operand.vmem [shape: f32[1,512], index: 3, kind: input, shape index: {}]
  %s4 = inlined_call_operand.vmem [shape: f32[1,512], index: 4, kind: input, shape index: {}]
  %s5 = inlined_call_operand.vmem [shape: f32[512,128], index: 5, kind: input, shape index: {}]
  %s6 = inlined_call_operand.vmem [shape: f32[1,128], index: 6, kind: input, shape index: {}]
  %s7 = inlined_call_operand.vmem [shape: f32[1,128], index: 7, kind: input, shape index: {}]
  %s8 = inlined_call_operand.vmem [shape: f32[1,128], index: 8, kind: input, shape index: {}]
  %s9 = inlined_call_operand.vmem [shape: f32[128,64], index: 9, kind: input, shape index: {}]
  %s10 = inlined_call_operand.vmem [shape: f32[1,64], index: 10, kind: input, shape index: {}]
  %s11 = inlined_call_operand.vmem [shape: f32[1,64], index: 11, kind: input, shape index: {}]
  %s12 = inlined_call_operand.vmem [shape: f32[1,64], index: 12, kind: input, shape index: {}]
  %s13 = inlined_call_operand.vmem [shape: f32[64,32], index: 13, kind: input, shape index: {}]
  %s14 = inlined_call_operand.vmem [shape: f32[1,32], index: 14, kind: input, shape index: {}]
  %s15 = inlined_call_operand.vmem [shape: f32[1,32], index: 15, kind: input, shape index: {}]
  %s16 = inlined_call_operand.vmem [shape: f32[1,32], index: 16, kind: input, shape index: {}]
  %s17 = inlined_call_operand.vmem [shape: f32[32,2], index: 17, kind: input, shape index: {}]
  %s18 = inlined_call_operand.vmem [shape: f32[1,2], index: 18, kind: input, shape index: {}]
  %s19 = inlined_call_operand.hbm [shape: f32[2,2], index: 19, kind: output, shape index: {}]
  %s20 = sld [smem:[#allocation0]]
  $region86: #{forward.7} parent=0
    _
  %s22 = ssub.s32 1, %s20
  %s23 = scalar_select 0, %s22, %s20
  $region1: #{forward.7} parent=0
    #allocation2 [shape = 'u8[1024]{0}', space=vmem, size = 0x400, scoped, tag = 'output window, operand 0, single buffered']
    #allocation3 [shape = 's32[1]{0}', space=sflag, size = 0x4, scoped, tag = 'scoped memory for forward.7']
    %24 = vsyncpa [#allocation3], 0
    // Predicated region
    $region2: #{forward.7} parent=1 // pred_check
      _
    $region3: #{forward.7} parent=1 // pred_check_branch
      %26 = sbr.rel (0) target = $region5
    $region4: #{forward.7} parent=1 // pred_region
      _
    $region5: #{forward.7} parent=1 // pred_fallthru
      _
    // Predicated region
    $region6: #{forward.7} parent=1 // pred_check
      _
    $region7: #{forward.7} parent=1 // pred_check_branch
      %28 = sbr.rel (0) target = $region9
    $region8: #{forward.7} parent=1 // pred_region
      _
    $region9: #{forward.7} parent=1 // pred_fallthru
      _
    // Predicated region
    $region10: #{forward.7} parent=1 // pred_check
      _
    $region11: #{forward.7} parent=1 // pred_check_branch
      %30 = sbr.rel (0) target = $region13
    $region12: #{forward.7} parent=1 // pred_region
      _
    $region13: #{forward.7} parent=1 // pred_fallthru
      _
    // Predicated region
    $region14: #{forward.7} parent=1 // pred_check
      _
    $region15: #{forward.7} parent=1 // pred_check_branch
      %32 = sbr.rel (0) target = $region17
    $region16: #{forward.7} parent=1 // pred_region
      _
    $region17: #{forward.7} parent=1 // pred_fallthru
      _
    // Predicated region
    $region18: #{forward.7} parent=1 // pred_check
      _
    $region19: #{forward.7} parent=1 // pred_check_branch
      %34 = sbr.rel (0) target = $region21
    $region20: #{forward.7} parent=1 // pred_region
      _
    $region21: #{forward.7} parent=1 // pred_fallthru
      _
    // Predicated region
    $region22: #{forward.7} parent=1 // pred_check
      _
    $region23: #{forward.7} parent=1 // pred_check_branch
      %36 = sbr.rel (0) target = $region25
    $region24: #{forward.7} parent=1 // pred_region
      _
    $region25: #{forward.7} parent=1 // pred_fallthru
      _
    // Predicated region
    $region26: #{forward.7} parent=1 // pred_check
      _
    $region27: #{forward.7} parent=1 // pred_check_branch
      %38 = sbr.rel (0) target = $region29
    $region28: #{forward.7} parent=1 // pred_region
      _
    $region29: #{forward.7} parent=1 // pred_fallthru
      _
    // Predicated region
    $region30: #{forward.7} parent=1 // pred_check
      _
    $region31: #{forward.7} parent=1 // pred_check_branch
      %40 = sbr.rel (0) target = $region33
    $region32: #{forward.7} parent=1 // pred_region
      _
    $region33: #{forward.7} parent=1 // pred_fallthru
      _
    // Predicated region
    $region34: #{forward.7} parent=1 // pred_check
      _
    $region35: #{forward.7} parent=1 // pred_check_branch
      %42 = sbr.rel (0) target = $region37
    $region36: #{forward.7} parent=1 // pred_region
      _
    $region37: #{forward.7} parent=1 // pred_fallthru
      _
    // Predicated region
    $region38: #{forward.7} parent=1 // pred_check
      _
    $region39: #{forward.7} parent=1 // pred_check_branch
      %44 = sbr.rel (0) target = $region41
    $region40: #{forward.7} parent=1 // pred_region
      _
    $region41: #{forward.7} parent=1 // pred_fallthru
      _
    // Predicated region
    $region42: #{forward.7} parent=1 // pred_check
      _
    $region43: #{forward.7} parent=1 // pred_check_branch
      %46 = sbr.rel (0) target = $region45
    $region44: #{forward.7} parent=1 // pred_region
      _
    $region45: #{forward.7} parent=1 // pred_fallthru
      _
    // Predicated region
    $region46: #{forward.7} parent=1 // pred_check
      _
    $region47: #{forward.7} parent=1 // pred_check_branch
      %48 = sbr.rel (0) target = $region49
    $region48: #{forward.7} parent=1 // pred_region
      _
    $region49: #{forward.7} parent=1 // pred_fallthru
      _
    // Predicated region
    $region50: #{forward.7} parent=1 // pred_check
      _
    $region51: #{forward.7} parent=1 // pred_check_branch
      %50 = sbr.rel (0) target = $region53
    $region52: #{forward.7} parent=1 // pred_region
      _
    $region53: #{forward.7} parent=1 // pred_fallthru
      _
    // Predicated region
    $region54: #{forward.7} parent=1 // pred_check
      _
    $region55: #{forward.7} parent=1 // pred_check_branch
      %52 = sbr.rel (0) target = $region57
    $region56: #{forward.7} parent=1 // pred_region
      _
    $region57: #{forward.7} parent=1 // pred_fallthru
      _
    // Predicated region
    $region58: #{forward.7} parent=1 // pred_check
      _
    $region59: #{forward.7} parent=1 // pred_check_branch
      %54 = sbr.rel (0) target = $region61
    $region60: #{forward.7} parent=1 // pred_region
      _
    $region61: #{forward.7} parent=1 // pred_fallthru
      _
    // Predicated region
    $region62: #{forward.7} parent=1 // pred_check
      _
    $region63: #{forward.7} parent=1 // pred_check_branch
      %56 = sbr.rel (0) target = $region65
    $region64: #{forward.7} parent=1 // pred_region
      _
    $region65: #{forward.7} parent=1 // pred_fallthru
      _
    // Predicated region
    $region66: #{forward.7} parent=1 // pred_check
      _
    $region67: #{forward.7} parent=1 // pred_check_branch
      %58 = sbr.rel (0) target = $region69
    $region68: #{forward.7} parent=1 // pred_region
      _
    $region69: #{forward.7} parent=1 // pred_fallthru
      _
    // Predicated region
    $region70: #{forward.7} parent=1 // pred_check
      _
    $region71: #{forward.7} parent=1 // pred_check_branch
      %60 = sbr.rel (0) target = $region73
    $region72: #{forward.7} parent=1 // pred_region
      _
    $region73: #{forward.7} parent=1 // pred_fallthru
      _
    // Predicated region
    $region74: #{forward.7} parent=1 // pred_check
      _
    $region75: #{forward.7} parent=1 // pred_check_branch
      %62 = sbr.rel (0) target = $region77
    $region76: #{forward.7} parent=1 // pred_region
      _
    $region77: #{forward.7} parent=1 // pred_fallthru
      _
    %v63 = vld [vmem:[%s0] sm:$0xff]
    %v64 = vld [vmem:[%s1] sm:$0xff]
    %v65 = vld [vmem:[%s1 + $0x8] sm:$0xff]
    %v66 = vld [vmem:[%s1 + $0x10] sm:$0xff]
    %v67 = vld [vmem:[%s1 + $0x18] sm:$0xff]
    %v68 = vld [vmem:[%s1 + $0x20] sm:$0xff]
    %v69 = vld [vmem:[%s1 + $0x28] sm:$0xff]
    %v70 = vld [vmem:[%s1 + $0x30] sm:$0xff]
    %v71 = vld [vmem:[%s1 + $0x38] sm:$0xff]
    %v72 = vld [vmem:[%s1 + $0x40] sm:$0xff]
    %v73 = vld [vmem:[%s1 + $0x48] sm:$0xff]
    %v74 = vld [vmem:[%s1 + $0x50] sm:$0xff]
    %v75 = vld [vmem:[%s1 + $0x58] sm:$0xff]
    %v76 = vld [vmem:[%s1 + $0x60] sm:$0xff]
    %v77 = vld [vmem:[%s1 + $0x68] sm:$0xff]
    %v78 = vld [vmem:[%s1 + $0x70] sm:$0xff]
    %v79 = vld [vmem:[%s1 + $0x78] sm:$0xff]
    %v80 = vld [vmem:[%s1 + $0x80] sm:$0xff]
    %v81 = vld [vmem:[%s1 + $0x88] sm:$0xff]
    %v82 = vld [vmem:[%s1 + $0x90] sm:$0xff]
    %v83 = vld [vmem:[%s1 + $0x98] sm:$0xff]
    %v84 = vld [vmem:[%s1 + $0xa0] sm:$0xff]
    %v85 = vld [vmem:[%s1 + $0xa8] sm:$0xff]
    %v86 = vld [vmem:[%s1 + $0xb0] sm:$0xff]
    %v87 = vld [vmem:[%s1 + $0xb8] sm:$0xff]
    %v88 = vld [vmem:[%s1 + $0xc0] sm:$0xff]
    %v89 = vld [vmem:[%s1 + $0xc8] sm:$0xff]
    %v90 = vld [vmem:[%s1 + $0xd0] sm:$0xff]
    %v91 = vld [vmem:[%s1 + $0xd8] sm:$0xff]
    %v92 = vld [vmem:[%s1 + $0xe0] sm:$0xff]
    %v93 = vld [vmem:[%s1 + $0xe8] sm:$0xff]
    %v94 = vld [vmem:[%s1 + $0xf0] sm:$0xff]
    %v95 = vld [vmem:[%s1 + $0xf8] sm:$0xff]
    %v96 = vld [vmem:[%s1 + $0x100] sm:$0xff]
    %v97 = vld [vmem:[%s1 + $0x108] sm:$0xff]
    %v98 = vld [vmem:[%s1 + $0x110] sm:$0xff]
    %v99 = vld [vmem:[%s1 + $0x118] sm:$0xff]
    %v100 = vld [vmem:[%s1 + $0x120] sm:$0xff]
    %v101 = vld [vmem:[%s1 + $0x128] sm:$0xff]
    %v102 = vld [vmem:[%s1 + $0x130] sm:$0xff]
    %v103 = vld [vmem:[%s1 + $0x138] sm:$0xff]
    %v104 = vld [vmem:[%s1 + $0x140] sm:$0xff]
    %v105 = vld [vmem:[%s1 + $0x148] sm:$0xff]
    %v106 = vld [vmem:[%s1 + $0x150] sm:$0xff]
    %v107 = vld [vmem:[%s1 + $0x158] sm:$0xff]
    %v108 = vld [vmem:[%s1 + $0x160] sm:$0xff]
    %v109 = vld [vmem:[%s1 + $0x168] sm:$0xff]
    %v110 = vld [vmem:[%s1 + $0x170] sm:$0xff]
    %v111 = vld [vmem:[%s1 + $0x178] sm:$0xff]
    %v112 = vld [vmem:[%s1 + $0x180] sm:$0xff]
    %v113 = vld [vmem:[%s1 + $0x188] sm:$0xff]
    %v114 = vld [vmem:[%s1 + $0x190] sm:$0xff]
    %v115 = vld [vmem:[%s1 + $0x198] sm:$0xff]
    %v116 = vld [vmem:[%s1 + $0x1a0] sm:$0xff]
    %v117 = vld [vmem:[%s1 + $0x1a8] sm:$0xff]
    %v118 = vld [vmem:[%s1 + $0x1b0] sm:$0xff]
    %v119 = vld [vmem:[%s1 + $0x1b8] sm:$0xff]
    %v120 = vld [vmem:[%s1 + $0x1c0] sm:$0xff]
    %v121 = vld [vmem:[%s1 + $0x1c8] sm:$0xff]
    %v122 = vld [vmem:[%s1 + $0x1d0] sm:$0xff]
    %v123 = vld [vmem:[%s1 + $0x1d8] sm:$0xff]
    %v124 = vld [vmem:[%s1 + $0x1e0] sm:$0xff]
    %v125 = vld [vmem:[%s1 + $0x1e8] sm:$0xff]
    %v126 = vld [vmem:[%s1 + $0x1f0] sm:$0xff]
    %v127 = vld [vmem:[%s1 + $0x1f8] sm:$0xff]
    %v128 = vld [vmem:[%s1 + $0x200] sm:$0xff]
    %v129 = vld [vmem:[%s1 + $0x208] sm:$0xff]
    %v130 = vld [vmem:[%s1 + $0x210] sm:$0xff]
    %v131 = vld [vmem:[%s1 + $0x218] sm:$0xff]
    %v132 = vld [vmem:[%s1 + $0x220] sm:$0xff]
    %v133 = vld [vmem:[%s1 + $0x228] sm:$0xff]
    %v134 = vld [vmem:[%s1 + $0x230] sm:$0xff]
    %v135 = vld [vmem:[%s1 + $0x238] sm:$0xff]
    %v136 = vld [vmem:[%s1 + $0x240] sm:$0xff]
    %v137 = vld [vmem:[%s1 + $0x248] sm:$0xff]
    %v138 = vld [vmem:[%s1 + $0x250] sm:$0xff]
    %v139 = vld [vmem:[%s1 + $0x258] sm:$0xff]
    %v140 = vld [vmem:[%s1 + $0x260] sm:$0xff]
    %v141 = vld [vmem:[%s1 + $0x268] sm:$0xff]
    %v142 = vld [vmem:[%s1 + $0x270] sm:$0xff]
    %v143 = vld [vmem:[%s1 + $0x278] sm:$0xff]
    %v144 = vld [vmem:[%s1 + $0x280] sm:$0xff]
    %v145 = vld [vmem:[%s1 + $0x288] sm:$0xff]
    %v146 = vld [vmem:[%s1 + $0x290] sm:$0xff]
    %v147 = vld [vmem:[%s1 + $0x298] sm:$0xff]
    %v148 = vld [vmem:[%s1 + $0x2a0] sm:$0xff]
    %v149 = vld [vmem:[%s1 + $0x2a8] sm:$0xff]
    %v150 = vld [vmem:[%s1 + $0x2b0] sm:$0xff]
    %v151 = vld [vmem:[%s1 + $0x2b8] sm:$0xff]
    %v152 = vld [vmem:[%s1 + $0x2c0] sm:$0xff]
    %v153 = vld [vmem:[%s1 + $0x2c8] sm:$0xff]
    %v154 = vld [vmem:[%s1 + $0x2d0] sm:$0xff]
    %v155 = vld [vmem:[%s1 + $0x2d8] sm:$0xff]
    %v156 = vld [vmem:[%s1 + $0x2e0] sm:$0xff]
    %v157 = vld [vmem:[%s1 + $0x2e8] sm:$0xff]
    %v158 = vld [vmem:[%s1 + $0x2f0] sm:$0xff]
    %v159 = vld [vmem:[%s1 + $0x2f8] sm:$0xff]
    %v160 = vld [vmem:[%s1 + $0x300] sm:$0xff]
    %v161 = vld [vmem:[%s1 + $0x308] sm:$0xff]
    %v162 = vld [vmem:[%s1 + $0x310] sm:$0xff]
    %v163 = vld [vmem:[%s1 + $0x318] sm:$0xff]
    %v164 = vld [vmem:[%s1 + $0x320] sm:$0xff]
    %v165 = vld [vmem:[%s1 + $0x328] sm:$0xff]
    %v166 = vld [vmem:[%s1 + $0x330] sm:$0xff]
    %v167 = vld [vmem:[%s1 + $0x338] sm:$0xff]
    %v168 = vld [vmem:[%s1 + $0x340] sm:$0xff]
    %v169 = vld [vmem:[%s1 + $0x348] sm:$0xff]
    %v170 = vld [vmem:[%s1 + $0x350] sm:$0xff]
    %v171 = vld [vmem:[%s1 + $0x358] sm:$0xff]
    %v172 = vld [vmem:[%s1 + $0x360] sm:$0xff]
    %v173 = vld [vmem:[%s1 + $0x368] sm:$0xff]
    %v174 = vld [vmem:[%s1 + $0x370] sm:$0xff]
    %v175 = vld [vmem:[%s1 + $0x378] sm:$0xff]
    %v176 = vld [vmem:[%s1 + $0x380] sm:$0xff]
    %v177 = vld [vmem:[%s1 + $0x388] sm:$0xff]
    %v178 = vld [vmem:[%s1 + $0x390] sm:$0xff]
    %v179 = vld [vmem:[%s1 + $0x398] sm:$0xff]
    %v180 = vld [vmem:[%s1 + $0x3a0] sm:$0xff]
    %v181 = vld [vmem:[%s1 + $0x3a8] sm:$0xff]
    %v182 = vld [vmem:[%s1 + $0x3b0] sm:$0xff]
    %v183 = vld [vmem:[%s1 + $0x3b8] sm:$0xff]
    %v184 = vld [vmem:[%s1 + $0x3c0] sm:$0xff]
    %v185 = vld [vmem:[%s1 + $0x3c8] sm:$0xff]
    %v186 = vld [vmem:[%s1 + $0x3d0] sm:$0xff]
    %v187 = vld [vmem:[%s1 + $0x3d8] sm:$0xff]
    %v188 = vld [vmem:[%s1 + $0x3e0] sm:$0xff]
    %v189 = vld [vmem:[%s1 + $0x3e8] sm:$0xff]
    %v190 = vld [vmem:[%s1 + $0x3f0] sm:$0xff]
    %v191 = vld [vmem:[%s1 + $0x3f8] sm:$0xff]
    %v192 = vld [vmem:[%s1 + $0x400] sm:$0xff]
    %v193 = vld [vmem:[%s1 + $0x408] sm:$0xff]
    %v194 = vld [vmem:[%s1 + $0x410] sm:$0xff]
    %v195 = vld [vmem:[%s1 + $0x418] sm:$0xff]
    %v196 = vld [vmem:[%s1 + $0x420] sm:$0xff]
    %v197 = vld [vmem:[%s1 + $0x428] sm:$0xff]
    %v198 = vld [vmem:[%s1 + $0x430] sm:$0xff]
    %v199 = vld [vmem:[%s1 + $0x438] sm:$0xff]
    %v200 = vld [vmem:[%s1 + $0x440] sm:$0xff]
    %v201 = vld [vmem:[%s1 + $0x448] sm:$0xff]
    %v202 = vld [vmem:[%s1 + $0x450] sm:$0xff]
    %v203 = vld [vmem:[%s1 + $0x458] sm:$0xff]
    %v204 = vld [vmem:[%s1 + $0x460] sm:$0xff]
    %v205 = vld [vmem:[%s1 + $0x468] sm:$0xff]
    %v206 = vld [vmem:[%s1 + $0x470] sm:$0xff]
    %v207 = vld [vmem:[%s1 + $0x478] sm:$0xff]
    %v208 = vld [vmem:[%s1 + $0x480] sm:$0xff]
    %v209 = vld [vmem:[%s1 + $0x488] sm:$0xff]
    %v210 = vld [vmem:[%s1 + $0x490] sm:$0xff]
    %v211 = vld [vmem:[%s1 + $0x498] sm:$0xff]
    %v212 = vld [vmem:[%s1 + $0x4a0] sm:$0xff]
    %v213 = vld [vmem:[%s1 + $0x4a8] sm:$0xff]
    %v214 = vld [vmem:[%s1 + $0x4b0] sm:$0xff]
    %v215 = vld [vmem:[%s1 + $0x4b8] sm:$0xff]
    %v216 = vld [vmem:[%s1 + $0x4c0] sm:$0xff]
    %v217 = vld [vmem:[%s1 + $0x4c8] sm:$0xff]
    %v218 = vld [vmem:[%s1 + $0x4d0] sm:$0xff]
    %v219 = vld [vmem:[%s1 + $0x4d8] sm:$0xff]
    %v220 = vld [vmem:[%s1 + $0x4e0] sm:$0xff]
    %v221 = vld [vmem:[%s1 + $0x4e8] sm:$0xff]
    %v222 = vld [vmem:[%s1 + $0x4f0] sm:$0xff]
    %v223 = vld [vmem:[%s1 + $0x4f8] sm:$0xff]
    %v224 = vld [vmem:[%s1 + $0x500] sm:$0xff]
    %v225 = vld [vmem:[%s1 + $0x508] sm:$0xff]
    %v226 = vld [vmem:[%s1 + $0x510] sm:$0xff]
    %v227 = vld [vmem:[%s1 + $0x518] sm:$0xff]
    %v228 = vld [vmem:[%s1 + $0x520] sm:$0xff]
    %v229 = vld [vmem:[%s1 + $0x528] sm:$0xff]
    %v230 = vld [vmem:[%s1 + $0x530] sm:$0xff]
    %v231 = vld [vmem:[%s1 + $0x538] sm:$0xff]
    %v232 = vld [vmem:[%s1 + $0x540] sm:$0xff]
    %v233 = vld [vmem:[%s1 + $0x548] sm:$0xff]
    %v234 = vld [vmem:[%s1 + $0x550] sm:$0xff]
    %v235 = vld [vmem:[%s1 + $0x558] sm:$0xff]
    %v236 = vld [vmem:[%s1 + $0x560] sm:$0xff]
    %v237 = vld [vmem:[%s1 + $0x568] sm:$0xff]
    %v238 = vld [vmem:[%s1 + $0x570] sm:$0xff]
    %v239 = vld [vmem:[%s1 + $0x578] sm:$0xff]
    %v240 = vld [vmem:[%s1 + $0x580] sm:$0xff]
    %v241 = vld [vmem:[%s1 + $0x588] sm:$0xff]
    %v242 = vld [vmem:[%s1 + $0x590] sm:$0xff]
    %v243 = vld [vmem:[%s1 + $0x598] sm:$0xff]
    %v244 = vld [vmem:[%s1 + $0x5a0] sm:$0xff]
    %v245 = vld [vmem:[%s1 + $0x5a8] sm:$0xff]
    %v246 = vld [vmem:[%s1 + $0x5b0] sm:$0xff]
    %v247 = vld [vmem:[%s1 + $0x5b8] sm:$0xff]
    %v248 = vld [vmem:[%s1 + $0x5c0] sm:$0xff]
    %v249 = vld [vmem:[%s1 + $0x5c8] sm:$0xff]
    %v250 = vld [vmem:[%s1 + $0x5d0] sm:$0xff]
    %v251 = vld [vmem:[%s1 + $0x5d8] sm:$0xff]
    %v252 = vld [vmem:[%s1 + $0x5e0] sm:$0xff]
    %v253 = vld [vmem:[%s1 + $0x5e8] sm:$0xff]
    %v254 = vld [vmem:[%s1 + $0x5f0] sm:$0xff]
    %v255 = vld [vmem:[%s1 + $0x5f8] sm:$0xff]
    %v256 = vld [vmem:[%s1 + $0x600] sm:$0xff]
    %v257 = vld [vmem:[%s1 + $0x608] sm:$0xff]
    %v258 = vld [vmem:[%s1 + $0x610] sm:$0xff]
    %v259 = vld [vmem:[%s1 + $0x618] sm:$0xff]
    %v260 = vld [vmem:[%s1 + $0x620] sm:$0xff]
    %v261 = vld [vmem:[%s1 + $0x628] sm:$0xff]
    %v262 = vld [vmem:[%s1 + $0x630] sm:$0xff]
    %v263 = vld [vmem:[%s1 + $0x638] sm:$0xff]
    %v264 = vld [vmem:[%s1 + $0x640] sm:$0xff]
    %v265 = vld [vmem:[%s1 + $0x648] sm:$0xff]
    %v266 = vld [vmem:[%s1 + $0x650] sm:$0xff]
    %v267 = vld [vmem:[%s1 + $0x658] sm:$0xff]
    %v268 = vld [vmem:[%s1 + $0x660] sm:$0xff]
    %v269 = vld [vmem:[%s1 + $0x668] sm:$0xff]
    %v270 = vld [vmem:[%s1 + $0x670] sm:$0xff]
    %v271 = vld [vmem:[%s1 + $0x678] sm:$0xff]
    %v272 = vld [vmem:[%s1 + $0x680] sm:$0xff]
    %v273 = vld [vmem:[%s1 + $0x688] sm:$0xff]
    %v274 = vld [vmem:[%s1 + $0x690] sm:$0xff]
    %v275 = vld [vmem:[%s1 + $0x698] sm:$0xff]
    %v276 = vld [vmem:[%s1 + $0x6a0] sm:$0xff]
    %v277 = vld [vmem:[%s1 + $0x6a8] sm:$0xff]
    %v278 = vld [vmem:[%s1 + $0x6b0] sm:$0xff]
    %v279 = vld [vmem:[%s1 + $0x6b8] sm:$0xff]
    %v280 = vld [vmem:[%s1 + $0x6c0] sm:$0xff]
    %v281 = vld [vmem:[%s1 + $0x6c8] sm:$0xff]
    %v282 = vld [vmem:[%s1 + $0x6d0] sm:$0xff]
    %v283 = vld [vmem:[%s1 + $0x6d8] sm:$0xff]
    %v284 = vld [vmem:[%s1 + $0x6e0] sm:$0xff]
    %v285 = vld [vmem:[%s1 + $0x6e8] sm:$0xff]
    %v286 = vld [vmem:[%s1 + $0x6f0] sm:$0xff]
    %v287 = vld [vmem:[%s1 + $0x6f8] sm:$0xff]
    %v288 = vld [vmem:[%s1 + $0x700] sm:$0xff]
    %v289 = vld [vmem:[%s1 + $0x708] sm:$0xff]
    %v290 = vld [vmem:[%s1 + $0x710] sm:$0xff]
    %v291 = vld [vmem:[%s1 + $0x718] sm:$0xff]
    %v292 = vld [vmem:[%s1 + $0x720] sm:$0xff]
    %v293 = vld [vmem:[%s1 + $0x728] sm:$0xff]
    %v294 = vld [vmem:[%s1 + $0x730] sm:$0xff]
    %v295 = vld [vmem:[%s1 + $0x738] sm:$0xff]
    %v296 = vld [vmem:[%s1 + $0x740] sm:$0xff]
    %v297 = vld [vmem:[%s1 + $0x748] sm:$0xff]
    %v298 = vld [vmem:[%s1 + $0x750] sm:$0xff]
    %v299 = vld [vmem:[%s1 + $0x758] sm:$0xff]
    %v300 = vld [vmem:[%s1 + $0x760] sm:$0xff]
    %v301 = vld [vmem:[%s1 + $0x768] sm:$0xff]
    %v302 = vld [vmem:[%s1 + $0x770] sm:$0xff]
    %v303 = vld [vmem:[%s1 + $0x778] sm:$0xff]
    %v304 = vld [vmem:[%s1 + $0x780] sm:$0xff]
    %v305 = vld [vmem:[%s1 + $0x788] sm:$0xff]
    %v306 = vld [vmem:[%s1 + $0x790] sm:$0xff]
    %v307 = vld [vmem:[%s1 + $0x798] sm:$0xff]
    %v308 = vld [vmem:[%s1 + $0x7a0] sm:$0xff]
    %v309 = vld [vmem:[%s1 + $0x7a8] sm:$0xff]
    %v310 = vld [vmem:[%s1 + $0x7b0] sm:$0xff]
    %v311 = vld [vmem:[%s1 + $0x7b8] sm:$0xff]
    %v312 = vld [vmem:[%s1 + $0x7c0] sm:$0xff]
    %v313 = vld [vmem:[%s1 + $0x7c8] sm:$0xff]
    %v314 = vld [vmem:[%s1 + $0x7d0] sm:$0xff]
    %v315 = vld [vmem:[%s1 + $0x7d8] sm:$0xff]
    %v316 = vld [vmem:[%s1 + $0x7e0] sm:$0xff]
    %v317 = vld [vmem:[%s1 + $0x7e8] sm:$0xff]
    %v318 = vld [vmem:[%s1 + $0x7f0] sm:$0xff]
    %v319 = vld [vmem:[%s1 + $0x7f8] sm:$0xff]
    %v320 = vld [vmem:[%s2] sm:$0xf]
    %v322 = vperm.slane %v320, 0
    %v323 = vperm.slane %v320, 1
    %v324 = vperm.slane %v320, 2
    %v325 = vperm.slane %v320, 3
    %331 = vst [vmem:[#allocation1] ss:$4 sm:$0xff] %v63
    %v332 = vld.sshfl [vmem:[#allocation1] sm:$0xff pattern:$0x73625140]
    %v333 = vld.sshfl [vmem:[#allocation1 + $0x8] sm:$0xff pattern:$0x73625140]
    %v334 = vld.sshfl [vmem:[#allocation1 + $0x10] sm:$0xff pattern:$0x73625140]
    %v335 = vld.sshfl [vmem:[#allocation1 + $0x18] sm:$0xff pattern:$0x73625140]
    %340 = vmatpush.msra.mxu0 %v124
    %341 = vmatpush.msra.mxu0 %v120
    %342 = vmatpush.msra.mxu0 %v116
    %343 = vmatpush.msra.mxu0 %v112
    %344 = vmatpush.msra.mxu0 %v108
    %345 = vmatpush.msra.mxu0 %v104
    %346 = vmatpush.msra.mxu0 %v100
    %347 = vmatpush.msra.mxu0 %v96
    %348 = vmatpush.msra.mxu0 %v92
    %349 = vmatpush.msra.mxu0 %v88
    %350 = vmatpush.msra.mxu0 %v84
    %351 = vmatpush.msra.mxu0 %v80
    %352 = vmatpush.msra.mxu0 %v76
    %353 = vmatpush.msra.mxu0 %v72
    %354 = vmatpush.msra.mxu0 %v68
    %355 = vmatpush.msra.mxu0 %v64
    %356 = vmatmul.f32.gmra.mxu0 %v332
    %v357 = vpop.f32.mrf.mxu0
    %v358 = vadd.f32 %v322, %v357
    %359 = vdwg.mxu0
    %360 = vmatpush.msra.mxu0 %v188
    %361 = vmatpush.msra.mxu0 %v184
    %362 = vmatpush.msra.mxu0 %v180
    %363 = vmatpush.msra.mxu0 %v176
    %364 = vmatpush.msra.mxu0 %v172
    %365 = vmatpush.msra.mxu0 %v168
    %366 = vmatpush.msra.mxu0 %v164
    %367 = vmatpush.msra.mxu0 %v160
    %368 = vmatpush.msra.mxu0 %v156
    %369 = vmatpush.msra.mxu0 %v152
    %370 = vmatpush.msra.mxu0 %v148
    %371 = vmatpush.msra.mxu0 %v144
    %372 = vmatpush.msra.mxu0 %v140
    %373 = vmatpush.msra.mxu0 %v136
    %374 = vmatpush.msra.mxu0 %v132
    %375 = vmatpush.msra.mxu0 %v128
    %376 = vmatmul.f32.gmra.mxu0 %v333
    %v377 = vpop.f32.mrf.mxu0
    %v378 = vadd.f32 %v358, %v377
    %379 = vdwg.mxu0
    %380 = vmatpush.msra.mxu0 %v252
    %381 = vmatpush.msra.mxu0 %v248
    %382 = vmatpush.msra.mxu0 %v244
    %383 = vmatpush.msra.mxu0 %v240
    %384 = vmatpush.msra.mxu0 %v236
    %385 = vmatpush.msra.mxu0 %v232
    %386 = vmatpush.msra.mxu0 %v228
    %387 = vmatpush.msra.mxu0 %v224
    %388 = vmatpush.msra.mxu0 %v220
    %389 = vmatpush.msra.mxu0 %v216
    %390 = vmatpush.msra.mxu0 %v212
    %391 = vmatpush.msra.mxu0 %v208
    %392 = vmatpush.msra.mxu0 %v204
    %393 = vmatpush.msra.mxu0 %v200
    %394 = vmatpush.msra.mxu0 %v196
    %395 = vmatpush.msra.mxu0 %v192
    %396 = vmatmul.f32.gmra.mxu0 %v334
    %v397 = vpop.f32.mrf.mxu0
    %v398 = vadd.f32 %v378, %v397
    %399 = vdwg.mxu0
    %400 = vmatpush.msra.mxu0 %v316
    %401 = vmatpush.msra.mxu0 %v312
    %402 = vmatpush.msra.mxu0 %v308
    %403 = vmatpush.msra.mxu0 %v304
    %404 = vmatpush.msra.mxu0 %v300
    %405 = vmatpush.msra.mxu0 %v296
    %406 = vmatpush.msra.mxu0 %v292
    %407 = vmatpush.msra.mxu0 %v288
    %408 = vmatpush.msra.mxu0 %v284
    %409 = vmatpush.msra.mxu0 %v280
    %410 = vmatpush.msra.mxu0 %v276
    %411 = vmatpush.msra.mxu0 %v272
    %412 = vmatpush.msra.mxu0 %v268
    %413 = vmatpush.msra.mxu0 %v264
    %414 = vmatpush.msra.mxu0 %v260
    %415 = vmatpush.msra.mxu0 %v256
    %416 = vmatmul.f32.gmra.mxu0 %v335
    %v417 = vpop.f32.mrf.mxu0
    %v418 = vadd.f32 %v398, %v417
    %419 = vdwg.mxu0
    %420 = vmatpush.msra.mxu0 %v125
    %421 = vmatpush.msra.mxu0 %v121
    %422 = vmatpush.msra.mxu0 %v117
    %423 = vmatpush.msra.mxu0 %v113
    %424 = vmatpush.msra.mxu0 %v109
    %425 = vmatpush.msra.mxu0 %v105
    %426 = vmatpush.msra.mxu0 %v101
    %427 = vmatpush.msra.mxu0 %v97
    %428 = vmatpush.msra.mxu0 %v93
    %429 = vmatpush.msra.mxu0 %v89
    %430 = vmatpush.msra.mxu0 %v85
    %431 = vmatpush.msra.mxu0 %v81
    %432 = vmatpush.msra.mxu0 %v77
    %433 = vmatpush.msra.mxu0 %v73
    %434 = vmatpush.msra.mxu0 %v69
    %435 = vmatpush.msra.mxu0 %v65
    %436 = vmatmul.f32.gmra.mxu0 %v332
    %v437 = vpop.f32.mrf.mxu0
    %v438 = vadd.f32 %v323, %v437
    %439 = vdwg.mxu0
    %440 = vmatpush.msra.mxu0 %v189
    %441 = vmatpush.msra.mxu0 %v185
    %442 = vmatpush.msra.mxu0 %v181
    %443 = vmatpush.msra.mxu0 %v177
    %444 = vmatpush.msra.mxu0 %v173
    %445 = vmatpush.msra.mxu0 %v169
    %446 = vmatpush.msra.mxu0 %v165
    %447 = vmatpush.msra.mxu0 %v161
    %448 = vmatpush.msra.mxu0 %v157
    %449 = vmatpush.msra.mxu0 %v153
    %450 = vmatpush.msra.mxu0 %v149
    %451 = vmatpush.msra.mxu0 %v145
    %452 = vmatpush.msra.mxu0 %v141
    %453 = vmatpush.msra.mxu0 %v137
    %454 = vmatpush.msra.mxu0 %v133
    %455 = vmatpush.msra.mxu0 %v129
    %456 = vmatmul.f32.gmra.mxu0 %v333
    %v457 = vpop.f32.mrf.mxu0
    %v458 = vadd.f32 %v438, %v457
    %459 = vdwg.mxu0
    %460 = vmatpush.msra.mxu0 %v253
    %461 = vmatpush.msra.mxu0 %v249
    %462 = vmatpush.msra.mxu0 %v245
    %463 = vmatpush.msra.mxu0 %v241
    %464 = vmatpush.msra.mxu0 %v237
    %465 = vmatpush.msra.mxu0 %v233
    %466 = vmatpush.msra.mxu0 %v229
    %467 = vmatpush.msra.mxu0 %v225
    %468 = vmatpush.msra.mxu0 %v221
    %469 = vmatpush.msra.mxu0 %v217
    %470 = vmatpush.msra.mxu0 %v213
    %471 = vmatpush.msra.mxu0 %v209
    %472 = vmatpush.msra.mxu0 %v205
    %473 = vmatpush.msra.mxu0 %v201
    %474 = vmatpush.msra.mxu0 %v197
    %475 = vmatpush.msra.mxu0 %v193
    %476 = vmatmul.f32.gmra.mxu0 %v334
    %v477 = vpop.f32.mrf.mxu0
    %v478 = vadd.f32 %v458, %v477
    %479 = vdwg.mxu0
    %480 = vmatpush.msra.mxu0 %v317
    %481 = vmatpush.msra.mxu0 %v313
    %482 = vmatpush.msra.mxu0 %v309
    %483 = vmatpush.msra.mxu0 %v305
    %484 = vmatpush.msra.mxu0 %v301
    %485 = vmatpush.msra.mxu0 %v297
    %486 = vmatpush.msra.mxu0 %v293
    %487 = vmatpush.msra.mxu0 %v289
    %488 = vmatpush.msra.mxu0 %v285
    %489 = vmatpush.msra.mxu0 %v281
    %490 = vmatpush.msra.mxu0 %v277
    %491 = vmatpush.msra.mxu0 %v273
    %492 = vmatpush.msra.mxu0 %v269
    %493 = vmatpush.msra.mxu0 %v265
    %494 = vmatpush.msra.mxu0 %v261
    %495 = vmatpush.msra.mxu0 %v257
    %496 = vmatmul.f32.gmra.mxu0 %v335
    %v497 = vpop.f32.mrf.mxu0
    %v498 = vadd.f32 %v478, %v497
    %499 = vdwg.mxu0
    %500 = vmatpush.msra.mxu0 %v126
    %501 = vmatpush.msra.mxu0 %v122
    %502 = vmatpush.msra.mxu0 %v118
    %503 = vmatpush.msra.mxu0 %v114
    %504 = vmatpush.msra.mxu0 %v110
    %505 = vmatpush.msra.mxu0 %v106
    %506 = vmatpush.msra.mxu0 %v102
    %507 = vmatpush.msra.mxu0 %v98
    %508 = vmatpush.msra.mxu0 %v94
    %509 = vmatpush.msra.mxu0 %v90
    %510 = vmatpush.msra.mxu0 %v86
    %511 = vmatpush.msra.mxu0 %v82
    %512 = vmatpush.msra.mxu0 %v78
    %513 = vmatpush.msra.mxu0 %v74
    %514 = vmatpush.msra.mxu0 %v70
    %515 = vmatpush.msra.mxu0 %v66
    %516 = vmatmul.f32.gmra.mxu0 %v332
    %v517 = vpop.f32.mrf.mxu0
    %v518 = vadd.f32 %v324, %v517
    %519 = vdwg.mxu0
    %520 = vmatpush.msra.mxu0 %v190
    %521 = vmatpush.msra.mxu0 %v186
    %522 = vmatpush.msra.mxu0 %v182
    %523 = vmatpush.msra.mxu0 %v178
    %524 = vmatpush.msra.mxu0 %v174
    %525 = vmatpush.msra.mxu0 %v170
    %526 = vmatpush.msra.mxu0 %v166
    %527 = vmatpush.msra.mxu0 %v162
    %528 = vmatpush.msra.mxu0 %v158
    %529 = vmatpush.msra.mxu0 %v154
    %530 = vmatpush.msra.mxu0 %v150
    %531 = vmatpush.msra.mxu0 %v146
    %532 = vmatpush.msra.mxu0 %v142
    %533 = vmatpush.msra.mxu0 %v138
    %534 = vmatpush.msra.mxu0 %v134
    %535 = vmatpush.msra.mxu0 %v130
    %536 = vmatmul.f32.gmra.mxu0 %v333
    %v537 = vpop.f32.mrf.mxu0
    %v538 = vadd.f32 %v518, %v537
    %539 = vdwg.mxu0
    %540 = vmatpush.msra.mxu0 %v254
    %541 = vmatpush.msra.mxu0 %v250
    %542 = vmatpush.msra.mxu0 %v246
    %543 = vmatpush.msra.mxu0 %v242
    %544 = vmatpush.msra.mxu0 %v238
    %545 = vmatpush.msra.mxu0 %v234
    %546 = vmatpush.msra.mxu0 %v230
    %547 = vmatpush.msra.mxu0 %v226
    %548 = vmatpush.msra.mxu0 %v222
    %549 = vmatpush.msra.mxu0 %v218
    %550 = vmatpush.msra.mxu0 %v214
    %551 = vmatpush.msra.mxu0 %v210
    %552 = vmatpush.msra.mxu0 %v206
    %553 = vmatpush.msra.mxu0 %v202
    %554 = vmatpush.msra.mxu0 %v198
    %555 = vmatpush.msra.mxu0 %v194
    %556 = vmatmul.f32.gmra.mxu0 %v334
    %v557 = vpop.f32.mrf.mxu0
    %v558 = vadd.f32 %v538, %v557
    %559 = vdwg.mxu0
    %560 = vmatpush.msra.mxu0 %v318
    %561 = vmatpush.msra.mxu0 %v314
    %562 = vmatpush.msra.mxu0 %v310
    %563 = vmatpush.msra.mxu0 %v306
    %564 = vmatpush.msra.mxu0 %v302
    %565 = vmatpush.msra.mxu0 %v298
    %566 = vmatpush.msra.mxu0 %v294
    %567 = vmatpush.msra.mxu0 %v290
    %568 = vmatpush.msra.mxu0 %v286
    %569 = vmatpush.msra.mxu0 %v282
    %570 = vmatpush.msra.mxu0 %v278
    %571 = vmatpush.msra.mxu0 %v274
    %572 = vmatpush.msra.mxu0 %v270
    %573 = vmatpush.msra.mxu0 %v266
    %574 = vmatpush.msra.mxu0 %v262
    %575 = vmatpush.msra.mxu0 %v258
    %576 = vmatmul.f32.gmra.mxu0 %v335
    %v577 = vpop.f32.mrf.mxu0
    %v578 = vadd.f32 %v558, %v577
    %579 = vdwg.mxu0
    %580 = vmatpush.msra.mxu0 %v127
    %581 = vmatpush.msra.mxu0 %v123
    %582 = vmatpush.msra.mxu0 %v119
    %583 = vmatpush.msra.mxu0 %v115
    %584 = vmatpush.msra.mxu0 %v111
    %585 = vmatpush.msra.mxu0 %v107
    %586 = vmatpush.msra.mxu0 %v103
    %587 = vmatpush.msra.mxu0 %v99
    %588 = vmatpush.msra.mxu0 %v95
    %589 = vmatpush.msra.mxu0 %v91
    %590 = vmatpush.msra.mxu0 %v87
    %591 = vmatpush.msra.mxu0 %v83
    %592 = vmatpush.msra.mxu0 %v79
    %593 = vmatpush.msra.mxu0 %v75
    %594 = vmatpush.msra.mxu0 %v71
    %595 = vmatpush.msra.mxu0 %v67
    %596 = vmatmul.f32.gmra.mxu0 %v332
    %v597 = vpop.f32.mrf.mxu0
    %v598 = vadd.f32 %v325, %v597
    %599 = vdwg.mxu0
    %600 = vmatpush.msra.mxu0 %v191
    %601 = vmatpush.msra.mxu0 %v187
    %602 = vmatpush.msra.mxu0 %v183
    %603 = vmatpush.msra.mxu0 %v179
    %604 = vmatpush.msra.mxu0 %v175
    %605 = vmatpush.msra.mxu0 %v171
    %606 = vmatpush.msra.mxu0 %v167
    %607 = vmatpush.msra.mxu0 %v163
    %608 = vmatpush.msra.mxu0 %v159
    %609 = vmatpush.msra.mxu0 %v155
    %610 = vmatpush.msra.mxu0 %v151
    %611 = vmatpush.msra.mxu0 %v147
    %612 = vmatpush.msra.mxu0 %v143
    %613 = vmatpush.msra.mxu0 %v139
    %614 = vmatpush.msra.mxu0 %v135
    %615 = vmatpush.msra.mxu0 %v131
    %616 = vmatmul.f32.gmra.mxu0 %v333
    %v617 = vpop.f32.mrf.mxu0
    %v618 = vadd.f32 %v598, %v617
    %619 = vdwg.mxu0
    %620 = vmatpush.msra.mxu0 %v255
    %621 = vmatpush.msra.mxu0 %v251
    %622 = vmatpush.msra.mxu0 %v247
    %623 = vmatpush.msra.mxu0 %v243
    %624 = vmatpush.msra.mxu0 %v239
    %625 = vmatpush.msra.mxu0 %v235
    %626 = vmatpush.msra.mxu0 %v231
    %627 = vmatpush.msra.mxu0 %v227
    %628 = vmatpush.msra.mxu0 %v223
    %629 = vmatpush.msra.mxu0 %v219
    %630 = vmatpush.msra.mxu0 %v215
    %631 = vmatpush.msra.mxu0 %v211
    %632 = vmatpush.msra.mxu0 %v207
    %633 = vmatpush.msra.mxu0 %v203
    %634 = vmatpush.msra.mxu0 %v199
    %635 = vmatpush.msra.mxu0 %v195
    %636 = vmatmul.f32.gmra.mxu0 %v334
    %v637 = vpop.f32.mrf.mxu0
    %v638 = vadd.f32 %v618, %v637
    %639 = vdwg.mxu0
    %640 = vmatpush.msra.mxu0 %v319
    %641 = vmatpush.msra.mxu0 %v315
    %642 = vmatpush.msra.mxu0 %v311
    %643 = vmatpush.msra.mxu0 %v307
    %644 = vmatpush.msra.mxu0 %v303
    %645 = vmatpush.msra.mxu0 %v299
    %646 = vmatpush.msra.mxu0 %v295
    %647 = vmatpush.msra.mxu0 %v291
    %648 = vmatpush.msra.mxu0 %v287
    %649 = vmatpush.msra.mxu0 %v283
    %650 = vmatpush.msra.mxu0 %v279
    %651 = vmatpush.msra.mxu0 %v275
    %652 = vmatpush.msra.mxu0 %v271
    %653 = vmatpush.msra.mxu0 %v267
    %654 = vmatpush.msra.mxu0 %v263
    %655 = vmatpush.msra.mxu0 %v259
    %656 = vmatmul.f32.gmra.mxu0 %v335
    %v657 = vpop.f32.mrf.mxu0
    %v658 = vadd.f32 %v638, %v657
    %659 = vdwg.mxu0
    %v660 = vmax.f32 %v418, 0.0
    %v661 = vmax.f32 %v498, 0.0
    %v662 = vmax.f32 %v578, 0.0
    %v663 = vmax.f32 %v658, 0.0
    %v664 = vld [vmem:[%s3] sm:$0xf]
    %v665 = vld [vmem:[%s4] sm:$0xf]
    %vm666 = vcmask 1041408
    %v667 = vsel %vm666, %v660, 0.0
    %v668 = vrot.slane %v667, 4
    %v669 = vadd.f32 %v667, %v668
    %v670 = vrot.slane %v669, 2
    %v671 = vadd.f32 %v669, %v670
    %v672 = vrot.slane %v671, 1
    %v673 = vadd.f32 %v671, %v672
    %v674 = vsel %vm666, %v661, 0.0
    %v675 = vrot.slane %v674, 4
    %v676 = vadd.f32 %v674, %v675
    %v677 = vrot.slane %v676, 2
    %v678 = vadd.f32 %v676, %v677
    %v679 = vrot.slane %v678, 1
    %v680 = vadd.f32 %v678, %v679
    %v681 = vsel %vm666, %v662, 0.0
    %v682 = vrot.slane %v681, 4
    %v683 = vadd.f32 %v681, %v682
    %v684 = vrot.slane %v683, 2
    %v685 = vadd.f32 %v683, %v684
    %v686 = vrot.slane %v685, 1
    %v687 = vadd.f32 %v685, %v686
    %v688 = vsel %vm666, %v663, 0.0
    %v689 = vrot.slane %v688, 4
    %v690 = vadd.f32 %v688, %v689
    %v691 = vrot.slane %v690, 2
    %v692 = vadd.f32 %v690, %v691
    %v693 = vrot.slane %v692, 1
    %v694 = vadd.f32 %v692, %v693
    %v695 = vrcp.pop 2.0
    %v696 = vmul.f32 2.0, %v695
    %v697 = vsub.f32 1.0, %v696
    %v698 = vmul.f32 %v695, %v697
    %v699 = vadd.f32 %v695, %v698
    %vm700 = vweird.f32 %v695
    %v701 = vsel %vm700, %v695, %v699
    %v702 = vmul.f32 %v673, %v701
    %v703 = vmul.f32 %v680, %v701
    %v704 = vmul.f32 %v687, %v701
    %v705 = vmul.f32 %v694, %v701
    %v706 = vsub.f32 %v660, %v702
    %v707 = vsub.f32 %v661, %v703
    %v708 = vsub.f32 %v662, %v704
    %v709 = vsub.f32 %v663, %v705
    %v710 = vmul.f32 %v706, %v706
    %v711 = vmul.f32 %v707, %v707
    %v712 = vmul.f32 %v708, %v708
    %v713 = vmul.f32 %v709, %v709
    %v714 = vsel %vm666, %v710, 0.0
    %v715 = vrot.slane %v714, 4
    %v716 = vadd.f32 %v714, %v715
    %v717 = vrot.slane %v716, 2
    %v718 = vadd.f32 %v716, %v717
    %v719 = vrot.slane %v718, 1
    %v720 = vadd.f32 %v718, %v719
    %v721 = vsel %vm666, %v711, 0.0
    %v722 = vrot.slane %v721, 4
    %v723 = vadd.f32 %v721, %v722
    %v724 = vrot.slane %v723, 2
    %v725 = vadd.f32 %v723, %v724
    %v726 = vrot.slane %v725, 1
    %v727 = vadd.f32 %v725, %v726
    %v728 = vsel %vm666, %v712, 0.0
    %v729 = vrot.slane %v728, 4
    %v730 = vadd.f32 %v728, %v729
    %v731 = vrot.slane %v730, 2
    %v732 = vadd.f32 %v730, %v731
    %v733 = vrot.slane %v732, 1
    %v734 = vadd.f32 %v732, %v733
    %v735 = vsel %vm666, %v713, 0.0
    %v736 = vrot.slane %v735, 4
    %v737 = vadd.f32 %v735, %v736
    %v738 = vrot.slane %v737, 2
    %v739 = vadd.f32 %v737, %v738
    %v740 = vrot.slane %v739, 1
    %v741 = vadd.f32 %v739, %v740
    %v742 = vmul.f32 %v720, %v701
    %v743 = vmul.f32 %v727, %v701
    %v744 = vmul.f32 %v734, %v701
    %v745 = vmul.f32 %v741, %v701
    %v746 = vadd.f32 %v742, 1e-05
    %v747 = vadd.f32 %v743, 1e-05
    %v748 = vadd.f32 %v744, 1e-05
    %v749 = vadd.f32 %v745, 1e-05
    %v750 = vrsqrt.pop %v746
    %v751 = vmul.f32 %v750, %v746
    %v752 = vmul.f32 %v751, %v750
    %v753 = vmul.f32 0.5, %v752
    %v754 = vsub.f32 1.5, %v753
    %v755 = vmul.f32 %v750, %v754
    %vm756 = vweird.f32 %v746
    %vm757 = vweird.f32 %v750
    %vm758 = vmor %vm756, %vm757
    %v759 = vsel %vm758, %v750, %v755
    %v760 = vrsqrt.pop %v747
    %v761 = vmul.f32 %v760, %v747
    %v762 = vmul.f32 %v761, %v760
    %v763 = vmul.f32 0.5, %v762
    %v764 = vsub.f32 1.5, %v763
    %v765 = vmul.f32 %v760, %v764
    %vm766 = vweird.f32 %v747
    %vm767 = vweird.f32 %v760
    %vm768 = vmor %vm766, %vm767
    %v769 = vsel %vm768, %v760, %v765
    %v770 = vrsqrt.pop %v748
    %v771 = vmul.f32 %v770, %v748
    %v772 = vmul.f32 %v771, %v770
    %v773 = vmul.f32 0.5, %v772
    %v774 = vsub.f32 1.5, %v773
    %v775 = vmul.f32 %v770, %v774
    %vm776 = vweird.f32 %v748
    %vm777 = vweird.f32 %v770
    %vm778 = vmor %vm776, %vm777
    %v779 = vsel %vm778, %v770, %v775
    %v780 = vrsqrt.pop %v749
    %v781 = vmul.f32 %v780, %v749
    %v782 = vmul.f32 %v781, %v780
    %v783 = vmul.f32 0.5, %v782
    %v784 = vsub.f32 1.5, %v783
    %v785 = vmul.f32 %v780, %v784
    %vm786 = vweird.f32 %v749
    %vm787 = vweird.f32 %v780
    %vm788 = vmor %vm786, %vm787
    %v789 = vsel %vm788, %v780, %v785
    %v794 = vrot.slane %v769, 7
    %v795 = vrot.slane %v779, 6
    %v796 = vrot.slane %v789, 5
    %vm797 = vcmask 1040384
    %v798 = vsel %vm797, %v759, %v794
    %vm799 = vcmask 1042434
    %v800 = vsel %vm799, %v795, %v796
    %v801 = vsel %vm666, %v798, %v800
    %v803 = vmul.f32 %v664, %v801
    %v805 = vperm.slane %v803, 0
    %v806 = vperm.slane %v803, 1
    %v807 = vperm.slane %v803, 2
    %v808 = vperm.slane %v803, 3
    %v813 = vmul.f32 %v702, %v805
    %v814 = vmul.f32 %v703, %v806
    %v815 = vmul.f32 %v704, %v807
    %v816 = vmul.f32 %v705, %v808
    %v821 = vrot.slane %v814, 7
    %v822 = vrot.slane %v815, 6
    %v823 = vrot.slane %v816, 5
    %v824 = vsel %vm797, %v813, %v821
    %v825 = vsel %vm799, %v822, %v823
    %v826 = vsel %vm666, %v824, %v825
    %v828 = vsub.f32 %v665, %v826
    %v829 = vmul.f32 %v660, %v805
    %v830 = vmul.f32 %v661, %v806
    %v831 = vmul.f32 %v662, %v807
    %v832 = vmul.f32 %v663, %v808
    %v834 = vperm.slane %v828, 0
    %v835 = vperm.slane %v828, 1
    %v836 = vperm.slane %v828, 2
    %v837 = vperm.slane %v828, 3
    %v842 = vadd.f32 %v829, %v834
    %v843 = vadd.f32 %v830, %v835
    %v844 = vadd.f32 %v831, %v836
    %v845 = vadd.f32 %v832, %v837
    %v846 = vld [vmem:[%s5] sm:$0xff]
    %v847 = vld [vmem:[%s5 + $0x8] sm:$0xff]
    %v848 = vld [vmem:[%s5 + $0x10] sm:$0xff]
    %v849 = vld [vmem:[%s5 + $0x18] sm:$0xff]
    %v850 = vld [vmem:[%s5 + $0x20] sm:$0xff]
    %v851 = vld [vmem:[%s5 + $0x28] sm:$0xff]
    %v852 = vld [vmem:[%s5 + $0x30] sm:$0xff]
    %v853 = vld [vmem:[%s5 + $0x38] sm:$0xff]
    %v854 = vld [vmem:[%s5 + $0x40] sm:$0xff]
    %v855 = vld [vmem:[%s5 + $0x48] sm:$0xff]
    %v856 = vld [vmem:[%s5 + $0x50] sm:$0xff]
    %v857 = vld [vmem:[%s5 + $0x58] sm:$0xff]
    %v858 = vld [vmem:[%s5 + $0x60] sm:$0xff]
    %v859 = vld [vmem:[%s5 + $0x68] sm:$0xff]
    %v860 = vld [vmem:[%s5 + $0x70] sm:$0xff]
    %v861 = vld [vmem:[%s5 + $0x78] sm:$0xff]
    %v862 = vld [vmem:[%s5 + $0x80] sm:$0xff]
    %v863 = vld [vmem:[%s5 + $0x88] sm:$0xff]
    %v864 = vld [vmem:[%s5 + $0x90] sm:$0xff]
    %v865 = vld [vmem:[%s5 + $0x98] sm:$0xff]
    %v866 = vld [vmem:[%s5 + $0xa0] sm:$0xff]
    %v867 = vld [vmem:[%s5 + $0xa8] sm:$0xff]
    %v868 = vld [vmem:[%s5 + $0xb0] sm:$0xff]
    %v869 = vld [vmem:[%s5 + $0xb8] sm:$0xff]
    %v870 = vld [vmem:[%s5 + $0xc0] sm:$0xff]
    %v871 = vld [vmem:[%s5 + $0xc8] sm:$0xff]
    %v872 = vld [vmem:[%s5 + $0xd0] sm:$0xff]
    %v873 = vld [vmem:[%s5 + $0xd8] sm:$0xff]
    %v874 = vld [vmem:[%s5 + $0xe0] sm:$0xff]
    %v875 = vld [vmem:[%s5 + $0xe8] sm:$0xff]
    %v876 = vld [vmem:[%s5 + $0xf0] sm:$0xff]
    %v877 = vld [vmem:[%s5 + $0xf8] sm:$0xff]
    %v878 = vld [vmem:[%s5 + $0x100] sm:$0xff]
    %v879 = vld [vmem:[%s5 + $0x108] sm:$0xff]
    %v880 = vld [vmem:[%s5 + $0x110] sm:$0xff]
    %v881 = vld [vmem:[%s5 + $0x118] sm:$0xff]
    %v882 = vld [vmem:[%s5 + $0x120] sm:$0xff]
    %v883 = vld [vmem:[%s5 + $0x128] sm:$0xff]
    %v884 = vld [vmem:[%s5 + $0x130] sm:$0xff]
    %v885 = vld [vmem:[%s5 + $0x138] sm:$0xff]
    %v886 = vld [vmem:[%s5 + $0x140] sm:$0xff]
    %v887 = vld [vmem:[%s5 + $0x148] sm:$0xff]
    %v888 = vld [vmem:[%s5 + $0x150] sm:$0xff]
    %v889 = vld [vmem:[%s5 + $0x158] sm:$0xff]
    %v890 = vld [vmem:[%s5 + $0x160] sm:$0xff]
    %v891 = vld [vmem:[%s5 + $0x168] sm:$0xff]
    %v892 = vld [vmem:[%s5 + $0x170] sm:$0xff]
    %v893 = vld [vmem:[%s5 + $0x178] sm:$0xff]
    %v894 = vld [vmem:[%s5 + $0x180] sm:$0xff]
    %v895 = vld [vmem:[%s5 + $0x188] sm:$0xff]
    %v896 = vld [vmem:[%s5 + $0x190] sm:$0xff]
    %v897 = vld [vmem:[%s5 + $0x198] sm:$0xff]
    %v898 = vld [vmem:[%s5 + $0x1a0] sm:$0xff]
    %v899 = vld [vmem:[%s5 + $0x1a8] sm:$0xff]
    %v900 = vld [vmem:[%s5 + $0x1b0] sm:$0xff]
    %v901 = vld [vmem:[%s5 + $0x1b8] sm:$0xff]
    %v902 = vld [vmem:[%s5 + $0x1c0] sm:$0xff]
    %v903 = vld [vmem:[%s5 + $0x1c8] sm:$0xff]
    %v904 = vld [vmem:[%s5 + $0x1d0] sm:$0xff]
    %v905 = vld [vmem:[%s5 + $0x1d8] sm:$0xff]
    %v906 = vld [vmem:[%s5 + $0x1e0] sm:$0xff]
    %v907 = vld [vmem:[%s5 + $0x1e8] sm:$0xff]
    %v908 = vld [vmem:[%s5 + $0x1f0] sm:$0xff]
    %v909 = vld [vmem:[%s5 + $0x1f8] sm:$0xff]
    %v910 = vld [vmem:[%s6] sm:$0x1]
    %v912 = vperm.slane %v910, 0
    %914 = vmatpush.msra.mxu0 %v861
    %915 = vmatpush.msra.mxu0 %v860
    %916 = vmatpush.msra.mxu0 %v859
    %917 = vmatpush.msra.mxu0 %v858
    %918 = vmatpush.msra.mxu0 %v857
    %919 = vmatpush.msra.mxu0 %v856
    %920 = vmatpush.msra.mxu0 %v855
    %921 = vmatpush.msra.mxu0 %v854
    %922 = vmatpush.msra.mxu0 %v853
    %923 = vmatpush.msra.mxu0 %v852
    %924 = vmatpush.msra.mxu0 %v851
    %925 = vmatpush.msra.mxu0 %v850
    %926 = vmatpush.msra.mxu0 %v849
    %927 = vmatpush.msra.mxu0 %v848
    %928 = vmatpush.msra.mxu0 %v847
    %929 = vmatpush.msra.mxu0 %v846
    %930 = vmatmul.f32.gmra.mxu0 %v842
    %v931 = vpop.f32.mrf.mxu0
    %v932 = vadd.f32 %v912, %v931
    %933 = vdwg.mxu0
    %934 = vmatpush.msra.mxu0 %v877
    %935 = vmatpush.msra.mxu0 %v876
    %936 = vmatpush.msra.mxu0 %v875
    %937 = vmatpush.msra.mxu0 %v874
    %938 = vmatpush.msra.mxu0 %v873
    %939 = vmatpush.msra.mxu0 %v872
    %940 = vmatpush.msra.mxu0 %v871
    %941 = vmatpush.msra.mxu0 %v870
    %942 = vmatpush.msra.mxu0 %v869
    %943 = vmatpush.msra.mxu0 %v868
    %944 = vmatpush.msra.mxu0 %v867
    %945 = vmatpush.msra.mxu0 %v866
    %946 = vmatpush.msra.mxu0 %v865
    %947 = vmatpush.msra.mxu0 %v864
    %948 = vmatpush.msra.mxu0 %v863
    %949 = vmatpush.msra.mxu0 %v862
    %950 = vmatmul.f32.gmra.mxu0 %v843
    %v951 = vpop.f32.mrf.mxu0
    %v952 = vadd.f32 %v932, %v951
    %953 = vdwg.mxu0
    %954 = vmatpush.msra.mxu0 %v893
    %955 = vmatpush.msra.mxu0 %v892
    %956 = vmatpush.msra.mxu0 %v891
    %957 = vmatpush.msra.mxu0 %v890
    %958 = vmatpush.msra.mxu0 %v889
    %959 = vmatpush.msra.mxu0 %v888
    %960 = vmatpush.msra.mxu0 %v887
    %961 = vmatpush.msra.mxu0 %v886
    %962 = vmatpush.msra.mxu0 %v885
    %963 = vmatpush.msra.mxu0 %v884
    %964 = vmatpush.msra.mxu0 %v883
    %965 = vmatpush.msra.mxu0 %v882
    %966 = vmatpush.msra.mxu0 %v881
    %967 = vmatpush.msra.mxu0 %v880
    %968 = vmatpush.msra.mxu0 %v879
    %969 = vmatpush.msra.mxu0 %v878
    %970 = vmatmul.f32.gmra.mxu0 %v844
    %v971 = vpop.f32.mrf.mxu0
    %v972 = vadd.f32 %v952, %v971
    %973 = vdwg.mxu0
    %974 = vmatpush.msra.mxu0 %v909
    %975 = vmatpush.msra.mxu0 %v908
    %976 = vmatpush.msra.mxu0 %v907
    %977 = vmatpush.msra.mxu0 %v906
    %978 = vmatpush.msra.mxu0 %v905
    %979 = vmatpush.msra.mxu0 %v904
    %980 = vmatpush.msra.mxu0 %v903
    %981 = vmatpush.msra.mxu0 %v902
    %982 = vmatpush.msra.mxu0 %v901
    %983 = vmatpush.msra.mxu0 %v900
    %984 = vmatpush.msra.mxu0 %v899
    %985 = vmatpush.msra.mxu0 %v898
    %986 = vmatpush.msra.mxu0 %v897
    %987 = vmatpush.msra.mxu0 %v896
    %988 = vmatpush.msra.mxu0 %v895
    %989 = vmatpush.msra.mxu0 %v894
    %990 = vmatmul.f32.gmra.mxu0 %v845
    %v991 = vpop.f32.mrf.mxu0
    %v992 = vadd.f32 %v972, %v991
    %993 = vdwg.mxu0
    %v994 = vmax.f32 %v992, 0.0
    %v995 = vld [vmem:[%s7] sm:$0x1]
    %v996 = vld [vmem:[%s8] sm:$0x1]
    %v997 = vsel %vm666, %v994, 0.0
    %v998 = vrot.slane %v997, 4
    %v999 = vadd.f32 %v997, %v998
    %v1000 = vrot.slane %v999, 2
    %v1001 = vadd.f32 %v999, %v1000
    %v1002 = vrot.slane %v1001, 1
    %v1003 = vadd.f32 %v1001, %v1002
    %v1004 = vmul.f32 %v1003, %v701
    %v1005 = vsub.f32 %v994, %v1004
    %v1006 = vmul.f32 %v1005, %v1005
    %v1007 = vsel %vm666, %v1006, 0.0
    %v1008 = vrot.slane %v1007, 4
    %v1009 = vadd.f32 %v1007, %v1008
    %v1010 = vrot.slane %v1009, 2
    %v1011 = vadd.f32 %v1009, %v1010
    %v1012 = vrot.slane %v1011, 1
    %v1013 = vadd.f32 %v1011, %v1012
    %v1014 = vmul.f32 %v1013, %v701
    %v1015 = vadd.f32 %v1014, 1e-05
    %v1016 = vrsqrt.pop %v1015
    %v1017 = vmul.f32 %v1016, %v1015
    %v1018 = vmul.f32 %v1017, %v1016
    %v1019 = vmul.f32 0.5, %v1018
    %v1020 = vsub.f32 1.5, %v1019
    %v1021 = vmul.f32 %v1016, %v1020
    %vm1022 = vweird.f32 %v1015
    %vm1023 = vweird.f32 %v1016
    %vm1024 = vmor %vm1022, %vm1023
    %v1025 = vsel %vm1024, %v1016, %v1021
    %v1026 = vmul.f32 %v995, %v1025
    %v1027 = vmul.f32 %v1004, %v1026
    %v1028 = vsub.f32 %v996, %v1027
    %v1030 = vperm.slane %v1026, 0
    %v1032 = vmul.f32 %v994, %v1030
    %v1034 = vperm.slane %v1028, 0
    %v1036 = vadd.f32 %v1032, %v1034
    %v1037 = vld [vmem:[%s9] sm:$0xff]
    %v1038 = vld [vmem:[%s9 + $0x8] sm:$0xff]
    %v1039 = vld [vmem:[%s9 + $0x10] sm:$0xff]
    %v1040 = vld [vmem:[%s9 + $0x18] sm:$0xff]
    %v1041 = vld [vmem:[%s9 + $0x20] sm:$0xff]
    %v1042 = vld [vmem:[%s9 + $0x28] sm:$0xff]
    %v1043 = vld [vmem:[%s9 + $0x30] sm:$0xff]
    %v1044 = vld [vmem:[%s9 + $0x38] sm:$0xff]
    %v1045 = vld [vmem:[%s9 + $0x40] sm:$0xff]
    %v1046 = vld [vmem:[%s9 + $0x48] sm:$0xff]
    %v1047 = vld [vmem:[%s9 + $0x50] sm:$0xff]
    %v1048 = vld [vmem:[%s9 + $0x58] sm:$0xff]
    %v1049 = vld [vmem:[%s9 + $0x60] sm:$0xff]
    %v1050 = vld [vmem:[%s9 + $0x68] sm:$0xff]
    %v1051 = vld [vmem:[%s9 + $0x70] sm:$0xff]
    %v1052 = vld [vmem:[%s9 + $0x78] sm:$0xff]
    %v1053 = vld [vmem:[%s10] sm:$0x1]
    %v1055 = vperm.slane %v1053, 0
    %1057 = vmatpush.msra.mxu0 %v1052
    %1058 = vmatpush.msra.mxu0 %v1051
    %1059 = vmatpush.msra.mxu0 %v1050
    %1060 = vmatpush.msra.mxu0 %v1049
    %1061 = vmatpush.msra.mxu0 %v1048
    %1062 = vmatpush.msra.mxu0 %v1047
    %1063 = vmatpush.msra.mxu0 %v1046
    %1064 = vmatpush.msra.mxu0 %v1045
    %1065 = vmatpush.msra.mxu0 %v1044
    %1066 = vmatpush.msra.mxu0 %v1043
    %1067 = vmatpush.msra.mxu0 %v1042
    %1068 = vmatpush.msra.mxu0 %v1041
    %1069 = vmatpush.msra.mxu0 %v1040
    %1070 = vmatpush.msra.mxu0 %v1039
    %1071 = vmatpush.msra.mxu0 %v1038
    %1072 = vmatpush.msra.mxu0 %v1037
    %1073 = vmatmul.f32.gmra.mxu0 %v1036
    %v1074 = vpop.f32.mrf.mxu0
    %v1075 = vadd.f32 %v1055, %v1074
    %1076 = vdwg.mxu0
    %v1077 = vmax.f32 %v1075, 0.0
    %v1078 = vld [vmem:[%s11] sm:$0x1]
    %v1079 = vld [vmem:[%s12] sm:$0x1]
    %vm1080 = vcmask 517120
    %v1081 = vsel %vm1080, %v1077, 0.0
    %v1082 = vrot.slane %v1081, 4
    %v1083 = vadd.f32 %v1081, %v1082
    %v1084 = vrot.slane %v1083, 2
    %v1085 = vadd.f32 %v1083, %v1084
    %v1086 = vrot.slane %v1085, 1
    %v1087 = vadd.f32 %v1085, %v1086
    %v1088 = vmul.f32 %v1087, %v701
    %v1089 = vsub.f32 %v1077, %v1088
    %v1090 = vmul.f32 %v1089, %v1089
    %v1091 = vsel %vm1080, %v1090, 0.0
    %v1092 = vrot.slane %v1091, 4
    %v1093 = vadd.f32 %v1091, %v1092
    %v1094 = vrot.slane %v1093, 2
    %v1095 = vadd.f32 %v1093, %v1094
    %v1096 = vrot.slane %v1095, 1
    %v1097 = vadd.f32 %v1095, %v1096
    %v1098 = vmul.f32 %v1097, %v701
    %v1099 = vadd.f32 %v1098, 1e-05
    %v1100 = vrsqrt.pop %v1099
    %v1101 = vmul.f32 %v1100, %v1099
    %v1102 = vmul.f32 %v1101, %v1100
    %v1103 = vmul.f32 0.5, %v1102
    %v1104 = vsub.f32 1.5, %v1103
    %v1105 = vmul.f32 %v1100, %v1104
    %vm1106 = vweird.f32 %v1099
    %vm1107 = vweird.f32 %v1100
    %vm1108 = vmor %vm1106, %vm1107
    %v1109 = vsel %vm1108, %v1100, %v1105
    %v1110 = vmul.f32 %v1078, %v1109
    %v1111 = vmul.f32 %v1088, %v1110
    %v1112 = vsub.f32 %v1079, %v1111
    %v1114 = vperm.slane %v1110, 0
    %v1116 = vmul.f32 %v1077, %v1114
    %v1118 = vperm.slane %v1112, 0
    %v1120 = vadd.f32 %v1116, %v1118
    %v1121 = vld [vmem:[%s13] sm:$0xff]
    %v1122 = vld [vmem:[%s13 + $0x8] sm:$0xff]
    %v1123 = vld [vmem:[%s13 + $0x10] sm:$0xff]
    %v1124 = vld [vmem:[%s13 + $0x18] sm:$0xff]
    %v1125 = vld [vmem:[%s13 + $0x20] sm:$0xff]
    %v1126 = vld [vmem:[%s13 + $0x28] sm:$0xff]
    %v1127 = vld [vmem:[%s13 + $0x30] sm:$0xff]
    %v1128 = vld [vmem:[%s13 + $0x38] sm:$0xff]
    %v1129 = vld [vmem:[%s14] sm:$0x1]
    %v1131 = vperm.slane %v1129, 0
    %vm1133 = vcmask 523264
    %v1135 = vsel %vm1133, %v1120, 0
    %1137 = vmatpush.msra.mxu0 0.0
    %1138 = vmatpush.msra.mxu0 0.0
    %1139 = vmatpush.msra.mxu0 0.0
    %1140 = vmatpush.msra.mxu0 0.0
    %1141 = vmatpush.msra.mxu0 0.0
    %1142 = vmatpush.msra.mxu0 0.0
    %1143 = vmatpush.msra.mxu0 0.0
    %1144 = vmatpush.msra.mxu0 0.0
    %1145 = vmatpush.msra.mxu0 %v1128
    %1146 = vmatpush.msra.mxu0 %v1127
    %1147 = vmatpush.msra.mxu0 %v1126
    %1148 = vmatpush.msra.mxu0 %v1125
    %1149 = vmatpush.msra.mxu0 %v1124
    %1150 = vmatpush.msra.mxu0 %v1123
    %1151 = vmatpush.msra.mxu0 %v1122
    %1152 = vmatpush.msra.mxu0 %v1121
    %1153 = vmatmul.f32.gmra.mxu0 %v1135
    %v1154 = vpop.f32.mrf.mxu0
    %v1155 = vadd.f32 %v1131, %v1154
    %1156 = vdwg.mxu0
    %v1157 = vmax.f32 %v1155, 0.0
    %v1158 = vld [vmem:[%s15] sm:$0x1]
    %v1159 = vld [vmem:[%s16] sm:$0x1]
    %vm1160 = vcmask 254976
    %v1161 = vsel %vm1160, %v1157, 0.0
    %v1162 = vrot.slane %v1161, 4
    %v1163 = vadd.f32 %v1161, %v1162
    %v1164 = vrot.slane %v1163, 2
    %v1165 = vadd.f32 %v1163, %v1164
    %v1166 = vrot.slane %v1165, 1
    %v1167 = vadd.f32 %v1165, %v1166
    %v1168 = vmul.f32 %v1167, %v701
    %v1169 = vsub.f32 %v1157, %v1168
    %v1170 = vmul.f32 %v1169, %v1169
    %v1171 = vsel %vm1160, %v1170, 0.0
    %v1172 = vrot.slane %v1171, 4
    %v1173 = vadd.f32 %v1171, %v1172
    %v1174 = vrot.slane %v1173, 2
    %v1175 = vadd.f32 %v1173, %v1174
    %v1176 = vrot.slane %v1175, 1
    %v1177 = vadd.f32 %v1175, %v1176
    %v1178 = vmul.f32 %v1177, %v701
    %v1179 = vadd.f32 %v1178, 1e-05
    %v1180 = vrsqrt.pop %v1179
    %v1181 = vmul.f32 %v1180, %v1179
    %v1182 = vmul.f32 %v1181, %v1180
    %v1183 = vmul.f32 0.5, %v1182
    %v1184 = vsub.f32 1.5, %v1183
    %v1185 = vmul.f32 %v1180, %v1184
    %vm1186 = vweird.f32 %v1179
    %vm1187 = vweird.f32 %v1180
    %vm1188 = vmor %vm1186, %vm1187
    %v1189 = vsel %vm1188, %v1180, %v1185
    %v1190 = vmul.f32 %v1158, %v1189
    %v1191 = vmul.f32 %v1168, %v1190
    %v1192 = vsub.f32 %v1159, %v1191
    %v1194 = vperm.slane %v1190, 0
    %v1196 = vmul.f32 %v1157, %v1194
    %v1198 = vperm.slane %v1192, 0
    %v1200 = vadd.f32 %v1196, %v1198
    %v1201 = vld [vmem:[%s17] sm:$0xff]
    %v1202 = vld [vmem:[%s17 + $0x8] sm:$0xff]
    %v1203 = vld [vmem:[%s17 + $0x10] sm:$0xff]
    %v1204 = vld [vmem:[%s17 + $0x18] sm:$0xff]
    %v1205 = vld [vmem:[%s18] sm:$0x1]
    %v1207 = vperm.slane %v1205, 0
    %vm1209 = vcmask 261120
    %v1211 = vsel %vm1209, %v1200, 0
    %1213 = vmatpush.msra.mxu0 0.0
    %1214 = vmatpush.msra.mxu0 0.0
    %1215 = vmatpush.msra.mxu0 0.0
    %1216 = vmatpush.msra.mxu0 0.0
    %1217 = vmatpush.msra.mxu0 0.0
    %1218 = vmatpush.msra.mxu0 0.0
    %1219 = vmatpush.msra.mxu0 0.0
    %1220 = vmatpush.msra.mxu0 0.0
    %1221 = vmatpush.msra.mxu0 0.0
    %1222 = vmatpush.msra.mxu0 0.0
    %1223 = vmatpush.msra.mxu0 0.0
    %1224 = vmatpush.msra.mxu0 0.0
    %1225 = vmatpush.msra.mxu0 %v1204
    %1226 = vmatpush.msra.mxu0 %v1203
    %1227 = vmatpush.msra.mxu0 %v1202
    %1228 = vmatpush.msra.mxu0 %v1201
    %1229 = vmatmul.f32.gmra.mxu0 %v1211
    %v1230 = vpop.f32.mrf.mxu0
    %v1231 = vadd.f32 %v1207, %v1230
    %1232 = vdwg.mxu0
    %vm1233 = vcmask 9216
    %1234 = vst.msk [vmem:[#allocation2] sm:$0x3] %vm1233, %v1231
    // Predicated region
    $region78: #{forward.7} parent=1 // pred_check
      _
    $region79: #{forward.7} parent=1 // pred_check_branch
      %1236 = sbr.rel (0) target = $region81
    $region80: #{forward.7} parent=1 // pred_region
      %1238 = vsyncadd [#allocation3], 0
      %s1240 = sshll.u32 [#allocation2], 4
      %s1241 = int_to_ptr.vmem [resolvable:$true] %s1240
      %s1242 = sshll.u32 %s19, 4
      %s1243 = int_to_ptr.hbm [resolvable:$true] %s1242
      %1245 = dma.vmem_to_hbm [thread:$0]  %s1241, 32, %s1243, [#allocation3]
    $region81: #{forward.7} parent=1 // pred_fallthru
      _
    // Predicated region
    $region82: #{forward.7} parent=1 // pred_check
      _
    $region83: #{forward.7} parent=1 // pred_check_branch
      %1247 = sbr.rel (0) target = $region85
    $region84: #{forward.7} parent=1 // pred_region
      %1249 = dma.done [#allocation3], 32
    $region85: #{forward.7} parent=1 // pred_fallthru
      _
    %1250 = vsyncpa [#allocation3], 1

</llo_original>
